<compile_context>
chip_gen: v5e
topology: v5e:2x2
jax: 0.10.0
libtpu: 0.0.40
codegen_flags: <defaults>
</compile_context>

<pallas_src>
import math

import jax
import jax.numpy as jnp
from jax import lax
from jax.experimental import pallas as pl
from jax.experimental.pallas import tpu as pltpu

EPS_IN = 1e-3                               # nn.InstanceNorm2d(eps=0.001)
BN_SCALE = 1.0 / math.sqrt(1.0 + 1e-5)      # eval-mode SyncBatchNorm


def _parallel():
    return pltpu.CompilerParams(dimension_semantics=("parallel",))


# ----------------------------------------------------------------------------
# In-kernel helpers (traced inside Pallas kernel bodies)
# ----------------------------------------------------------------------------
def _in_bn_relu(x):
    """InstanceNorm over the last axis + eval-BN scale + ReLU.  x: (C, L)."""
    m = jnp.mean(x, axis=-1, keepdims=True)
    xc = x - m
    var = jnp.mean(xc * xc, axis=-1, keepdims=True)
    return jnp.maximum(xc * lax.rsqrt(var + EPS_IN) * BN_SCALE, 0.0)


def _in_bn_relu_seg(x, nb, n):
    """Per-batch InstanceNorm on a lane-flat (C, nb*n) activation."""
    return jnp.concatenate(
        [_in_bn_relu(x[:, b * n:(b + 1) * n]) for b in range(nb)], axis=-1)


def _bn_relu(x):
    return jnp.maximum(x * BN_SCALE, 0.0)


def _mxu(w, x):
    """bf16 MXU matmul with f32 accumulation (pure format cast before the dot)."""
    return jnp.dot(w.astype(jnp.bfloat16), x.astype(jnp.bfloat16),
                   preferred_element_type=jnp.float32)


def _neg_pdist(xb):
    """xb: (C, N) -> (N, N) negative squared pairwise distance (knn score)."""
    n = xb.shape[1]
    g = lax.dot_general(xb, xb, (((0,), (0,)), ((), ())),
                        preferred_element_type=jnp.float32)            # x^T x
    xx_row = jnp.sum(xb * xb, axis=0, keepdims=True)                   # (1, N)
    eye = (lax.broadcasted_iota(jnp.int32, (n, n), 0)
           == lax.broadcasted_iota(jnp.int32, (n, n), 1))
    xx_col = jnp.sum(jnp.where(eye, g, 0.0), axis=-1, keepdims=True)   # (N, 1)
    return 2.0 * g - xx_row - xx_col


# ----------------------------------------------------------------------------
# Batch-folded fused 1x1 conv (multiple inputs = channel-concat folded away)
# ----------------------------------------------------------------------------
def conv_flat(xs_ws, b, post=None):
    """y = post(sum_i W_i @ x_i + b).  x_i: (Cin_i, L), W_i: (Cout, Cin_i).

    Single pallas_call, no grid: at these shapes everything (weights plus the
    (C, B*N) activations) fits VMEM, and one 256-lane matmul beats per-batch
    dispatch.  Multiple (x, W) pairs replace torch.cat on the channel axis.
    """
    n_in = len(xs_ws)
    L = xs_ws[0][0].shape[1]
    Cout = xs_ws[0][1].shape[0]

    def kernel(*refs):
        x_refs = refs[:n_in]
        w_refs = refs[n_in:2 * n_in]
        b_ref, o_ref = refs[2 * n_in], refs[2 * n_in + 1]
        y = _mxu(w_refs[0][...], x_refs[0][...])
        for i in range(1, n_in):
            y = y + _mxu(w_refs[i][...], x_refs[i][...])
        y = y + b_ref[...]
        if post == 'bn_relu':
            y = _bn_relu(y)
        o_ref[...] = y

    args = [x for x, _ in xs_ws] + [w for _, w in xs_ws] + [b.reshape(-1, 1)]
    return pl.pallas_call(
        kernel,
        out_shape=jax.ShapeDtypeStruct((Cout, L), jnp.float32),
    )(*args)


# ----------------------------------------------------------------------------
# PointCN: one fully fused, batch-folded kernel per block
# ----------------------------------------------------------------------------
def point_cn_fused(x, p, nb):
    """conv1 + IN/BN/ReLU + PointCA + conv2 + IN/BN/ReLU + residual."""
    C, L = x.shape
    N = L // nb
    w1, b1 = p['conv1']['w'], p['conv1']['b']
    w2, b2 = p['conv2']['w'], p['conv2']['b']
    ws, bs = p['ca']['seed']['w'], p['ca']['seed']['b']
    waT = p['ca']['conv_a']['w'].T          # (C, C4) pre-transposed for the VPU
    ba = p['ca']['conv_a']['b']
    wb = p['ca']['conv_b']['w']             # (C, C4)
    bb = p['ca']['conv_b']['b']

    def kernel(x_ref, w1_ref, b1_ref, ws_ref, bs_ref, waT_ref, ba_ref,
               wb_ref, bb_ref, w2_ref, b2_ref, o_ref):
        xb = x_ref[...]                                                # (C, L)
        h = _in_bn_relu_seg(_mxu(w1_ref[...], xb) + b1_ref[...], nb, N)
        # --- PointCA -------------------------------------------------------
        hn = _in_bn_relu_seg(h, nb, N)          # seed_predictor's own IN+BN+ReLU
        w = jnp.dot(ws_ref[...], hn,
                    preferred_element_type=jnp.float32) + bs_ref[...]  # (1, L)
        w = jnp.tanh(jnp.maximum(w, 0.0))
        chunks = []
        for b in range(nb):
            hb = h[:, b * N:(b + 1) * N]                               # (C, N)
            wseg = w[:, b * N:(b + 1) * N]                             # (1, N)
            wseg = wseg / jnp.maximum(
                jnp.sum(jnp.abs(wseg), axis=-1, keepdims=True), 1e-12)
            x_sum = jnp.sum(hb * wseg, axis=-1, keepdims=True)         # (C, 1)
            # gate MLP on VPU+XLU: lane-1 MXU outputs would stall on push/pop
            a = jnp.sum(waT_ref[...] * x_sum, axis=0, keepdims=True) + ba_ref[...]
            a = _bn_relu(a)                                            # (1, C4)
            g = jnp.sum(wb_ref[...] * a, axis=-1, keepdims=True) + bb_ref[...]
            gate = 1.0 / (1.0 + jnp.exp(-g))                           # (C, 1)
            chunks.append(gate * hb)
        ca = jnp.concatenate(chunks, axis=-1)                          # (C, L)
        # ---------------------------------------------------------------------
        y = _in_bn_relu_seg(_mxu(w2_ref[...], ca) + b2_ref[...], nb, N)
        o_ref[...] = y + xb

    return pl.pallas_call(
        kernel,
        out_shape=jax.ShapeDtypeStruct((C, L), jnp.float32),
    )(x, w1, b1[:, None], ws, bs.reshape(1, 1), waT, ba[None, :],
      wb, bb[:, None], w2, b2[:, None])


# ----------------------------------------------------------------------------
# Attention propagation
# ----------------------------------------------------------------------------
def pairwise_neg_dist(x, nb):
    """x: (C, nb*N) -> (nb, N, N) negative squared pairwise distance."""
    C, L = x.shape
    N = L // nb

    def kernel(x_ref, o_ref):
        o_ref[0] = _neg_pdist(x_ref[...])

    return pl.pallas_call(
        kernel,
        out_shape=jax.ShapeDtypeStruct((nb, N, N), jnp.float32),
        grid=(nb,),
        in_specs=[pl.BlockSpec((C, N), lambda b: (0, b))],
        out_specs=pl.BlockSpec((1, N, N), lambda b: (b, 0, 0)),
        compiler_params=_parallel(),
    )(x)


def attention_core(x, qkv, kth, p, nb, head):
    """Per-batch fused kernel: knn mask (rebuilt from x) -> per-head masked
    attention -> mh_filter -> cat_filter (split weights, no concat) -> residual."""
    C, L = x.shape
    N = L // nb
    hd = C // head
    scale = 1.0 / math.sqrt(hd)

    w_mh, b_mh = p['mh']['w'], p['mh']['b']
    w_c1, b_c1 = p['cat1']['w'], p['cat1']['b']
    w_c2, b_c2 = p['cat2']['w'], p['cat2']['b']
    w_c1a, w_c1b = w_c1[:, :C], w_c1[:, C:]

    def kernel(x_ref, qkv_ref, kc_ref, kr_ref, wmh_ref, bmh_ref, wc1a_ref,
               wc1b_ref, bc1_ref, wc2_ref, bc2_ref, o_ref, av_ref):
        xb = x_ref[...]                                                # (C, N)
        pd = _neg_pdist(xb)                                            # (N, N)
        # mutual knn mask: m in topk(n) and n in topk(m)
        # TODO(synk): ties at the k-th threshold may admit extra neighbours vs
        # the PyTorch scatter mask.
        mask = (pd >= kc_ref[0]) & (pd >= kr_ref[0])
        # one head at a time: per-head working set is (N, N), not (H, N, N)
        for h in range(head):
            q = qkv_ref[pl.ds(h * hd, hd), :].astype(jnp.bfloat16)
            k = qkv_ref[pl.ds(C + h * hd, hd), :].astype(jnp.bfloat16)
            v = qkv_ref[pl.ds(2 * C + h * hd, hd), :].astype(jnp.bfloat16)
            s = lax.dot_general(q, k, (((0,), (0,)), ((), ())),
                                preferred_element_type=jnp.float32) * scale
            s = jnp.where(mask, s, -1e9)
            m = jnp.max(s, axis=-1, keepdims=True)
            e = jnp.exp(s - m)
            pr = (e / jnp.sum(e, axis=-1, keepdims=True)).astype(jnp.bfloat16)
            av_ref[pl.ds(h * hd, hd), :] = lax.dot_general(
                v, pr, (((1,), (1,)), ((), ())),
                preferred_element_type=jnp.float32)                    # (hd, N)
        av = av_ref[...]                                               # (C, N)
        mh = _mxu(wmh_ref[...], av) + bmh_ref[...]                     # (C, N)
        # cat_filter on the virtual concat [x ; mh] (weights pre-split)
        h1 = _bn_relu(_mxu(wc1a_ref[...], xb) + _mxu(wc1b_ref[...], mh)
                      + bc1_ref[...])                                  # (2C, N)
        o_ref[...] = xb + _mxu(wc2_ref[...], h1) + bc2_ref[...]        # residual

    return pl.pallas_call(
        kernel,
        out_shape=jax.ShapeDtypeStruct((C, L), jnp.float32),
        grid=(nb,),
        in_specs=[pl.BlockSpec((C, N), lambda b: (0, b)),
                  pl.BlockSpec((3 * C, N), lambda b: (0, b)),
                  pl.BlockSpec((1, N, 1), lambda b: (b, 0, 0)),
                  pl.BlockSpec((1, 1, N), lambda b: (b, 0, 0)),
                  pl.BlockSpec((C, C), lambda b: (0, 0)),
                  pl.BlockSpec((C, 1), lambda b: (0, 0)),
                  pl.BlockSpec((2 * C, C), lambda b: (0, 0)),
                  pl.BlockSpec((2 * C, C), lambda b: (0, 0)),
                  pl.BlockSpec((2 * C, 1), lambda b: (0, 0)),
                  pl.BlockSpec((C, 2 * C), lambda b: (0, 0)),
                  pl.BlockSpec((C, 1), lambda b: (0, 0))],
        out_specs=pl.BlockSpec((C, N), lambda b: (0, b)),
        scratch_shapes=[pltpu.VMEM((C, N), jnp.float32)],
        compiler_params=_parallel(),
    )(x, qkv, kth[:, :, None], kth[:, None, :],
      w_mh, b_mh[:, None], w_c1a, w_c1b, b_c1[:, None], w_c2, b_c2[:, None])


def attention_prop(x, p, nb, head=4, k=40):
    """attention_propagantion on lane-flat activations."""
    C, L = x.shape
    N = L // nb
    k = min(k, N)
    # stacked Q/K/V projection: one conv call instead of three
    w_qkv = jnp.concatenate([p['q']['w'], p['k']['w'], p['v']['w']], axis=0)
    b_qkv = jnp.concatenate([p['q']['b'], p['k']['b'], p['v']['b']], axis=0)
    qkv = conv_flat([(x, w_qkv)], b_qkv)                    # (3C, L)
    pdist = pairwise_neg_dist(x, nb)                        # (nb, N, N)
    # TODO(synk): top-k selection has no Pallas primitive; the k-th threshold
    # comes from lax.top_k (the attention kernel rebuilds pdist in-kernel, so
    # the (N, N) matrix is only written once and never read back).
    kth = lax.top_k(pdist, k)[0][:, :, -1]                  # (nb, N)
    return attention_core(x, qkv, kth, p, nb, head)


# ----------------------------------------------------------------------------
# diff_pool -> OAFilter chain -> diff_unpool: one fused per-batch kernel
# ----------------------------------------------------------------------------
def pool_oaf_unpool(x, p_down, p_l2, p_up, nb):
    """The (C, M) pooled activation and all OAFilter intermediates stay in VMEM."""
    C, L = x.shape
    N = L // nb
    wd, bd = p_down['conv']['w'], p_down['conv']['b']
    wu, bu = p_up['conv']['w'], p_up['conv']['b']
    M = wd.shape[0]
    nl = len(p_l2)
    w1s = jnp.stack([q['conv1']['w'] for q in p_l2])                  # (nl, C, C)
    b1s = jnp.stack([q['conv1']['b'][:, None] for q in p_l2])         # (nl, C, 1)
    w2Ts = jnp.stack([q['conv2']['w'].T for q in p_l2])               # (nl, M, M)
    b2s = jnp.stack([q['conv2']['b'][None, :] for q in p_l2])         # (nl, 1, M)
    w3s = jnp.stack([q['conv3']['w'] for q in p_l2])                  # (nl, C, C)
    b3s = jnp.stack([q['conv3']['b'][:, None] for q in p_l2])         # (nl, C, 1)

    def kernel(x_ref, wd_ref, bd_ref, w1_ref, b1_ref, w2T_ref, b2_ref,
               w3_ref, b3_ref, wu_ref, bu_ref, o_ref):
        xb = x_ref[...]                                                # (C, N)
        hn = _in_bn_relu(xb)                   # shared by the pool & unpool convs
        # diff_pool: softmax over points (N), x @ S^T
        e = jnp.dot(wd_ref[...], hn,
                    preferred_element_type=jnp.float32) + bd_ref[...]  # (M, N)
        e = e - jnp.max(e, axis=-1, keepdims=True)
        ex = jnp.exp(e)
        S = ex / jnp.sum(ex, axis=-1, keepdims=True)
        xd = lax.dot_general(xb, S, (((1,), (1,)), ((), ())),
                             preferred_element_type=jnp.float32)       # (C, M)
        # OAFilter chain; trans(1,2) folded: conv2 acts from the right
        for l in range(nl):
            t1 = jnp.dot(w1_ref[l], _in_bn_relu(xd),
                         preferred_element_type=jnp.float32) + b1_ref[l]
            u = t1 + jnp.dot(_bn_relu(t1), w2T_ref[l],
                             preferred_element_type=jnp.float32) + b2_ref[l]
            t3 = jnp.dot(w3_ref[l], _in_bn_relu(u),
                         preferred_element_type=jnp.float32) + b3_ref[l]
            xd = t3 + xd
        # diff_unpool: softmax over clusters (M), x_down @ S
        eu = jnp.dot(wu_ref[...], hn,
                     preferred_element_type=jnp.float32) + bu_ref[...]  # (M, N)
        eu = eu - jnp.max(eu, axis=0, keepdims=True)
        exu = jnp.exp(eu)
        Su = exu / jnp.sum(exu, axis=0, keepdims=True)
        o_ref[...] = jnp.dot(xd, Su, preferred_element_type=jnp.float32)

    return pl.pallas_call(
        kernel,
        out_shape=jax.ShapeDtypeStruct((C, L), jnp.float32),
        grid=(nb,),
        in_specs=[pl.BlockSpec((C, N), lambda b: (0, b)),
                  pl.BlockSpec((M, C), lambda b: (0, 0)),
                  pl.BlockSpec((M, 1), lambda b: (0, 0)),
                  pl.BlockSpec((nl, C, C), lambda b: (0, 0, 0)),
                  pl.BlockSpec((nl, C, 1), lambda b: (0, 0, 0)),
                  pl.BlockSpec((nl, M, M), lambda b: (0, 0, 0)),
                  pl.BlockSpec((nl, 1, M), lambda b: (0, 0, 0)),
                  pl.BlockSpec((nl, C, C), lambda b: (0, 0, 0)),
                  pl.BlockSpec((nl, C, 1), lambda b: (0, 0, 0)),
                  pl.BlockSpec((M, C), lambda b: (0, 0)),
                  pl.BlockSpec((M, 1), lambda b: (0, 0))],
        out_specs=pl.BlockSpec((C, N), lambda b: (0, b)),
        compiler_params=_parallel(),
    )(x, wd, bd[:, None], w1s, b1s, w2Ts, b2s, w3s, b3s, wu, bu[:, None])


# ----------------------------------------------------------------------------
# Tiny epilogue math (kept in XLA: Pallas launch overhead would dominate)
# ----------------------------------------------------------------------------
def weighted_8points(xs, logits):
    """xs: (B, 1, N, 4), logits: (B, N) -> e_hat (B, 9)."""
    B = xs.shape[0]
    weights = jnp.maximum(jnp.tanh(logits), 0.0)              # relu(tanh(logits))
    x_in = xs[:, 0]                                           # (B, N, 4)
    xx = jnp.transpose(x_in, (0, 2, 1))                       # (B, 4, N)
    X = jnp.stack([xx[:, 2] * xx[:, 0], xx[:, 2] * xx[:, 1], xx[:, 2],
                   xx[:, 3] * xx[:, 0], xx[:, 3] * xx[:, 1], xx[:, 3],
                   xx[:, 0], xx[:, 1], jnp.ones_like(xx[:, 0])], axis=1)  # (B, 9, N)
    X = jnp.transpose(X, (0, 2, 1))                           # (B, N, 9)
    wX = weights[:, :, None] * X                              # (B, N, 9)
    XwX = jnp.einsum('bnk,bnm->bkm', X, wX)                   # (B, 9, 9)
    # TODO(synk): symmetric eigendecomposition (torch.symeig) has no Pallas
    # equivalent; computed with jnp.linalg.eigh (eigenvalues ascending).
    _, v = jnp.linalg.eigh(XwX)
    e_hat = v[:, :, 0].reshape(B, 9)
    return e_hat / jnp.linalg.norm(e_hat, axis=1, keepdims=True)


def batch_episym(x1, x2, F):
    """Standard OANet symmetric epipolar distance. x1,x2: (B,N,2), F: (B,9)."""
    B, N, _ = x1.shape
    ones = jnp.ones((B, N, 1), jnp.float32)
    x1h = jnp.concatenate([x1, ones], axis=-1)                # (B, N, 3)
    x2h = jnp.concatenate([x2, ones], axis=-1)
    Fm = F.reshape(B, 3, 3)
    Fx1 = jnp.einsum('bij,bnj->bni', Fm, x1h)                 # (B, N, 3)
    Ftx2 = jnp.einsum('bji,bnj->bni', Fm, x2h)                # (B, N, 3)
    x2Fx1 = jnp.sum(x2h * Fx1, axis=-1)                       # (B, N)
    ys = x2Fx1 ** 2 * (1.0 / (Fx1[..., 0] ** 2 + Fx1[..., 1] ** 2 + 1e-15)
                       + 1.0 / (Ftx2[..., 0] ** 2 + Ftx2[..., 1] ** 2 + 1e-15))
    return ys


# ----------------------------------------------------------------------------
# RNABlock forward
# ----------------------------------------------------------------------------
def rna_block(params, data, xs):
    """data: (B, Cin, N, 1), xs: (B, 1, N, 4)."""
    B, Cin, N, _ = data.shape
    L = B * N
    # (B, Cin, N, 1) -> lane-flat channels-major activations (Cin, B*N)
    xf = jnp.transpose(data[..., 0], (1, 0, 2)).reshape(Cin, L)

    x = conv_flat([(xf, params['conv1']['w'])], params['conv1']['b'])   # (C, L)

    # l1_1: PointCN x3 + attention_propagantion
    for p in params['l1_1']:
        x = point_cn_fused(x, p, B)
    x1_1 = attention_prop(x, params['l1_1_attn'], B)

    # down -> OAFilter chain -> up (single fused kernel)
    x_up = pool_oaf_unpool(x1_1, params['down1'], params['l2'], params['up1'], B)

    # cat([x1_1, x_up]) conv folded as two matmuls with the weight split
    w_head = params['l1_2_conv']['w']                        # (C, 2C)
    C = w_head.shape[0]
    h = conv_flat([(x1_1, w_head[:, :C]), (x_up, w_head[:, C:])],
                  params['l1_2_conv']['b'], post='bn_relu')
    h = attention_prop(h, params['l1_2_attn'], B)
    for p in params['l1_2']:
        h = point_cn_fused(h, p, B)

    logits = conv_flat([(h, params['output']['w'])],
                       params['output']['b']).reshape(B, N)  # (B, N)

    e_hat = weighted_8points(xs, logits)
    p1, p2 = xs[:, 0, :, :2], xs[:, 0, :, 2:4]
    residual = batch_episym(p1, p2, e_hat).reshape(B, 1, N, 1)
    return logits, e_hat, residual


# ----------------------------------------------------------------------------
# Deterministic parameter construction (synthetic weights)
# ----------------------------------------------------------------------------
def make_params(key, C, Cin, depth, clusters):
    cnt = [0]

    def conv(cout, cin):
        cnt[0] += 1
        kw = jax.random.fold_in(key, 2 * cnt[0])
        kb = jax.random.fold_in(key, 2 * cnt[0] + 1)
        return {'w': jax.random.normal(kw, (cout, cin), jnp.float32) / math.sqrt(cin),
                'b': 0.01 * jax.random.normal(kb, (cout,), jnp.float32)}

    def point_cn_p():
        return {'conv1': conv(C, C),
                'ca': {'seed': conv(1, C),
                       'conv_a': conv(C // 4, C),
                       'conv_b': conv(C, C // 4)},
                'conv2': conv(C, C)}

    def attn_p():
        return {'q': conv(C, C), 'k': conv(C, C), 'v': conv(C, C),
                'mh': conv(C, C), 'cat1': conv(2 * C, 2 * C), 'cat2': conv(C, 2 * C)}

    M = clusters
    return {
        'conv1': conv(C, Cin),
        'l1_1': [point_cn_p() for _ in range(3)],
        'l1_1_attn': attn_p(),
        'down1': {'conv': conv(M, C)},
        'l2': [{'conv1': conv(C, C), 'conv2': conv(M, M), 'conv3': conv(C, C)}
               for _ in range(depth // 2)],
        'up1': {'conv': conv(M, C)},
        'l1_2_conv': conv(C, 2 * C),
        'l1_2_attn': attn_p(),
        'l1_2': [point_cn_p() for _ in range(3)],
        'output': conv(1, C),
    }


# ----------------------------------------------------------------------------
if __name__ == "__main__":
    B, N = 2, 128         # batch, num points (N >= knn k=40, lane-aligned to 128)
    C = 32                # net_channels
    Cin = 4               # input_channel
    depth = 2
    clusters = 8

    key = jax.random.PRNGKey(0)
    params = make_params(key, C, Cin, depth, clusters)
    kd, kx = jax.random.split(jax.random.fold_in(key, 12345))
    data = jax.random.normal(kd, (B, Cin, N, 1), jnp.float32)
    xs = jax.random.normal(kx, (B, 1, N, 4), jnp.float32)

    fwd = jax.jit(rna_block)
    logits, e_hat, residual = fwd(params, data, xs)
    jax.block_until_ready((logits, e_hat, residual))

    assert logits.shape == (B, N)
    assert e_hat.shape == (B, 9)
    assert residual.shape == (B, 1, N, 1)
    assert bool(jnp.all(jnp.isfinite(logits)))
    assert bool(jnp.all(jnp.isfinite(e_hat)))
    assert bool(jnp.all(jnp.isfinite(residual)))
    print("KERNEL_OK")
</pallas_src>

<mosaic_0001>
module attributes {stable_mosaic.version = 11 : i64} {
  func.func @kernel(%arg0: memref<4x256xf32, #tpu.memory_space<vmem>>, %arg1: memref<32x4xf32, #tpu.memory_space<vmem>>, %arg2: memref<32x1xf32, #tpu.memory_space<vmem>>, %arg3: memref<32x256xf32, #tpu.memory_space<vmem>>) attributes {dimension_semantics = [], scalar_prefetch = 0 : i64, scratch_operands = 0 : i64, tpu.core_type = #tpu.core_type<tc>} {
    %c0 = arith.constant 0 : index
    %c0_0 = arith.constant 0 : index
    %0 = vector.load %arg1[%c0, %c0_0] : memref<32x4xf32, #tpu.memory_space<vmem>>, vector<32x4xf32>
    %c0_1 = arith.constant 0 : index
    %c0_2 = arith.constant 0 : index
    %1 = vector.load %arg0[%c0_1, %c0_2] : memref<4x256xf32, #tpu.memory_space<vmem>>, vector<4x256xf32>
    %2 = arith.truncf %0 : vector<32x4xf32> to vector<32x4xbf16>
    %3 = arith.truncf %1 : vector<4x256xf32> to vector<4x256xbf16>
    %cst = arith.constant dense<0.000000e+00> : vector<32x256xf32>
    %4 = tpu.matmul %2, %3, %cst {dimension_numbers = #tpu.dot_dimension_numbers<[1], [0], [0], [1], [0, 0, 1, 1], [], []>} : vector<32x4xbf16>, vector<4x256xbf16>, vector<32x256xf32> -> vector<32x256xf32>
    %c0_3 = arith.constant 0 : index
    %c0_4 = arith.constant 0 : index
    %5 = vector.load %arg2[%c0_3, %c0_4] : memref<32x1xf32, #tpu.memory_space<vmem>>, vector<32x1xf32>
    %6 = vector.broadcast %5 : vector<32x1xf32> to vector<32x256xf32>
    %7 = arith.addf %4, %6 : vector<32x256xf32>
    %c0_5 = arith.constant 0 : index
    %c0_6 = arith.constant 0 : index
    %8 = vector.load %arg3[%c0_5, %c0_6] : memref<32x256xf32, #tpu.memory_space<vmem>>, vector<32x256xf32>
    tpu.vector_store %arg3[%c0_5, %c0_6], %7 {strides = array<i32>} : memref<32x256xf32, #tpu.memory_space<vmem>>, vector<32x256xf32>,
    return
  }
}

module attributes {stable_mosaic.version = 11 : i64} {
  func.func @kernel(%arg0: memref<32x256xf32, #tpu.memory_space<vmem>>, %arg1: memref<32x32xf32, #tpu.memory_space<vmem>>, %arg2: memref<32x1xf32, #tpu.memory_space<vmem>>, %arg3: memref<1x32xf32, #tpu.memory_space<vmem>>, %arg4: memref<1x1xf32, #tpu.memory_space<vmem>>, %arg5: memref<32x8xf32, #tpu.memory_space<vmem>>, %arg6: memref<1x8xf32, #tpu.memory_space<vmem>>, %arg7: memref<32x8xf32, #tpu.memory_space<vmem>>, %arg8: memref<32x1xf32, #tpu.memory_space<vmem>>, %arg9: memref<32x32xf32, #tpu.memory_space<vmem>>, %arg10: memref<32x1xf32, #tpu.memory_space<vmem>>, %arg11: memref<32x256xf32, #tpu.memory_space<vmem>>) attributes {dimension_semantics = [], scalar_prefetch = 0 : i64, scratch_operands = 0 : i64, tpu.core_type = #tpu.core_type<tc>} {
    %c0 = arith.constant 0 : index
    %c0_0 = arith.constant 0 : index
    %0 = vector.load %arg0[%c0, %c0_0] : memref<32x256xf32, #tpu.memory_space<vmem>>, vector<32x256xf32>
    %c0_1 = arith.constant 0 : index
    %c0_2 = arith.constant 0 : index
    %1 = vector.load %arg1[%c0_1, %c0_2] : memref<32x32xf32, #tpu.memory_space<vmem>>, vector<32x32xf32>
    %2 = arith.truncf %1 : vector<32x32xf32> to vector<32x32xbf16>
    %3 = arith.truncf %0 : vector<32x256xf32> to vector<32x256xbf16>
    %cst = arith.constant dense<0.000000e+00> : vector<32x256xf32>
    %4 = tpu.matmul %2, %3, %cst {dimension_numbers = #tpu.dot_dimension_numbers<[1], [0], [0], [1], [0, 0, 1, 1], [], []>} : vector<32x32xbf16>, vector<32x256xbf16>, vector<32x256xf32> -> vector<32x256xf32>
    %c0_3 = arith.constant 0 : index
    %c0_4 = arith.constant 0 : index
    %5 = vector.load %arg2[%c0_3, %c0_4] : memref<32x1xf32, #tpu.memory_space<vmem>>, vector<32x1xf32>
    %6 = vector.broadcast %5 : vector<32x1xf32> to vector<32x256xf32>
    %7 = arith.addf %4, %6 : vector<32x256xf32>
    %8 = vector.extract_strided_slice %7 {offsets = [0, 0], sizes = [32, 128], strides = [1, 1]} : vector<32x256xf32> to vector<32x128xf32>
    %cst_5 = arith.constant dense<0.000000e+00> : vector<32xf32>
    %9 = vector.multi_reduction <add>, %8, %cst_5 [1] : vector<32x128xf32> to vector<32xf32>
    %10 = vector.shape_cast %9 : vector<32xf32> to vector<32x1xf32>
    %cst_6 = arith.constant 1.280000e+02 : f32
    %11 = vector.broadcast %cst_6 : f32 to vector<32x1xf32>
    %12 = arith.divf %10, %11 : vector<32x1xf32>
    %13 = vector.broadcast %12 : vector<32x1xf32> to vector<32x128xf32>
    %14 = arith.subf %8, %13 : vector<32x128xf32>
    %15 = arith.mulf %14, %14 : vector<32x128xf32>
    %cst_7 = arith.constant dense<0.000000e+00> : vector<32xf32>
    %16 = vector.multi_reduction <add>, %15, %cst_7 [1] : vector<32x128xf32> to vector<32xf32>
    %17 = vector.shape_cast %16 : vector<32xf32> to vector<32x1xf32>
    %cst_8 = arith.constant 1.280000e+02 : f32
    %18 = vector.broadcast %cst_8 : f32 to vector<32x1xf32>
    %19 = arith.divf %17, %18 : vector<32x1xf32>
    %cst_9 = arith.constant 1.000000e-03 : f32
    %20 = vector.broadcast %cst_9 : f32 to vector<32x1xf32>
    %21 = arith.addf %19, %20 : vector<32x1xf32>
    %22 = math.rsqrt %21 : vector<32x1xf32>
    %23 = vector.broadcast %22 : vector<32x1xf32> to vector<32x128xf32>
    %24 = arith.mulf %14, %23 : vector<32x128xf32>
    %cst_10 = arith.constant 0.999994993 : f32
    %25 = vector.broadcast %cst_10 : f32 to vector<32x128xf32>
    %26 = arith.mulf %24, %25 : vector<32x128xf32>
    %cst_11 = arith.constant 0.000000e+00 : f32
    %27 = vector.broadcast %cst_11 : f32 to vector<32x128xf32>
    %28 = arith.maximumf %26, %27 : vector<32x128xf32>
    %29 = vector.extract_strided_slice %7 {offsets = [0, 128], sizes = [32, 128], strides = [1, 1]} : vector<32x256xf32> to vector<32x128xf32>
    %cst_12 = arith.constant dense<0.000000e+00> : vector<32xf32>
    %30 = vector.multi_reduction <add>, %29, %cst_12 [1] : vector<32x128xf32> to vector<32xf32>
    %31 = vector.shape_cast %30 : vector<32xf32> to vector<32x1xf32>
    %cst_13 = arith.constant 1.280000e+02 : f32
    %32 = vector.broadcast %cst_13 : f32 to vector<32x1xf32>
    %33 = arith.divf %31, %32 : vector<32x1xf32>
    %34 = vector.broadcast %33 : vector<32x1xf32> to vector<32x128xf32>
    %35 = arith.subf %29, %34 : vector<32x128xf32>
    %36 = arith.mulf %35, %35 : vector<32x128xf32>
    %cst_14 = arith.constant dense<0.000000e+00> : vector<32xf32>
    %37 = vector.multi_reduction <add>, %36, %cst_14 [1] : vector<32x128xf32> to vector<32xf32>
    %38 = vector.shape_cast %37 : vector<32xf32> to vector<32x1xf32>
    %cst_15 = arith.constant 1.280000e+02 : f32
    %39 = vector.broadcast %cst_15 : f32 to vector<32x1xf32>
    %40 = arith.divf %38, %39 : vector<32x1xf32>
    %cst_16 = arith.constant 1.000000e-03 : f32
    %41 = vector.broadcast %cst_16 : f32 to vector<32x1xf32>
    %42 = arith.addf %40, %41 : vector<32x1xf32>
    %43 = math.rsqrt %42 : vector<32x1xf32>
    %44 = vector.broadcast %43 : vector<32x1xf32> to vector<32x128xf32>
    %45 = arith.mulf %35, %44 : vector<32x128xf32>
    %cst_17 = arith.constant 0.999994993 : f32
    %46 = vector.broadcast %cst_17 : f32 to vector<32x128xf32>
    %47 = arith.mulf %45, %46 : vector<32x128xf32>
    %cst_18 = arith.constant 0.000000e+00 : f32
    %48 = vector.broadcast %cst_18 : f32 to vector<32x128xf32>
    %49 = arith.maximumf %47, %48 : vector<32x128xf32>
    %50 = tpu.concatenate %28, %49 in 1 : vector<32x128xf32>, vector<32x128xf32> -> vector<32x256xf32>
    %51 = vector.extract_strided_slice %50 {offsets = [0, 0], sizes = [32, 128], strides = [1, 1]} : vector<32x256xf32> to vector<32x128xf32>
    %cst_19 = arith.constant dense<0.000000e+00> : vector<32xf32>
    %52 = vector.multi_reduction <add>, %51, %cst_19 [1] : vector<32x128xf32> to vector<32xf32>
    %53 = vector.shape_cast %52 : vector<32xf32> to vector<32x1xf32>
    %cst_20 = arith.constant 1.280000e+02 : f32
    %54 = vector.broadcast %cst_20 : f32 to vector<32x1xf32>
    %55 = arith.divf %53, %54 : vector<32x1xf32>
    %56 = vector.broadcast %55 : vector<32x1xf32> to vector<32x128xf32>
    %57 = arith.subf %51, %56 : vector<32x128xf32>
    %58 = arith.mulf %57, %57 : vector<32x128xf32>
    %cst_21 = arith.constant dense<0.000000e+00> : vector<32xf32>
    %59 = vector.multi_reduction <add>, %58, %cst_21 [1] : vector<32x128xf32> to vector<32xf32>
    %60 = vector.shape_cast %59 : vector<32xf32> to vector<32x1xf32>
    %cst_22 = arith.constant 1.280000e+02 : f32
    %61 = vector.broadcast %cst_22 : f32 to vector<32x1xf32>
    %62 = arith.divf %60, %61 : vector<32x1xf32>
    %cst_23 = arith.constant 1.000000e-03 : f32
    %63 = vector.broadcast %cst_23 : f32 to vector<32x1xf32>
    %64 = arith.addf %62, %63 : vector<32x1xf32>
    %65 = math.rsqrt %64 : vector<32x1xf32>
    %66 = vector.broadcast %65 : vector<32x1xf32> to vector<32x128xf32>
    %67 = arith.mulf %57, %66 : vector<32x128xf32>
    %cst_24 = arith.constant 0.999994993 : f32
    %68 = vector.broadcast %cst_24 : f32 to vector<32x128xf32>
    %69 = arith.mulf %67, %68 : vector<32x128xf32>
    %cst_25 = arith.constant 0.000000e+00 : f32
    %70 = vector.broadcast %cst_25 : f32 to vector<32x128xf32>
    %71 = arith.maximumf %69, %70 : vector<32x128xf32>
    %72 = vector.extract_strided_slice %50 {offsets = [0, 128], sizes = [32, 128], strides = [1, 1]} : vector<32x256xf32> to vector<32x128xf32>
    %cst_26 = arith.constant dense<0.000000e+00> : vector<32xf32>
    %73 = vector.multi_reduction <add>, %72, %cst_26 [1] : vector<32x128xf32> to vector<32xf32>
    %74 = vector.shape_cast %73 : vector<32xf32> to vector<32x1xf32>
    %cst_27 = arith.constant 1.280000e+02 : f32
    %75 = vector.broadcast %cst_27 : f32 to vector<32x1xf32>
    %76 = arith.divf %74, %75 : vector<32x1xf32>
    %77 = vector.broadcast %76 : vector<32x1xf32> to vector<32x128xf32>
    %78 = arith.subf %72, %77 : vector<32x128xf32>
    %79 = arith.mulf %78, %78 : vector<32x128xf32>
    %cst_28 = arith.constant dense<0.000000e+00> : vector<32xf32>
    %80 = vector.multi_reduction <add>, %79, %cst_28 [1] : vector<32x128xf32> to vector<32xf32>
    %81 = vector.shape_cast %80 : vector<32xf32> to vector<32x1xf32>
    %cst_29 = arith.constant 1.280000e+02 : f32
    %82 = vector.broadcast %cst_29 : f32 to vector<32x1xf32>
    %83 = arith.divf %81, %82 : vector<32x1xf32>
    %cst_30 = arith.constant 1.000000e-03 : f32
    %84 = vector.broadcast %cst_30 : f32 to vector<32x1xf32>
    %85 = arith.addf %83, %84 : vector<32x1xf32>
    %86 = math.rsqrt %85 : vector<32x1xf32>
    %87 = vector.broadcast %86 : vector<32x1xf32> to vector<32x128xf32>
    %88 = arith.mulf %78, %87 : vector<32x128xf32>
    %cst_31 = arith.constant 0.999994993 : f32
    %89 = vector.broadcast %cst_31 : f32 to vector<32x128xf32>
    %90 = arith.mulf %88, %89 : vector<32x128xf32>
    %cst_32 = arith.constant 0.000000e+00 : f32
    %91 = vector.broadcast %cst_32 : f32 to vector<32x128xf32>
    %92 = arith.maximumf %90, %91 : vector<32x128xf32>
    %93 = tpu.concatenate %71, %92 in 1 : vector<32x128xf32>, vector<32x128xf32> -> vector<32x256xf32>
    %c0_33 = arith.constant 0 : index
    %c0_34 = arith.constant 0 : index
    %94 = vector.load %arg3[%c0_33, %c0_34] : memref<1x32xf32, #tpu.memory_space<vmem>>, vector<1x32xf32>
    %cst_35 = arith.constant dense<0.000000e+00> : vector<1x256xf32>
    %95 = tpu.matmul %94, %93, %cst_35 {dimension_numbers = #tpu.dot_dimension_numbers<[1], [0], [0], [1], [0, 0, 1, 1], [], []>} : vector<1x32xf32>, vector<32x256xf32>, vector<1x256xf32> -> vector<1x256xf32>
    %c0_36 = arith.constant 0 : index
    %c0_37 = arith.constant 0 : index
    %96 = vector.load %arg4[%c0_36, %c0_37] : memref<1x1xf32, #tpu.memory_space<vmem>>, vector<1x1xf32>
    %97 = vector.broadcast %96 : vector<1x1xf32> to vector<1x256xf32>
    %98 = arith.addf %95, %97 : vector<1x256xf32>
    %cst_38 = arith.constant 0.000000e+00 : f32
    %99 = vector.broadcast %cst_38 : f32 to vector<1x256xf32>
    %100 = arith.maximumf %98, %99 : vector<1x256xf32>
    %101 = math.tanh %100 : vector<1x256xf32>
    %102 = vector.extract_strided_slice %50 {offsets = [0, 0], sizes = [32, 128], strides = [1, 1]} : vector<32x256xf32> to vector<32x128xf32>
    %103 = vector.extract_strided_slice %101 {offsets = [0, 0], sizes = [1, 128], strides = [1, 1]} : vector<1x256xf32> to vector<1x128xf32>
    %104 = math.absf %103 : vector<1x128xf32>
    %cst_39 = arith.constant dense<0.000000e+00> : vector<1xf32>
    %105 = vector.multi_reduction <add>, %104, %cst_39 [1] : vector<1x128xf32> to vector<1xf32>
    %106 = vector.shape_cast %105 : vector<1xf32> to vector<1x1xf32>
    %cst_40 = arith.constant 9.99999996E-13 : f32
    %107 = vector.broadcast %cst_40 : f32 to vector<1x1xf32>
    %108 = arith.maximumf %106, %107 : vector<1x1xf32>
    %109 = vector.broadcast %108 : vector<1x1xf32> to vector<1x128xf32>
    %110 = arith.divf %103, %109 : vector<1x128xf32>
    %111 = vector.broadcast %110 : vector<1x128xf32> to vector<32x128xf32>
    %112 = arith.mulf %102, %111 : vector<32x128xf32>
    %cst_41 = arith.constant dense<0.000000e+00> : vector<32xf32>
    %113 = vector.multi_reduction <add>, %112, %cst_41 [1] : vector<32x128xf32> to vector<32xf32>
    %114 = vector.shape_cast %113 : vector<32xf32> to vector<32x1xf32>
    %c0_42 = arith.constant 0 : index
    %c0_43 = arith.constant 0 : index
    %115 = vector.load %arg5[%c0_42, %c0_43] : memref<32x8xf32, #tpu.memory_space<vmem>>, vector<32x8xf32>
    %116 = vector.broadcast %114 : vector<32x1xf32> to vector<32x8xf32>
    %117 = arith.mulf %115, %116 : vector<32x8xf32>
    %cst_44 = arith.constant dense<0.000000e+00> : vector<8xf32>
    %118 = vector.multi_reduction <add>, %117, %cst_44 [0] : vector<32x8xf32> to vector<8xf32>
    %119 = vector.shape_cast %118 : vector<8xf32> to vector<1x8xf32>
    %c0_45 = arith.constant 0 : index
    %c0_46 = arith.constant 0 : index
    %120 = vector.load %arg6[%c0_45, %c0_46] : memref<1x8xf32, #tpu.memory_space<vmem>>, vector<1x8xf32>
    %121 = arith.addf %119, %120 : vector<1x8xf32>
    %cst_47 = arith.constant 0.999994993 : f32
    %122 = vector.broadcast %cst_47 : f32 to vector<1x8xf32>
    %123 = arith.mulf %121, %122 : vector<1x8xf32>
    %cst_48 = arith.constant 0.000000e+00 : f32
    %124 = vector.broadcast %cst_48 : f32 to vector<1x8xf32>
    %125 = arith.maximumf %123, %124 : vector<1x8xf32>
    %c0_49 = arith.constant 0 : index
    %c0_50 = arith.constant 0 : index
    %126 = vector.load %arg7[%c0_49, %c0_50] : memref<32x8xf32, #tpu.memory_space<vmem>>, vector<32x8xf32>
    %127 = vector.broadcast %125 : vector<1x8xf32> to vector<32x8xf32>
    %128 = arith.mulf %126, %127 : vector<32x8xf32>
    %cst_51 = arith.constant dense<0.000000e+00> : vector<32xf32>
    %129 = vector.multi_reduction <add>, %128, %cst_51 [1] : vector<32x8xf32> to vector<32xf32>
    %130 = vector.shape_cast %129 : vector<32xf32> to vector<32x1xf32>
    %c0_52 = arith.constant 0 : index
    %c0_53 = arith.constant 0 : index
    %131 = vector.load %arg8[%c0_52, %c0_53] : memref<32x1xf32, #tpu.memory_space<vmem>>, vector<32x1xf32>
    %132 = arith.addf %130, %131 : vector<32x1xf32>
    %cst_54 = arith.constant 0.000000e+00 : f32
    %133 = vector.broadcast %cst_54 : f32 to vector<32x1xf32>
    %134 = arith.subf %133, %132 : vector<32x1xf32>
    %135 = math.exp %134 : vector<32x1xf32>
    %cst_55 = arith.constant 1.000000e+00 : f32
    %136 = vector.broadcast %cst_55 : f32 to vector<32x1xf32>
    %137 = arith.addf %136, %135 : vector<32x1xf32>
    %cst_56 = arith.constant 1.000000e+00 : f32
    %138 = vector.broadcast %cst_56 : f32 to vector<32x1xf32>
    %139 = arith.divf %138, %137 : vector<32x1xf32>
    %140 = vector.broadcast %139 : vector<32x1xf32> to vector<32x128xf32>
    %141 = arith.mulf %140, %102 : vector<32x128xf32>
    %142 = vector.extract_strided_slice %50 {offsets = [0, 128], sizes = [32, 128], strides = [1, 1]} : vector<32x256xf32> to vector<32x128xf32>
    %143 = vector.extract_strided_slice %101 {offsets = [0, 128], sizes = [1, 128], strides = [1, 1]} : vector<1x256xf32> to vector<1x128xf32>
    %144 = math.absf %143 : vector<1x128xf32>
    %cst_57 = arith.constant dense<0.000000e+00> : vector<1xf32>
    %145 = vector.multi_reduction <add>, %144, %cst_57 [1] : vector<1x128xf32> to vector<1xf32>
    %146 = vector.shape_cast %145 : vector<1xf32> to vector<1x1xf32>
    %cst_58 = arith.constant 9.99999996E-13 : f32
    %147 = vector.broadcast %cst_58 : f32 to vector<1x1xf32>
    %148 = arith.maximumf %146, %147 : vector<1x1xf32>
    %149 = vector.broadcast %148 : vector<1x1xf32> to vector<1x128xf32>
    %150 = arith.divf %143, %149 : vector<1x128xf32>
    %151 = vector.broadcast %150 : vector<1x128xf32> to vector<32x128xf32>
    %152 = arith.mulf %142, %151 : vector<32x128xf32>
    %cst_59 = arith.constant dense<0.000000e+00> : vector<32xf32>
    %153 = vector.multi_reduction <add>, %152, %cst_59 [1] : vector<32x128xf32> to vector<32xf32>
    %154 = vector.shape_cast %153 : vector<32xf32> to vector<32x1xf32>
    %c0_60 = arith.constant 0 : index
    %c0_61 = arith.constant 0 : index
    %155 = vector.load %arg5[%c0_60, %c0_61] : memref<32x8xf32, #tpu.memory_space<vmem>>, vector<32x8xf32>
    %156 = vector.broadcast %154 : vector<32x1xf32> to vector<32x8xf32>
    %157 = arith.mulf %155, %156 : vector<32x8xf32>
    %cst_62 = arith.constant dense<0.000000e+00> : vector<8xf32>
    %158 = vector.multi_reduction <add>, %157, %cst_62 [0] : vector<32x8xf32> to vector<8xf32>
    %159 = vector.shape_cast %158 : vector<8xf32> to vector<1x8xf32>
    %c0_63 = arith.constant 0 : index
    %c0_64 = arith.constant 0 : index
    %160 = vector.load %arg6[%c0_63, %c0_64] : memref<1x8xf32, #tpu.memory_space<vmem>>, vector<1x8xf32>
    %161 = arith.addf %159, %160 : vector<1x8xf32>
    %cst_65 = arith.constant 0.999994993 : f32
    %162 = vector.broadcast %cst_65 : f32 to vector<1x8xf32>
    %163 = arith.mulf %161, %162 : vector<1x8xf32>
    %cst_66 = arith.constant 0.000000e+00 : f32
    %164 = vector.broadcast %cst_66 : f32 to vector<1x8xf32>
    %165 = arith.maximumf %163, %164 : vector<1x8xf32>
    %c0_67 = arith.constant 0 : index
    %c0_68 = arith.constant 0 : index
    %166 = vector.load %arg7[%c0_67, %c0_68] : memref<32x8xf32, #tpu.memory_space<vmem>>, vector<32x8xf32>
    %167 = vector.broadcast %165 : vector<1x8xf32> to vector<32x8xf32>
    %168 = arith.mulf %166, %167 : vector<32x8xf32>
    %cst_69 = arith.constant dense<0.000000e+00> : vector<32xf32>
    %169 = vector.multi_reduction <add>, %168, %cst_69 [1] : vector<32x8xf32> to vector<32xf32>
    %170 = vector.shape_cast %169 : vector<32xf32> to vector<32x1xf32>
    %c0_70 = arith.constant 0 : index
    %c0_71 = arith.constant 0 : index
    %171 = vector.load %arg8[%c0_70, %c0_71] : memref<32x1xf32, #tpu.memory_space<vmem>>, vector<32x1xf32>
    %172 = arith.addf %170, %171 : vector<32x1xf32>
    %cst_72 = arith.constant 0.000000e+00 : f32
    %173 = vector.broadcast %cst_72 : f32 to vector<32x1xf32>
    %174 = arith.subf %173, %172 : vector<32x1xf32>
    %175 = math.exp %174 : vector<32x1xf32>
    %cst_73 = arith.constant 1.000000e+00 : f32
    %176 = vector.broadcast %cst_73 : f32 to vector<32x1xf32>
    %177 = arith.addf %176, %175 : vector<32x1xf32>
    %cst_74 = arith.constant 1.000000e+00 : f32
    %178 = vector.broadcast %cst_74 : f32 to vector<32x1xf32>
    %179 = arith.divf %178, %177 : vector<32x1xf32>
    %180 = vector.broadcast %179 : vector<32x1xf32> to vector<32x128xf32>
    %181 = arith.mulf %180, %142 : vector<32x128xf32>
    %182 = tpu.concatenate %141, %181 in 1 : vector<32x128xf32>, vector<32x128xf32> -> vector<32x256xf32>
    %c0_75 = arith.constant 0 : index
    %c0_76 = arith.constant 0 : index
    %183 = vector.load %arg9[%c0_75, %c0_76] : memref<32x32xf32, #tpu.memory_space<vmem>>, vector<32x32xf32>
    %184 = arith.truncf %183 : vector<32x32xf32> to vector<32x32xbf16>
    %185 = arith.truncf %182 : vector<32x256xf32> to vector<32x256xbf16>
    %cst_77 = arith.constant dense<0.000000e+00> : vector<32x256xf32>
    %186 = tpu.matmul %184, %185, %cst_77 {dimension_numbers = #tpu.dot_dimension_numbers<[1], [0], [0], [1], [0, 0, 1, 1], [], []>} : vector<32x32xbf16>, vector<32x256xbf16>, vector<32x256xf32> -> vector<32x256xf32>
    %c0_78 = arith.constant 0 : index
    %c0_79 = arith.constant 0 : index
    %187 = vector.load %arg10[%c0_78, %c0_79] : memref<32x1xf32, #tpu.memory_space<vmem>>, vector<32x1xf32>
    %188 = vector.broadcast %187 : vector<32x1xf32> to vector<32x256xf32>
    %189 = arith.addf %186, %188 : vector<32x256xf32>
    %190 = vector.extract_strided_slice %189 {offsets = [0, 0], sizes = [32, 128], strides = [1, 1]} : vector<32x256xf32> to vector<32x128xf32>
    %cst_80 = arith.constant dense<0.000000e+00> : vector<32xf32>
    %191 = vector.multi_reduction <add>, %190, %cst_80 [1] : vector<32x128xf32> to vector<32xf32>
    %192 = vector.shape_cast %191 : vector<32xf32> to vector<32x1xf32>
    %cst_81 = arith.constant 1.280000e+02 : f32
    %193 = vector.broadcast %cst_81 : f32 to vector<32x1xf32>
    %194 = arith.divf %192, %193 : vector<32x1xf32>
    %195 = vector.broadcast %194 : vector<32x1xf32> to vector<32x128xf32>
    %196 = arith.subf %190, %195 : vector<32x128xf32>
    %197 = arith.mulf %196, %196 : vector<32x128xf32>
    %cst_82 = arith.constant dense<0.000000e+00> : vector<32xf32>
    %198 = vector.multi_reduction <add>, %197, %cst_82 [1] : vector<32x128xf32> to vector<32xf32>
    %199 = vector.shape_cast %198 : vector<32xf32> to vector<32x1xf32>
    %cst_83 = arith.constant 1.280000e+02 : f32
    %200 = vector.broadcast %cst_83 : f32 to vector<32x1xf32>
    %201 = arith.divf %199, %200 : vector<32x1xf32>
    %cst_84 = arith.constant 1.000000e-03 : f32
    %202 = vector.broadcast %cst_84 : f32 to vector<32x1xf32>
    %203 = arith.addf %201, %202 : vector<32x1xf32>
    %204 = math.rsqrt %203 : vector<32x1xf32>
    %205 = vector.broadcast %204 : vector<32x1xf32> to vector<32x128xf32>
    %206 = arith.mulf %196, %205 : vector<32x128xf32>
    %cst_85 = arith.constant 0.999994993 : f32
    %207 = vector.broadcast %cst_85 : f32 to vector<32x128xf32>
    %208 = arith.mulf %206, %207 : vector<32x128xf32>
    %cst_86 = arith.constant 0.000000e+00 : f32
    %209 = vector.broadcast %cst_86 : f32 to vector<32x128xf32>
    %210 = arith.maximumf %208, %209 : vector<32x128xf32>
    %211 = vector.extract_strided_slice %189 {offsets = [0, 128], sizes = [32, 128], strides = [1, 1]} : vector<32x256xf32> to vector<32x128xf32>
    %cst_87 = arith.constant dense<0.000000e+00> : vector<32xf32>
    %212 = vector.multi_reduction <add>, %211, %cst_87 [1] : vector<32x128xf32> to vector<32xf32>
    %213 = vector.shape_cast %212 : vector<32xf32> to vector<32x1xf32>
    %cst_88 = arith.constant 1.280000e+02 : f32
    %214 = vector.broadcast %cst_88 : f32 to vector<32x1xf32>
    %215 = arith.divf %213, %214 : vector<32x1xf32>
    %216 = vector.broadcast %215 : vector<32x1xf32> to vector<32x128xf32>
    %217 = arith.subf %211, %216 : vector<32x128xf32>
    %218 = arith.mulf %217, %217 : vector<32x128xf32>
    %cst_89 = arith.constant dense<0.000000e+00> : vector<32xf32>
    %219 = vector.multi_reduction <add>, %218, %cst_89 [1] : vector<32x128xf32> to vector<32xf32>
    %220 = vector.shape_cast %219 : vector<32xf32> to vector<32x1xf32>
    %cst_90 = arith.constant 1.280000e+02 : f32
    %221 = vector.broadcast %cst_90 : f32 to vector<32x1xf32>
    %222 = arith.divf %220, %221 : vector<32x1xf32>
    %cst_91 = arith.constant 1.000000e-03 : f32
    %223 = vector.broadcast %cst_91 : f32 to vector<32x1xf32>
    %224 = arith.addf %222, %223 : vector<32x1xf32>
    %225 = math.rsqrt %224 : vector<32x1xf32>
    %226 = vector.broadcast %225 : vector<32x1xf32> to vector<32x128xf32>
    %227 = arith.mulf %217, %226 : vector<32x128xf32>
    %cst_92 = arith.constant 0.999994993 : f32
    %228 = vector.broadcast %cst_92 : f32 to vector<32x128xf32>
    %229 = arith.mulf %227, %228 : vector<32x128xf32>
    %cst_93 = arith.constant 0.000000e+00 : f32
    %230 = vector.broadcast %cst_93 : f32 to vector<32x128xf32>
    %231 = arith.maximumf %229, %230 : vector<32x128xf32>
    %232 = tpu.concatenate %210, %231 in 1 : vector<32x128xf32>, vector<32x128xf32> -> vector<32x256xf32>
    %233 = arith.addf %232, %0 : vector<32x256xf32>
    %c0_94 = arith.constant 0 : index
    %c0_95 = arith.constant 0 : index
    %234 = vector.load %arg11[%c0_94, %c0_95] : memref<32x256xf32, #tpu.memory_space<vmem>>, vector<32x256xf32>
    tpu.vector_store %arg11[%c0_94, %c0_95], %233 {strides = array<i32>} : memref<32x256xf32, #tpu.memory_space<vmem>>, vector<32x256xf32>,
    return
  }
}

module attributes {stable_mosaic.version = 11 : i64} {
  func.func @kernel(%arg0: i32, %arg1: memref<32x128xf32, #tpu.memory_space<vmem>>, %arg2: memref<1x128x128xf32, #tpu.memory_space<vmem>>) attributes {dimension_semantics = [#tpu.dimension_semantics<parallel>], iteration_bounds = array<i64: 2>, scalar_prefetch = 0 : i64, scratch_operands = 0 : i64, tpu.core_type = #tpu.core_type<tc>, window_params = [{transform_indices = @transform_0, window_bounds = array<i64: 32, 128>}, {transform_indices = @transform_1, window_bounds = array<i64: 1, 128, 128>}]} {
    %c0 = arith.constant 0 : index
    %c0_0 = arith.constant 0 : index
    %0 = vector.load %arg1[%c0, %c0_0] : memref<32x128xf32, #tpu.memory_space<vmem>>, vector<32x128xf32>
    %cst = arith.constant dense<0.000000e+00> : vector<128x128xf32>
    %1 = tpu.matmul %0, %0, %cst {dimension_numbers = #tpu.dot_dimension_numbers<[0], [0], [1], [1], [0, 1, 1, 1], [], []>} : vector<32x128xf32>, vector<32x128xf32>, vector<128x128xf32> -> vector<128x128xf32>
    %2 = arith.mulf %0, %0 : vector<32x128xf32>
    %cst_1 = arith.constant dense<0.000000e+00> : vector<128xf32>
    %3 = vector.multi_reduction <add>, %2, %cst_1 [0] : vector<32x128xf32> to vector<128xf32>
    %4 = vector.shape_cast %3 : vector<128xf32> to vector<1x128xf32>
    %5 = tpu.iota {dimensions = array<i32: 0>} : vector<128x128xi32>
    %6 = tpu.iota {dimensions = array<i32: 1>} : vector<128x128xi32>
    %7 = arith.cmpi eq, %5, %6 : vector<128x128xi32>
    %cst_2 = arith.constant 0.000000e+00 : f32
    %8 = vector.broadcast %cst_2 : f32 to vector<128x128xf32>
    %9 = arith.select %7, %1, %8 : vector<128x128xi1>, vector<128x128xf32>
    %cst_3 = arith.constant dense<0.000000e+00> : vector<128xf32>
    %10 = vector.multi_reduction <add>, %9, %cst_3 [1] : vector<128x128xf32> to vector<128xf32>
    %11 = vector.shape_cast %10 : vector<128xf32> to vector<128x1xf32>
    %cst_4 = arith.constant 2.000000e+00 : f32
    %12 = vector.broadcast %cst_4 : f32 to vector<128x128xf32>
    %13 = arith.mulf %12, %1 : vector<128x128xf32>
    %14 = vector.broadcast %4 : vector<1x128xf32> to vector<128x128xf32>
    %15 = arith.subf %13, %14 : vector<128x128xf32>
    %16 = vector.broadcast %11 : vector<128x1xf32> to vector<128x128xf32>
    %17 = arith.subf %15, %16 : vector<128x128xf32>
    %c0_5 = arith.constant 0 : index
    %c0_6 = arith.constant 0 : index
    %c0_7 = arith.constant 0 : index
    %18 = vector.load %arg2[%c0_5, %c0_6, %c0_7] : memref<1x128x128xf32, #tpu.memory_space<vmem>>, vector<1x128x128xf32>
    %19 = vector.shape_cast %18 : vector<1x128x128xf32> to vector<128x128xf32>
    %20 = vector.shape_cast %17 : vector<128x128xf32> to vector<1x128x128xf32>
    tpu.vector_store %arg2[%c0_5, %c0_6, %c0_7], %20 {strides = array<i32>} : memref<1x128x128xf32, #tpu.memory_space<vmem>>, vector<1x128x128xf32>,
    return
  }
  func.func @transform_0(%arg0: i32) -> (i32, i32) {
    %c0_i32 = arith.constant 0 : i32
    %c0_i32_0 = arith.constant 0 : i32
    return %c0_i32, %arg0 : i32, i32
  }
  func.func @transform_1(%arg0: i32) -> (i32, i32, i32) {
    %c0_i32 = arith.constant 0 : i32
    %c0_i32_0 = arith.constant 0 : i32
    %c0_i32_1 = arith.constant 0 : i32
    return %arg0, %c0_i32, %c0_i32_0 : i32, i32, i32
  }
}

module attributes {stable_mosaic.version = 11 : i64} {
  func.func @kernel(%arg0: memref<32x256xf32, #tpu.memory_space<vmem>>, %arg1: memref<96x32xf32, #tpu.memory_space<vmem>>, %arg2: memref<96x1xf32, #tpu.memory_space<vmem>>, %arg3: memref<96x256xf32, #tpu.memory_space<vmem>>) attributes {dimension_semantics = [], scalar_prefetch = 0 : i64, scratch_operands = 0 : i64, tpu.core_type = #tpu.core_type<tc>} {
    %c0 = arith.constant 0 : index
    %c0_0 = arith.constant 0 : index
    %0 = vector.load %arg1[%c0, %c0_0] : memref<96x32xf32, #tpu.memory_space<vmem>>, vector<96x32xf32>
    %c0_1 = arith.constant 0 : index
    %c0_2 = arith.constant 0 : index
    %1 = vector.load %arg0[%c0_1, %c0_2] : memref<32x256xf32, #tpu.memory_space<vmem>>, vector<32x256xf32>
    %2 = arith.truncf %0 : vector<96x32xf32> to vector<96x32xbf16>
    %3 = arith.truncf %1 : vector<32x256xf32> to vector<32x256xbf16>
    %cst = arith.constant dense<0.000000e+00> : vector<96x256xf32>
    %4 = tpu.matmul %2, %3, %cst {dimension_numbers = #tpu.dot_dimension_numbers<[1], [0], [0], [1], [0, 0, 1, 1], [], []>} : vector<96x32xbf16>, vector<32x256xbf16>, vector<96x256xf32> -> vector<96x256xf32>
    %c0_3 = arith.constant 0 : index
    %c0_4 = arith.constant 0 : index
    %5 = vector.load %arg2[%c0_3, %c0_4] : memref<96x1xf32, #tpu.memory_space<vmem>>, vector<96x1xf32>
    %6 = vector.broadcast %5 : vector<96x1xf32> to vector<96x256xf32>
    %7 = arith.addf %4, %6 : vector<96x256xf32>
    %c0_5 = arith.constant 0 : index
    %c0_6 = arith.constant 0 : index
    %8 = vector.load %arg3[%c0_5, %c0_6] : memref<96x256xf32, #tpu.memory_space<vmem>>, vector<96x256xf32>
    tpu.vector_store %arg3[%c0_5, %c0_6], %7 {strides = array<i32>} : memref<96x256xf32, #tpu.memory_space<vmem>>, vector<96x256xf32>,
    return
  }
}

module attributes {stable_mosaic.version = 11 : i64} {
  func.func @kernel(%arg0: i32, %arg1: memref<32x128xf32, #tpu.memory_space<vmem>>, %arg2: memref<96x128xf32, #tpu.memory_space<vmem>>, %arg3: memref<1x128x1xf32, #tpu.memory_space<vmem>>, %arg4: memref<1x1x128xf32, #tpu.memory_space<vmem>>, %arg5: memref<32x32xf32, #tpu.memory_space<vmem>>, %arg6: memref<32x1xf32, #tpu.memory_space<vmem>>, %arg7: memref<64x32xf32, #tpu.memory_space<vmem>>, %arg8: memref<64x32xf32, #tpu.memory_space<vmem>>, %arg9: memref<64x1xf32, #tpu.memory_space<vmem>>, %arg10: memref<32x64xf32, #tpu.memory_space<vmem>>, %arg11: memref<32x1xf32, #tpu.memory_space<vmem>>, %arg12: memref<32x128xf32, #tpu.memory_space<vmem>>, %arg13: memref<32x128xf32, #tpu.memory_space<vmem>>) attributes {dimension_semantics = [#tpu.dimension_semantics<parallel>], iteration_bounds = array<i64: 2>, scalar_prefetch = 0 : i64, scratch_operands = 1 : i64, tpu.core_type = #tpu.core_type<tc>, window_params = [{transform_indices = @transform_0, window_bounds = array<i64: 32, 128>}, {transform_indices = @transform_1, window_bounds = array<i64: 96, 128>}, {transform_indices = @transform_2, window_bounds = array<i64: 1, 128, 1>}, {transform_indices = @transform_3, window_bounds = array<i64: 1, 1, 128>}, {pipeline_mode = #tpu.pipeline_mode<synchronous>, transform_indices = @transform_4, window_bounds = array<i64: 32, 32>}, {pipeline_mode = #tpu.pipeline_mode<synchronous>, transform_indices = @transform_5, window_bounds = array<i64: 32, 1>}, {pipeline_mode = #tpu.pipeline_mode<synchronous>, transform_indices = @transform_6, window_bounds = array<i64: 64, 32>}, {pipeline_mode = #tpu.pipeline_mode<synchronous>, transform_indices = @transform_7, window_bounds = array<i64: 64, 32>}, {pipeline_mode = #tpu.pipeline_mode<synchronous>, transform_indices = @transform_8, window_bounds = array<i64: 64, 1>}, {pipeline_mode = #tpu.pipeline_mode<synchronous>, transform_indices = @transform_9, window_bounds = array<i64: 32, 64>}, {pipeline_mode = #tpu.pipeline_mode<synchronous>, transform_indices = @transform_10, window_bounds = array<i64: 32, 1>}, {transform_indices = @transform_11, window_bounds = array<i64: 32, 128>}]} {
    %c0 = arith.constant 0 : index
    %c0_0 = arith.constant 0 : index
    %0 = vector.load %arg1[%c0, %c0_0] : memref<32x128xf32, #tpu.memory_space<vmem>>, vector<32x128xf32>
    %cst = arith.constant dense<0.000000e+00> : vector<128x128xf32>
    %1 = tpu.matmul %0, %0, %cst {dimension_numbers = #tpu.dot_dimension_numbers<[0], [0], [1], [1], [0, 1, 1, 1], [], []>} : vector<32x128xf32>, vector<32x128xf32>, vector<128x128xf32> -> vector<128x128xf32>
    %2 = arith.mulf %0, %0 : vector<32x128xf32>
    %cst_1 = arith.constant dense<0.000000e+00> : vector<128xf32>
    %3 = vector.multi_reduction <add>, %2, %cst_1 [0] : vector<32x128xf32> to vector<128xf32>
    %4 = vector.shape_cast %3 : vector<128xf32> to vector<1x128xf32>
    %5 = tpu.iota {dimensions = array<i32: 0>} : vector<128x128xi32>
    %6 = tpu.iota {dimensions = array<i32: 1>} : vector<128x128xi32>
    %7 = arith.cmpi eq, %5, %6 : vector<128x128xi32>
    %cst_2 = arith.constant 0.000000e+00 : f32
    %8 = vector.broadcast %cst_2 : f32 to vector<128x128xf32>
    %9 = arith.select %7, %1, %8 : vector<128x128xi1>, vector<128x128xf32>
    %cst_3 = arith.constant dense<0.000000e+00> : vector<128xf32>
    %10 = vector.multi_reduction <add>, %9, %cst_3 [1] : vector<128x128xf32> to vector<128xf32>
    %11 = vector.shape_cast %10 : vector<128xf32> to vector<128x1xf32>
    %cst_4 = arith.constant 2.000000e+00 : f32
    %12 = vector.broadcast %cst_4 : f32 to vector<128x128xf32>
    %13 = arith.mulf %12, %1 : vector<128x128xf32>
    %14 = vector.broadcast %4 : vector<1x128xf32> to vector<128x128xf32>
    %15 = arith.subf %13, %14 : vector<128x128xf32>
    %16 = vector.broadcast %11 : vector<128x1xf32> to vector<128x128xf32>
    %17 = arith.subf %15, %16 : vector<128x128xf32>
    %c0_5 = arith.constant 0 : index
    %c0_6 = arith.constant 0 : index
    %c0_7 = arith.constant 0 : index
    %18 = vector.load %arg3[%c0_5, %c0_6, %c0_7] : memref<1x128x1xf32, #tpu.memory_space<vmem>>, vector<1x128x1xf32>
    %19 = vector.shape_cast %18 : vector<1x128x1xf32> to vector<128x1xf32>
    %20 = vector.broadcast %19 : vector<128x1xf32> to vector<128x128xf32>
    %21 = arith.cmpf oge, %17, %20 : vector<128x128xf32>
    %c0_8 = arith.constant 0 : index
    %c0_9 = arith.constant 0 : index
    %c0_10 = arith.constant 0 : index
    %22 = vector.load %arg4[%c0_8, %c0_9, %c0_10] : memref<1x1x128xf32, #tpu.memory_space<vmem>>, vector<1x1x128xf32>
    %23 = vector.shape_cast %22 : vector<1x1x128xf32> to vector<1x128xf32>
    %24 = vector.broadcast %23 : vector<1x128xf32> to vector<128x128xf32>
    %25 = arith.cmpf oge, %17, %24 : vector<128x128xf32>
    %26 = arith.andi %21, %25 : vector<128x128xi1>
    %c0_11 = arith.constant 0 : index
    %c0_12 = arith.constant 0 : index
    %27 = vector.load %arg2[%c0_11, %c0_12] : memref<96x128xf32, #tpu.memory_space<vmem>>, vector<8x128xf32>
    %28 = arith.truncf %27 : vector<8x128xf32> to vector<8x128xbf16>
    %c32 = arith.constant 32 : index
    %c0_13 = arith.constant 0 : index
    %29 = vector.load %arg2[%c32, %c0_13] : memref<96x128xf32, #tpu.memory_space<vmem>>, vector<8x128xf32>
    %30 = arith.truncf %29 : vector<8x128xf32> to vector<8x128xbf16>
    %c64 = arith.constant 64 : index
    %c0_14 = arith.constant 0 : index
    %31 = vector.load %arg2[%c64, %c0_14] : memref<96x128xf32, #tpu.memory_space<vmem>>, vector<8x128xf32>
    %32 = arith.truncf %31 : vector<8x128xf32> to vector<8x128xbf16>
    %cst_15 = arith.constant dense<0.000000e+00> : vector<128x128xf32>
    %33 = tpu.matmul %28, %30, %cst_15 {dimension_numbers = #tpu.dot_dimension_numbers<[0], [0], [1], [1], [0, 1, 1, 1], [], []>} : vector<8x128xbf16>, vector<8x128xbf16>, vector<128x128xf32> -> vector<128x128xf32>
    %cst_16 = arith.constant 0.353553385 : f32
    %34 = vector.broadcast %cst_16 : f32 to vector<128x128xf32>
    %35 = arith.mulf %33, %34 : vector<128x128xf32>
    %cst_17 = arith.constant -1.000000e+09 : f32
    %36 = vector.broadcast %cst_17 : f32 to vector<128x128xf32>
    %37 = arith.select %26, %35, %36 : vector<128x128xi1>, vector<128x128xf32>
    %cst_18 = arith.constant dense<0xFF800000> : vector<128xf32>
    %38 = vector.multi_reduction <maximumf>, %37, %cst_18 [1] : vector<128x128xf32> to vector<128xf32>
    %39 = vector.shape_cast %38 : vector<128xf32> to vector<128x1xf32>
    %40 = vector.broadcast %39 : vector<128x1xf32> to vector<128x128xf32>
    %41 = arith.subf %37, %40 : vector<128x128xf32>
    %42 = math.exp %41 : vector<128x128xf32>
    %cst_19 = arith.constant dense<0.000000e+00> : vector<128xf32>
    %43 = vector.multi_reduction <add>, %42, %cst_19 [1] : vector<128x128xf32> to vector<128xf32>
    %44 = vector.shape_cast %43 : vector<128xf32> to vector<128x1xf32>
    %45 = vector.broadcast %44 : vector<128x1xf32> to vector<128x128xf32>
    %46 = arith.divf %42, %45 : vector<128x128xf32>
    %47 = arith.truncf %46 : vector<128x128xf32> to vector<128x128xbf16>
    %cst_20 = arith.constant dense<0.000000e+00> : vector<8x128xf32>
    %48 = tpu.matmul %32, %47, %cst_20 {dimension_numbers = #tpu.dot_dimension_numbers<[1], [1], [0], [0], [0, 0, 1, 0], [], []>} : vector<8x128xbf16>, vector<128x128xbf16>, vector<8x128xf32> -> vector<8x128xf32>
    %c0_21 = arith.constant 0 : index
    %c0_22 = arith.constant 0 : index
    %49 = vector.load %arg13[%c0_21, %c0_22] : memref<32x128xf32, #tpu.memory_space<vmem>>, vector<8x128xf32>
    tpu.vector_store %arg13[%c0_21, %c0_22], %48 {strides = array<i32>} : memref<32x128xf32, #tpu.memory_space<vmem>>, vector<8x128xf32>,
    %c8 = arith.constant 8 : index
    %c0_23 = arith.constant 0 : index
    %50 = vector.load %arg2[%c8, %c0_23] : memref<96x128xf32, #tpu.memory_space<vmem>>, vector<8x128xf32>
    %51 = arith.truncf %50 : vector<8x128xf32> to vector<8x128xbf16>
    %c40 = arith.constant 40 : index
    %c0_24 = arith.constant 0 : index
    %52 = vector.load %arg2[%c40, %c0_24] : memref<96x128xf32, #tpu.memory_space<vmem>>, vector<8x128xf32>
    %53 = arith.truncf %52 : vector<8x128xf32> to vector<8x128xbf16>
    %c72 = arith.constant 72 : index
    %c0_25 = arith.constant 0 : index
    %54 = vector.load %arg2[%c72, %c0_25] : memref<96x128xf32, #tpu.memory_space<vmem>>, vector<8x128xf32>
    %55 = arith.truncf %54 : vector<8x128xf32> to vector<8x128xbf16>
    %cst_26 = arith.constant dense<0.000000e+00> : vector<128x128xf32>
    %56 = tpu.matmul %51, %53, %cst_26 {dimension_numbers = #tpu.dot_dimension_numbers<[0], [0], [1], [1], [0, 1, 1, 1], [], []>} : vector<8x128xbf16>, vector<8x128xbf16>, vector<128x128xf32> -> vector<128x128xf32>
    %cst_27 = arith.constant 0.353553385 : f32
    %57 = vector.broadcast %cst_27 : f32 to vector<128x128xf32>
    %58 = arith.mulf %56, %57 : vector<128x128xf32>
    %cst_28 = arith.constant -1.000000e+09 : f32
    %59 = vector.broadcast %cst_28 : f32 to vector<128x128xf32>
    %60 = arith.select %26, %58, %59 : vector<128x128xi1>, vector<128x128xf32>
    %cst_29 = arith.constant dense<0xFF800000> : vector<128xf32>
    %61 = vector.multi_reduction <maximumf>, %60, %cst_29 [1] : vector<128x128xf32> to vector<128xf32>
    %62 = vector.shape_cast %61 : vector<128xf32> to vector<128x1xf32>
    %63 = vector.broadcast %62 : vector<128x1xf32> to vector<128x128xf32>
    %64 = arith.subf %60, %63 : vector<128x128xf32>
    %65 = math.exp %64 : vector<128x128xf32>
    %cst_30 = arith.constant dense<0.000000e+00> : vector<128xf32>
    %66 = vector.multi_reduction <add>, %65, %cst_30 [1] : vector<128x128xf32> to vector<128xf32>
    %67 = vector.shape_cast %66 : vector<128xf32> to vector<128x1xf32>
    %68 = vector.broadcast %67 : vector<128x1xf32> to vector<128x128xf32>
    %69 = arith.divf %65, %68 : vector<128x128xf32>
    %70 = arith.truncf %69 : vector<128x128xf32> to vector<128x128xbf16>
    %cst_31 = arith.constant dense<0.000000e+00> : vector<8x128xf32>
    %71 = tpu.matmul %55, %70, %cst_31 {dimension_numbers = #tpu.dot_dimension_numbers<[1], [1], [0], [0], [0, 0, 1, 0], [], []>} : vector<8x128xbf16>, vector<128x128xbf16>, vector<8x128xf32> -> vector<8x128xf32>
    %c8_32 = arith.constant 8 : index
    %c0_33 = arith.constant 0 : index
    %72 = vector.load %arg13[%c8_32, %c0_33] : memref<32x128xf32, #tpu.memory_space<vmem>>, vector<8x128xf32>
    tpu.vector_store %arg13[%c8_32, %c0_33], %71 {strides = array<i32>} : memref<32x128xf32, #tpu.memory_space<vmem>>, vector<8x128xf32>,
    %c16 = arith.constant 16 : index
    %c0_34 = arith.constant 0 : index
    %73 = vector.load %arg2[%c16, %c0_34] : memref<96x128xf32, #tpu.memory_space<vmem>>, vector<8x128xf32>
    %74 = arith.truncf %73 : vector<8x128xf32> to vector<8x128xbf16>
    %c48 = arith.constant 48 : index
    %c0_35 = arith.constant 0 : index
    %75 = vector.load %arg2[%c48, %c0_35] : memref<96x128xf32, #tpu.memory_space<vmem>>, vector<8x128xf32>
    %76 = arith.truncf %75 : vector<8x128xf32> to vector<8x128xbf16>
    %c80 = arith.constant 80 : index
    %c0_36 = arith.constant 0 : index
    %77 = vector.load %arg2[%c80, %c0_36] : memref<96x128xf32, #tpu.memory_space<vmem>>, vector<8x128xf32>
    %78 = arith.truncf %77 : vector<8x128xf32> to vector<8x128xbf16>
    %cst_37 = arith.constant dense<0.000000e+00> : vector<128x128xf32>
    %79 = tpu.matmul %74, %76, %cst_37 {dimension_numbers = #tpu.dot_dimension_numbers<[0], [0], [1], [1], [0, 1, 1, 1], [], []>} : vector<8x128xbf16>, vector<8x128xbf16>, vector<128x128xf32> -> vector<128x128xf32>
    %cst_38 = arith.constant 0.353553385 : f32
    %80 = vector.broadcast %cst_38 : f32 to vector<128x128xf32>
    %81 = arith.mulf %79, %80 : vector<128x128xf32>
    %cst_39 = arith.constant -1.000000e+09 : f32
    %82 = vector.broadcast %cst_39 : f32 to vector<128x128xf32>
    %83 = arith.select %26, %81, %82 : vector<128x128xi1>, vector<128x128xf32>
    %cst_40 = arith.constant dense<0xFF800000> : vector<128xf32>
    %84 = vector.multi_reduction <maximumf>, %83, %cst_40 [1] : vector<128x128xf32> to vector<128xf32>
    %85 = vector.shape_cast %84 : vector<128xf32> to vector<128x1xf32>
    %86 = vector.broadcast %85 : vector<128x1xf32> to vector<128x128xf32>
    %87 = arith.subf %83, %86 : vector<128x128xf32>
    %88 = math.exp %87 : vector<128x128xf32>
    %cst_41 = arith.constant dense<0.000000e+00> : vector<128xf32>
    %89 = vector.multi_reduction <add>, %88, %cst_41 [1] : vector<128x128xf32> to vector<128xf32>
    %90 = vector.shape_cast %89 : vector<128xf32> to vector<128x1xf32>
    %91 = vector.broadcast %90 : vector<128x1xf32> to vector<128x128xf32>
    %92 = arith.divf %88, %91 : vector<128x128xf32>
    %93 = arith.truncf %92 : vector<128x128xf32> to vector<128x128xbf16>
    %cst_42 = arith.constant dense<0.000000e+00> : vector<8x128xf32>
    %94 = tpu.matmul %78, %93, %cst_42 {dimension_numbers = #tpu.dot_dimension_numbers<[1], [1], [0], [0], [0, 0, 1, 0], [], []>} : vector<8x128xbf16>, vector<128x128xbf16>, vector<8x128xf32> -> vector<8x128xf32>
    %c16_43 = arith.constant 16 : index
    %c0_44 = arith.constant 0 : index
    %95 = vector.load %arg13[%c16_43, %c0_44] : memref<32x128xf32, #tpu.memory_space<vmem>>, vector<8x128xf32>
    tpu.vector_store %arg13[%c16_43, %c0_44], %94 {strides = array<i32>} : memref<32x128xf32, #tpu.memory_space<vmem>>, vector<8x128xf32>,
    %c24 = arith.constant 24 : index
    %c0_45 = arith.constant 0 : index
    %96 = vector.load %arg2[%c24, %c0_45] : memref<96x128xf32, #tpu.memory_space<vmem>>, vector<8x128xf32>
    %97 = arith.truncf %96 : vector<8x128xf32> to vector<8x128xbf16>
    %c56 = arith.constant 56 : index
    %c0_46 = arith.constant 0 : index
    %98 = vector.load %arg2[%c56, %c0_46] : memref<96x128xf32, #tpu.memory_space<vmem>>, vector<8x128xf32>
    %99 = arith.truncf %98 : vector<8x128xf32> to vector<8x128xbf16>
    %c88 = arith.constant 88 : index
    %c0_47 = arith.constant 0 : index
    %100 = vector.load %arg2[%c88, %c0_47] : memref<96x128xf32, #tpu.memory_space<vmem>>, vector<8x128xf32>
    %101 = arith.truncf %100 : vector<8x128xf32> to vector<8x128xbf16>
    %cst_48 = arith.constant dense<0.000000e+00> : vector<128x128xf32>
    %102 = tpu.matmul %97, %99, %cst_48 {dimension_numbers = #tpu.dot_dimension_numbers<[0], [0], [1], [1], [0, 1, 1, 1], [], []>} : vector<8x128xbf16>, vector<8x128xbf16>, vector<128x128xf32> -> vector<128x128xf32>
    %cst_49 = arith.constant 0.353553385 : f32
    %103 = vector.broadcast %cst_49 : f32 to vector<128x128xf32>
    %104 = arith.mulf %102, %103 : vector<128x128xf32>
    %cst_50 = arith.constant -1.000000e+09 : f32
    %105 = vector.broadcast %cst_50 : f32 to vector<128x128xf32>
    %106 = arith.select %26, %104, %105 : vector<128x128xi1>, vector<128x128xf32>
    %cst_51 = arith.constant dense<0xFF800000> : vector<128xf32>
    %107 = vector.multi_reduction <maximumf>, %106, %cst_51 [1] : vector<128x128xf32> to vector<128xf32>
    %108 = vector.shape_cast %107 : vector<128xf32> to vector<128x1xf32>
    %109 = vector.broadcast %108 : vector<128x1xf32> to vector<128x128xf32>
    %110 = arith.subf %106, %109 : vector<128x128xf32>
    %111 = math.exp %110 : vector<128x128xf32>
    %cst_52 = arith.constant dense<0.000000e+00> : vector<128xf32>
    %112 = vector.multi_reduction <add>, %111, %cst_52 [1] : vector<128x128xf32> to vector<128xf32>
    %113 = vector.shape_cast %112 : vector<128xf32> to vector<128x1xf32>
    %114 = vector.broadcast %113 : vector<128x1xf32> to vector<128x128xf32>
    %115 = arith.divf %111, %114 : vector<128x128xf32>
    %116 = arith.truncf %115 : vector<128x128xf32> to vector<128x128xbf16>
    %cst_53 = arith.constant dense<0.000000e+00> : vector<8x128xf32>
    %117 = tpu.matmul %101, %116, %cst_53 {dimension_numbers = #tpu.dot_dimension_numbers<[1], [1], [0], [0], [0, 0, 1, 0], [], []>} : vector<8x128xbf16>, vector<128x128xbf16>, vector<8x128xf32> -> vector<8x128xf32>
    %c24_54 = arith.constant 24 : index
    %c0_55 = arith.constant 0 : index
    %118 = vector.load %arg13[%c24_54, %c0_55] : memref<32x128xf32, #tpu.memory_space<vmem>>, vector<8x128xf32>
    tpu.vector_store %arg13[%c24_54, %c0_55], %117 {strides = array<i32>} : memref<32x128xf32, #tpu.memory_space<vmem>>, vector<8x128xf32>,
    %c0_56 = arith.constant 0 : index
    %c0_57 = arith.constant 0 : index
    %119 = vector.load %arg13[%c0_56, %c0_57] : memref<32x128xf32, #tpu.memory_space<vmem>>, vector<32x128xf32>
    %c0_58 = arith.constant 0 : index
    %c0_59 = arith.constant 0 : index
    %120 = vector.load %arg5[%c0_58, %c0_59] : memref<32x32xf32, #tpu.memory_space<vmem>>, vector<32x32xf32>
    %121 = arith.truncf %120 : vector<32x32xf32> to vector<32x32xbf16>
    %122 = arith.truncf %119 : vector<32x128xf32> to vector<32x128xbf16>
    %cst_60 = arith.constant dense<0.000000e+00> : vector<32x128xf32>
    %123 = tpu.matmul %121, %122, %cst_60 {dimension_numbers = #tpu.dot_dimension_numbers<[1], [0], [0], [1], [0, 0, 1, 1], [], []>} : vector<32x32xbf16>, vector<32x128xbf16>, vector<32x128xf32> -> vector<32x128xf32>
    %c0_61 = arith.constant 0 : index
    %c0_62 = arith.constant 0 : index
    %124 = vector.load %arg6[%c0_61, %c0_62] : memref<32x1xf32, #tpu.memory_space<vmem>>, vector<32x1xf32>
    %125 = vector.broadcast %124 : vector<32x1xf32> to vector<32x128xf32>
    %126 = arith.addf %123, %125 : vector<32x128xf32>
    %c0_63 = arith.constant 0 : index
    %c0_64 = arith.constant 0 : index
    %127 = vector.load %arg7[%c0_63, %c0_64] : memref<64x32xf32, #tpu.memory_space<vmem>>, vector<64x32xf32>
    %128 = arith.truncf %127 : vector<64x32xf32> to vector<64x32xbf16>
    %129 = arith.truncf %0 : vector<32x128xf32> to vector<32x128xbf16>
    %cst_65 = arith.constant dense<0.000000e+00> : vector<64x128xf32>
    %130 = tpu.matmul %128, %129, %cst_65 {dimension_numbers = #tpu.dot_dimension_numbers<[1], [0], [0], [1], [0, 0, 1, 1], [], []>} : vector<64x32xbf16>, vector<32x128xbf16>, vector<64x128xf32> -> vector<64x128xf32>
    %c0_66 = arith.constant 0 : index
    %c0_67 = arith.constant 0 : index
    %131 = vector.load %arg8[%c0_66, %c0_67] : memref<64x32xf32, #tpu.memory_space<vmem>>, vector<64x32xf32>
    %132 = arith.truncf %131 : vector<64x32xf32> to vector<64x32xbf16>
    %133 = arith.truncf %126 : vector<32x128xf32> to vector<32x128xbf16>
    %cst_68 = arith.constant dense<0.000000e+00> : vector<64x128xf32>
    %134 = tpu.matmul %132, %133, %cst_68 {dimension_numbers = #tpu.dot_dimension_numbers<[1], [0], [0], [1], [0, 0, 1, 1], [], []>} : vector<64x32xbf16>, vector<32x128xbf16>, vector<64x128xf32> -> vector<64x128xf32>
    %135 = arith.addf %130, %134 : vector<64x128xf32>
    %c0_69 = arith.constant 0 : index
    %c0_70 = arith.constant 0 : index
    %136 = vector.load %arg9[%c0_69, %c0_70] : memref<64x1xf32, #tpu.memory_space<vmem>>, vector<64x1xf32>
    %137 = vector.broadcast %136 : vector<64x1xf32> to vector<64x128xf32>
    %138 = arith.addf %135, %137 : vector<64x128xf32>
    %cst_71 = arith.constant 0.999994993 : f32
    %139 = vector.broadcast %cst_71 : f32 to vector<64x128xf32>
    %140 = arith.mulf %138, %139 : vector<64x128xf32>
    %cst_72 = arith.constant 0.000000e+00 : f32
    %141 = vector.broadcast %cst_72 : f32 to vector<64x128xf32>
    %142 = arith.maximumf %140, %141 : vector<64x128xf32>
    %c0_73 = arith.constant 0 : index
    %c0_74 = arith.constant 0 : index
    %143 = vector.load %arg10[%c0_73, %c0_74] : memref<32x64xf32, #tpu.memory_space<vmem>>, vector<32x64xf32>
    %144 = arith.truncf %143 : vector<32x64xf32> to vector<32x64xbf16>
    %145 = arith.truncf %142 : vector<64x128xf32> to vector<64x128xbf16>
    %cst_75 = arith.constant dense<0.000000e+00> : vector<32x128xf32>
    %146 = tpu.matmul %144, %145, %cst_75 {dimension_numbers = #tpu.dot_dimension_numbers<[1], [0], [0], [1], [0, 0, 1, 1], [], []>} : vector<32x64xbf16>, vector<64x128xbf16>, vector<32x128xf32> -> vector<32x128xf32>
    %147 = arith.addf %0, %146 : vector<32x128xf32>
    %c0_76 = arith.constant 0 : index
    %c0_77 = arith.constant 0 : index
    %148 = vector.load %arg11[%c0_76, %c0_77] : memref<32x1xf32, #tpu.memory_space<vmem>>, vector<32x1xf32>
    %149 = vector.broadcast %148 : vector<32x1xf32> to vector<32x128xf32>
    %150 = arith.addf %147, %149 : vector<32x128xf32>
    %c0_78 = arith.constant 0 : index
    %c0_79 = arith.constant 0 : index
    %151 = vector.load %arg12[%c0_78, %c0_79] : memref<32x128xf32, #tpu.memory_space<vmem>>, vector<32x128xf32>
    tpu.vector_store %arg12[%c0_78, %c0_79], %150 {strides = array<i32>} : memref<32x128xf32, #tpu.memory_space<vmem>>, vector<32x128xf32>,
    return
  }
  func.func @transform_0(%arg0: i32) -> (i32, i32) {
    %c0_i32 = arith.constant 0 : i32
    %c0_i32_0 = arith.constant 0 : i32
    return %c0_i32, %arg0 : i32, i32
  }
  func.func @transform_1(%arg0: i32) -> (i32, i32) {
    %c0_i32 = arith.constant 0 : i32
    %c0_i32_0 = arith.constant 0 : i32
    return %c0_i32, %arg0 : i32, i32
  }
  func.func @transform_2(%arg0: i32) -> (i32, i32, i32) {
    %c0_i32 = arith.constant 0 : i32
    %c0_i32_0 = arith.constant 0 : i32
    %c0_i32_1 = arith.constant 0 : i32
    return %arg0, %c0_i32, %c0_i32_0 : i32, i32, i32
  }
  func.func @transform_3(%arg0: i32) -> (i32, i32, i32) {
    %c0_i32 = arith.constant 0 : i32
    %c0_i32_0 = arith.constant 0 : i32
    %c0_i32_1 = arith.constant 0 : i32
    return %arg0, %c0_i32, %c0_i32_0 : i32, i32, i32
  }
  func.func @transform_4(%arg0: i32) -> (i32, i32) {
    %c0_i32 = arith.constant 0 : i32
    %c0_i32_0 = arith.constant 0 : i32
    %c0_i32_1 = arith.constant 0 : i32
    return %c0_i32, %c0_i32_0 : i32, i32
  }
  func.func @transform_5(%arg0: i32) -> (i32, i32) {
    %c0_i32 = arith.constant 0 : i32
    %c0_i32_0 = arith.constant 0 : i32
    %c0_i32_1 = arith.constant 0 : i32
    return %c0_i32, %c0_i32_0 : i32, i32
  }
  func.func @transform_6(%arg0: i32) -> (i32, i32) {
    %c0_i32 = arith.constant 0 : i32
    %c0_i32_0 = arith.constant 0 : i32
    %c0_i32_1 = arith.constant 0 : i32
    return %c0_i32, %c0_i32_0 : i32, i32
  }
  func.func @transform_7(%arg0: i32) -> (i32, i32) {
    %c0_i32 = arith.constant 0 : i32
    %c0_i32_0 = arith.constant 0 : i32
    %c0_i32_1 = arith.constant 0 : i32
    return %c0_i32, %c0_i32_0 : i32, i32
  }
  func.func @transform_8(%arg0: i32) -> (i32, i32) {
    %c0_i32 = arith.constant 0 : i32
    %c0_i32_0 = arith.constant 0 : i32
    %c0_i32_1 = arith.constant 0 : i32
    return %c0_i32, %c0_i32_0 : i32, i32
  }
  func.func @transform_9(%arg0: i32) -> (i32, i32) {
    %c0_i32 = arith.constant 0 : i32
    %c0_i32_0 = arith.constant 0 : i32
    %c0_i32_1 = arith.constant 0 : i32
    return %c0_i32, %c0_i32_0 : i32, i32
  }
  func.func @transform_10(%arg0: i32) -> (i32, i32) {
    %c0_i32 = arith.constant 0 : i32
    %c0_i32_0 = arith.constant 0 : i32
    %c0_i32_1 = arith.constant 0 : i32
    return %c0_i32, %c0_i32_0 : i32, i32
  }
  func.func @transform_11(%arg0: i32) -> (i32, i32) {
    %c0_i32 = arith.constant 0 : i32
    %c0_i32_0 = arith.constant 0 : i32
    return %c0_i32, %arg0 : i32, i32
  }
}

module attributes {stable_mosaic.version = 11 : i64} {
  func.func @kernel(%arg0: i32, %arg1: memref<32x128xf32, #tpu.memory_space<vmem>>, %arg2: memref<8x32xf32, #tpu.memory_space<vmem>>, %arg3: memref<8x1xf32, #tpu.memory_space<vmem>>, %arg4: memref<1x32x32xf32, #tpu.memory_space<vmem>>, %arg5: memref<1x32x1xf32, #tpu.memory_space<vmem>>, %arg6: memref<1x8x8xf32, #tpu.memory_space<vmem>>, %arg7: memref<1x1x8xf32, #tpu.memory_space<vmem>>, %arg8: memref<1x32x32xf32, #tpu.memory_space<vmem>>, %arg9: memref<1x32x1xf32, #tpu.memory_space<vmem>>, %arg10: memref<8x32xf32, #tpu.memory_space<vmem>>, %arg11: memref<8x1xf32, #tpu.memory_space<vmem>>, %arg12: memref<32x128xf32, #tpu.memory_space<vmem>>) attributes {dimension_semantics = [#tpu.dimension_semantics<parallel>], iteration_bounds = array<i64: 2>, scalar_prefetch = 0 : i64, scratch_operands = 0 : i64, tpu.core_type = #tpu.core_type<tc>, window_params = [{transform_indices = @transform_0, window_bounds = array<i64: 32, 128>}, {pipeline_mode = #tpu.pipeline_mode<synchronous>, transform_indices = @transform_1, window_bounds = array<i64: 8, 32>}, {pipeline_mode = #tpu.pipeline_mode<synchronous>, transform_indices = @transform_2, window_bounds = array<i64: 8, 1>}, {pipeline_mode = #tpu.pipeline_mode<synchronous>, transform_indices = @transform_3, window_bounds = array<i64: 1, 32, 32>}, {pipeline_mode = #tpu.pipeline_mode<synchronous>, transform_indices = @transform_4, window_bounds = array<i64: 1, 32, 1>}, {pipeline_mode = #tpu.pipeline_mode<synchronous>, transform_indices = @transform_5, window_bounds = array<i64: 1, 8, 8>}, {pipeline_mode = #tpu.pipeline_mode<synchronous>, transform_indices = @transform_6, window_bounds = array<i64: 1, 1, 8>}, {pipeline_mode = #tpu.pipeline_mode<synchronous>, transform_indices = @transform_7, window_bounds = array<i64: 1, 32, 32>}, {pipeline_mode = #tpu.pipeline_mode<synchronous>, transform_indices = @transform_8, window_bounds = array<i64: 1, 32, 1>}, {pipeline_mode = #tpu.pipeline_mode<synchronous>, transform_indices = @transform_9, window_bounds = array<i64: 8, 32>}, {pipeline_mode = #tpu.pipeline_mode<synchronous>, transform_indices = @transform_10, window_bounds = array<i64: 8, 1>}, {transform_indices = @transform_11, window_bounds = array<i64: 32, 128>}]} {
    %c0 = arith.constant 0 : index
    %c0_0 = arith.constant 0 : index
    %0 = vector.load %arg1[%c0, %c0_0] : memref<32x128xf32, #tpu.memory_space<vmem>>, vector<32x128xf32>
    %cst = arith.constant dense<0.000000e+00> : vector<32xf32>
    %1 = vector.multi_reduction <add>, %0, %cst [1] : vector<32x128xf32> to vector<32xf32>
    %2 = vector.shape_cast %1 : vector<32xf32> to vector<32x1xf32>
    %cst_1 = arith.constant 1.280000e+02 : f32
    %3 = vector.broadcast %cst_1 : f32 to vector<32x1xf32>
    %4 = arith.divf %2, %3 : vector<32x1xf32>
    %5 = vector.broadcast %4 : vector<32x1xf32> to vector<32x128xf32>
    %6 = arith.subf %0, %5 : vector<32x128xf32>
    %7 = arith.mulf %6, %6 : vector<32x128xf32>
    %cst_2 = arith.constant dense<0.000000e+00> : vector<32xf32>
    %8 = vector.multi_reduction <add>, %7, %cst_2 [1] : vector<32x128xf32> to vector<32xf32>
    %9 = vector.shape_cast %8 : vector<32xf32> to vector<32x1xf32>
    %cst_3 = arith.constant 1.280000e+02 : f32
    %10 = vector.broadcast %cst_3 : f32 to vector<32x1xf32>
    %11 = arith.divf %9, %10 : vector<32x1xf32>
    %cst_4 = arith.constant 1.000000e-03 : f32
    %12 = vector.broadcast %cst_4 : f32 to vector<32x1xf32>
    %13 = arith.addf %11, %12 : vector<32x1xf32>
    %14 = math.rsqrt %13 : vector<32x1xf32>
    %15 = vector.broadcast %14 : vector<32x1xf32> to vector<32x128xf32>
    %16 = arith.mulf %6, %15 : vector<32x128xf32>
    %cst_5 = arith.constant 0.999994993 : f32
    %17 = vector.broadcast %cst_5 : f32 to vector<32x128xf32>
    %18 = arith.mulf %16, %17 : vector<32x128xf32>
    %cst_6 = arith.constant 0.000000e+00 : f32
    %19 = vector.broadcast %cst_6 : f32 to vector<32x128xf32>
    %20 = arith.maximumf %18, %19 : vector<32x128xf32>
    %c0_7 = arith.constant 0 : index
    %c0_8 = arith.constant 0 : index
    %21 = vector.load %arg2[%c0_7, %c0_8] : memref<8x32xf32, #tpu.memory_space<vmem>>, vector<8x32xf32>
    %cst_9 = arith.constant dense<0.000000e+00> : vector<8x128xf32>
    %22 = tpu.matmul %21, %20, %cst_9 {dimension_numbers = #tpu.dot_dimension_numbers<[1], [0], [0], [1], [0, 0, 1, 1], [], []>} : vector<8x32xf32>, vector<32x128xf32>, vector<8x128xf32> -> vector<8x128xf32>
    %c0_10 = arith.constant 0 : index
    %c0_11 = arith.constant 0 : index
    %23 = vector.load %arg3[%c0_10, %c0_11] : memref<8x1xf32, #tpu.memory_space<vmem>>, vector<8x1xf32>
    %24 = vector.broadcast %23 : vector<8x1xf32> to vector<8x128xf32>
    %25 = arith.addf %22, %24 : vector<8x128xf32>
    %cst_12 = arith.constant dense<0xFF800000> : vector<8xf32>
    %26 = vector.multi_reduction <maximumf>, %25, %cst_12 [1] : vector<8x128xf32> to vector<8xf32>
    %27 = vector.shape_cast %26 : vector<8xf32> to vector<8x1xf32>
    %28 = vector.broadcast %27 : vector<8x1xf32> to vector<8x128xf32>
    %29 = arith.subf %25, %28 : vector<8x128xf32>
    %30 = math.exp %29 : vector<8x128xf32>
    %cst_13 = arith.constant dense<0.000000e+00> : vector<8xf32>
    %31 = vector.multi_reduction <add>, %30, %cst_13 [1] : vector<8x128xf32> to vector<8xf32>
    %32 = vector.shape_cast %31 : vector<8xf32> to vector<8x1xf32>
    %33 = vector.broadcast %32 : vector<8x1xf32> to vector<8x128xf32>
    %34 = arith.divf %30, %33 : vector<8x128xf32>
    %cst_14 = arith.constant dense<0.000000e+00> : vector<32x8xf32>
    %35 = tpu.matmul %0, %34, %cst_14 {dimension_numbers = #tpu.dot_dimension_numbers<[1], [1], [0], [0], [0, 0, 1, 0], [], []>} : vector<32x128xf32>, vector<8x128xf32>, vector<32x8xf32> -> vector<32x8xf32>
    %c0_15 = arith.constant 0 : index
    %c0_16 = arith.constant 0 : index
    %c0_17 = arith.constant 0 : index
    %36 = vector.load %arg4[%c0_15, %c0_16, %c0_17] : memref<1x32x32xf32, #tpu.memory_space<vmem>>, vector<1x32x32xf32>
    %37 = vector.shape_cast %36 : vector<1x32x32xf32> to vector<32x32xf32>
    %cst_18 = arith.constant dense<0.000000e+00> : vector<32xf32>
    %38 = vector.multi_reduction <add>, %35, %cst_18 [1] : vector<32x8xf32> to vector<32xf32>
    %39 = vector.shape_cast %38 : vector<32xf32> to vector<32x1xf32>
    %cst_19 = arith.constant 8.000000e+00 : f32
    %40 = vector.broadcast %cst_19 : f32 to vector<32x1xf32>
    %41 = arith.divf %39, %40 : vector<32x1xf32>
    %42 = vector.broadcast %41 : vector<32x1xf32> to vector<32x8xf32>
    %43 = arith.subf %35, %42 : vector<32x8xf32>
    %44 = arith.mulf %43, %43 : vector<32x8xf32>
    %cst_20 = arith.constant dense<0.000000e+00> : vector<32xf32>
    %45 = vector.multi_reduction <add>, %44, %cst_20 [1] : vector<32x8xf32> to vector<32xf32>
    %46 = vector.shape_cast %45 : vector<32xf32> to vector<32x1xf32>
    %cst_21 = arith.constant 8.000000e+00 : f32
    %47 = vector.broadcast %cst_21 : f32 to vector<32x1xf32>
    %48 = arith.divf %46, %47 : vector<32x1xf32>
    %cst_22 = arith.constant 1.000000e-03 : f32
    %49 = vector.broadcast %cst_22 : f32 to vector<32x1xf32>
    %50 = arith.addf %48, %49 : vector<32x1xf32>
    %51 = math.rsqrt %50 : vector<32x1xf32>
    %52 = vector.broadcast %51 : vector<32x1xf32> to vector<32x8xf32>
    %53 = arith.mulf %43, %52 : vector<32x8xf32>
    %cst_23 = arith.constant 0.999994993 : f32
    %54 = vector.broadcast %cst_23 : f32 to vector<32x8xf32>
    %55 = arith.mulf %53, %54 : vector<32x8xf32>
    %cst_24 = arith.constant 0.000000e+00 : f32
    %56 = vector.broadcast %cst_24 : f32 to vector<32x8xf32>
    %57 = arith.maximumf %55, %56 : vector<32x8xf32>
    %cst_25 = arith.constant dense<0.000000e+00> : vector<32x8xf32>
    %58 = tpu.matmul %37, %57, %cst_25 {dimension_numbers = #tpu.dot_dimension_numbers<[1], [0], [0], [1], [0, 0, 1, 1], [], []>} : vector<32x32xf32>, vector<32x8xf32>, vector<32x8xf32> -> vector<32x8xf32>
    %c0_26 = arith.constant 0 : index
    %c0_27 = arith.constant 0 : index
    %c0_28 = arith.constant 0 : index
    %59 = vector.load %arg5[%c0_26, %c0_27, %c0_28] : memref<1x32x1xf32, #tpu.memory_space<vmem>>, vector<1x32x1xf32>
    %60 = vector.shape_cast %59 : vector<1x32x1xf32> to vector<32x1xf32>
    %61 = vector.broadcast %60 : vector<32x1xf32> to vector<32x8xf32>
    %62 = arith.addf %58, %61 : vector<32x8xf32>
    %cst_29 = arith.constant 0.999994993 : f32
    %63 = vector.broadcast %cst_29 : f32 to vector<32x8xf32>
    %64 = arith.mulf %62, %63 : vector<32x8xf32>
    %cst_30 = arith.constant 0.000000e+00 : f32
    %65 = vector.broadcast %cst_30 : f32 to vector<32x8xf32>
    %66 = arith.maximumf %64, %65 : vector<32x8xf32>
    %c0_31 = arith.constant 0 : index
    %c0_32 = arith.constant 0 : index
    %c0_33 = arith.constant 0 : index
    %67 = vector.load %arg6[%c0_31, %c0_32, %c0_33] : memref<1x8x8xf32, #tpu.memory_space<vmem>>, vector<1x8x8xf32>
    %68 = vector.shape_cast %67 : vector<1x8x8xf32> to vector<8x8xf32>
    %cst_34 = arith.constant dense<0.000000e+00> : vector<32x8xf32>
    %69 = tpu.matmul %66, %68, %cst_34 {dimension_numbers = #tpu.dot_dimension_numbers<[1], [0], [0], [1], [0, 0, 1, 1], [], []>} : vector<32x8xf32>, vector<8x8xf32>, vector<32x8xf32> -> vector<32x8xf32>
    %70 = arith.addf %62, %69 : vector<32x8xf32>
    %c0_35 = arith.constant 0 : index
    %c0_36 = arith.constant 0 : index
    %c0_37 = arith.constant 0 : index
    %71 = vector.load %arg7[%c0_35, %c0_36, %c0_37] : memref<1x1x8xf32, #tpu.memory_space<vmem>>, vector<1x1x8xf32>
    %72 = vector.shape_cast %71 : vector<1x1x8xf32> to vector<1x8xf32>
    %73 = vector.broadcast %72 : vector<1x8xf32> to vector<32x8xf32>
    %74 = arith.addf %70, %73 : vector<32x8xf32>
    %c0_38 = arith.constant 0 : index
    %c0_39 = arith.constant 0 : index
    %c0_40 = arith.constant 0 : index
    %75 = vector.load %arg8[%c0_38, %c0_39, %c0_40] : memref<1x32x32xf32, #tpu.memory_space<vmem>>, vector<1x32x32xf32>
    %76 = vector.shape_cast %75 : vector<1x32x32xf32> to vector<32x32xf32>
    %cst_41 = arith.constant dense<0.000000e+00> : vector<32xf32>
    %77 = vector.multi_reduction <add>, %74, %cst_41 [1] : vector<32x8xf32> to vector<32xf32>
    %78 = vector.shape_cast %77 : vector<32xf32> to vector<32x1xf32>
    %cst_42 = arith.constant 8.000000e+00 : f32
    %79 = vector.broadcast %cst_42 : f32 to vector<32x1xf32>
    %80 = arith.divf %78, %79 : vector<32x1xf32>
    %81 = vector.broadcast %80 : vector<32x1xf32> to vector<32x8xf32>
    %82 = arith.subf %74, %81 : vector<32x8xf32>
    %83 = arith.mulf %82, %82 : vector<32x8xf32>
    %cst_43 = arith.constant dense<0.000000e+00> : vector<32xf32>
    %84 = vector.multi_reduction <add>, %83, %cst_43 [1] : vector<32x8xf32> to vector<32xf32>
    %85 = vector.shape_cast %84 : vector<32xf32> to vector<32x1xf32>
    %cst_44 = arith.constant 8.000000e+00 : f32
    %86 = vector.broadcast %cst_44 : f32 to vector<32x1xf32>
    %87 = arith.divf %85, %86 : vector<32x1xf32>
    %cst_45 = arith.constant 1.000000e-03 : f32
    %88 = vector.broadcast %cst_45 : f32 to vector<32x1xf32>
    %89 = arith.addf %87, %88 : vector<32x1xf32>
    %90 = math.rsqrt %89 : vector<32x1xf32>
    %91 = vector.broadcast %90 : vector<32x1xf32> to vector<32x8xf32>
    %92 = arith.mulf %82, %91 : vector<32x8xf32>
    %cst_46 = arith.constant 0.999994993 : f32
    %93 = vector.broadcast %cst_46 : f32 to vector<32x8xf32>
    %94 = arith.mulf %92, %93 : vector<32x8xf32>
    %cst_47 = arith.constant 0.000000e+00 : f32
    %95 = vector.broadcast %cst_47 : f32 to vector<32x8xf32>
    %96 = arith.maximumf %94, %95 : vector<32x8xf32>
    %cst_48 = arith.constant dense<0.000000e+00> : vector<32x8xf32>
    %97 = tpu.matmul %76, %96, %cst_48 {dimension_numbers = #tpu.dot_dimension_numbers<[1], [0], [0], [1], [0, 0, 1, 1], [], []>} : vector<32x32xf32>, vector<32x8xf32>, vector<32x8xf32> -> vector<32x8xf32>
    %c0_49 = arith.constant 0 : index
    %c0_50 = arith.constant 0 : index
    %c0_51 = arith.constant 0 : index
    %98 = vector.load %arg9[%c0_49, %c0_50, %c0_51] : memref<1x32x1xf32, #tpu.memory_space<vmem>>, vector<1x32x1xf32>
    %99 = vector.shape_cast %98 : vector<1x32x1xf32> to vector<32x1xf32>
    %100 = vector.broadcast %99 : vector<32x1xf32> to vector<32x8xf32>
    %101 = arith.addf %97, %100 : vector<32x8xf32>
    %102 = arith.addf %101, %35 : vector<32x8xf32>
    %c0_52 = arith.constant 0 : index
    %c0_53 = arith.constant 0 : index
    %103 = vector.load %arg10[%c0_52, %c0_53] : memref<8x32xf32, #tpu.memory_space<vmem>>, vector<8x32xf32>
    %cst_54 = arith.constant dense<0.000000e+00> : vector<8x128xf32>
    %104 = tpu.matmul %103, %20, %cst_54 {dimension_numbers = #tpu.dot_dimension_numbers<[1], [0], [0], [1], [0, 0, 1, 1], [], []>} : vector<8x32xf32>, vector<32x128xf32>, vector<8x128xf32> -> vector<8x128xf32>
    %c0_55 = arith.constant 0 : index
    %c0_56 = arith.constant 0 : index
    %105 = vector.load %arg11[%c0_55, %c0_56] : memref<8x1xf32, #tpu.memory_space<vmem>>, vector<8x1xf32>
    %106 = vector.broadcast %105 : vector<8x1xf32> to vector<8x128xf32>
    %107 = arith.addf %104, %106 : vector<8x128xf32>
    %cst_57 = arith.constant dense<0xFF800000> : vector<128xf32>
    %108 = vector.multi_reduction <maximumf>, %107, %cst_57 [0] : vector<8x128xf32> to vector<128xf32>
    %109 = vector.shape_cast %108 : vector<128xf32> to vector<1x128xf32>
    %110 = vector.broadcast %109 : vector<1x128xf32> to vector<8x128xf32>
    %111 = arith.subf %107, %110 : vector<8x128xf32>
    %112 = math.exp %111 : vector<8x128xf32>
    %cst_58 = arith.constant dense<0.000000e+00> : vector<128xf32>
    %113 = vector.multi_reduction <add>, %112, %cst_58 [0] : vector<8x128xf32> to vector<128xf32>
    %114 = vector.shape_cast %113 : vector<128xf32> to vector<1x128xf32>
    %115 = vector.broadcast %114 : vector<1x128xf32> to vector<8x128xf32>
    %116 = arith.divf %112, %115 : vector<8x128xf32>
    %cst_59 = arith.constant dense<0.000000e+00> : vector<32x128xf32>
    %117 = tpu.matmul %102, %116, %cst_59 {dimension_numbers = #tpu.dot_dimension_numbers<[1], [0], [0], [1], [0, 0, 1, 1], [], []>} : vector<32x8xf32>, vector<8x128xf32>, vector<32x128xf32> -> vector<32x128xf32>
    %c0_60 = arith.constant 0 : index
    %c0_61 = arith.constant 0 : index
    %118 = vector.load %arg12[%c0_60, %c0_61] : memref<32x128xf32, #tpu.memory_space<vmem>>, vector<32x128xf32>
    tpu.vector_store %arg12[%c0_60, %c0_61], %117 {strides = array<i32>} : memref<32x128xf32, #tpu.memory_space<vmem>>, vector<32x128xf32>,
    return
  }
  func.func @transform_0(%arg0: i32) -> (i32, i32) {
    %c0_i32 = arith.constant 0 : i32
    %c0_i32_0 = arith.constant 0 : i32
    return %c0_i32, %arg0 : i32, i32
  }
  func.func @transform_1(%arg0: i32) -> (i32, i32) {
    %c0_i32 = arith.constant 0 : i32
    %c0_i32_0 = arith.constant 0 : i32
    %c0_i32_1 = arith.constant 0 : i32
    return %c0_i32, %c0_i32_0 : i32, i32
  }
  func.func @transform_2(%arg0: i32) -> (i32, i32) {
    %c0_i32 = arith.constant 0 : i32
    %c0_i32_0 = arith.constant 0 : i32
    %c0_i32_1 = arith.constant 0 : i32
    return %c0_i32, %c0_i32_0 : i32, i32
  }
  func.func @transform_3(%arg0: i32) -> (i32, i32, i32) {
    %c0_i32 = arith.constant 0 : i32
    %c0_i32_0 = arith.constant 0 : i32
    %c0_i32_1 = arith.constant 0 : i32
    %c0_i32_2 = arith.constant 0 : i32
    return %c0_i32, %c0_i32_0, %c0_i32_1 : i32, i32, i32
  }
  func.func @transform_4(%arg0: i32) -> (i32, i32, i32) {
    %c0_i32 = arith.constant 0 : i32
    %c0_i32_0 = arith.constant 0 : i32
    %c0_i32_1 = arith.constant 0 : i32
    %c0_i32_2 = arith.constant 0 : i32
    return %c0_i32, %c0_i32_0, %c0_i32_1 : i32, i32, i32
  }
  func.func @transform_5(%arg0: i32) -> (i32, i32, i32) {
    %c0_i32 = arith.constant 0 : i32
    %c0_i32_0 = arith.constant 0 : i32
    %c0_i32_1 = arith.constant 0 : i32
    %c0_i32_2 = arith.constant 0 : i32
    return %c0_i32, %c0_i32_0, %c0_i32_1 : i32, i32, i32
  }
  func.func @transform_6(%arg0: i32) -> (i32, i32, i32) {
    %c0_i32 = arith.constant 0 : i32
    %c0_i32_0 = arith.constant 0 : i32
    %c0_i32_1 = arith.constant 0 : i32
    %c0_i32_2 = arith.constant 0 : i32
    return %c0_i32, %c0_i32_0, %c0_i32_1 : i32, i32, i32
  }
  func.func @transform_7(%arg0: i32) -> (i32, i32, i32) {
    %c0_i32 = arith.constant 0 : i32
    %c0_i32_0 = arith.constant 0 : i32
    %c0_i32_1 = arith.constant 0 : i32
    %c0_i32_2 = arith.constant 0 : i32
    return %c0_i32, %c0_i32_0, %c0_i32_1 : i32, i32, i32
  }
  func.func @transform_8(%arg0: i32) -> (i32, i32, i32) {
    %c0_i32 = arith.constant 0 : i32
    %c0_i32_0 = arith.constant 0 : i32
    %c0_i32_1 = arith.constant 0 : i32
    %c0_i32_2 = arith.constant 0 : i32
    return %c0_i32, %c0_i32_0, %c0_i32_1 : i32, i32, i32
  }
  func.func @transform_9(%arg0: i32) -> (i32, i32) {
    %c0_i32 = arith.constant 0 : i32
    %c0_i32_0 = arith.constant 0 : i32
    %c0_i32_1 = arith.constant 0 : i32
    return %c0_i32, %c0_i32_0 : i32, i32
  }
  func.func @transform_10(%arg0: i32) -> (i32, i32) {
    %c0_i32 = arith.constant 0 : i32
    %c0_i32_0 = arith.constant 0 : i32
    %c0_i32_1 = arith.constant 0 : i32
    return %c0_i32, %c0_i32_0 : i32, i32
  }
  func.func @transform_11(%arg0: i32) -> (i32, i32) {
    %c0_i32 = arith.constant 0 : i32
    %c0_i32_0 = arith.constant 0 : i32
    return %c0_i32, %arg0 : i32, i32
  }
}

module attributes {stable_mosaic.version = 11 : i64} {
  func.func @kernel(%arg0: memref<32x256xf32, #tpu.memory_space<vmem>>, %arg1: memref<32x256xf32, #tpu.memory_space<vmem>>, %arg2: memref<32x32xf32, #tpu.memory_space<vmem>>, %arg3: memref<32x32xf32, #tpu.memory_space<vmem>>, %arg4: memref<32x1xf32, #tpu.memory_space<vmem>>, %arg5: memref<32x256xf32, #tpu.memory_space<vmem>>) attributes {dimension_semantics = [], scalar_prefetch = 0 : i64, scratch_operands = 0 : i64, tpu.core_type = #tpu.core_type<tc>} {
    %c0 = arith.constant 0 : index
    %c0_0 = arith.constant 0 : index
    %0 = vector.load %arg2[%c0, %c0_0] : memref<32x32xf32, #tpu.memory_space<vmem>>, vector<32x32xf32>
    %c0_1 = arith.constant 0 : index
    %c0_2 = arith.constant 0 : index
    %1 = vector.load %arg0[%c0_1, %c0_2] : memref<32x256xf32, #tpu.memory_space<vmem>>, vector<32x256xf32>
    %2 = arith.truncf %0 : vector<32x32xf32> to vector<32x32xbf16>
    %3 = arith.truncf %1 : vector<32x256xf32> to vector<32x256xbf16>
    %cst = arith.constant dense<0.000000e+00> : vector<32x256xf32>
    %4 = tpu.matmul %2, %3, %cst {dimension_numbers = #tpu.dot_dimension_numbers<[1], [0], [0], [1], [0, 0, 1, 1], [], []>} : vector<32x32xbf16>, vector<32x256xbf16>, vector<32x256xf32> -> vector<32x256xf32>
    %c0_3 = arith.constant 0 : index
    %c0_4 = arith.constant 0 : index
    %5 = vector.load %arg3[%c0_3, %c0_4] : memref<32x32xf32, #tpu.memory_space<vmem>>, vector<32x32xf32>
    %c0_5 = arith.constant 0 : index
    %c0_6 = arith.constant 0 : index
    %6 = vector.load %arg1[%c0_5, %c0_6] : memref<32x256xf32, #tpu.memory_space<vmem>>, vector<32x256xf32>
    %7 = arith.truncf %5 : vector<32x32xf32> to vector<32x32xbf16>
    %8 = arith.truncf %6 : vector<32x256xf32> to vector<32x256xbf16>
    %cst_7 = arith.constant dense<0.000000e+00> : vector<32x256xf32>
    %9 = tpu.matmul %7, %8, %cst_7 {dimension_numbers = #tpu.dot_dimension_numbers<[1], [0], [0], [1], [0, 0, 1, 1], [], []>} : vector<32x32xbf16>, vector<32x256xbf16>, vector<32x256xf32> -> vector<32x256xf32>
    %10 = arith.addf %4, %9 : vector<32x256xf32>
    %c0_8 = arith.constant 0 : index
    %c0_9 = arith.constant 0 : index
    %11 = vector.load %arg4[%c0_8, %c0_9] : memref<32x1xf32, #tpu.memory_space<vmem>>, vector<32x1xf32>
    %12 = vector.broadcast %11 : vector<32x1xf32> to vector<32x256xf32>
    %13 = arith.addf %10, %12 : vector<32x256xf32>
    %cst_10 = arith.constant 0.999994993 : f32
    %14 = vector.broadcast %cst_10 : f32 to vector<32x256xf32>
    %15 = arith.mulf %13, %14 : vector<32x256xf32>
    %cst_11 = arith.constant 0.000000e+00 : f32
    %16 = vector.broadcast %cst_11 : f32 to vector<32x256xf32>
    %17 = arith.maximumf %15, %16 : vector<32x256xf32>
    %c0_12 = arith.constant 0 : index
    %c0_13 = arith.constant 0 : index
    %18 = vector.load %arg5[%c0_12, %c0_13] : memref<32x256xf32, #tpu.memory_space<vmem>>, vector<32x256xf32>
    tpu.vector_store %arg5[%c0_12, %c0_13], %17 {strides = array<i32>} : memref<32x256xf32, #tpu.memory_space<vmem>>, vector<32x256xf32>,
    return
  }
}

module attributes {stable_mosaic.version = 11 : i64} {
  func.func @kernel(%arg0: memref<32x256xf32, #tpu.memory_space<vmem>>, %arg1: memref<1x32xf32, #tpu.memory_space<vmem>>, %arg2: memref<1x1xf32, #tpu.memory_space<vmem>>, %arg3: memref<1x256xf32, #tpu.memory_space<vmem>>) attributes {dimension_semantics = [], scalar_prefetch = 0 : i64, scratch_operands = 0 : i64, tpu.core_type = #tpu.core_type<tc>} {
    %c0 = arith.constant 0 : index
    %c0_0 = arith.constant 0 : index
    %0 = vector.load %arg1[%c0, %c0_0] : memref<1x32xf32, #tpu.memory_space<vmem>>, vector<1x32xf32>
    %c0_1 = arith.constant 0 : index
    %c0_2 = arith.constant 0 : index
    %1 = vector.load %arg0[%c0_1, %c0_2] : memref<32x256xf32, #tpu.memory_space<vmem>>, vector<32x256xf32>
    %2 = arith.truncf %0 : vector<1x32xf32> to vector<1x32xbf16>
    %3 = arith.truncf %1 : vector<32x256xf32> to vector<32x256xbf16>
    %cst = arith.constant dense<0.000000e+00> : vector<1x256xf32>
    %4 = tpu.matmul %2, %3, %cst {dimension_numbers = #tpu.dot_dimension_numbers<[1], [0], [0], [1], [0, 0, 1, 1], [], []>} : vector<1x32xbf16>, vector<32x256xbf16>, vector<1x256xf32> -> vector<1x256xf32>
    %c0_3 = arith.constant 0 : index
    %c0_4 = arith.constant 0 : index
    %5 = vector.load %arg2[%c0_3, %c0_4] : memref<1x1xf32, #tpu.memory_space<vmem>>, vector<1x1xf32>
    %6 = vector.broadcast %5 : vector<1x1xf32> to vector<1x256xf32>
    %7 = arith.addf %4, %6 : vector<1x256xf32>
    %c0_5 = arith.constant 0 : index
    %c0_6 = arith.constant 0 : index
    %8 = vector.load %arg3[%c0_5, %c0_6] : memref<1x256xf32, #tpu.memory_space<vmem>>, vector<1x256xf32>
    tpu.vector_store %arg3[%c0_5, %c0_6], %7 {strides = array<i32>} : memref<1x256xf32, #tpu.memory_space<vmem>>, vector<1x256xf32>,
    return
  }
}

</mosaic_0001>

<llo_original>
// kernel: rna_block.16
$region0: #{rna_block.16}
  #allocation0 [shape = 'u32[]', space=smem, size = 0x4, offset = 0x4, fixed_abs, tag = 'smem constant byte address 0x4 - core index']
  #allocation1 [shape = 'u32[72,128]{1,0:T(1,128)}', space=vmem, size = 0x9000, scoped, tag = 'internal scratch']
  %s0 = inlined_call_operand.vmem [shape: f32[4,256], index: 0, kind: input, shape index: {}]
  %s1 = inlined_call_operand.vmem [shape: f32[32,4], index: 1, kind: input, shape index: {}]
  %s2 = inlined_call_operand.vmem [shape: f32[32,1], index: 2, kind: input, shape index: {}]
  %s3 = inlined_call_operand.vmem [shape: f32[32,256], index: 3, kind: output, shape index: {}]
  %s4 = sld [smem:[#allocation0]]
  $region22: #{rna_block.16} parent=0
    _
  %s6 = ssub.s32 1, %s4
  %s7 = scalar_select 0, %s6, %s4
  // Predicated region
  $region2: #{rna_block.16} parent=0 // pred_check
    _
  $region3: #{rna_block.16} parent=0 // pred_check_branch
    %9 = sbr.rel (0) target = $region5
  $region4: #{rna_block.16} parent=0 // pred_region
    _
  $region5: #{rna_block.16} parent=0 // pred_fallthru
    _
  // Predicated region
  $region6: #{rna_block.16} parent=0 // pred_check
    _
  $region7: #{rna_block.16} parent=0 // pred_check_branch
    %11 = sbr.rel (0) target = $region9
  $region8: #{rna_block.16} parent=0 // pred_region
    _
  $region9: #{rna_block.16} parent=0 // pred_fallthru
    _
  // Predicated region
  $region10: #{rna_block.16} parent=0 // pred_check
    _
  $region11: #{rna_block.16} parent=0 // pred_check_branch
    %13 = sbr.rel (0) target = $region13
  $region12: #{rna_block.16} parent=0 // pred_region
    _
  $region13: #{rna_block.16} parent=0 // pred_fallthru
    _
  %v15 = vld [vmem:[%s1] sm:$0xff]
  %v16 = vld [vmem:[%s1 + $0x8] sm:$0xff]
  %v17 = vld [vmem:[%s1 + $0x10] sm:$0xff]
  %v18 = vld [vmem:[%s1 + $0x18] sm:$0xff]
  %v19 = vld [vmem:[%s0] sm:$0xff]
  %v20 = vpack.c.bf16 %v16, %v15
  %v21 = vpack.c.bf16 %v18, %v17
  %23 = vst [vmem:[#allocation1] ss:$2 sm:$0xff] %v19
  %v24 = vld.sshfl [vmem:[#allocation1] sm:$0xff pattern:$0x75316420]
  %v25 = vld.sshfl [vmem:[#allocation1 + $0x8] sm:$0xff pattern:$0x75316420]
  %v28 = vpack.c.bf16 %v24, %v24
  %v29 = vpack.c.bf16 %v25, %v25
  %v30 = vld [vmem:[%s2] sm:$0xff]
  %v31 = vld [vmem:[%s2 + $0x8] sm:$0xff]
  %v32 = vld [vmem:[%s2 + $0x10] sm:$0xff]
  %v33 = vld [vmem:[%s2 + $0x18] sm:$0xff]
  %35 = vset.pattern.permute.xlu0 0
  %36 = vperm.xlu0 %35, %v30
  %v37 = vpop.permute.xlu0 %36
  %40 = vset.pattern.permute.xlu0 0
  %41 = vperm.xlu0 %40, %v31
  %v42 = vpop.permute.xlu0 %41
  %45 = vset.pattern.permute.xlu0 0
  %46 = vperm.xlu0 %45, %v32
  %v47 = vpop.permute.xlu0 %46
  %50 = vset.pattern.permute.xlu0 0
  %51 = vperm.xlu0 %50, %v33
  %v52 = vpop.permute.xlu0 %51
  %vm54 = vcmask 31744
  %v56 = vsel %vm54, %v20, 0
  %v59 = vsel %vm54, %v21, 0
  %vm61 = vcmask 1041408
  %v63 = vsel %vm61, %v28, 0
  %v66 = vsel %vm61, %v29, 0
  %68 = vmatpush.bf16.msra.mxu0 0
  %69 = vmatpush.bf16.msra.mxu0 0
  %70 = vmatpush.bf16.msra.mxu0 0
  %71 = vmatpush.bf16.msra.mxu0 0
  %72 = vmatpush.bf16.msra.mxu0 0
  %73 = vmatpush.bf16.msra.mxu0 0
  %74 = vmatpush.bf16.msra.mxu0 0
  %75 = vmatpush.bf16.msra.mxu0 %v63
  %76 = vmatmul.bf16.gmra.mxu0 %v56
  %v77 = vpop.f32.mrf.mxu0
  %v78 = vadd.f32 %v37, %v77
  %v79 = vpop.f32.mrf.mxu0
  %v80 = vadd.f32 %v42, %v79
  %81 = vmatmul.bf16.gmra.mxu0 %v59
  %v82 = vpop.f32.mrf.mxu0
  %v83 = vadd.f32 %v47, %v82
  %v84 = vpop.f32.mrf.mxu0
  %v85 = vadd.f32 %v52, %v84
  %86 = vdwg.mxu0
  %87 = vmatpush.bf16.msra.mxu0 0
  %88 = vmatpush.bf16.msra.mxu0 0
  %89 = vmatpush.bf16.msra.mxu0 0
  %90 = vmatpush.bf16.msra.mxu0 0
  %91 = vmatpush.bf16.msra.mxu0 0
  %92 = vmatpush.bf16.msra.mxu0 0
  %93 = vmatpush.bf16.msra.mxu0 0
  %94 = vmatpush.bf16.msra.mxu0 %v66
  %95 = vmatmul.bf16.gmra.mxu0 %v56
  %v96 = vpop.f32.mrf.mxu0
  %v97 = vadd.f32 %v37, %v96
  %v98 = vpop.f32.mrf.mxu0
  %v99 = vadd.f32 %v42, %v98
  %100 = vmatmul.bf16.gmra.mxu0 %v59
  %v101 = vpop.f32.mrf.mxu0
  %v102 = vadd.f32 %v47, %v101
  %v103 = vpop.f32.mrf.mxu0
  %v104 = vadd.f32 %v52, %v103
  %105 = vdwg.mxu0
  %106 = vst [vmem:[%s3] sm:$0xff] %v78
  %107 = vst [vmem:[%s3 + $0x8] sm:$0xff] %v97
  %108 = vst [vmem:[%s3 + $0x10] sm:$0xff] %v80
  %109 = vst [vmem:[%s3 + $0x18] sm:$0xff] %v99
  %110 = vst [vmem:[%s3 + $0x20] sm:$0xff] %v83
  %111 = vst [vmem:[%s3 + $0x28] sm:$0xff] %v102
  %112 = vst [vmem:[%s3 + $0x30] sm:$0xff] %v85
  %113 = vst [vmem:[%s3 + $0x38] sm:$0xff] %v104
  // Predicated region
  $region14: #{rna_block.16} parent=0 // pred_check
    _
  $region15: #{rna_block.16} parent=0 // pred_check_branch
    %115 = sbr.rel (0) target = $region17
  $region16: #{rna_block.16} parent=0 // pred_region
    _
  $region17: #{rna_block.16} parent=0 // pred_fallthru
    _
  // Predicated region
  $region18: #{rna_block.16} parent=0 // pred_check
    _
  $region19: #{rna_block.16} parent=0 // pred_check_branch
    %117 = sbr.rel (0) target = $region21
  $region20: #{rna_block.16} parent=0 // pred_region
    _
  $region21: #{rna_block.16} parent=0 // pred_fallthru
    _

// kernel: rna_block.21
$region0: #{rna_block.21}
  #allocation0 [shape = 'u32[]', space=smem, size = 0x4, offset = 0x4, fixed_abs, tag = 'smem constant byte address 0x4 - core index']
  #allocation1 [shape = 'u32[72,128]{1,0:T(1,128)}', space=vmem, size = 0x9000, scoped, tag = 'internal scratch']
  %s0 = inlined_call_operand.vmem [shape: f32[32,256], index: 0, kind: input, shape index: {}]
  %s1 = inlined_call_operand.vmem [shape: f32[2,128,128], index: 1, kind: output, shape index: {}]
  %s2 = sld [smem:[#allocation0]]
  $region75: #{rna_block.21} parent=0
    _
  %s4 = ssub.s32 1, %s2
  %s5 = scalar_select 0, %s4, %s2
  $region1: #{rna_block.21} parent=0
    #allocation2 [shape = 'u8[32768]{0}', space=vmem, size = 0x8000, scoped, tag = 'input window, operand 0']
    loop: start=0, step=1, limit=4
    $region2: #{rna_block.21} parent=1 // loop_pre_header
      _
    $region3: #{rna_block.21} parent=1 // loop_header
      %s7 = sphi 0, %s11
      %p8 = scmp.ge.s32.totalorder %s7, 4
      %s17 = sphi 0, %s19
      %s20 = sphi 0, %s17
      %s21 = sphi 0, %s20
      %s37 = sphi 0, %s21
      %s43 = sphi 0, %s45
      %s46 = sphi 0, %s43
      %s47 = sphi 0, %s46
      %s63 = sphi 0, %s47
    $region4: #{rna_block.21} parent=1 // loop_header_branch
      %10 = sbr.rel (%p8) target = $region8
    $region5: #{rna_block.21} parent=1 // loop_body
      %s12 = ssub.s32 %s7, 1
      %s13 = ssub.s32 %s7, 2
      %s14 = sadd.s32 %s7, 1
      %s15 = ssub.s32 %s7, %s14
      %p16 = scmp.eq.s32.totalorder %s15, 0
      %s18 = sadd.s32 %s17, 1
      %s19 = scalar_select %p16, %s17, %s18
      %p22 = pneg %p16
      %p23 = scmp.eq.s32.totalorder %s7, 1
      %p24 = por %p22, %p23
      %p25 = scmp.ne.s32.totalorder %s17, %s20
      %p26 = scmp.eq.s32.totalorder %s7, 0
      %p27 = por %p25, %p26
      %p28 = scmp.ne.s32.totalorder %s17, %s20
      %p29 = scmp.eq.s32.totalorder %s12, 1
      %p30 = por %p28, %p29
      %p31 = scmp.ne.s32.totalorder %s20, %s21
      %p32 = scmp.eq.s32.totalorder %s12, 0
      %p33 = por %p31, %p32
      %p34 = scmp.ne.s32.totalorder %s20, %s21
      %p35 = scmp.eq.s32.totalorder %s13, 1
      %p36 = por %p34, %p35
      %p38 = scmp.ne.s32.totalorder %s21, %s37
      %p39 = scmp.eq.s32.totalorder %s13, 0
      %p40 = por %p38, %p39
      %s41 = ssub.s32 %s7, %s14
      %p42 = scmp.eq.s32.totalorder %s41, 0
      %s44 = sadd.s32 %s43, 1
      %s45 = scalar_select %p42, %s43, %s44
      %p48 = pneg %p42
      %p49 = scmp.eq.s32.totalorder %s7, 1
      %p50 = por %p48, %p49
      %p51 = scmp.ne.s32.totalorder %s43, %s46
      %p52 = scmp.eq.s32.totalorder %s7, 0
      %p53 = por %p51, %p52
      %p54 = scmp.ne.s32.totalorder %s43, %s46
      %p55 = scmp.eq.s32.totalorder %s12, 1
      %p56 = por %p54, %p55
      %p57 = scmp.ne.s32.totalorder %s46, %s47
      %p58 = scmp.eq.s32.totalorder %s12, 0
      %p59 = por %p57, %p58
      %p60 = scmp.ne.s32.totalorder %s46, %s47
      %p61 = scmp.eq.s32.totalorder %s13, 1
      %p62 = por %p60, %p61
      %p64 = scmp.ne.s32.totalorder %s47, %s63
      %p65 = scmp.eq.s32.totalorder %s13, 0
      %p66 = por %p64, %p65
      %p67 = scmp.le.s32.totalorder 1, %s7
      %p68 = scmp.lt.s32.totalorder %s7, 3
      %p69 = pnand %p67, %p68
      %p70 = pneg %p69
      // Predicated region
      $region9: #{rna_block.21} parent=5 // pred_check
        _
      $region10: #{rna_block.21} parent=5 // pred_check_branch
        %72 = sbr.rel (%p69) target = $region12
      $region11: #{rna_block.21} parent=5 // pred_region
        %s73 = ssub.s32 %s7, 1
      $region12: #{rna_block.21} parent=5 // pred_fallthru
        _
      %p74 = scmp.lt.s32.totalorder %s7, 2
      // Predicated region
      $region13: #{rna_block.21} parent=5 // pred_check
        %p75 = pneg %p74
      $region14: #{rna_block.21} parent=5 // pred_check_branch
        %77 = sbr.rel (%p75) target = $region16
      $region15: #{rna_block.21} parent=5 // pred_region
        // Predicated region
        $region17: #{rna_block.21} parent=15 // pred_check
          %p78 = pneg %p27
        $region18: #{rna_block.21} parent=15 // pred_check_branch
          %80 = sbr.rel (%p78) target = $region20
        $region19: #{rna_block.21} parent=15 // pred_region
          %s81 = sand.u32 %s17, 1
          %s82 = sand.u32 %s17, 1
          %s83 = smul.addr %s82, 32
          %s84 = scalar_lea.vmem [#allocation2], %s83
          %s85 = smul.addr %s7, 8
          %s86 = scalar_lea.vmem %s0, %s85
          // Predicated region
          $region21: #{rna_block.21} parent=19 // pred_check
            _
          $region22: #{rna_block.21} parent=19 // pred_check_branch
            %88 = sbr.rel (0) target = $region24
          $region23: #{rna_block.21} parent=19 // pred_region
            // Predicated region
            $region25: #{rna_block.21} parent=23 // pred_check
              _
            $region26: #{rna_block.21} parent=23 // pred_check_branch
              %90 = sbr.rel (0) target = $region28
            $region27: #{rna_block.21} parent=23 // pred_region
              // Predicated region
              $region40: #{rna_block.21} parent=27 // pred_check
                _
              $region41: #{rna_block.21} parent=27 // pred_check_branch
                %112 = sbr.rel (0) target = $region43
              $region42: #{rna_block.21} parent=27 // pred_region
                loop: start=0, step=1, limit=1
                $region44: #{rna_block.21} parent=42 // loop_pre_header
                  _
                $region45: #{rna_block.21} parent=42 // loop_header
                  %s114 = sphi 0, %s118
                  %p115 = scmp.ge.s32.totalorder %s114, 1
                  %s119 = sphi %s86, %s86
                  %s120 = sphi %s84, %s84
                $region46: #{rna_block.21} parent=42 // loop_header_branch
                  %117 = sbr.rel (%p115) target = $region50
                $region47: #{rna_block.21} parent=42 // loop_body
                  %v121 = vld [vmem:[%s119] sm:$0xff]
                  %122 = vst [vmem:[%s120] sm:$0xff] %v121
                  %v123 = vld [vmem:[%s119 + $0x10] sm:$0xff]
                  %124 = vst [vmem:[%s120 + $0x8] sm:$0xff] %v123
                  %v125 = vld [vmem:[%s119 + $0x20] sm:$0xff]
                  %126 = vst [vmem:[%s120 + $0x10] sm:$0xff] %v125
                  %v127 = vld [vmem:[%s119 + $0x30] sm:$0xff]
                  %128 = vst [vmem:[%s120 + $0x18] sm:$0xff] %v127
                $region48: #{rna_block.21} parent=42 // loop_footer
                  %s118 = sadd.s32 1, %s114
                $region49: #{rna_block.21} parent=42 // loop_footer_branch
                  %113 = sbr.rel target = $region45
                $region50: #{rna_block.21} parent=42 // loop_exit
                  _
              $region43: #{rna_block.21} parent=27 // pred_fallthru
                _
              // Predicated region
              $region51: #{rna_block.21} parent=27 // pred_check
                _
              $region52: #{rna_block.21} parent=27 // pred_check_branch
                %130 = sbr.rel target = $region54
              $region53: #{rna_block.21} parent=27 // pred_region
                _
              $region54: #{rna_block.21} parent=27 // pred_fallthru
                _
            $region28: #{rna_block.21} parent=23 // pred_fallthru
              _
            // Predicated region
            $region29: #{rna_block.21} parent=23 // pred_check
              _
            $region30: #{rna_block.21} parent=23 // pred_check_branch
              %92 = sbr.rel target = $region32
            $region31: #{rna_block.21} parent=23 // pred_region
              %s94 = ssub.s32 256, 1
              loop: start=0, step=1, limit=1
              $region33: #{rna_block.21} parent=31 // loop_pre_header
                _
              $region34: #{rna_block.21} parent=31 // loop_header
                %s96 = sphi 0, %s100
                %p97 = scmp.ge.s32.totalorder %s96, 1
                %s101 = sphi %s86, %s86
                %s102 = sphi %s84, %s84
              $region35: #{rna_block.21} parent=31 // loop_header_branch
                %99 = sbr.rel (%p97) target = $region39
              $region36: #{rna_block.21} parent=31 // loop_body
                %v103 = vld [vmem:[%s101] sm:%s94]
                %104 = vst [vmem:[%s102] sm:%s94] %v103
                %v105 = vld [vmem:[%s101 + $0x10] sm:%s94]
                %106 = vst [vmem:[%s102 + $0x8] sm:%s94] %v105
                %v107 = vld [vmem:[%s101 + $0x20] sm:%s94]
                %108 = vst [vmem:[%s102 + $0x10] sm:%s94] %v107
                %v109 = vld [vmem:[%s101 + $0x30] sm:%s94]
                %110 = vst [vmem:[%s102 + $0x18] sm:%s94] %v109
              $region37: #{rna_block.21} parent=31 // loop_footer
                %s100 = sadd.s32 1, %s96
              $region38: #{rna_block.21} parent=31 // loop_footer_branch
                %95 = sbr.rel target = $region34
              $region39: #{rna_block.21} parent=31 // loop_exit
                _
            $region32: #{rna_block.21} parent=23 // pred_fallthru
              _
          $region24: #{rna_block.21} parent=19 // pred_fallthru
            _
          %131 = vnop
        $region20: #{rna_block.21} parent=15 // pred_fallthru
          _
      $region16: #{rna_block.21} parent=5 // pred_fallthru
        _
      %p132 = scmp.le.s32.totalorder 1, %s7
      %p133 = scmp.lt.s32.totalorder %s7, 3
      %p134 = pnand %p132, %p133
      %p135 = pneg %p134
      // Predicated region
      $region55: #{rna_block.21} parent=5 // pred_check
        _
      $region56: #{rna_block.21} parent=5 // pred_check_branch
        %137 = sbr.rel (%p134) target = $region58
      $region57: #{rna_block.21} parent=5 // pred_region
        %s138 = ssub.s32 %s7, 1
        %s139 = sand.u32 %s20, 1
        %s140 = sand.u32 %s20, 1
        %s141 = smul.addr %s140, 32
        %s142 = scalar_lea.vmem [#allocation2], %s141
        // Predicated region
        $region59: #{rna_block.21} parent=57 // pred_check
          %p143 = pneg %p33
        $region60: #{rna_block.21} parent=57 // pred_check_branch
          %145 = sbr.rel (%p143) target = $region62
        $region61: #{rna_block.21} parent=57 // pred_region
          _
        $region62: #{rna_block.21} parent=57 // pred_fallthru
          _
        %s146 = sand.u32 %s20, 1
        %s147 = sand.u32 %s20, 1
        %s148 = smul.addr %s147, 32
        %s149 = scalar_lea.vmem [#allocation2], %s148
        %p150 = pneg %p33
        %p151 = pneg %p30
        %p152 = pneg %p59
        %p153 = pneg %p56
        %p154 = scmp.lt.s32.totalorder %s12, 1
        %s155 = scalar_select %p154, %s12, 1
        %s156 = smul.addr %s155, 16
        %s157 = smul.addr %s156, 8
        %s158 = scalar_lea.vmem %s1, %s157
        %p159 = scmp.lt.s32.totalorder %s12, 1
        %s160 = scalar_select %p159, %s12, 1
        %s161 = smul.addr %s160, 16
        %s162 = smul.addr %s161, 8
        %s163 = scalar_lea.vmem %s1, %s162
        %v164 = vld [vmem:[%s142] sm:$0xff]
        %v165 = vld [vmem:[%s142 + $0x8] sm:$0xff]
        %v166 = vld [vmem:[%s142 + $0x10] sm:$0xff]
        %v167 = vld [vmem:[%s142 + $0x18] sm:$0xff]
        %168 = vxpose.xlu0.b32.start [1/16] %v164, 128
        %169 = vxpose.xlu0.b32.cont [2/16] %v165, 128
        %170 = vxpose.xlu0.b32.cont [3/16] %v166, 128
        %171 = vxpose.xlu0.b32.cont [4/16] %v167, 128
        %172 = vxpose.xlu0.b32.cont [5/16] 0.0, 128
        %173 = vxpose.xlu0.b32.cont [6/16] 0.0, 128
        %174 = vxpose.xlu0.b32.cont [7/16] 0.0, 128
        %175 = vxpose.xlu0.b32.cont [8/16] 0.0, 128
        %176 = vxpose.xlu0.b32.cont [9/16] 0.0, 128
        %177 = vxpose.xlu0.b32.cont [10/16] 0.0, 128
        %178 = vxpose.xlu0.b32.cont [11/16] 0.0, 128
        %179 = vxpose.xlu0.b32.cont [12/16] 0.0, 128
        %180 = vxpose.xlu0.b32.cont [13/16] 0.0, 128
        %181 = vxpose.xlu0.b32.cont [14/16] 0.0, 128
        %182 = vxpose.xlu0.b32.cont [15/16] 0.0, 128
        %183 = vxpose.xlu0.b32.end [16/16] 0.0, 128
        %v184 = vpop.trf.xlu0
        %v185 = vpop.trf.xlu0
        %v186 = vpop.trf.xlu0
        %v187 = vpop.trf.xlu0
        %v188 = vpop.trf.xlu0
        %v189 = vpop.trf.xlu0
        %v190 = vpop.trf.xlu0
        %v191 = vpop.trf.xlu0
        %v192 = vpop.trf.xlu0
        %v193 = vpop.trf.xlu0
        %v194 = vpop.trf.xlu0
        %v195 = vpop.trf.xlu0
        %v196 = vpop.trf.xlu0
        %v197 = vpop.trf.xlu0
        %v198 = vpop.trf.xlu0
        %v199 = vpop.trf.xlu0
        %vm200 = vcmask 261120
        %v202 = vsel %vm200, %v184, 0
        %v205 = vsel %vm200, %v185, 0
        %v208 = vsel %vm200, %v186, 0
        %v211 = vsel %vm200, %v187, 0
        %v214 = vsel %vm200, %v188, 0
        %v217 = vsel %vm200, %v189, 0
        %v220 = vsel %vm200, %v190, 0
        %v223 = vsel %vm200, %v191, 0
        %v226 = vsel %vm200, %v192, 0
        %v229 = vsel %vm200, %v193, 0
        %v232 = vsel %vm200, %v194, 0
        %v235 = vsel %vm200, %v195, 0
        %v238 = vsel %vm200, %v196, 0
        %v241 = vsel %vm200, %v197, 0
        %v244 = vsel %vm200, %v198, 0
        %v247 = vsel %vm200, %v199, 0
        %249 = vmatpush.msra.mxu0 0.0
        %250 = vmatpush.msra.mxu0 0.0
        %251 = vmatpush.msra.mxu0 0.0
        %252 = vmatpush.msra.mxu0 0.0
        %253 = vmatpush.msra.mxu0 0.0
        %254 = vmatpush.msra.mxu0 0.0
        %255 = vmatpush.msra.mxu0 0.0
        %256 = vmatpush.msra.mxu0 0.0
        %257 = vmatpush.msra.mxu0 0.0
        %258 = vmatpush.msra.mxu0 0.0
        %259 = vmatpush.msra.mxu0 0.0
        %260 = vmatpush.msra.mxu0 0.0
        %261 = vmatpush.msra.mxu0 %v167
        %262 = vmatpush.msra.mxu0 %v166
        %263 = vmatpush.msra.mxu0 %v165
        %264 = vmatpush.msra.mxu0 %v164
        %265 = vmatmul.f32.gmra.mxu0 %v202
        %v266 = vpop.f32.mrf.mxu0
        %v267 = vadd.f32 0.0, %v266
        %268 = vmatmul.f32.gmra.mxu0 %v205
        %v269 = vpop.f32.mrf.mxu0
        %v270 = vadd.f32 0.0, %v269
        %271 = vmatmul.f32.gmra.mxu0 %v208
        %v272 = vpop.f32.mrf.mxu0
        %v273 = vadd.f32 0.0, %v272
        %274 = vmatmul.f32.gmra.mxu0 %v211
        %v275 = vpop.f32.mrf.mxu0
        %v276 = vadd.f32 0.0, %v275
        %277 = vmatmul.f32.gmra.mxu0 %v214
        %v278 = vpop.f32.mrf.mxu0
        %v279 = vadd.f32 0.0, %v278
        %280 = vmatmul.f32.gmra.mxu0 %v217
        %v281 = vpop.f32.mrf.mxu0
        %v282 = vadd.f32 0.0, %v281
        %283 = vmatmul.f32.gmra.mxu0 %v220
        %v284 = vpop.f32.mrf.mxu0
        %v285 = vadd.f32 0.0, %v284
        %286 = vmatmul.f32.gmra.mxu0 %v223
        %v287 = vpop.f32.mrf.mxu0
        %v288 = vadd.f32 0.0, %v287
        %289 = vmatmul.f32.gmra.mxu0 %v226
        %v290 = vpop.f32.mrf.mxu0
        %v291 = vadd.f32 0.0, %v290
        %292 = vmatmul.f32.gmra.mxu0 %v229
        %v293 = vpop.f32.mrf.mxu0
        %v294 = vadd.f32 0.0, %v293
        %295 = vmatmul.f32.gmra.mxu0 %v232
        %v296 = vpop.f32.mrf.mxu0
        %v297 = vadd.f32 0.0, %v296
        %298 = vmatmul.f32.gmra.mxu0 %v235
        %v299 = vpop.f32.mrf.mxu0
        %v300 = vadd.f32 0.0, %v299
        %301 = vmatmul.f32.gmra.mxu0 %v238
        %v302 = vpop.f32.mrf.mxu0
        %v303 = vadd.f32 0.0, %v302
        %304 = vmatmul.f32.gmra.mxu0 %v241
        %v305 = vpop.f32.mrf.mxu0
        %v306 = vadd.f32 0.0, %v305
        %307 = vmatmul.f32.gmra.mxu0 %v244
        %v308 = vpop.f32.mrf.mxu0
        %v309 = vadd.f32 0.0, %v308
        %310 = vmatmul.f32.gmra.mxu0 %v247
        %v311 = vpop.f32.mrf.mxu0
        %v312 = vadd.f32 0.0, %v311
        %313 = vdwg.mxu0
        %v314 = vmul.f32 %v164, %v164
        %v315 = vmul.f32 %v165, %v165
        %v316 = vmul.f32 %v166, %v166
        %v317 = vmul.f32 %v167, %v167
        %v318 = vadd.f32 %v314, %v315
        %v319 = vadd.f32 %v318, %v316
        %v320 = vadd.f32 %v319, %v317
        %v321 = vrot.slane %v320, 4
        %v322 = vadd.f32 %v320, %v321
        %v323 = vrot.slane %v322, 2
        %v324 = vadd.f32 %v322, %v323
        %v325 = vrot.slane %v324, 1
        %v326 = vadd.f32 %v324, %v325
        %v327 = vlaneseq
        %v328 = vshrl.u32 %v327, 7
        %v329 = vadd.s32 %v328, 8
        %v330 = vadd.s32 %v328, 16
        %v331 = vadd.s32 %v328, 24
        %v332 = vadd.s32 %v328, 32
        %v333 = vadd.s32 %v328, 40
        %v334 = vadd.s32 %v328, 48
        %v335 = vadd.s32 %v328, 56
        %v336 = vadd.s32 %v328, 64
        %v337 = vadd.s32 %v328, 72
        %v338 = vadd.s32 %v328, 80
        %v339 = vadd.s32 %v328, 88
        %v340 = vadd.s32 %v328, 96
        %v341 = vadd.s32 %v328, 104
        %v342 = vadd.s32 %v328, 112
        %v343 = vadd.s32 %v328, 120
        %v344 = vlaneseq
        %v345 = vand.u32 %v344, 127
        %vm346 = vcmp.eq.s32.totalorder %v328, %v345
        %vm347 = vcmp.eq.s32.totalorder %v329, %v345
        %vm348 = vcmp.eq.s32.totalorder %v330, %v345
        %vm349 = vcmp.eq.s32.totalorder %v331, %v345
        %vm350 = vcmp.eq.s32.totalorder %v332, %v345
        %vm351 = vcmp.eq.s32.totalorder %v333, %v345
        %vm352 = vcmp.eq.s32.totalorder %v334, %v345
        %vm353 = vcmp.eq.s32.totalorder %v335, %v345
        %vm354 = vcmp.eq.s32.totalorder %v336, %v345
        %vm355 = vcmp.eq.s32.totalorder %v337, %v345
        %vm356 = vcmp.eq.s32.totalorder %v338, %v345
        %vm357 = vcmp.eq.s32.totalorder %v339, %v345
        %vm358 = vcmp.eq.s32.totalorder %v340, %v345
        %vm359 = vcmp.eq.s32.totalorder %v341, %v345
        %vm360 = vcmp.eq.s32.totalorder %v342, %v345
        %vm361 = vcmp.eq.s32.totalorder %v343, %v345
        %v362 = vsel %vm346, %v267, 0.0
        %v363 = vsel %vm347, %v270, 0.0
        %v364 = vsel %vm348, %v273, 0.0
        %v365 = vsel %vm349, %v276, 0.0
        %v366 = vsel %vm350, %v279, 0.0
        %v367 = vsel %vm351, %v282, 0.0
        %v368 = vsel %vm352, %v285, 0.0
        %v369 = vsel %vm353, %v288, 0.0
        %v370 = vsel %vm354, %v291, 0.0
        %v371 = vsel %vm355, %v294, 0.0
        %v372 = vsel %vm356, %v297, 0.0
        %v373 = vsel %vm357, %v300, 0.0
        %v374 = vsel %vm358, %v303, 0.0
        %v375 = vsel %vm359, %v306, 0.0
        %v376 = vsel %vm360, %v309, 0.0
        %v377 = vsel %vm361, %v312, 0.0
        %378 = vadd.xlane.f32.xlu0 %v362
        %v379 = vpop.xlane.xlu0 %378
        %380 = vadd.xlane.f32.xlu0 %v363
        %v381 = vpop.xlane.xlu0 %380
        %382 = vadd.xlane.f32.xlu0 %v364
        %v383 = vpop.xlane.xlu0 %382
        %384 = vadd.xlane.f32.xlu0 %v365
        %v385 = vpop.xlane.xlu0 %384
        %386 = vadd.xlane.f32.xlu0 %v366
        %v387 = vpop.xlane.xlu0 %386
        %388 = vadd.xlane.f32.xlu0 %v367
        %v389 = vpop.xlane.xlu0 %388
        %390 = vadd.xlane.f32.xlu0 %v368
        %v391 = vpop.xlane.xlu0 %390
        %392 = vadd.xlane.f32.xlu0 %v369
        %v393 = vpop.xlane.xlu0 %392
        %394 = vadd.xlane.f32.xlu0 %v370
        %v395 = vpop.xlane.xlu0 %394
        %396 = vadd.xlane.f32.xlu0 %v371
        %v397 = vpop.xlane.xlu0 %396
        %398 = vadd.xlane.f32.xlu0 %v372
        %v399 = vpop.xlane.xlu0 %398
        %400 = vadd.xlane.f32.xlu0 %v373
        %v401 = vpop.xlane.xlu0 %400
        %402 = vadd.xlane.f32.xlu0 %v374
        %v403 = vpop.xlane.xlu0 %402
        %404 = vadd.xlane.f32.xlu0 %v375
        %v405 = vpop.xlane.xlu0 %404
        %406 = vadd.xlane.f32.xlu0 %v376
        %v407 = vpop.xlane.xlu0 %406
        %408 = vadd.xlane.f32.xlu0 %v377
        %v409 = vpop.xlane.xlu0 %408
        %v410 = vmul.f32 %v267, 2.0
        %v411 = vmul.f32 %v270, 2.0
        %v412 = vmul.f32 %v273, 2.0
        %v413 = vmul.f32 %v276, 2.0
        %v414 = vmul.f32 %v279, 2.0
        %v415 = vmul.f32 %v282, 2.0
        %v416 = vmul.f32 %v285, 2.0
        %v417 = vmul.f32 %v288, 2.0
        %v418 = vmul.f32 %v291, 2.0
        %v419 = vmul.f32 %v294, 2.0
        %v420 = vmul.f32 %v297, 2.0
        %v421 = vmul.f32 %v300, 2.0
        %v422 = vmul.f32 %v303, 2.0
        %v423 = vmul.f32 %v306, 2.0
        %v424 = vmul.f32 %v309, 2.0
        %v425 = vmul.f32 %v312, 2.0
        %v426 = vsub.f32 %v410, %v326
        %v427 = vsub.f32 %v411, %v326
        %v428 = vsub.f32 %v412, %v326
        %v429 = vsub.f32 %v413, %v326
        %v430 = vsub.f32 %v414, %v326
        %v431 = vsub.f32 %v415, %v326
        %v432 = vsub.f32 %v416, %v326
        %v433 = vsub.f32 %v417, %v326
        %v434 = vsub.f32 %v418, %v326
        %v435 = vsub.f32 %v419, %v326
        %v436 = vsub.f32 %v420, %v326
        %v437 = vsub.f32 %v421, %v326
        %v438 = vsub.f32 %v422, %v326
        %v439 = vsub.f32 %v423, %v326
        %v440 = vsub.f32 %v424, %v326
        %v441 = vsub.f32 %v425, %v326
        %v442 = vsub.f32 %v426, %v379
        %v443 = vsub.f32 %v427, %v381
        %v444 = vsub.f32 %v428, %v383
        %v445 = vsub.f32 %v429, %v385
        %v446 = vsub.f32 %v430, %v387
        %v447 = vsub.f32 %v431, %v389
        %v448 = vsub.f32 %v432, %v391
        %v449 = vsub.f32 %v433, %v393
        %v450 = vsub.f32 %v434, %v395
        %v451 = vsub.f32 %v435, %v397
        %v452 = vsub.f32 %v436, %v399
        %v453 = vsub.f32 %v437, %v401
        %v454 = vsub.f32 %v438, %v403
        %v455 = vsub.f32 %v439, %v405
        %v456 = vsub.f32 %v440, %v407
        %v457 = vsub.f32 %v441, %v409
        %458 = vst [vmem:[%s163] sm:$0xff] %v442
        %459 = vst [vmem:[%s163 + $0x8] sm:$0xff] %v443
        %460 = vst [vmem:[%s163 + $0x10] sm:$0xff] %v444
        %461 = vst [vmem:[%s163 + $0x18] sm:$0xff] %v445
        %462 = vst [vmem:[%s163 + $0x20] sm:$0xff] %v446
        %463 = vst [vmem:[%s163 + $0x28] sm:$0xff] %v447
        %464 = vst [vmem:[%s163 + $0x30] sm:$0xff] %v448
        %465 = vst [vmem:[%s163 + $0x38] sm:$0xff] %v449
        %466 = vst [vmem:[%s163 + $0x40] sm:$0xff] %v450
        %467 = vst [vmem:[%s163 + $0x48] sm:$0xff] %v451
        %468 = vst [vmem:[%s163 + $0x50] sm:$0xff] %v452
        %469 = vst [vmem:[%s163 + $0x58] sm:$0xff] %v453
        %470 = vst [vmem:[%s163 + $0x60] sm:$0xff] %v454
        %471 = vst [vmem:[%s163 + $0x68] sm:$0xff] %v455
        %472 = vst [vmem:[%s163 + $0x70] sm:$0xff] %v456
        %473 = vst [vmem:[%s163 + $0x78] sm:$0xff] %v457
        %p474 = scmp.lt.s32.totalorder %s12, 1
        %s475 = scalar_select %p474, %s12, 1
        %s476 = smul.addr %s475, 16
        %s477 = smul.addr %s476, 8
        %s478 = scalar_lea.vmem %s1, %s477
        // Predicated region
        $region63: #{rna_block.21} parent=57 // pred_check
          %p479 = pneg %p56
        $region64: #{rna_block.21} parent=57 // pred_check_branch
          %481 = sbr.rel (%p479) target = $region66
        $region65: #{rna_block.21} parent=57 // pred_region
          _
        $region66: #{rna_block.21} parent=57 // pred_fallthru
          _
      $region58: #{rna_block.21} parent=5 // pred_fallthru
        _
      %p482 = scmp.le.s32.totalorder 2, %s7
      // Predicated region
      $region67: #{rna_block.21} parent=5 // pred_check
        %p483 = pneg %p482
      $region68: #{rna_block.21} parent=5 // pred_check_branch
        %485 = sbr.rel (%p483) target = $region70
      $region69: #{rna_block.21} parent=5 // pred_region
        %s486 = ssub.s32 %s7, 2
        // Predicated region
        $region71: #{rna_block.21} parent=69 // pred_check
          %p487 = pneg %p62
        $region72: #{rna_block.21} parent=69 // pred_check_branch
          %489 = sbr.rel (%p487) target = $region74
        $region73: #{rna_block.21} parent=69 // pred_region
          %p490 = scmp.lt.s32.totalorder %s13, 1
          %s491 = scalar_select %p490, %s13, 1
          %s492 = smul.addr %s491, 16
          %s493 = smul.addr %s492, 8
          %s494 = scalar_lea.vmem %s1, %s493
        $region74: #{rna_block.21} parent=69 // pred_fallthru
          _
      $region70: #{rna_block.21} parent=5 // pred_fallthru
        _
    $region6: #{rna_block.21} parent=1 // loop_footer
      %s11 = sadd.s32 1, %s7
    $region7: #{rna_block.21} parent=1 // loop_footer_branch
      %6 = sbr.rel target = $region3
    $region8: #{rna_block.21} parent=1 // loop_exit
      _

// kernel: rna_block.17
$region0: #{rna_block.17}
  #allocation0 [shape = 'u32[]', space=smem, size = 0x4, offset = 0x4, fixed_abs, tag = 'smem constant byte address 0x4 - core index']
  #allocation1 [shape = 'u32[72,128]{1,0:T(1,128)}', space=vmem, size = 0x9000, scoped, tag = 'internal scratch']
  #allocation2 [shape = 'f32[1,1]{1,0:T(1,128)S(1)}', space=vmem, size = 0x200, scoped, tag = 'scoped memory for rna_block.17']
  %s0 = inlined_call_operand.vmem [shape: f32[32,256], index: 0, kind: input, shape index: {}]
  %s1 = inlined_call_operand.vmem [shape: f32[32,32], index: 1, kind: input, shape index: {}]
  %s2 = inlined_call_operand.vmem [shape: f32[32,1], index: 2, kind: input, shape index: {}]
  %s3 = inlined_call_operand.vmem [shape: f32[1,32], index: 3, kind: input, shape index: {}]
  %s4 = inlined_call_operand.<no memory space> [shape: f32[1,1], index: 4, kind: input, shape index: {}]
  %s5 = inlined_call_operand.vmem [shape: f32[32,8], index: 5, kind: input, shape index: {}]
  %s6 = inlined_call_operand.vmem [shape: f32[1,8], index: 6, kind: input, shape index: {}]
  %s7 = inlined_call_operand.vmem [shape: f32[32,8], index: 7, kind: input, shape index: {}]
  %s8 = inlined_call_operand.vmem [shape: f32[32,1], index: 8, kind: input, shape index: {}]
  %s9 = inlined_call_operand.vmem [shape: f32[32,32], index: 9, kind: input, shape index: {}]
  %s10 = inlined_call_operand.vmem [shape: f32[32,1], index: 10, kind: input, shape index: {}]
  %s11 = inlined_call_operand.vmem [shape: f32[32,256], index: 11, kind: output, shape index: {}]
  %s12 = sld [smem:[#allocation0]]
  $region54: #{rna_block.17} parent=0
    _
  %s14 = ssub.s32 1, %s12
  %s15 = scalar_select 0, %s14, %s12
  %v16 = vstv %s4
  %17 = vst [vmem:[#allocation2] sm:$0x1] %v16
  // Predicated region
  $region2: #{rna_block.17} parent=0 // pred_check
    _
  $region3: #{rna_block.17} parent=0 // pred_check_branch
    %19 = sbr.rel (0) target = $region5
  $region4: #{rna_block.17} parent=0 // pred_region
    _
  $region5: #{rna_block.17} parent=0 // pred_fallthru
    _
  // Predicated region
  $region6: #{rna_block.17} parent=0 // pred_check
    _
  $region7: #{rna_block.17} parent=0 // pred_check_branch
    %21 = sbr.rel (0) target = $region9
  $region8: #{rna_block.17} parent=0 // pred_region
    _
  $region9: #{rna_block.17} parent=0 // pred_fallthru
    _
  // Predicated region
  $region10: #{rna_block.17} parent=0 // pred_check
    _
  $region11: #{rna_block.17} parent=0 // pred_check_branch
    %23 = sbr.rel (0) target = $region13
  $region12: #{rna_block.17} parent=0 // pred_region
    _
  $region13: #{rna_block.17} parent=0 // pred_fallthru
    _
  // Predicated region
  $region14: #{rna_block.17} parent=0 // pred_check
    _
  $region15: #{rna_block.17} parent=0 // pred_check_branch
    %25 = sbr.rel (0) target = $region17
  $region16: #{rna_block.17} parent=0 // pred_region
    _
  $region17: #{rna_block.17} parent=0 // pred_fallthru
    _
  // Predicated region
  $region18: #{rna_block.17} parent=0 // pred_check
    _
  $region19: #{rna_block.17} parent=0 // pred_check_branch
    %27 = sbr.rel (0) target = $region21
  $region20: #{rna_block.17} parent=0 // pred_region
    _
  $region21: #{rna_block.17} parent=0 // pred_fallthru
    _
  // Predicated region
  $region22: #{rna_block.17} parent=0 // pred_check
    _
  $region23: #{rna_block.17} parent=0 // pred_check_branch
    %29 = sbr.rel (0) target = $region25
  $region24: #{rna_block.17} parent=0 // pred_region
    _
  $region25: #{rna_block.17} parent=0 // pred_fallthru
    _
  // Predicated region
  $region26: #{rna_block.17} parent=0 // pred_check
    _
  $region27: #{rna_block.17} parent=0 // pred_check_branch
    %31 = sbr.rel (0) target = $region29
  $region28: #{rna_block.17} parent=0 // pred_region
    _
  $region29: #{rna_block.17} parent=0 // pred_fallthru
    _
  // Predicated region
  $region30: #{rna_block.17} parent=0 // pred_check
    _
  $region31: #{rna_block.17} parent=0 // pred_check_branch
    %33 = sbr.rel (0) target = $region33
  $region32: #{rna_block.17} parent=0 // pred_region
    _
  $region33: #{rna_block.17} parent=0 // pred_fallthru
    _
  // Predicated region
  $region34: #{rna_block.17} parent=0 // pred_check
    _
  $region35: #{rna_block.17} parent=0 // pred_check_branch
    %35 = sbr.rel (0) target = $region37
  $region36: #{rna_block.17} parent=0 // pred_region
    _
  $region37: #{rna_block.17} parent=0 // pred_fallthru
    _
  // Predicated region
  $region38: #{rna_block.17} parent=0 // pred_check
    _
  $region39: #{rna_block.17} parent=0 // pred_check_branch
    %37 = sbr.rel (0) target = $region41
  $region40: #{rna_block.17} parent=0 // pred_region
    _
  $region41: #{rna_block.17} parent=0 // pred_fallthru
    _
  // Predicated region
  $region42: #{rna_block.17} parent=0 // pred_check
    _
  $region43: #{rna_block.17} parent=0 // pred_check_branch
    %39 = sbr.rel (0) target = $region45
  $region44: #{rna_block.17} parent=0 // pred_region
    _
  $region45: #{rna_block.17} parent=0 // pred_fallthru
    _
  %v41 = vld [vmem:[%s0] sm:$0xff]
  %v42 = vld [vmem:[%s0 + $0x8] sm:$0xff]
  %v43 = vld [vmem:[%s0 + $0x10] sm:$0xff]
  %v44 = vld [vmem:[%s0 + $0x18] sm:$0xff]
  %v45 = vld [vmem:[%s0 + $0x20] sm:$0xff]
  %v46 = vld [vmem:[%s0 + $0x28] sm:$0xff]
  %v47 = vld [vmem:[%s0 + $0x30] sm:$0xff]
  %v48 = vld [vmem:[%s0 + $0x38] sm:$0xff]
  %v49 = vld [vmem:[%s1] sm:$0xff]
  %v50 = vld [vmem:[%s1 + $0x8] sm:$0xff]
  %v51 = vld [vmem:[%s1 + $0x10] sm:$0xff]
  %v52 = vld [vmem:[%s1 + $0x18] sm:$0xff]
  %v53 = vpack.c.bf16 %v50, %v49
  %v54 = vpack.c.bf16 %v52, %v51
  %v55 = vpack.c.bf16 %v43, %v41
  %v56 = vpack.c.bf16 %v44, %v42
  %v57 = vpack.c.bf16 %v47, %v45
  %v58 = vpack.c.bf16 %v48, %v46
  %v59 = vld [vmem:[%s2] sm:$0xff]
  %v60 = vld [vmem:[%s2 + $0x8] sm:$0xff]
  %v61 = vld [vmem:[%s2 + $0x10] sm:$0xff]
  %v62 = vld [vmem:[%s2 + $0x18] sm:$0xff]
  %64 = vset.pattern.permute.xlu0 0
  %65 = vperm.xlu0 %64, %v59
  %v66 = vpop.permute.xlu0 %65
  %69 = vset.pattern.permute.xlu0 0
  %70 = vperm.xlu0 %69, %v60
  %v71 = vpop.permute.xlu0 %70
  %74 = vset.pattern.permute.xlu0 0
  %75 = vperm.xlu0 %74, %v61
  %v76 = vpop.permute.xlu0 %75
  %79 = vset.pattern.permute.xlu0 0
  %80 = vperm.xlu0 %79, %v62
  %v81 = vpop.permute.xlu0 %80
  %vm83 = vcmask 261120
  %v85 = vsel %vm83, %v53, 0
  %v88 = vsel %vm83, %v54, 0
  %90 = vmatpush.bf16.msra.mxu0 0
  %91 = vmatpush.bf16.msra.mxu0 0
  %92 = vmatpush.bf16.msra.mxu0 0
  %93 = vmatpush.bf16.msra.mxu0 0
  %94 = vmatpush.bf16.msra.mxu0 0
  %95 = vmatpush.bf16.msra.mxu0 0
  %96 = vmatpush.bf16.msra.mxu0 %v57
  %97 = vmatpush.bf16.msra.mxu0 %v55
  %98 = vmatmul.bf16.gmra.mxu0 %v85
  %v99 = vpop.f32.mrf.mxu0
  %v100 = vadd.f32 %v66, %v99
  %v101 = vpop.f32.mrf.mxu0
  %v102 = vadd.f32 %v71, %v101
  %103 = vmatmul.bf16.gmra.mxu0 %v88
  %v104 = vpop.f32.mrf.mxu0
  %v105 = vadd.f32 %v76, %v104
  %v106 = vpop.f32.mrf.mxu0
  %v107 = vadd.f32 %v81, %v106
  %108 = vdwg.mxu0
  %109 = vmatpush.bf16.msra.mxu0 0
  %110 = vmatpush.bf16.msra.mxu0 0
  %111 = vmatpush.bf16.msra.mxu0 0
  %112 = vmatpush.bf16.msra.mxu0 0
  %113 = vmatpush.bf16.msra.mxu0 0
  %114 = vmatpush.bf16.msra.mxu0 0
  %115 = vmatpush.bf16.msra.mxu0 %v58
  %116 = vmatpush.bf16.msra.mxu0 %v56
  %117 = vmatmul.bf16.gmra.mxu0 %v85
  %v118 = vpop.f32.mrf.mxu0
  %v119 = vadd.f32 %v66, %v118
  %v120 = vpop.f32.mrf.mxu0
  %v121 = vadd.f32 %v71, %v120
  %122 = vmatmul.bf16.gmra.mxu0 %v88
  %v123 = vpop.f32.mrf.mxu0
  %v124 = vadd.f32 %v76, %v123
  %v125 = vpop.f32.mrf.mxu0
  %v126 = vadd.f32 %v81, %v125
  %127 = vdwg.mxu0
  %128 = vadd.xlane.f32.xlu0 %v100
  %v129 = vpop.xlane.xlu0 %128
  %130 = vadd.xlane.f32.xlu0 %v102
  %v131 = vpop.xlane.xlu0 %130
  %132 = vadd.xlane.f32.xlu0 %v105
  %v133 = vpop.xlane.xlu0 %132
  %134 = vadd.xlane.f32.xlu0 %v107
  %v135 = vpop.xlane.xlu0 %134
  %v136 = vrcp.pop 128.0
  %v137 = vmul.f32 128.0, %v136
  %v138 = vsub.f32 1.0, %v137
  %v139 = vmul.f32 %v136, %v138
  %v140 = vadd.f32 %v136, %v139
  %vm141 = vweird.f32 %v136
  %v142 = vsel %vm141, %v136, %v140
  %v143 = vmul.f32 %v129, %v142
  %v144 = vmul.f32 %v131, %v142
  %v145 = vmul.f32 %v133, %v142
  %v146 = vmul.f32 %v135, %v142
  %v147 = vsub.f32 %v100, %v143
  %v148 = vsub.f32 %v102, %v144
  %v149 = vsub.f32 %v105, %v145
  %v150 = vsub.f32 %v107, %v146
  %v151 = vmul.f32 %v147, %v147
  %v152 = vmul.f32 %v148, %v148
  %v153 = vmul.f32 %v149, %v149
  %v154 = vmul.f32 %v150, %v150
  %155 = vadd.xlane.f32.xlu0 %v151
  %v156 = vpop.xlane.xlu0 %155
  %157 = vadd.xlane.f32.xlu0 %v152
  %v158 = vpop.xlane.xlu0 %157
  %159 = vadd.xlane.f32.xlu0 %v153
  %v160 = vpop.xlane.xlu0 %159
  %161 = vadd.xlane.f32.xlu0 %v154
  %v162 = vpop.xlane.xlu0 %161
  %v163 = vmul.f32 %v156, %v142
  %v164 = vmul.f32 %v158, %v142
  %v165 = vmul.f32 %v160, %v142
  %v166 = vmul.f32 %v162, %v142
  %v167 = vadd.f32 %v163, 0.001
  %v168 = vadd.f32 %v164, 0.001
  %v169 = vadd.f32 %v165, 0.001
  %v170 = vadd.f32 %v166, 0.001
  %v171 = vrsqrt.pop %v167
  %v172 = vmul.f32 %v171, %v167
  %v173 = vmul.f32 %v172, %v171
  %v174 = vmul.f32 0.5, %v173
  %v175 = vsub.f32 1.5, %v174
  %v176 = vmul.f32 %v171, %v175
  %vm177 = vweird.f32 %v167
  %vm178 = vweird.f32 %v171
  %vm179 = vmor %vm177, %vm178
  %v180 = vsel %vm179, %v171, %v176
  %v181 = vrsqrt.pop %v168
  %v182 = vmul.f32 %v181, %v168
  %v183 = vmul.f32 %v182, %v181
  %v184 = vmul.f32 0.5, %v183
  %v185 = vsub.f32 1.5, %v184
  %v186 = vmul.f32 %v181, %v185
  %vm187 = vweird.f32 %v168
  %vm188 = vweird.f32 %v181
  %vm189 = vmor %vm187, %vm188
  %v190 = vsel %vm189, %v181, %v186
  %v191 = vrsqrt.pop %v169
  %v192 = vmul.f32 %v191, %v169
  %v193 = vmul.f32 %v192, %v191
  %v194 = vmul.f32 0.5, %v193
  %v195 = vsub.f32 1.5, %v194
  %v196 = vmul.f32 %v191, %v195
  %vm197 = vweird.f32 %v169
  %vm198 = vweird.f32 %v191
  %vm199 = vmor %vm197, %vm198
  %v200 = vsel %vm199, %v191, %v196
  %v201 = vrsqrt.pop %v170
  %v202 = vmul.f32 %v201, %v170
  %v203 = vmul.f32 %v202, %v201
  %v204 = vmul.f32 0.5, %v203
  %v205 = vsub.f32 1.5, %v204
  %v206 = vmul.f32 %v201, %v205
  %vm207 = vweird.f32 %v170
  %vm208 = vweird.f32 %v201
  %vm209 = vmor %vm207, %vm208
  %v210 = vsel %vm209, %v201, %v206
  %v211 = vmul.f32 %v147, %v180
  %v212 = vmul.f32 %v148, %v190
  %v213 = vmul.f32 %v149, %v200
  %v214 = vmul.f32 %v150, %v210
  %v215 = vmul.f32 %v211, 0.999995
  %v216 = vmul.f32 %v212, 0.999995
  %v217 = vmul.f32 %v213, 0.999995
  %v218 = vmul.f32 %v214, 0.999995
  %v219 = vmax.f32 %v215, 0.0
  %v220 = vmax.f32 %v216, 0.0
  %v221 = vmax.f32 %v217, 0.0
  %v222 = vmax.f32 %v218, 0.0
  %223 = vadd.xlane.f32.xlu0 %v119
  %v224 = vpop.xlane.xlu0 %223
  %225 = vadd.xlane.f32.xlu0 %v121
  %v226 = vpop.xlane.xlu0 %225
  %227 = vadd.xlane.f32.xlu0 %v124
  %v228 = vpop.xlane.xlu0 %227
  %229 = vadd.xlane.f32.xlu0 %v126
  %v230 = vpop.xlane.xlu0 %229
  %v231 = vmul.f32 %v224, %v142
  %v232 = vmul.f32 %v226, %v142
  %v233 = vmul.f32 %v228, %v142
  %v234 = vmul.f32 %v230, %v142
  %v235 = vsub.f32 %v119, %v231
  %v236 = vsub.f32 %v121, %v232
  %v237 = vsub.f32 %v124, %v233
  %v238 = vsub.f32 %v126, %v234
  %v239 = vmul.f32 %v235, %v235
  %v240 = vmul.f32 %v236, %v236
  %v241 = vmul.f32 %v237, %v237
  %v242 = vmul.f32 %v238, %v238
  %243 = vadd.xlane.f32.xlu0 %v239
  %v244 = vpop.xlane.xlu0 %243
  %245 = vadd.xlane.f32.xlu0 %v240
  %v246 = vpop.xlane.xlu0 %245
  %247 = vadd.xlane.f32.xlu0 %v241
  %v248 = vpop.xlane.xlu0 %247
  %249 = vadd.xlane.f32.xlu0 %v242
  %v250 = vpop.xlane.xlu0 %249
  %v251 = vmul.f32 %v244, %v142
  %v252 = vmul.f32 %v246, %v142
  %v253 = vmul.f32 %v248, %v142
  %v254 = vmul.f32 %v250, %v142
  %v255 = vadd.f32 %v251, 0.001
  %v256 = vadd.f32 %v252, 0.001
  %v257 = vadd.f32 %v253, 0.001
  %v258 = vadd.f32 %v254, 0.001
  %v259 = vrsqrt.pop %v255
  %v260 = vmul.f32 %v259, %v255
  %v261 = vmul.f32 %v260, %v259
  %v262 = vmul.f32 0.5, %v261
  %v263 = vsub.f32 1.5, %v262
  %v264 = vmul.f32 %v259, %v263
  %vm265 = vweird.f32 %v255
  %vm266 = vweird.f32 %v259
  %vm267 = vmor %vm265, %vm266
  %v268 = vsel %vm267, %v259, %v264
  %v269 = vrsqrt.pop %v256
  %v270 = vmul.f32 %v269, %v256
  %v271 = vmul.f32 %v270, %v269
  %v272 = vmul.f32 0.5, %v271
  %v273 = vsub.f32 1.5, %v272
  %v274 = vmul.f32 %v269, %v273
  %vm275 = vweird.f32 %v256
  %vm276 = vweird.f32 %v269
  %vm277 = vmor %vm275, %vm276
  %v278 = vsel %vm277, %v269, %v274
  %v279 = vrsqrt.pop %v257
  %v280 = vmul.f32 %v279, %v257
  %v281 = vmul.f32 %v280, %v279
  %v282 = vmul.f32 0.5, %v281
  %v283 = vsub.f32 1.5, %v282
  %v284 = vmul.f32 %v279, %v283
  %vm285 = vweird.f32 %v257
  %vm286 = vweird.f32 %v279
  %vm287 = vmor %vm285, %vm286
  %v288 = vsel %vm287, %v279, %v284
  %v289 = vrsqrt.pop %v258
  %v290 = vmul.f32 %v289, %v258
  %v291 = vmul.f32 %v290, %v289
  %v292 = vmul.f32 0.5, %v291
  %v293 = vsub.f32 1.5, %v292
  %v294 = vmul.f32 %v289, %v293
  %vm295 = vweird.f32 %v258
  %vm296 = vweird.f32 %v289
  %vm297 = vmor %vm295, %vm296
  %v298 = vsel %vm297, %v289, %v294
  %v299 = vmul.f32 %v235, %v268
  %v300 = vmul.f32 %v236, %v278
  %v301 = vmul.f32 %v237, %v288
  %v302 = vmul.f32 %v238, %v298
  %v303 = vmul.f32 %v299, 0.999995
  %v304 = vmul.f32 %v300, 0.999995
  %v305 = vmul.f32 %v301, 0.999995
  %v306 = vmul.f32 %v302, 0.999995
  %v307 = vmax.f32 %v303, 0.0
  %v308 = vmax.f32 %v304, 0.0
  %v309 = vmax.f32 %v305, 0.0
  %v310 = vmax.f32 %v306, 0.0
  %311 = vadd.xlane.f32.xlu0 %v219
  %v312 = vpop.xlane.xlu0 %311
  %313 = vadd.xlane.f32.xlu0 %v220
  %v314 = vpop.xlane.xlu0 %313
  %315 = vadd.xlane.f32.xlu0 %v221
  %v316 = vpop.xlane.xlu0 %315
  %317 = vadd.xlane.f32.xlu0 %v222
  %v318 = vpop.xlane.xlu0 %317
  %v319 = vmul.f32 %v312, %v142
  %v320 = vmul.f32 %v314, %v142
  %v321 = vmul.f32 %v316, %v142
  %v322 = vmul.f32 %v318, %v142
  %v323 = vsub.f32 %v219, %v319
  %v324 = vsub.f32 %v220, %v320
  %v325 = vsub.f32 %v221, %v321
  %v326 = vsub.f32 %v222, %v322
  %v327 = vmul.f32 %v323, %v323
  %v328 = vmul.f32 %v324, %v324
  %v329 = vmul.f32 %v325, %v325
  %v330 = vmul.f32 %v326, %v326
  %331 = vadd.xlane.f32.xlu0 %v327
  %v332 = vpop.xlane.xlu0 %331
  %333 = vadd.xlane.f32.xlu0 %v328
  %v334 = vpop.xlane.xlu0 %333
  %335 = vadd.xlane.f32.xlu0 %v329
  %v336 = vpop.xlane.xlu0 %335
  %337 = vadd.xlane.f32.xlu0 %v330
  %v338 = vpop.xlane.xlu0 %337
  %v339 = vmul.f32 %v332, %v142
  %v340 = vmul.f32 %v334, %v142
  %v341 = vmul.f32 %v336, %v142
  %v342 = vmul.f32 %v338, %v142
  %v343 = vadd.f32 %v339, 0.001
  %v344 = vadd.f32 %v340, 0.001
  %v345 = vadd.f32 %v341, 0.001
  %v346 = vadd.f32 %v342, 0.001
  %v347 = vrsqrt.pop %v343
  %v348 = vmul.f32 %v347, %v343
  %v349 = vmul.f32 %v348, %v347
  %v350 = vmul.f32 0.5, %v349
  %v351 = vsub.f32 1.5, %v350
  %v352 = vmul.f32 %v347, %v351
  %vm353 = vweird.f32 %v343
  %vm354 = vweird.f32 %v347
  %vm355 = vmor %vm353, %vm354
  %v356 = vsel %vm355, %v347, %v352
  %v357 = vrsqrt.pop %v344
  %v358 = vmul.f32 %v357, %v344
  %v359 = vmul.f32 %v358, %v357
  %v360 = vmul.f32 0.5, %v359
  %v361 = vsub.f32 1.5, %v360
  %v362 = vmul.f32 %v357, %v361
  %vm363 = vweird.f32 %v344
  %vm364 = vweird.f32 %v357
  %vm365 = vmor %vm363, %vm364
  %v366 = vsel %vm365, %v357, %v362
  %v367 = vrsqrt.pop %v345
  %v368 = vmul.f32 %v367, %v345
  %v369 = vmul.f32 %v368, %v367
  %v370 = vmul.f32 0.5, %v369
  %v371 = vsub.f32 1.5, %v370
  %v372 = vmul.f32 %v367, %v371
  %vm373 = vweird.f32 %v345
  %vm374 = vweird.f32 %v367
  %vm375 = vmor %vm373, %vm374
  %v376 = vsel %vm375, %v367, %v372
  %v377 = vrsqrt.pop %v346
  %v378 = vmul.f32 %v377, %v346
  %v379 = vmul.f32 %v378, %v377
  %v380 = vmul.f32 0.5, %v379
  %v381 = vsub.f32 1.5, %v380
  %v382 = vmul.f32 %v377, %v381
  %vm383 = vweird.f32 %v346
  %vm384 = vweird.f32 %v377
  %vm385 = vmor %vm383, %vm384
  %v386 = vsel %vm385, %v377, %v382
  %v387 = vmul.f32 %v323, %v356
  %v388 = vmul.f32 %v324, %v366
  %v389 = vmul.f32 %v325, %v376
  %v390 = vmul.f32 %v326, %v386
  %v391 = vmul.f32 %v387, 0.999995
  %v392 = vmul.f32 %v388, 0.999995
  %v393 = vmul.f32 %v389, 0.999995
  %v394 = vmul.f32 %v390, 0.999995
  %v395 = vmax.f32 %v391, 0.0
  %v396 = vmax.f32 %v392, 0.0
  %v397 = vmax.f32 %v393, 0.0
  %v398 = vmax.f32 %v394, 0.0
  %399 = vadd.xlane.f32.xlu0 %v307
  %v400 = vpop.xlane.xlu0 %399
  %401 = vadd.xlane.f32.xlu0 %v308
  %v402 = vpop.xlane.xlu0 %401
  %403 = vadd.xlane.f32.xlu0 %v309
  %v404 = vpop.xlane.xlu0 %403
  %405 = vadd.xlane.f32.xlu0 %v310
  %v406 = vpop.xlane.xlu0 %405
  %v407 = vmul.f32 %v400, %v142
  %v408 = vmul.f32 %v402, %v142
  %v409 = vmul.f32 %v404, %v142
  %v410 = vmul.f32 %v406, %v142
  %v411 = vsub.f32 %v307, %v407
  %v412 = vsub.f32 %v308, %v408
  %v413 = vsub.f32 %v309, %v409
  %v414 = vsub.f32 %v310, %v410
  %v415 = vmul.f32 %v411, %v411
  %v416 = vmul.f32 %v412, %v412
  %v417 = vmul.f32 %v413, %v413
  %v418 = vmul.f32 %v414, %v414
  %419 = vadd.xlane.f32.xlu0 %v415
  %v420 = vpop.xlane.xlu0 %419
  %421 = vadd.xlane.f32.xlu0 %v416
  %v422 = vpop.xlane.xlu0 %421
  %423 = vadd.xlane.f32.xlu0 %v417
  %v424 = vpop.xlane.xlu0 %423
  %425 = vadd.xlane.f32.xlu0 %v418
  %v426 = vpop.xlane.xlu0 %425
  %v427 = vmul.f32 %v420, %v142
  %v428 = vmul.f32 %v422, %v142
  %v429 = vmul.f32 %v424, %v142
  %v430 = vmul.f32 %v426, %v142
  %v431 = vadd.f32 %v427, 0.001
  %v432 = vadd.f32 %v428, 0.001
  %v433 = vadd.f32 %v429, 0.001
  %v434 = vadd.f32 %v430, 0.001
  %v435 = vrsqrt.pop %v431
  %v436 = vmul.f32 %v435, %v431
  %v437 = vmul.f32 %v436, %v435
  %v438 = vmul.f32 0.5, %v437
  %v439 = vsub.f32 1.5, %v438
  %v440 = vmul.f32 %v435, %v439
  %vm441 = vweird.f32 %v431
  %vm442 = vweird.f32 %v435
  %vm443 = vmor %vm441, %vm442
  %v444 = vsel %vm443, %v435, %v440
  %v445 = vrsqrt.pop %v432
  %v446 = vmul.f32 %v445, %v432
  %v447 = vmul.f32 %v446, %v445
  %v448 = vmul.f32 0.5, %v447
  %v449 = vsub.f32 1.5, %v448
  %v450 = vmul.f32 %v445, %v449
  %vm451 = vweird.f32 %v432
  %vm452 = vweird.f32 %v445
  %vm453 = vmor %vm451, %vm452
  %v454 = vsel %vm453, %v445, %v450
  %v455 = vrsqrt.pop %v433
  %v456 = vmul.f32 %v455, %v433
  %v457 = vmul.f32 %v456, %v455
  %v458 = vmul.f32 0.5, %v457
  %v459 = vsub.f32 1.5, %v458
  %v460 = vmul.f32 %v455, %v459
  %vm461 = vweird.f32 %v433
  %vm462 = vweird.f32 %v455
  %vm463 = vmor %vm461, %vm462
  %v464 = vsel %vm463, %v455, %v460
  %v465 = vrsqrt.pop %v434
  %v466 = vmul.f32 %v465, %v434
  %v467 = vmul.f32 %v466, %v465
  %v468 = vmul.f32 0.5, %v467
  %v469 = vsub.f32 1.5, %v468
  %v470 = vmul.f32 %v465, %v469
  %vm471 = vweird.f32 %v434
  %vm472 = vweird.f32 %v465
  %vm473 = vmor %vm471, %vm472
  %v474 = vsel %vm473, %v465, %v470
  %v475 = vmul.f32 %v411, %v444
  %v476 = vmul.f32 %v412, %v454
  %v477 = vmul.f32 %v413, %v464
  %v478 = vmul.f32 %v414, %v474
  %v479 = vmul.f32 %v475, 0.999995
  %v480 = vmul.f32 %v476, 0.999995
  %v481 = vmul.f32 %v477, 0.999995
  %v482 = vmul.f32 %v478, 0.999995
  %v483 = vmax.f32 %v479, 0.0
  %v484 = vmax.f32 %v480, 0.0
  %v485 = vmax.f32 %v481, 0.0
  %v486 = vmax.f32 %v482, 0.0
  %v487 = vld [vmem:[%s3] sm:$0x1]
  %v488 = vld [vmem:[#allocation2] sm:$0x1]
  %490 = vset.pattern.permute.xlu0 0
  %491 = vperm.xlu0 %490, %v488
  %v492 = vpop.permute.xlu0 %491
  %v494 = vperm.slane %v492, 0
  %v496 = vsel %vm83, %v487, 0
  %498 = vmatpush.msra.mxu0 0.0
  %499 = vmatpush.msra.mxu0 0.0
  %500 = vmatpush.msra.mxu0 0.0
  %501 = vmatpush.msra.mxu0 0.0
  %502 = vmatpush.msra.mxu0 0.0
  %503 = vmatpush.msra.mxu0 0.0
  %504 = vmatpush.msra.mxu0 0.0
  %505 = vmatpush.msra.mxu0 0.0
  %506 = vmatpush.msra.mxu0 0.0
  %507 = vmatpush.msra.mxu0 0.0
  %508 = vmatpush.msra.mxu0 0.0
  %509 = vmatpush.msra.mxu0 0.0
  %510 = vmatpush.msra.mxu0 %v398
  %511 = vmatpush.msra.mxu0 %v397
  %512 = vmatpush.msra.mxu0 %v396
  %513 = vmatpush.msra.mxu0 %v395
  %514 = vmatmul.f32.gmra.mxu0 %v496
  %v515 = vpop.f32.mrf.mxu0
  %v516 = vadd.f32 %v494, %v515
  %517 = vdwg.mxu0
  %518 = vmatpush.msra.mxu0 0.0
  %519 = vmatpush.msra.mxu0 0.0
  %520 = vmatpush.msra.mxu0 0.0
  %521 = vmatpush.msra.mxu0 0.0
  %522 = vmatpush.msra.mxu0 0.0
  %523 = vmatpush.msra.mxu0 0.0
  %524 = vmatpush.msra.mxu0 0.0
  %525 = vmatpush.msra.mxu0 0.0
  %526 = vmatpush.msra.mxu0 0.0
  %527 = vmatpush.msra.mxu0 0.0
  %528 = vmatpush.msra.mxu0 0.0
  %529 = vmatpush.msra.mxu0 0.0
  %530 = vmatpush.msra.mxu0 %v486
  %531 = vmatpush.msra.mxu0 %v485
  %532 = vmatpush.msra.mxu0 %v484
  %533 = vmatpush.msra.mxu0 %v483
  %534 = vmatmul.f32.gmra.mxu0 %v496
  %v535 = vpop.f32.mrf.mxu0
  %v536 = vadd.f32 %v494, %v535
  %537 = vdwg.mxu0
  %v538 = vmax.f32 %v516, 0.0
  %v539 = vmax.f32 %v536, 0.0
  %v540 = vtanh.pop %v538
  %v541 = vtanh.pop %v539
  %v542 = vand.u32 2147483647, %v540
  %vm543 = vcmask 1040384
  %v544 = vsel %vm543, %v542, 0.0
  %545 = vadd.xlane.f32.xlu0 %v544
  %v546 = vpop.xlane.xlu0 %545
  %v547 = vmax.f32 %v546, 1e-12
  %v548 = vrcp.pop %v547
  %v549 = vmul.f32 %v547, %v548
  %v550 = vsub.f32 1.0, %v549
  %v551 = vmul.f32 %v548, %v550
  %v552 = vadd.f32 %v548, %v551
  %vm553 = vweird.f32 %v547
  %vm554 = vweird.f32 %v548
  %vm555 = vmor %vm553, %vm554
  %v556 = vsel %vm555, %v548, %v552
  %v557 = vand.u32 2147483647, %v547
  %vm558 = vcmp.eq.f32.partialorder %v557, 8.507059e+37
  %v559 = vand.u32 %v547, 2147483648
  %v560 = vor.u32 1.1754944e-38, %v559
  %v561 = vsel %vm558, %v560, %v556
  %v562 = vmul.f32 %v540, %v561
  %v563 = vperm.slane %v562, 0
  %v564 = vmul.f32 %v219, %v563
  %v565 = vmul.f32 %v220, %v563
  %v566 = vmul.f32 %v221, %v563
  %v567 = vmul.f32 %v222, %v563
  %568 = vadd.xlane.f32.xlu0 %v564
  %v569 = vpop.xlane.xlu0 %568
  %570 = vadd.xlane.f32.xlu0 %v565
  %v571 = vpop.xlane.xlu0 %570
  %572 = vadd.xlane.f32.xlu0 %v566
  %v573 = vpop.xlane.xlu0 %572
  %574 = vadd.xlane.f32.xlu0 %v567
  %v575 = vpop.xlane.xlu0 %574
  %v576 = vld [vmem:[%s5] sm:$0xff]
  %v577 = vld [vmem:[%s5 + $0x8] sm:$0xff]
  %v578 = vld [vmem:[%s5 + $0x10] sm:$0xff]
  %v579 = vld [vmem:[%s5 + $0x18] sm:$0xff]
  %v580 = vmul.f32 %v576, %v569
  %v581 = vmul.f32 %v577, %v571
  %v582 = vmul.f32 %v578, %v573
  %v583 = vmul.f32 %v579, %v575
  %vm584 = vcmask 64512
  %v585 = vsel %vm584, %v580, 0.0
  %v586 = vsel %vm584, %v581, 0.0
  %v587 = vadd.f32 %v585, %v586
  %v588 = vsel %vm584, %v582, 0.0
  %v589 = vadd.f32 %v587, %v588
  %v590 = vsel %vm584, %v583, 0.0
  %v591 = vadd.f32 %v589, %v590
  %v592 = vrot.slane %v591, 4
  %v593 = vadd.f32 %v591, %v592
  %v594 = vrot.slane %v593, 2
  %v595 = vadd.f32 %v593, %v594
  %v596 = vrot.slane %v595, 1
  %v597 = vadd.f32 %v595, %v596
  %v598 = vld [vmem:[%s6] sm:$0x1]
  %v599 = vadd.f32 %v597, %v598
  %v600 = vmul.f32 %v599, 0.999995
  %v601 = vmax.f32 %v600, 0.0
  %v602 = vld [vmem:[%s7] sm:$0xff]
  %v603 = vld [vmem:[%s7 + $0x8] sm:$0xff]
  %v604 = vld [vmem:[%s7 + $0x10] sm:$0xff]
  %v605 = vld [vmem:[%s7 + $0x18] sm:$0xff]
  %v606 = vperm.slane %v601, 0
  %v607 = vmul.f32 %v602, %v606
  %v608 = vmul.f32 %v603, %v606
  %v609 = vmul.f32 %v604, %v606
  %v610 = vmul.f32 %v605, %v606
  %v611 = vsel %vm584, %v607, 0.0
  %612 = vadd.xlane.f32.xlu0 %v611
  %v613 = vpop.xlane.xlu0 %612
  %v614 = vsel %vm584, %v608, 0.0
  %615 = vadd.xlane.f32.xlu0 %v614
  %v616 = vpop.xlane.xlu0 %615
  %v617 = vsel %vm584, %v609, 0.0
  %618 = vadd.xlane.f32.xlu0 %v617
  %v619 = vpop.xlane.xlu0 %618
  %v620 = vsel %vm584, %v610, 0.0
  %621 = vadd.xlane.f32.xlu0 %v620
  %v622 = vpop.xlane.xlu0 %621
  %v623 = vld [vmem:[%s8] sm:$0xff]
  %v624 = vld [vmem:[%s8 + $0x8] sm:$0xff]
  %v625 = vld [vmem:[%s8 + $0x10] sm:$0xff]
  %v626 = vld [vmem:[%s8 + $0x18] sm:$0xff]
  %v627 = vadd.f32 %v613, %v623
  %v628 = vadd.f32 %v616, %v624
  %v629 = vadd.f32 %v619, %v625
  %v630 = vadd.f32 %v622, %v626
  %v631 = vsub.f32 0.0, %v627
  %v632 = vsub.f32 0.0, %v628
  %v633 = vsub.f32 0.0, %v629
  %v634 = vsub.f32 0.0, %v630
  %v635 = vmul.f32 %v631, 1.442695
  %v636 = vpow.pop %v635
  %v637 = vmul.f32 %v632, 1.442695
  %v638 = vpow.pop %v637
  %v639 = vmul.f32 %v633, 1.442695
  %v640 = vpow.pop %v639
  %v641 = vmul.f32 %v634, 1.442695
  %v642 = vpow.pop %v641
  %v643 = vadd.f32 %v636, 1.0
  %v644 = vadd.f32 %v638, 1.0
  %v645 = vadd.f32 %v640, 1.0
  %v646 = vadd.f32 %v642, 1.0
  %v647 = vrcp.pop %v643
  %v648 = vmul.f32 %v643, %v647
  %v649 = vsub.f32 1.0, %v648
  %v650 = vmul.f32 %v647, %v649
  %v651 = vadd.f32 %v647, %v650
  %vm652 = vweird.f32 %v643
  %vm653 = vweird.f32 %v647
  %vm654 = vmor %vm652, %vm653
  %v655 = vsel %vm654, %v647, %v651
  %v656 = vand.u32 2147483647, %v643
  %vm657 = vcmp.eq.f32.partialorder %v656, 8.507059e+37
  %v658 = vand.u32 %v643, 2147483648
  %v659 = vor.u32 1.1754944e-38, %v658
  %v660 = vsel %vm657, %v659, %v655
  %v661 = vmul.f32 1.0, %v660
  %v662 = vrcp.pop %v644
  %v663 = vmul.f32 %v644, %v662
  %v664 = vsub.f32 1.0, %v663
  %v665 = vmul.f32 %v662, %v664
  %v666 = vadd.f32 %v662, %v665
  %vm667 = vweird.f32 %v644
  %vm668 = vweird.f32 %v662
  %vm669 = vmor %vm667, %vm668
  %v670 = vsel %vm669, %v662, %v666
  %v671 = vand.u32 2147483647, %v644
  %vm672 = vcmp.eq.f32.partialorder %v671, 8.507059e+37
  %v673 = vand.u32 %v644, 2147483648
  %v674 = vor.u32 1.1754944e-38, %v673
  %v675 = vsel %vm672, %v674, %v670
  %v676 = vmul.f32 1.0, %v675
  %v677 = vrcp.pop %v645
  %v678 = vmul.f32 %v645, %v677
  %v679 = vsub.f32 1.0, %v678
  %v680 = vmul.f32 %v677, %v679
  %v681 = vadd.f32 %v677, %v680
  %vm682 = vweird.f32 %v645
  %vm683 = vweird.f32 %v677
  %vm684 = vmor %vm682, %vm683
  %v685 = vsel %vm684, %v677, %v681
  %v686 = vand.u32 2147483647, %v645
  %vm687 = vcmp.eq.f32.partialorder %v686, 8.507059e+37
  %v688 = vand.u32 %v645, 2147483648
  %v689 = vor.u32 1.1754944e-38, %v688
  %v690 = vsel %vm687, %v689, %v685
  %v691 = vmul.f32 1.0, %v690
  %v692 = vrcp.pop %v646
  %v693 = vmul.f32 %v646, %v692
  %v694 = vsub.f32 1.0, %v693
  %v695 = vmul.f32 %v692, %v694
  %v696 = vadd.f32 %v692, %v695
  %vm697 = vweird.f32 %v646
  %vm698 = vweird.f32 %v692
  %vm699 = vmor %vm697, %vm698
  %v700 = vsel %vm699, %v692, %v696
  %v701 = vand.u32 2147483647, %v646
  %vm702 = vcmp.eq.f32.partialorder %v701, 8.507059e+37
  %v703 = vand.u32 %v646, 2147483648
  %v704 = vor.u32 1.1754944e-38, %v703
  %v705 = vsel %vm702, %v704, %v700
  %v706 = vmul.f32 1.0, %v705
  %708 = vset.pattern.permute.xlu0 0
  %709 = vperm.xlu0 %708, %v661
  %v710 = vpop.permute.xlu0 %709
  %713 = vset.pattern.permute.xlu0 0
  %714 = vperm.xlu0 %713, %v676
  %v715 = vpop.permute.xlu0 %714
  %718 = vset.pattern.permute.xlu0 0
  %719 = vperm.xlu0 %718, %v691
  %v720 = vpop.permute.xlu0 %719
  %723 = vset.pattern.permute.xlu0 0
  %724 = vperm.xlu0 %723, %v706
  %v725 = vpop.permute.xlu0 %724
  %v727 = vmul.f32 %v710, %v219
  %v728 = vmul.f32 %v715, %v220
  %v729 = vmul.f32 %v720, %v221
  %v730 = vmul.f32 %v725, %v222
  %v731 = vand.u32 2147483647, %v541
  %v732 = vsel %vm543, %v731, 0.0
  %733 = vadd.xlane.f32.xlu0 %v732
  %v734 = vpop.xlane.xlu0 %733
  %v735 = vmax.f32 %v734, 1e-12
  %v736 = vrcp.pop %v735
  %v737 = vmul.f32 %v735, %v736
  %v738 = vsub.f32 1.0, %v737
  %v739 = vmul.f32 %v736, %v738
  %v740 = vadd.f32 %v736, %v739
  %vm741 = vweird.f32 %v735
  %vm742 = vweird.f32 %v736
  %vm743 = vmor %vm741, %vm742
  %v744 = vsel %vm743, %v736, %v740
  %v745 = vand.u32 2147483647, %v735
  %vm746 = vcmp.eq.f32.partialorder %v745, 8.507059e+37
  %v747 = vand.u32 %v735, 2147483648
  %v748 = vor.u32 1.1754944e-38, %v747
  %v749 = vsel %vm746, %v748, %v744
  %v750 = vmul.f32 %v541, %v749
  %v751 = vperm.slane %v750, 0
  %v752 = vmul.f32 %v307, %v751
  %v753 = vmul.f32 %v308, %v751
  %v754 = vmul.f32 %v309, %v751
  %v755 = vmul.f32 %v310, %v751
  %756 = vadd.xlane.f32.xlu0 %v752
  %v757 = vpop.xlane.xlu0 %756
  %758 = vadd.xlane.f32.xlu0 %v753
  %v759 = vpop.xlane.xlu0 %758
  %760 = vadd.xlane.f32.xlu0 %v754
  %v761 = vpop.xlane.xlu0 %760
  %762 = vadd.xlane.f32.xlu0 %v755
  %v763 = vpop.xlane.xlu0 %762
  %v764 = vmul.f32 %v576, %v757
  %v765 = vmul.f32 %v577, %v759
  %v766 = vmul.f32 %v578, %v761
  %v767 = vmul.f32 %v579, %v763
  %v768 = vsel %vm584, %v764, 0.0
  %v769 = vsel %vm584, %v765, 0.0
  %v770 = vadd.f32 %v768, %v769
  %v771 = vsel %vm584, %v766, 0.0
  %v772 = vadd.f32 %v770, %v771
  %v773 = vsel %vm584, %v767, 0.0
  %v774 = vadd.f32 %v772, %v773
  %v775 = vrot.slane %v774, 4
  %v776 = vadd.f32 %v774, %v775
  %v777 = vrot.slane %v776, 2
  %v778 = vadd.f32 %v776, %v777
  %v779 = vrot.slane %v778, 1
  %v780 = vadd.f32 %v778, %v779
  %v781 = vadd.f32 %v780, %v598
  %v782 = vmul.f32 %v781, 0.999995
  %v783 = vmax.f32 %v782, 0.0
  %v784 = vperm.slane %v783, 0
  %v785 = vmul.f32 %v602, %v784
  %v786 = vmul.f32 %v603, %v784
  %v787 = vmul.f32 %v604, %v784
  %v788 = vmul.f32 %v605, %v784
  %v789 = vsel %vm584, %v785, 0.0
  %790 = vadd.xlane.f32.xlu0 %v789
  %v791 = vpop.xlane.xlu0 %790
  %v792 = vsel %vm584, %v786, 0.0
  %793 = vadd.xlane.f32.xlu0 %v792
  %v794 = vpop.xlane.xlu0 %793
  %v795 = vsel %vm584, %v787, 0.0
  %796 = vadd.xlane.f32.xlu0 %v795
  %v797 = vpop.xlane.xlu0 %796
  %v798 = vsel %vm584, %v788, 0.0
  %799 = vadd.xlane.f32.xlu0 %v798
  %v800 = vpop.xlane.xlu0 %799
  %v801 = vadd.f32 %v791, %v623
  %v802 = vadd.f32 %v794, %v624
  %v803 = vadd.f32 %v797, %v625
  %v804 = vadd.f32 %v800, %v626
  %v805 = vsub.f32 0.0, %v801
  %v806 = vsub.f32 0.0, %v802
  %v807 = vsub.f32 0.0, %v803
  %v808 = vsub.f32 0.0, %v804
  %v809 = vmul.f32 %v805, 1.442695
  %v810 = vpow.pop %v809
  %v811 = vmul.f32 %v806, 1.442695
  %v812 = vpow.pop %v811
  %v813 = vmul.f32 %v807, 1.442695
  %v814 = vpow.pop %v813
  %v815 = vmul.f32 %v808, 1.442695
  %v816 = vpow.pop %v815
  %v817 = vadd.f32 %v810, 1.0
  %v818 = vadd.f32 %v812, 1.0
  %v819 = vadd.f32 %v814, 1.0
  %v820 = vadd.f32 %v816, 1.0
  %v821 = vrcp.pop %v817
  %v822 = vmul.f32 %v817, %v821
  %v823 = vsub.f32 1.0, %v822
  %v824 = vmul.f32 %v821, %v823
  %v825 = vadd.f32 %v821, %v824
  %vm826 = vweird.f32 %v817
  %vm827 = vweird.f32 %v821
  %vm828 = vmor %vm826, %vm827
  %v829 = vsel %vm828, %v821, %v825
  %v830 = vand.u32 2147483647, %v817
  %vm831 = vcmp.eq.f32.partialorder %v830, 8.507059e+37
  %v832 = vand.u32 %v817, 2147483648
  %v833 = vor.u32 1.1754944e-38, %v832
  %v834 = vsel %vm831, %v833, %v829
  %v835 = vmul.f32 1.0, %v834
  %v836 = vrcp.pop %v818
  %v837 = vmul.f32 %v818, %v836
  %v838 = vsub.f32 1.0, %v837
  %v839 = vmul.f32 %v836, %v838
  %v840 = vadd.f32 %v836, %v839
  %vm841 = vweird.f32 %v818
  %vm842 = vweird.f32 %v836
  %vm843 = vmor %vm841, %vm842
  %v844 = vsel %vm843, %v836, %v840
  %v845 = vand.u32 2147483647, %v818
  %vm846 = vcmp.eq.f32.partialorder %v845, 8.507059e+37
  %v847 = vand.u32 %v818, 2147483648
  %v848 = vor.u32 1.1754944e-38, %v847
  %v849 = vsel %vm846, %v848, %v844
  %v850 = vmul.f32 1.0, %v849
  %v851 = vrcp.pop %v819
  %v852 = vmul.f32 %v819, %v851
  %v853 = vsub.f32 1.0, %v852
  %v854 = vmul.f32 %v851, %v853
  %v855 = vadd.f32 %v851, %v854
  %vm856 = vweird.f32 %v819
  %vm857 = vweird.f32 %v851
  %vm858 = vmor %vm856, %vm857
  %v859 = vsel %vm858, %v851, %v855
  %v860 = vand.u32 2147483647, %v819
  %vm861 = vcmp.eq.f32.partialorder %v860, 8.507059e+37
  %v862 = vand.u32 %v819, 2147483648
  %v863 = vor.u32 1.1754944e-38, %v862
  %v864 = vsel %vm861, %v863, %v859
  %v865 = vmul.f32 1.0, %v864
  %v866 = vrcp.pop %v820
  %v867 = vmul.f32 %v820, %v866
  %v868 = vsub.f32 1.0, %v867
  %v869 = vmul.f32 %v866, %v868
  %v870 = vadd.f32 %v866, %v869
  %vm871 = vweird.f32 %v820
  %vm872 = vweird.f32 %v866
  %vm873 = vmor %vm871, %vm872
  %v874 = vsel %vm873, %v866, %v870
  %v875 = vand.u32 2147483647, %v820
  %vm876 = vcmp.eq.f32.partialorder %v875, 8.507059e+37
  %v877 = vand.u32 %v820, 2147483648
  %v878 = vor.u32 1.1754944e-38, %v877
  %v879 = vsel %vm876, %v878, %v874
  %v880 = vmul.f32 1.0, %v879
  %882 = vset.pattern.permute.xlu0 0
  %883 = vperm.xlu0 %882, %v835
  %v884 = vpop.permute.xlu0 %883
  %887 = vset.pattern.permute.xlu0 0
  %888 = vperm.xlu0 %887, %v850
  %v889 = vpop.permute.xlu0 %888
  %892 = vset.pattern.permute.xlu0 0
  %893 = vperm.xlu0 %892, %v865
  %v894 = vpop.permute.xlu0 %893
  %897 = vset.pattern.permute.xlu0 0
  %898 = vperm.xlu0 %897, %v880
  %v899 = vpop.permute.xlu0 %898
  %v901 = vmul.f32 %v884, %v307
  %v902 = vmul.f32 %v889, %v308
  %v903 = vmul.f32 %v894, %v309
  %v904 = vmul.f32 %v899, %v310
  %v905 = vld [vmem:[%s9] sm:$0xff]
  %v906 = vld [vmem:[%s9 + $0x8] sm:$0xff]
  %v907 = vld [vmem:[%s9 + $0x10] sm:$0xff]
  %v908 = vld [vmem:[%s9 + $0x18] sm:$0xff]
  %v909 = vpack.c.bf16 %v906, %v905
  %v910 = vpack.c.bf16 %v908, %v907
  %v911 = vpack.c.bf16 %v728, %v727
  %v912 = vpack.c.bf16 %v902, %v901
  %v913 = vpack.c.bf16 %v730, %v729
  %v914 = vpack.c.bf16 %v904, %v903
  %v915 = vld [vmem:[%s10] sm:$0xff]
  %v916 = vld [vmem:[%s10 + $0x8] sm:$0xff]
  %v917 = vld [vmem:[%s10 + $0x10] sm:$0xff]
  %v918 = vld [vmem:[%s10 + $0x18] sm:$0xff]
  %920 = vset.pattern.permute.xlu0 0
  %921 = vperm.xlu0 %920, %v915
  %v922 = vpop.permute.xlu0 %921
  %925 = vset.pattern.permute.xlu0 0
  %926 = vperm.xlu0 %925, %v916
  %v927 = vpop.permute.xlu0 %926
  %930 = vset.pattern.permute.xlu0 0
  %931 = vperm.xlu0 %930, %v917
  %v932 = vpop.permute.xlu0 %931
  %935 = vset.pattern.permute.xlu0 0
  %936 = vperm.xlu0 %935, %v918
  %v937 = vpop.permute.xlu0 %936
  %v940 = vsel %vm83, %v909, 0
  %v943 = vsel %vm83, %v910, 0
  %945 = vmatpush.bf16.msra.mxu0 0
  %946 = vmatpush.bf16.msra.mxu0 0
  %947 = vmatpush.bf16.msra.mxu0 0
  %948 = vmatpush.bf16.msra.mxu0 0
  %949 = vmatpush.bf16.msra.mxu0 0
  %950 = vmatpush.bf16.msra.mxu0 0
  %951 = vmatpush.bf16.msra.mxu0 %v913
  %952 = vmatpush.bf16.msra.mxu0 %v911
  %953 = vmatmul.bf16.gmra.mxu0 %v940
  %v954 = vpop.f32.mrf.mxu0
  %v955 = vadd.f32 %v922, %v954
  %v956 = vpop.f32.mrf.mxu0
  %v957 = vadd.f32 %v927, %v956
  %958 = vmatmul.bf16.gmra.mxu0 %v943
  %v959 = vpop.f32.mrf.mxu0
  %v960 = vadd.f32 %v932, %v959
  %v961 = vpop.f32.mrf.mxu0
  %v962 = vadd.f32 %v937, %v961
  %963 = vdwg.mxu0
  %964 = vmatpush.bf16.msra.mxu0 0
  %965 = vmatpush.bf16.msra.mxu0 0
  %966 = vmatpush.bf16.msra.mxu0 0
  %967 = vmatpush.bf16.msra.mxu0 0
  %968 = vmatpush.bf16.msra.mxu0 0
  %969 = vmatpush.bf16.msra.mxu0 0
  %970 = vmatpush.bf16.msra.mxu0 %v914
  %971 = vmatpush.bf16.msra.mxu0 %v912
  %972 = vmatmul.bf16.gmra.mxu0 %v940
  %v973 = vpop.f32.mrf.mxu0
  %v974 = vadd.f32 %v922, %v973
  %v975 = vpop.f32.mrf.mxu0
  %v976 = vadd.f32 %v927, %v975
  %977 = vmatmul.bf16.gmra.mxu0 %v943
  %v978 = vpop.f32.mrf.mxu0
  %v979 = vadd.f32 %v932, %v978
  %v980 = vpop.f32.mrf.mxu0
  %v981 = vadd.f32 %v937, %v980
  %982 = vdwg.mxu0
  %983 = vadd.xlane.f32.xlu0 %v955
  %v984 = vpop.xlane.xlu0 %983
  %985 = vadd.xlane.f32.xlu0 %v957
  %v986 = vpop.xlane.xlu0 %985
  %987 = vadd.xlane.f32.xlu0 %v960
  %v988 = vpop.xlane.xlu0 %987
  %989 = vadd.xlane.f32.xlu0 %v962
  %v990 = vpop.xlane.xlu0 %989
  %v991 = vmul.f32 %v984, %v142
  %v992 = vmul.f32 %v986, %v142
  %v993 = vmul.f32 %v988, %v142
  %v994 = vmul.f32 %v990, %v142
  %v995 = vsub.f32 %v955, %v991
  %v996 = vsub.f32 %v957, %v992
  %v997 = vsub.f32 %v960, %v993
  %v998 = vsub.f32 %v962, %v994
  %v999 = vmul.f32 %v995, %v995
  %v1000 = vmul.f32 %v996, %v996
  %v1001 = vmul.f32 %v997, %v997
  %v1002 = vmul.f32 %v998, %v998
  %1003 = vadd.xlane.f32.xlu0 %v999
  %v1004 = vpop.xlane.xlu0 %1003
  %1005 = vadd.xlane.f32.xlu0 %v1000
  %v1006 = vpop.xlane.xlu0 %1005
  %1007 = vadd.xlane.f32.xlu0 %v1001
  %v1008 = vpop.xlane.xlu0 %1007
  %1009 = vadd.xlane.f32.xlu0 %v1002
  %v1010 = vpop.xlane.xlu0 %1009
  %v1011 = vmul.f32 %v1004, %v142
  %v1012 = vmul.f32 %v1006, %v142
  %v1013 = vmul.f32 %v1008, %v142
  %v1014 = vmul.f32 %v1010, %v142
  %v1015 = vadd.f32 %v1011, 0.001
  %v1016 = vadd.f32 %v1012, 0.001
  %v1017 = vadd.f32 %v1013, 0.001
  %v1018 = vadd.f32 %v1014, 0.001
  %v1019 = vrsqrt.pop %v1015
  %v1020 = vmul.f32 %v1019, %v1015
  %v1021 = vmul.f32 %v1020, %v1019
  %v1022 = vmul.f32 0.5, %v1021
  %v1023 = vsub.f32 1.5, %v1022
  %v1024 = vmul.f32 %v1019, %v1023
  %vm1025 = vweird.f32 %v1015
  %vm1026 = vweird.f32 %v1019
  %vm1027 = vmor %vm1025, %vm1026
  %v1028 = vsel %vm1027, %v1019, %v1024
  %v1029 = vrsqrt.pop %v1016
  %v1030 = vmul.f32 %v1029, %v1016
  %v1031 = vmul.f32 %v1030, %v1029
  %v1032 = vmul.f32 0.5, %v1031
  %v1033 = vsub.f32 1.5, %v1032
  %v1034 = vmul.f32 %v1029, %v1033
  %vm1035 = vweird.f32 %v1016
  %vm1036 = vweird.f32 %v1029
  %vm1037 = vmor %vm1035, %vm1036
  %v1038 = vsel %vm1037, %v1029, %v1034
  %v1039 = vrsqrt.pop %v1017
  %v1040 = vmul.f32 %v1039, %v1017
  %v1041 = vmul.f32 %v1040, %v1039
  %v1042 = vmul.f32 0.5, %v1041
  %v1043 = vsub.f32 1.5, %v1042
  %v1044 = vmul.f32 %v1039, %v1043
  %vm1045 = vweird.f32 %v1017
  %vm1046 = vweird.f32 %v1039
  %vm1047 = vmor %vm1045, %vm1046
  %v1048 = vsel %vm1047, %v1039, %v1044
  %v1049 = vrsqrt.pop %v1018
  %v1050 = vmul.f32 %v1049, %v1018
  %v1051 = vmul.f32 %v1050, %v1049
  %v1052 = vmul.f32 0.5, %v1051
  %v1053 = vsub.f32 1.5, %v1052
  %v1054 = vmul.f32 %v1049, %v1053
  %vm1055 = vweird.f32 %v1018
  %vm1056 = vweird.f32 %v1049
  %vm1057 = vmor %vm1055, %vm1056
  %v1058 = vsel %vm1057, %v1049, %v1054
  %v1059 = vmul.f32 %v995, %v1028
  %v1060 = vmul.f32 %v996, %v1038
  %v1061 = vmul.f32 %v997, %v1048
  %v1062 = vmul.f32 %v998, %v1058
  %v1063 = vmul.f32 %v1059, 0.999995
  %v1064 = vmul.f32 %v1060, 0.999995
  %v1065 = vmul.f32 %v1061, 0.999995
  %v1066 = vmul.f32 %v1062, 0.999995
  %v1067 = vmax.f32 %v1063, 0.0
  %v1068 = vmax.f32 %v1064, 0.0
  %v1069 = vmax.f32 %v1065, 0.0
  %v1070 = vmax.f32 %v1066, 0.0
  %1071 = vadd.xlane.f32.xlu0 %v974
  %v1072 = vpop.xlane.xlu0 %1071
  %1073 = vadd.xlane.f32.xlu0 %v976
  %v1074 = vpop.xlane.xlu0 %1073
  %1075 = vadd.xlane.f32.xlu0 %v979
  %v1076 = vpop.xlane.xlu0 %1075
  %1077 = vadd.xlane.f32.xlu0 %v981
  %v1078 = vpop.xlane.xlu0 %1077
  %v1079 = vmul.f32 %v1072, %v142
  %v1080 = vmul.f32 %v1074, %v142
  %v1081 = vmul.f32 %v1076, %v142
  %v1082 = vmul.f32 %v1078, %v142
  %v1083 = vsub.f32 %v974, %v1079
  %v1084 = vsub.f32 %v976, %v1080
  %v1085 = vsub.f32 %v979, %v1081
  %v1086 = vsub.f32 %v981, %v1082
  %v1087 = vmul.f32 %v1083, %v1083
  %v1088 = vmul.f32 %v1084, %v1084
  %v1089 = vmul.f32 %v1085, %v1085
  %v1090 = vmul.f32 %v1086, %v1086
  %1091 = vadd.xlane.f32.xlu0 %v1087
  %v1092 = vpop.xlane.xlu0 %1091
  %1093 = vadd.xlane.f32.xlu0 %v1088
  %v1094 = vpop.xlane.xlu0 %1093
  %1095 = vadd.xlane.f32.xlu0 %v1089
  %v1096 = vpop.xlane.xlu0 %1095
  %1097 = vadd.xlane.f32.xlu0 %v1090
  %v1098 = vpop.xlane.xlu0 %1097
  %v1099 = vmul.f32 %v1092, %v142
  %v1100 = vmul.f32 %v1094, %v142
  %v1101 = vmul.f32 %v1096, %v142
  %v1102 = vmul.f32 %v1098, %v142
  %v1103 = vadd.f32 %v1099, 0.001
  %v1104 = vadd.f32 %v1100, 0.001
  %v1105 = vadd.f32 %v1101, 0.001
  %v1106 = vadd.f32 %v1102, 0.001
  %v1107 = vrsqrt.pop %v1103
  %v1108 = vmul.f32 %v1107, %v1103
  %v1109 = vmul.f32 %v1108, %v1107
  %v1110 = vmul.f32 0.5, %v1109
  %v1111 = vsub.f32 1.5, %v1110
  %v1112 = vmul.f32 %v1107, %v1111
  %vm1113 = vweird.f32 %v1103
  %vm1114 = vweird.f32 %v1107
  %vm1115 = vmor %vm1113, %vm1114
  %v1116 = vsel %vm1115, %v1107, %v1112
  %v1117 = vrsqrt.pop %v1104
  %v1118 = vmul.f32 %v1117, %v1104
  %v1119 = vmul.f32 %v1118, %v1117
  %v1120 = vmul.f32 0.5, %v1119
  %v1121 = vsub.f32 1.5, %v1120
  %v1122 = vmul.f32 %v1117, %v1121
  %vm1123 = vweird.f32 %v1104
  %vm1124 = vweird.f32 %v1117
  %vm1125 = vmor %vm1123, %vm1124
  %v1126 = vsel %vm1125, %v1117, %v1122
  %v1127 = vrsqrt.pop %v1105
  %v1128 = vmul.f32 %v1127, %v1105
  %v1129 = vmul.f32 %v1128, %v1127
  %v1130 = vmul.f32 0.5, %v1129
  %v1131 = vsub.f32 1.5, %v1130
  %v1132 = vmul.f32 %v1127, %v1131
  %vm1133 = vweird.f32 %v1105
  %vm1134 = vweird.f32 %v1127
  %vm1135 = vmor %vm1133, %vm1134
  %v1136 = vsel %vm1135, %v1127, %v1132
  %v1137 = vrsqrt.pop %v1106
  %v1138 = vmul.f32 %v1137, %v1106
  %v1139 = vmul.f32 %v1138, %v1137
  %v1140 = vmul.f32 0.5, %v1139
  %v1141 = vsub.f32 1.5, %v1140
  %v1142 = vmul.f32 %v1137, %v1141
  %vm1143 = vweird.f32 %v1106
  %vm1144 = vweird.f32 %v1137
  %vm1145 = vmor %vm1143, %vm1144
  %v1146 = vsel %vm1145, %v1137, %v1142
  %v1147 = vmul.f32 %v1083, %v1116
  %v1148 = vmul.f32 %v1084, %v1126
  %v1149 = vmul.f32 %v1085, %v1136
  %v1150 = vmul.f32 %v1086, %v1146
  %v1151 = vmul.f32 %v1147, 0.999995
  %v1152 = vmul.f32 %v1148, 0.999995
  %v1153 = vmul.f32 %v1149, 0.999995
  %v1154 = vmul.f32 %v1150, 0.999995
  %v1155 = vmax.f32 %v1151, 0.0
  %v1156 = vmax.f32 %v1152, 0.0
  %v1157 = vmax.f32 %v1153, 0.0
  %v1158 = vmax.f32 %v1154, 0.0
  %v1159 = vadd.f32 %v1067, %v41
  %v1160 = vadd.f32 %v1155, %v42
  %v1161 = vadd.f32 %v1068, %v43
  %v1162 = vadd.f32 %v1156, %v44
  %v1163 = vadd.f32 %v1069, %v45
  %v1164 = vadd.f32 %v1157, %v46
  %v1165 = vadd.f32 %v1070, %v47
  %v1166 = vadd.f32 %v1158, %v48
  %1167 = vst [vmem:[%s11] sm:$0xff] %v1159
  %1168 = vst [vmem:[%s11 + $0x8] sm:$0xff] %v1160
  %1169 = vst [vmem:[%s11 + $0x10] sm:$0xff] %v1161
  %1170 = vst [vmem:[%s11 + $0x18] sm:$0xff] %v1162
  %1171 = vst [vmem:[%s11 + $0x20] sm:$0xff] %v1163
  %1172 = vst [vmem:[%s11 + $0x28] sm:$0xff] %v1164
  %1173 = vst [vmem:[%s11 + $0x30] sm:$0xff] %v1165
  %1174 = vst [vmem:[%s11 + $0x38] sm:$0xff] %v1166
  // Predicated region
  $region46: #{rna_block.17} parent=0 // pred_check
    _
  $region47: #{rna_block.17} parent=0 // pred_check_branch
    %1176 = sbr.rel (0) target = $region49
  $region48: #{rna_block.17} parent=0 // pred_region
    _
  $region49: #{rna_block.17} parent=0 // pred_fallthru
    _
  // Predicated region
  $region50: #{rna_block.17} parent=0 // pred_check
    _
  $region51: #{rna_block.17} parent=0 // pred_check_branch
    %1178 = sbr.rel (0) target = $region53
  $region52: #{rna_block.17} parent=0 // pred_region
    _
  $region53: #{rna_block.17} parent=0 // pred_fallthru
    _

// kernel: rna_block.20
$region0: #{rna_block.20}
  #allocation0 [shape = 'u32[]', space=smem, size = 0x4, offset = 0x4, fixed_abs, tag = 'smem constant byte address 0x4 - core index']
  #allocation1 [shape = 'u32[72,128]{1,0:T(1,128)}', space=vmem, size = 0x9000, scoped, tag = 'internal scratch']
  %s0 = inlined_call_operand.vmem [shape: f32[32,256], index: 0, kind: input, shape index: {}]
  %s1 = inlined_call_operand.vmem [shape: f32[96,32], index: 1, kind: input, shape index: {}]
  %s2 = inlined_call_operand.vmem [shape: f32[96,1], index: 2, kind: input, shape index: {}]
  %s3 = inlined_call_operand.vmem [shape: f32[96,256], index: 3, kind: output, shape index: {}]
  %s4 = sld [smem:[#allocation0]]
  $region22: #{rna_block.20} parent=0
    _
  %s6 = ssub.s32 1, %s4
  %s7 = scalar_select 0, %s6, %s4
  // Predicated region
  $region2: #{rna_block.20} parent=0 // pred_check
    _
  $region3: #{rna_block.20} parent=0 // pred_check_branch
    %9 = sbr.rel (0) target = $region5
  $region4: #{rna_block.20} parent=0 // pred_region
    _
  $region5: #{rna_block.20} parent=0 // pred_fallthru
    _
  // Predicated region
  $region6: #{rna_block.20} parent=0 // pred_check
    _
  $region7: #{rna_block.20} parent=0 // pred_check_branch
    %11 = sbr.rel (0) target = $region9
  $region8: #{rna_block.20} parent=0 // pred_region
    _
  $region9: #{rna_block.20} parent=0 // pred_fallthru
    _
  // Predicated region
  $region10: #{rna_block.20} parent=0 // pred_check
    _
  $region11: #{rna_block.20} parent=0 // pred_check_branch
    %13 = sbr.rel (0) target = $region13
  $region12: #{rna_block.20} parent=0 // pred_region
    _
  $region13: #{rna_block.20} parent=0 // pred_fallthru
    _
  %v15 = vld [vmem:[%s1] sm:$0xff]
  %v16 = vld [vmem:[%s1 + $0x8] sm:$0xff]
  %v17 = vld [vmem:[%s1 + $0x10] sm:$0xff]
  %v18 = vld [vmem:[%s1 + $0x18] sm:$0xff]
  %v19 = vld [vmem:[%s1 + $0x20] sm:$0xff]
  %v20 = vld [vmem:[%s1 + $0x28] sm:$0xff]
  %v21 = vld [vmem:[%s1 + $0x30] sm:$0xff]
  %v22 = vld [vmem:[%s1 + $0x38] sm:$0xff]
  %v23 = vld [vmem:[%s1 + $0x40] sm:$0xff]
  %v24 = vld [vmem:[%s1 + $0x48] sm:$0xff]
  %v25 = vld [vmem:[%s1 + $0x50] sm:$0xff]
  %v26 = vld [vmem:[%s1 + $0x58] sm:$0xff]
  %v27 = vld [vmem:[%s0] sm:$0xff]
  %v28 = vld [vmem:[%s0 + $0x8] sm:$0xff]
  %v29 = vld [vmem:[%s0 + $0x10] sm:$0xff]
  %v30 = vld [vmem:[%s0 + $0x18] sm:$0xff]
  %v31 = vld [vmem:[%s0 + $0x20] sm:$0xff]
  %v32 = vld [vmem:[%s0 + $0x28] sm:$0xff]
  %v33 = vld [vmem:[%s0 + $0x30] sm:$0xff]
  %v34 = vld [vmem:[%s0 + $0x38] sm:$0xff]
  %v35 = vpack.c.bf16 %v16, %v15
  %v36 = vpack.c.bf16 %v18, %v17
  %v37 = vpack.c.bf16 %v20, %v19
  %v38 = vpack.c.bf16 %v22, %v21
  %v39 = vpack.c.bf16 %v24, %v23
  %v40 = vpack.c.bf16 %v26, %v25
  %v41 = vpack.c.bf16 %v29, %v27
  %v42 = vpack.c.bf16 %v30, %v28
  %v43 = vpack.c.bf16 %v33, %v31
  %v44 = vpack.c.bf16 %v34, %v32
  %v45 = vld [vmem:[%s2] sm:$0xff]
  %v46 = vld [vmem:[%s2 + $0x8] sm:$0xff]
  %v47 = vld [vmem:[%s2 + $0x10] sm:$0xff]
  %v48 = vld [vmem:[%s2 + $0x18] sm:$0xff]
  %v49 = vld [vmem:[%s2 + $0x20] sm:$0xff]
  %v50 = vld [vmem:[%s2 + $0x28] sm:$0xff]
  %v51 = vld [vmem:[%s2 + $0x30] sm:$0xff]
  %v52 = vld [vmem:[%s2 + $0x38] sm:$0xff]
  %v53 = vld [vmem:[%s2 + $0x40] sm:$0xff]
  %v54 = vld [vmem:[%s2 + $0x48] sm:$0xff]
  %v55 = vld [vmem:[%s2 + $0x50] sm:$0xff]
  %v56 = vld [vmem:[%s2 + $0x58] sm:$0xff]
  %58 = vset.pattern.permute.xlu0 0
  %59 = vperm.xlu0 %58, %v45
  %v60 = vpop.permute.xlu0 %59
  %63 = vset.pattern.permute.xlu0 0
  %64 = vperm.xlu0 %63, %v46
  %v65 = vpop.permute.xlu0 %64
  %68 = vset.pattern.permute.xlu0 0
  %69 = vperm.xlu0 %68, %v47
  %v70 = vpop.permute.xlu0 %69
  %73 = vset.pattern.permute.xlu0 0
  %74 = vperm.xlu0 %73, %v48
  %v75 = vpop.permute.xlu0 %74
  %78 = vset.pattern.permute.xlu0 0
  %79 = vperm.xlu0 %78, %v49
  %v80 = vpop.permute.xlu0 %79
  %83 = vset.pattern.permute.xlu0 0
  %84 = vperm.xlu0 %83, %v50
  %v85 = vpop.permute.xlu0 %84
  %88 = vset.pattern.permute.xlu0 0
  %89 = vperm.xlu0 %88, %v51
  %v90 = vpop.permute.xlu0 %89
  %93 = vset.pattern.permute.xlu0 0
  %94 = vperm.xlu0 %93, %v52
  %v95 = vpop.permute.xlu0 %94
  %98 = vset.pattern.permute.xlu0 0
  %99 = vperm.xlu0 %98, %v53
  %v100 = vpop.permute.xlu0 %99
  %103 = vset.pattern.permute.xlu0 0
  %104 = vperm.xlu0 %103, %v54
  %v105 = vpop.permute.xlu0 %104
  %108 = vset.pattern.permute.xlu0 0
  %109 = vperm.xlu0 %108, %v55
  %v110 = vpop.permute.xlu0 %109
  %113 = vset.pattern.permute.xlu0 0
  %114 = vperm.xlu0 %113, %v56
  %v115 = vpop.permute.xlu0 %114
  %vm117 = vcmask 261120
  %v119 = vsel %vm117, %v35, 0
  %v122 = vsel %vm117, %v36, 0
  %v125 = vsel %vm117, %v37, 0
  %v128 = vsel %vm117, %v38, 0
  %v131 = vsel %vm117, %v39, 0
  %v134 = vsel %vm117, %v40, 0
  %136 = vmatpush.bf16.msra.mxu0 0
  %137 = vmatpush.bf16.msra.mxu0 0
  %138 = vmatpush.bf16.msra.mxu0 0
  %139 = vmatpush.bf16.msra.mxu0 0
  %140 = vmatpush.bf16.msra.mxu0 0
  %141 = vmatpush.bf16.msra.mxu0 0
  %142 = vmatpush.bf16.msra.mxu0 %v43
  %143 = vmatpush.bf16.msra.mxu0 %v41
  %144 = vmatmul.bf16.gmra.mxu0 %v119
  %v145 = vpop.f32.mrf.mxu0
  %v146 = vadd.f32 %v60, %v145
  %v147 = vpop.f32.mrf.mxu0
  %v148 = vadd.f32 %v65, %v147
  %149 = vmatmul.bf16.gmra.mxu0 %v122
  %v150 = vpop.f32.mrf.mxu0
  %v151 = vadd.f32 %v70, %v150
  %v152 = vpop.f32.mrf.mxu0
  %v153 = vadd.f32 %v75, %v152
  %154 = vmatmul.bf16.gmra.mxu0 %v125
  %v155 = vpop.f32.mrf.mxu0
  %v156 = vadd.f32 %v80, %v155
  %v157 = vpop.f32.mrf.mxu0
  %v158 = vadd.f32 %v85, %v157
  %159 = vmatmul.bf16.gmra.mxu0 %v128
  %v160 = vpop.f32.mrf.mxu0
  %v161 = vadd.f32 %v90, %v160
  %v162 = vpop.f32.mrf.mxu0
  %v163 = vadd.f32 %v95, %v162
  %164 = vmatmul.bf16.gmra.mxu0 %v131
  %v165 = vpop.f32.mrf.mxu0
  %v166 = vadd.f32 %v100, %v165
  %v167 = vpop.f32.mrf.mxu0
  %v168 = vadd.f32 %v105, %v167
  %169 = vmatmul.bf16.gmra.mxu0 %v134
  %v170 = vpop.f32.mrf.mxu0
  %v171 = vadd.f32 %v110, %v170
  %v172 = vpop.f32.mrf.mxu0
  %v173 = vadd.f32 %v115, %v172
  %174 = vdwg.mxu0
  %175 = vmatpush.bf16.msra.mxu0 0
  %176 = vmatpush.bf16.msra.mxu0 0
  %177 = vmatpush.bf16.msra.mxu0 0
  %178 = vmatpush.bf16.msra.mxu0 0
  %179 = vmatpush.bf16.msra.mxu0 0
  %180 = vmatpush.bf16.msra.mxu0 0
  %181 = vmatpush.bf16.msra.mxu0 %v44
  %182 = vmatpush.bf16.msra.mxu0 %v42
  %183 = vmatmul.bf16.gmra.mxu0 %v119
  %v184 = vpop.f32.mrf.mxu0
  %v185 = vadd.f32 %v60, %v184
  %v186 = vpop.f32.mrf.mxu0
  %v187 = vadd.f32 %v65, %v186
  %188 = vmatmul.bf16.gmra.mxu0 %v122
  %v189 = vpop.f32.mrf.mxu0
  %v190 = vadd.f32 %v70, %v189
  %v191 = vpop.f32.mrf.mxu0
  %v192 = vadd.f32 %v75, %v191
  %193 = vmatmul.bf16.gmra.mxu0 %v125
  %v194 = vpop.f32.mrf.mxu0
  %v195 = vadd.f32 %v80, %v194
  %v196 = vpop.f32.mrf.mxu0
  %v197 = vadd.f32 %v85, %v196
  %198 = vmatmul.bf16.gmra.mxu0 %v128
  %v199 = vpop.f32.mrf.mxu0
  %v200 = vadd.f32 %v90, %v199
  %v201 = vpop.f32.mrf.mxu0
  %v202 = vadd.f32 %v95, %v201
  %203 = vmatmul.bf16.gmra.mxu0 %v131
  %v204 = vpop.f32.mrf.mxu0
  %v205 = vadd.f32 %v100, %v204
  %v206 = vpop.f32.mrf.mxu0
  %v207 = vadd.f32 %v105, %v206
  %208 = vmatmul.bf16.gmra.mxu0 %v134
  %v209 = vpop.f32.mrf.mxu0
  %v210 = vadd.f32 %v110, %v209
  %v211 = vpop.f32.mrf.mxu0
  %v212 = vadd.f32 %v115, %v211
  %213 = vdwg.mxu0
  %214 = vst [vmem:[%s3] sm:$0xff] %v146
  %215 = vst [vmem:[%s3 + $0x8] sm:$0xff] %v185
  %216 = vst [vmem:[%s3 + $0x10] sm:$0xff] %v148
  %217 = vst [vmem:[%s3 + $0x18] sm:$0xff] %v187
  %218 = vst [vmem:[%s3 + $0x20] sm:$0xff] %v151
  %219 = vst [vmem:[%s3 + $0x28] sm:$0xff] %v190
  %220 = vst [vmem:[%s3 + $0x30] sm:$0xff] %v153
  %221 = vst [vmem:[%s3 + $0x38] sm:$0xff] %v192
  %222 = vst [vmem:[%s3 + $0x40] sm:$0xff] %v156
  %223 = vst [vmem:[%s3 + $0x48] sm:$0xff] %v195
  %224 = vst [vmem:[%s3 + $0x50] sm:$0xff] %v158
  %225 = vst [vmem:[%s3 + $0x58] sm:$0xff] %v197
  %226 = vst [vmem:[%s3 + $0x60] sm:$0xff] %v161
  %227 = vst [vmem:[%s3 + $0x68] sm:$0xff] %v200
  %228 = vst [vmem:[%s3 + $0x70] sm:$0xff] %v163
  %229 = vst [vmem:[%s3 + $0x78] sm:$0xff] %v202
  %230 = vst [vmem:[%s3 + $0x80] sm:$0xff] %v166
  %231 = vst [vmem:[%s3 + $0x88] sm:$0xff] %v205
  %232 = vst [vmem:[%s3 + $0x90] sm:$0xff] %v168
  %233 = vst [vmem:[%s3 + $0x98] sm:$0xff] %v207
  %234 = vst [vmem:[%s3 + $0xa0] sm:$0xff] %v171
  %235 = vst [vmem:[%s3 + $0xa8] sm:$0xff] %v210
  %236 = vst [vmem:[%s3 + $0xb0] sm:$0xff] %v173
  %237 = vst [vmem:[%s3 + $0xb8] sm:$0xff] %v212
  // Predicated region
  $region14: #{rna_block.20} parent=0 // pred_check
    _
  $region15: #{rna_block.20} parent=0 // pred_check_branch
    %239 = sbr.rel (0) target = $region17
  $region16: #{rna_block.20} parent=0 // pred_region
    _
  $region17: #{rna_block.20} parent=0 // pred_fallthru
    _
  // Predicated region
  $region18: #{rna_block.20} parent=0 // pred_check
    _
  $region19: #{rna_block.20} parent=0 // pred_check_branch
    %241 = sbr.rel (0) target = $region21
  $region20: #{rna_block.20} parent=0 // pred_region
    _
  $region21: #{rna_block.20} parent=0 // pred_fallthru
    _

// kernel: rna_block.24
$region0: #{rna_block.24}
  #allocation0 [shape = 'u32[]', space=smem, size = 0x4, offset = 0x4, fixed_abs, tag = 'smem constant byte address 0x4 - core index']
  #allocation1 [shape = 'u32[72,128]{1,0:T(1,128)}', space=vmem, size = 0x9000, scoped, tag = 'internal scratch']
  %s0 = inlined_call_operand.vmem [shape: f32[32,256], index: 0, kind: input, shape index: {}]
  %s1 = inlined_call_operand.vmem [shape: f32[32,256], index: 1, kind: input, shape index: {}]
  %s2 = inlined_call_operand.vmem [shape: f32[32,32], index: 2, kind: input, shape index: {}]
  %s3 = inlined_call_operand.vmem [shape: f32[32,32], index: 3, kind: input, shape index: {}]
  %s4 = inlined_call_operand.vmem [shape: f32[32,1], index: 4, kind: input, shape index: {}]
  %s5 = inlined_call_operand.vmem [shape: f32[32,256], index: 5, kind: output, shape index: {}]
  %s6 = sld [smem:[#allocation0]]
  $region30: #{rna_block.24} parent=0
    _
  %s8 = ssub.s32 1, %s6
  %s9 = scalar_select 0, %s8, %s6
  // Predicated region
  $region2: #{rna_block.24} parent=0 // pred_check
    _
  $region3: #{rna_block.24} parent=0 // pred_check_branch
    %11 = sbr.rel (0) target = $region5
  $region4: #{rna_block.24} parent=0 // pred_region
    _
  $region5: #{rna_block.24} parent=0 // pred_fallthru
    _
  // Predicated region
  $region6: #{rna_block.24} parent=0 // pred_check
    _
  $region7: #{rna_block.24} parent=0 // pred_check_branch
    %13 = sbr.rel (0) target = $region9
  $region8: #{rna_block.24} parent=0 // pred_region
    _
  $region9: #{rna_block.24} parent=0 // pred_fallthru
    _
  // Predicated region
  $region10: #{rna_block.24} parent=0 // pred_check
    _
  $region11: #{rna_block.24} parent=0 // pred_check_branch
    %15 = sbr.rel (0) target = $region13
  $region12: #{rna_block.24} parent=0 // pred_region
    _
  $region13: #{rna_block.24} parent=0 // pred_fallthru
    _
  // Predicated region
  $region14: #{rna_block.24} parent=0 // pred_check
    _
  $region15: #{rna_block.24} parent=0 // pred_check_branch
    %17 = sbr.rel (0) target = $region17
  $region16: #{rna_block.24} parent=0 // pred_region
    _
  $region17: #{rna_block.24} parent=0 // pred_fallthru
    _
  // Predicated region
  $region18: #{rna_block.24} parent=0 // pred_check
    _
  $region19: #{rna_block.24} parent=0 // pred_check_branch
    %19 = sbr.rel (0) target = $region21
  $region20: #{rna_block.24} parent=0 // pred_region
    _
  $region21: #{rna_block.24} parent=0 // pred_fallthru
    _
  %v21 = vld [vmem:[%s2] sm:$0xff]
  %v22 = vld [vmem:[%s2 + $0x8] sm:$0xff]
  %v23 = vld [vmem:[%s2 + $0x10] sm:$0xff]
  %v24 = vld [vmem:[%s2 + $0x18] sm:$0xff]
  %v25 = vld [vmem:[%s0] sm:$0xff]
  %v26 = vld [vmem:[%s0 + $0x8] sm:$0xff]
  %v27 = vld [vmem:[%s0 + $0x10] sm:$0xff]
  %v28 = vld [vmem:[%s0 + $0x18] sm:$0xff]
  %v29 = vld [vmem:[%s0 + $0x20] sm:$0xff]
  %v30 = vld [vmem:[%s0 + $0x28] sm:$0xff]
  %v31 = vld [vmem:[%s0 + $0x30] sm:$0xff]
  %v32 = vld [vmem:[%s0 + $0x38] sm:$0xff]
  %v33 = vpack.c.bf16 %v22, %v21
  %v34 = vpack.c.bf16 %v24, %v23
  %v35 = vpack.c.bf16 %v27, %v25
  %v36 = vpack.c.bf16 %v28, %v26
  %v37 = vpack.c.bf16 %v31, %v29
  %v38 = vpack.c.bf16 %v32, %v30
  %v39 = vld [vmem:[%s3] sm:$0xff]
  %v40 = vld [vmem:[%s3 + $0x8] sm:$0xff]
  %v41 = vld [vmem:[%s3 + $0x10] sm:$0xff]
  %v42 = vld [vmem:[%s3 + $0x18] sm:$0xff]
  %v43 = vld [vmem:[%s1] sm:$0xff]
  %v44 = vld [vmem:[%s1 + $0x8] sm:$0xff]
  %v45 = vld [vmem:[%s1 + $0x10] sm:$0xff]
  %v46 = vld [vmem:[%s1 + $0x18] sm:$0xff]
  %v47 = vld [vmem:[%s1 + $0x20] sm:$0xff]
  %v48 = vld [vmem:[%s1 + $0x28] sm:$0xff]
  %v49 = vld [vmem:[%s1 + $0x30] sm:$0xff]
  %v50 = vld [vmem:[%s1 + $0x38] sm:$0xff]
  %v51 = vpack.c.bf16 %v40, %v39
  %v52 = vpack.c.bf16 %v42, %v41
  %v53 = vpack.c.bf16 %v45, %v43
  %v54 = vpack.c.bf16 %v46, %v44
  %v55 = vpack.c.bf16 %v49, %v47
  %v56 = vpack.c.bf16 %v50, %v48
  %vm57 = vcmask 261120
  %v59 = vsel %vm57, %v51, 0
  %v62 = vsel %vm57, %v52, 0
  %64 = vmatpush.bf16.msra.mxu0 0
  %65 = vmatpush.bf16.msra.mxu0 0
  %66 = vmatpush.bf16.msra.mxu0 0
  %67 = vmatpush.bf16.msra.mxu0 0
  %68 = vmatpush.bf16.msra.mxu0 0
  %69 = vmatpush.bf16.msra.mxu0 0
  %70 = vmatpush.bf16.msra.mxu0 %v55
  %71 = vmatpush.bf16.msra.mxu0 %v53
  %72 = vmatmul.bf16.gmra.mxu0 %v59
  %v73 = vpop.f32.mrf.mxu0
  %v74 = vadd.f32 0.0, %v73
  %v75 = vpop.f32.mrf.mxu0
  %v76 = vadd.f32 0.0, %v75
  %77 = vmatmul.bf16.gmra.mxu0 %v62
  %v78 = vpop.f32.mrf.mxu0
  %v79 = vadd.f32 0.0, %v78
  %v80 = vpop.f32.mrf.mxu0
  %v81 = vadd.f32 0.0, %v80
  %82 = vdwg.mxu0
  %83 = vmatpush.bf16.msra.mxu0 0
  %84 = vmatpush.bf16.msra.mxu0 0
  %85 = vmatpush.bf16.msra.mxu0 0
  %86 = vmatpush.bf16.msra.mxu0 0
  %87 = vmatpush.bf16.msra.mxu0 0
  %88 = vmatpush.bf16.msra.mxu0 0
  %89 = vmatpush.bf16.msra.mxu0 %v56
  %90 = vmatpush.bf16.msra.mxu0 %v54
  %91 = vmatmul.bf16.gmra.mxu0 %v59
  %v92 = vpop.f32.mrf.mxu0
  %v93 = vadd.f32 0.0, %v92
  %v94 = vpop.f32.mrf.mxu0
  %v95 = vadd.f32 0.0, %v94
  %96 = vmatmul.bf16.gmra.mxu0 %v62
  %v97 = vpop.f32.mrf.mxu0
  %v98 = vadd.f32 0.0, %v97
  %v99 = vpop.f32.mrf.mxu0
  %v100 = vadd.f32 0.0, %v99
  %101 = vdwg.mxu0
  %v103 = vsel %vm57, %v33, 0
  %v106 = vsel %vm57, %v34, 0
  %108 = vmatpush.bf16.msra.mxu0 0
  %109 = vmatpush.bf16.msra.mxu0 0
  %110 = vmatpush.bf16.msra.mxu0 0
  %111 = vmatpush.bf16.msra.mxu0 0
  %112 = vmatpush.bf16.msra.mxu0 0
  %113 = vmatpush.bf16.msra.mxu0 0
  %114 = vmatpush.bf16.msra.mxu0 %v37
  %115 = vmatpush.bf16.msra.mxu0 %v35
  %116 = vmatmul.bf16.gmra.mxu0 %v103
  %v117 = vpop.f32.mrf.mxu0
  %v118 = vadd.f32 %v74, %v117
  %v119 = vpop.f32.mrf.mxu0
  %v120 = vadd.f32 %v76, %v119
  %121 = vmatmul.bf16.gmra.mxu0 %v106
  %v122 = vpop.f32.mrf.mxu0
  %v123 = vadd.f32 %v79, %v122
  %v124 = vpop.f32.mrf.mxu0
  %v125 = vadd.f32 %v81, %v124
  %126 = vdwg.mxu0
  %127 = vmatpush.bf16.msra.mxu0 0
  %128 = vmatpush.bf16.msra.mxu0 0
  %129 = vmatpush.bf16.msra.mxu0 0
  %130 = vmatpush.bf16.msra.mxu0 0
  %131 = vmatpush.bf16.msra.mxu0 0
  %132 = vmatpush.bf16.msra.mxu0 0
  %133 = vmatpush.bf16.msra.mxu0 %v38
  %134 = vmatpush.bf16.msra.mxu0 %v36
  %135 = vmatmul.bf16.gmra.mxu0 %v103
  %v136 = vpop.f32.mrf.mxu0
  %v137 = vadd.f32 %v93, %v136
  %v138 = vpop.f32.mrf.mxu0
  %v139 = vadd.f32 %v95, %v138
  %140 = vmatmul.bf16.gmra.mxu0 %v106
  %v141 = vpop.f32.mrf.mxu0
  %v142 = vadd.f32 %v98, %v141
  %v143 = vpop.f32.mrf.mxu0
  %v144 = vadd.f32 %v100, %v143
  %145 = vdwg.mxu0
  %v146 = vld [vmem:[%s4] sm:$0xff]
  %v147 = vld [vmem:[%s4 + $0x8] sm:$0xff]
  %v148 = vld [vmem:[%s4 + $0x10] sm:$0xff]
  %v149 = vld [vmem:[%s4 + $0x18] sm:$0xff]
  %151 = vset.pattern.permute.xlu0 0
  %152 = vperm.xlu0 %151, %v146
  %v153 = vpop.permute.xlu0 %152
  %156 = vset.pattern.permute.xlu0 0
  %157 = vperm.xlu0 %156, %v147
  %v158 = vpop.permute.xlu0 %157
  %161 = vset.pattern.permute.xlu0 0
  %162 = vperm.xlu0 %161, %v148
  %v163 = vpop.permute.xlu0 %162
  %166 = vset.pattern.permute.xlu0 0
  %167 = vperm.xlu0 %166, %v149
  %v168 = vpop.permute.xlu0 %167
  %v170 = vadd.f32 %v118, %v153
  %v171 = vadd.f32 %v137, %v153
  %v172 = vadd.f32 %v120, %v158
  %v173 = vadd.f32 %v139, %v158
  %v174 = vadd.f32 %v123, %v163
  %v175 = vadd.f32 %v142, %v163
  %v176 = vadd.f32 %v125, %v168
  %v177 = vadd.f32 %v144, %v168
  %v178 = vmul.f32 %v170, 0.999995
  %v179 = vmul.f32 %v171, 0.999995
  %v180 = vmul.f32 %v172, 0.999995
  %v181 = vmul.f32 %v173, 0.999995
  %v182 = vmul.f32 %v174, 0.999995
  %v183 = vmul.f32 %v175, 0.999995
  %v184 = vmul.f32 %v176, 0.999995
  %v185 = vmul.f32 %v177, 0.999995
  %v186 = vmax.f32 %v178, 0.0
  %v187 = vmax.f32 %v179, 0.0
  %v188 = vmax.f32 %v180, 0.0
  %v189 = vmax.f32 %v181, 0.0
  %v190 = vmax.f32 %v182, 0.0
  %v191 = vmax.f32 %v183, 0.0
  %v192 = vmax.f32 %v184, 0.0
  %v193 = vmax.f32 %v185, 0.0
  %194 = vst [vmem:[%s5] sm:$0xff] %v186
  %195 = vst [vmem:[%s5 + $0x8] sm:$0xff] %v187
  %196 = vst [vmem:[%s5 + $0x10] sm:$0xff] %v188
  %197 = vst [vmem:[%s5 + $0x18] sm:$0xff] %v189
  %198 = vst [vmem:[%s5 + $0x20] sm:$0xff] %v190
  %199 = vst [vmem:[%s5 + $0x28] sm:$0xff] %v191
  %200 = vst [vmem:[%s5 + $0x30] sm:$0xff] %v192
  %201 = vst [vmem:[%s5 + $0x38] sm:$0xff] %v193
  // Predicated region
  $region22: #{rna_block.24} parent=0 // pred_check
    _
  $region23: #{rna_block.24} parent=0 // pred_check_branch
    %203 = sbr.rel (0) target = $region25
  $region24: #{rna_block.24} parent=0 // pred_region
    _
  $region25: #{rna_block.24} parent=0 // pred_fallthru
    _
  // Predicated region
  $region26: #{rna_block.24} parent=0 // pred_check
    _
  $region27: #{rna_block.24} parent=0 // pred_check_branch
    %205 = sbr.rel (0) target = $region29
  $region28: #{rna_block.24} parent=0 // pred_region
    _
  $region29: #{rna_block.24} parent=0 // pred_fallthru
    _

// kernel: rna_block.23
$region0: #{rna_block.23}
  #allocation0 [shape = 'u32[]', space=smem, size = 0x4, offset = 0x4, fixed_abs, tag = 'smem constant byte address 0x4 - core index']
  #allocation1 [shape = 'u32[72,128]{1,0:T(1,128)}', space=vmem, size = 0x9000, scoped, tag = 'internal scratch']
  %s0 = inlined_call_operand.vmem [shape: f32[32,256], index: 0, kind: input, shape index: {}]
  %s1 = inlined_call_operand.vmem [shape: f32[8,32], index: 1, kind: input, shape index: {}]
  %s2 = inlined_call_operand.vmem [shape: f32[8,1], index: 2, kind: input, shape index: {}]
  %s3 = inlined_call_operand.vmem [shape: f32[1,32,32], index: 3, kind: input, shape index: {}]
  %s4 = inlined_call_operand.vmem [shape: f32[1,32,1], index: 4, kind: input, shape index: {}]
  %s5 = inlined_call_operand.vmem [shape: f32[1,8,8], index: 5, kind: input, shape index: {}]
  %s6 = inlined_call_operand.vmem [shape: f32[1,1,8], index: 6, kind: input, shape index: {}]
  %s7 = inlined_call_operand.vmem [shape: f32[1,32,32], index: 7, kind: input, shape index: {}]
  %s8 = inlined_call_operand.vmem [shape: f32[1,32,1], index: 8, kind: input, shape index: {}]
  %s9 = inlined_call_operand.vmem [shape: f32[8,32], index: 9, kind: input, shape index: {}]
  %s10 = inlined_call_operand.vmem [shape: f32[8,1], index: 10, kind: input, shape index: {}]
  %s11 = inlined_call_operand.vmem [shape: f32[32,256], index: 11, kind: output, shape index: {}]
  %s12 = sld [smem:[#allocation0]]
  $region149: #{rna_block.23} parent=0
    _
  %s14 = ssub.s32 1, %s12
  %s15 = scalar_select 0, %s14, %s12
  $region1: #{rna_block.23} parent=0
    #allocation2 [shape = 'u8[32768]{0}', space=vmem, size = 0x8000, scoped, tag = 'input window, operand 0']
    #allocation3 [shape = 'u8[32768]{0}', space=vmem, size = 0x8000, scoped, tag = 'output window, operand 0']
    loop: start=0, step=1, limit=4
    $region2: #{rna_block.23} parent=1 // loop_pre_header
      _
    $region3: #{rna_block.23} parent=1 // loop_header
      %s17 = sphi 0, %s21
      %p18 = scmp.ge.s32.totalorder %s17, 4
      %s27 = sphi 0, %s29
      %s30 = sphi 0, %s27
      %s31 = sphi 0, %s30
      %s47 = sphi 0, %s31
      %s51 = sphi 0, %s51
      %s53 = sphi 0, %s51
      %s54 = sphi 0, %s53
      %s68 = sphi 0, %s54
      %s72 = sphi 0, %s72
      %s74 = sphi 0, %s72
      %s75 = sphi 0, %s74
      %s89 = sphi 0, %s75
      %s93 = sphi 0, %s93
      %s95 = sphi 0, %s93
      %s96 = sphi 0, %s95
      %s110 = sphi 0, %s96
      %s114 = sphi 0, %s114
      %s116 = sphi 0, %s114
      %s117 = sphi 0, %s116
      %s131 = sphi 0, %s117
      %s135 = sphi 0, %s135
      %s137 = sphi 0, %s135
      %s138 = sphi 0, %s137
      %s152 = sphi 0, %s138
      %s156 = sphi 0, %s156
      %s158 = sphi 0, %s156
      %s159 = sphi 0, %s158
      %s173 = sphi 0, %s159
      %s177 = sphi 0, %s177
      %s179 = sphi 0, %s177
      %s180 = sphi 0, %s179
      %s194 = sphi 0, %s180
      %s198 = sphi 0, %s198
      %s200 = sphi 0, %s198
      %s201 = sphi 0, %s200
      %s215 = sphi 0, %s201
      %s219 = sphi 0, %s219
      %s221 = sphi 0, %s219
      %s222 = sphi 0, %s221
      %s236 = sphi 0, %s222
      %s240 = sphi 0, %s240
      %s242 = sphi 0, %s240
      %s243 = sphi 0, %s242
      %s257 = sphi 0, %s243
      %s263 = sphi 0, %s265
      %s266 = sphi 0, %s263
      %s267 = sphi 0, %s266
      %s283 = sphi 0, %s267
    $region4: #{rna_block.23} parent=1 // loop_header_branch
      %20 = sbr.rel (%p18) target = $region8
    $region5: #{rna_block.23} parent=1 // loop_body
      %s22 = ssub.s32 %s17, 1
      %s23 = ssub.s32 %s17, 2
      %s24 = sadd.s32 %s17, 1
      %s25 = ssub.s32 %s17, %s24
      %p26 = scmp.eq.s32.totalorder %s25, 0
      %s28 = sadd.s32 %s27, 1
      %s29 = scalar_select %p26, %s27, %s28
      %p32 = pneg %p26
      %p33 = scmp.eq.s32.totalorder %s17, 1
      %p34 = por %p32, %p33
      %p35 = scmp.ne.s32.totalorder %s27, %s30
      %p36 = scmp.eq.s32.totalorder %s17, 0
      %p37 = por %p35, %p36
      %p38 = scmp.ne.s32.totalorder %s27, %s30
      %p39 = scmp.eq.s32.totalorder %s22, 1
      %p40 = por %p38, %p39
      %p41 = scmp.ne.s32.totalorder %s30, %s31
      %p42 = scmp.eq.s32.totalorder %s22, 0
      %p43 = por %p41, %p42
      %p44 = scmp.ne.s32.totalorder %s30, %s31
      %p45 = scmp.eq.s32.totalorder %s23, 1
      %p46 = por %p44, %p45
      %p48 = scmp.ne.s32.totalorder %s31, %s47
      %p49 = scmp.eq.s32.totalorder %s23, 0
      %p50 = por %p48, %p49
      %s52 = sadd.s32 %s51, 1
      %p55 = scmp.eq.s32.totalorder %s17, 1
      %p56 = scmp.ne.s32.totalorder %s51, %s53
      %p57 = scmp.eq.s32.totalorder %s17, 0
      %p58 = por %p56, %p57
      %p59 = scmp.ne.s32.totalorder %s51, %s53
      %p60 = scmp.eq.s32.totalorder %s22, 1
      %p61 = por %p59, %p60
      %p62 = scmp.ne.s32.totalorder %s53, %s54
      %p63 = scmp.eq.s32.totalorder %s22, 0
      %p64 = por %p62, %p63
      %p65 = scmp.ne.s32.totalorder %s53, %s54
      %p66 = scmp.eq.s32.totalorder %s23, 1
      %p67 = por %p65, %p66
      %p69 = scmp.ne.s32.totalorder %s54, %s68
      %p70 = scmp.eq.s32.totalorder %s23, 0
      %p71 = por %p69, %p70
      %s73 = sadd.s32 %s72, 1
      %p76 = scmp.eq.s32.totalorder %s17, 1
      %p77 = scmp.ne.s32.totalorder %s72, %s74
      %p78 = scmp.eq.s32.totalorder %s17, 0
      %p79 = por %p77, %p78
      %p80 = scmp.ne.s32.totalorder %s72, %s74
      %p81 = scmp.eq.s32.totalorder %s22, 1
      %p82 = por %p80, %p81
      %p83 = scmp.ne.s32.totalorder %s74, %s75
      %p84 = scmp.eq.s32.totalorder %s22, 0
      %p85 = por %p83, %p84
      %p86 = scmp.ne.s32.totalorder %s74, %s75
      %p87 = scmp.eq.s32.totalorder %s23, 1
      %p88 = por %p86, %p87
      %p90 = scmp.ne.s32.totalorder %s75, %s89
      %p91 = scmp.eq.s32.totalorder %s23, 0
      %p92 = por %p90, %p91
      %s94 = sadd.s32 %s93, 1
      %p97 = scmp.eq.s32.totalorder %s17, 1
      %p98 = scmp.ne.s32.totalorder %s93, %s95
      %p99 = scmp.eq.s32.totalorder %s17, 0
      %p100 = por %p98, %p99
      %p101 = scmp.ne.s32.totalorder %s93, %s95
      %p102 = scmp.eq.s32.totalorder %s22, 1
      %p103 = por %p101, %p102
      %p104 = scmp.ne.s32.totalorder %s95, %s96
      %p105 = scmp.eq.s32.totalorder %s22, 0
      %p106 = por %p104, %p105
      %p107 = scmp.ne.s32.totalorder %s95, %s96
      %p108 = scmp.eq.s32.totalorder %s23, 1
      %p109 = por %p107, %p108
      %p111 = scmp.ne.s32.totalorder %s96, %s110
      %p112 = scmp.eq.s32.totalorder %s23, 0
      %p113 = por %p111, %p112
      %s115 = sadd.s32 %s114, 1
      %p118 = scmp.eq.s32.totalorder %s17, 1
      %p119 = scmp.ne.s32.totalorder %s114, %s116
      %p120 = scmp.eq.s32.totalorder %s17, 0
      %p121 = por %p119, %p120
      %p122 = scmp.ne.s32.totalorder %s114, %s116
      %p123 = scmp.eq.s32.totalorder %s22, 1
      %p124 = por %p122, %p123
      %p125 = scmp.ne.s32.totalorder %s116, %s117
      %p126 = scmp.eq.s32.totalorder %s22, 0
      %p127 = por %p125, %p126
      %p128 = scmp.ne.s32.totalorder %s116, %s117
      %p129 = scmp.eq.s32.totalorder %s23, 1
      %p130 = por %p128, %p129
      %p132 = scmp.ne.s32.totalorder %s117, %s131
      %p133 = scmp.eq.s32.totalorder %s23, 0
      %p134 = por %p132, %p133
      %s136 = sadd.s32 %s135, 1
      %p139 = scmp.eq.s32.totalorder %s17, 1
      %p140 = scmp.ne.s32.totalorder %s135, %s137
      %p141 = scmp.eq.s32.totalorder %s17, 0
      %p142 = por %p140, %p141
      %p143 = scmp.ne.s32.totalorder %s135, %s137
      %p144 = scmp.eq.s32.totalorder %s22, 1
      %p145 = por %p143, %p144
      %p146 = scmp.ne.s32.totalorder %s137, %s138
      %p147 = scmp.eq.s32.totalorder %s22, 0
      %p148 = por %p146, %p147
      %p149 = scmp.ne.s32.totalorder %s137, %s138
      %p150 = scmp.eq.s32.totalorder %s23, 1
      %p151 = por %p149, %p150
      %p153 = scmp.ne.s32.totalorder %s138, %s152
      %p154 = scmp.eq.s32.totalorder %s23, 0
      %p155 = por %p153, %p154
      %s157 = sadd.s32 %s156, 1
      %p160 = scmp.eq.s32.totalorder %s17, 1
      %p161 = scmp.ne.s32.totalorder %s156, %s158
      %p162 = scmp.eq.s32.totalorder %s17, 0
      %p163 = por %p161, %p162
      %p164 = scmp.ne.s32.totalorder %s156, %s158
      %p165 = scmp.eq.s32.totalorder %s22, 1
      %p166 = por %p164, %p165
      %p167 = scmp.ne.s32.totalorder %s158, %s159
      %p168 = scmp.eq.s32.totalorder %s22, 0
      %p169 = por %p167, %p168
      %p170 = scmp.ne.s32.totalorder %s158, %s159
      %p171 = scmp.eq.s32.totalorder %s23, 1
      %p172 = por %p170, %p171
      %p174 = scmp.ne.s32.totalorder %s159, %s173
      %p175 = scmp.eq.s32.totalorder %s23, 0
      %p176 = por %p174, %p175
      %s178 = sadd.s32 %s177, 1
      %p181 = scmp.eq.s32.totalorder %s17, 1
      %p182 = scmp.ne.s32.totalorder %s177, %s179
      %p183 = scmp.eq.s32.totalorder %s17, 0
      %p184 = por %p182, %p183
      %p185 = scmp.ne.s32.totalorder %s177, %s179
      %p186 = scmp.eq.s32.totalorder %s22, 1
      %p187 = por %p185, %p186
      %p188 = scmp.ne.s32.totalorder %s179, %s180
      %p189 = scmp.eq.s32.totalorder %s22, 0
      %p190 = por %p188, %p189
      %p191 = scmp.ne.s32.totalorder %s179, %s180
      %p192 = scmp.eq.s32.totalorder %s23, 1
      %p193 = por %p191, %p192
      %p195 = scmp.ne.s32.totalorder %s180, %s194
      %p196 = scmp.eq.s32.totalorder %s23, 0
      %p197 = por %p195, %p196
      %s199 = sadd.s32 %s198, 1
      %p202 = scmp.eq.s32.totalorder %s17, 1
      %p203 = scmp.ne.s32.totalorder %s198, %s200
      %p204 = scmp.eq.s32.totalorder %s17, 0
      %p205 = por %p203, %p204
      %p206 = scmp.ne.s32.totalorder %s198, %s200
      %p207 = scmp.eq.s32.totalorder %s22, 1
      %p208 = por %p206, %p207
      %p209 = scmp.ne.s32.totalorder %s200, %s201
      %p210 = scmp.eq.s32.totalorder %s22, 0
      %p211 = por %p209, %p210
      %p212 = scmp.ne.s32.totalorder %s200, %s201
      %p213 = scmp.eq.s32.totalorder %s23, 1
      %p214 = por %p212, %p213
      %p216 = scmp.ne.s32.totalorder %s201, %s215
      %p217 = scmp.eq.s32.totalorder %s23, 0
      %p218 = por %p216, %p217
      %s220 = sadd.s32 %s219, 1
      %p223 = scmp.eq.s32.totalorder %s17, 1
      %p224 = scmp.ne.s32.totalorder %s219, %s221
      %p225 = scmp.eq.s32.totalorder %s17, 0
      %p226 = por %p224, %p225
      %p227 = scmp.ne.s32.totalorder %s219, %s221
      %p228 = scmp.eq.s32.totalorder %s22, 1
      %p229 = por %p227, %p228
      %p230 = scmp.ne.s32.totalorder %s221, %s222
      %p231 = scmp.eq.s32.totalorder %s22, 0
      %p232 = por %p230, %p231
      %p233 = scmp.ne.s32.totalorder %s221, %s222
      %p234 = scmp.eq.s32.totalorder %s23, 1
      %p235 = por %p233, %p234
      %p237 = scmp.ne.s32.totalorder %s222, %s236
      %p238 = scmp.eq.s32.totalorder %s23, 0
      %p239 = por %p237, %p238
      %s241 = sadd.s32 %s240, 1
      %p244 = scmp.eq.s32.totalorder %s17, 1
      %p245 = scmp.ne.s32.totalorder %s240, %s242
      %p246 = scmp.eq.s32.totalorder %s17, 0
      %p247 = por %p245, %p246
      %p248 = scmp.ne.s32.totalorder %s240, %s242
      %p249 = scmp.eq.s32.totalorder %s22, 1
      %p250 = por %p248, %p249
      %p251 = scmp.ne.s32.totalorder %s242, %s243
      %p252 = scmp.eq.s32.totalorder %s22, 0
      %p253 = por %p251, %p252
      %p254 = scmp.ne.s32.totalorder %s242, %s243
      %p255 = scmp.eq.s32.totalorder %s23, 1
      %p256 = por %p254, %p255
      %p258 = scmp.ne.s32.totalorder %s243, %s257
      %p259 = scmp.eq.s32.totalorder %s23, 0
      %p260 = por %p258, %p259
      %s261 = ssub.s32 %s17, %s24
      %p262 = scmp.eq.s32.totalorder %s261, 0
      %s264 = sadd.s32 %s263, 1
      %s265 = scalar_select %p262, %s263, %s264
      %p268 = pneg %p262
      %p269 = scmp.eq.s32.totalorder %s17, 1
      %p270 = por %p268, %p269
      %p271 = scmp.ne.s32.totalorder %s263, %s266
      %p272 = scmp.eq.s32.totalorder %s17, 0
      %p273 = por %p271, %p272
      %p274 = scmp.ne.s32.totalorder %s263, %s266
      %p275 = scmp.eq.s32.totalorder %s22, 1
      %p276 = por %p274, %p275
      %p277 = scmp.ne.s32.totalorder %s266, %s267
      %p278 = scmp.eq.s32.totalorder %s22, 0
      %p279 = por %p277, %p278
      %p280 = scmp.ne.s32.totalorder %s266, %s267
      %p281 = scmp.eq.s32.totalorder %s23, 1
      %p282 = por %p280, %p281
      %p284 = scmp.ne.s32.totalorder %s267, %s283
      %p285 = scmp.eq.s32.totalorder %s23, 0
      %p286 = por %p284, %p285
      %p287 = scmp.le.s32.totalorder 1, %s17
      %p288 = scmp.lt.s32.totalorder %s17, 3
      %p289 = pnand %p287, %p288
      %p290 = pneg %p289
      // Predicated region
      $region9: #{rna_block.23} parent=5 // pred_check
        _
      $region10: #{rna_block.23} parent=5 // pred_check_branch
        %292 = sbr.rel (%p289) target = $region12
      $region11: #{rna_block.23} parent=5 // pred_region
        %s293 = ssub.s32 %s17, 1
        // Predicated region
        $region13: #{rna_block.23} parent=11 // pred_check
          %p294 = pneg %p64
        $region14: #{rna_block.23} parent=11 // pred_check_branch
          %296 = sbr.rel (%p294) target = $region16
        $region15: #{rna_block.23} parent=11 // pred_region
          _
        $region16: #{rna_block.23} parent=11 // pred_fallthru
          _
        // Predicated region
        $region17: #{rna_block.23} parent=11 // pred_check
          %p297 = pneg %p85
        $region18: #{rna_block.23} parent=11 // pred_check_branch
          %299 = sbr.rel (%p297) target = $region20
        $region19: #{rna_block.23} parent=11 // pred_region
          _
        $region20: #{rna_block.23} parent=11 // pred_fallthru
          _
        // Predicated region
        $region21: #{rna_block.23} parent=11 // pred_check
          %p300 = pneg %p106
        $region22: #{rna_block.23} parent=11 // pred_check_branch
          %302 = sbr.rel (%p300) target = $region24
        $region23: #{rna_block.23} parent=11 // pred_region
          _
        $region24: #{rna_block.23} parent=11 // pred_fallthru
          _
        // Predicated region
        $region25: #{rna_block.23} parent=11 // pred_check
          %p303 = pneg %p127
        $region26: #{rna_block.23} parent=11 // pred_check_branch
          %305 = sbr.rel (%p303) target = $region28
        $region27: #{rna_block.23} parent=11 // pred_region
          _
        $region28: #{rna_block.23} parent=11 // pred_fallthru
          _
        // Predicated region
        $region29: #{rna_block.23} parent=11 // pred_check
          %p306 = pneg %p148
        $region30: #{rna_block.23} parent=11 // pred_check_branch
          %308 = sbr.rel (%p306) target = $region32
        $region31: #{rna_block.23} parent=11 // pred_region
          _
        $region32: #{rna_block.23} parent=11 // pred_fallthru
          _
        // Predicated region
        $region33: #{rna_block.23} parent=11 // pred_check
          %p309 = pneg %p169
        $region34: #{rna_block.23} parent=11 // pred_check_branch
          %311 = sbr.rel (%p309) target = $region36
        $region35: #{rna_block.23} parent=11 // pred_region
          _
        $region36: #{rna_block.23} parent=11 // pred_fallthru
          _
        // Predicated region
        $region37: #{rna_block.23} parent=11 // pred_check
          %p312 = pneg %p190
        $region38: #{rna_block.23} parent=11 // pred_check_branch
          %314 = sbr.rel (%p312) target = $region40
        $region39: #{rna_block.23} parent=11 // pred_region
          _
        $region40: #{rna_block.23} parent=11 // pred_fallthru
          _
        // Predicated region
        $region41: #{rna_block.23} parent=11 // pred_check
          %p315 = pneg %p211
        $region42: #{rna_block.23} parent=11 // pred_check_branch
          %317 = sbr.rel (%p315) target = $region44
        $region43: #{rna_block.23} parent=11 // pred_region
          _
        $region44: #{rna_block.23} parent=11 // pred_fallthru
          _
        // Predicated region
        $region45: #{rna_block.23} parent=11 // pred_check
          %p318 = pneg %p232
        $region46: #{rna_block.23} parent=11 // pred_check_branch
          %320 = sbr.rel (%p318) target = $region48
        $region47: #{rna_block.23} parent=11 // pred_region
          _
        $region48: #{rna_block.23} parent=11 // pred_fallthru
          _
        // Predicated region
        $region49: #{rna_block.23} parent=11 // pred_check
          %p321 = pneg %p253
        $region50: #{rna_block.23} parent=11 // pred_check_branch
          %323 = sbr.rel (%p321) target = $region52
        $region51: #{rna_block.23} parent=11 // pred_region
          _
        $region52: #{rna_block.23} parent=11 // pred_fallthru
          _
      $region12: #{rna_block.23} parent=5 // pred_fallthru
        _
      %p324 = scmp.lt.s32.totalorder %s17, 2
      // Predicated region
      $region53: #{rna_block.23} parent=5 // pred_check
        %p325 = pneg %p324
      $region54: #{rna_block.23} parent=5 // pred_check_branch
        %327 = sbr.rel (%p325) target = $region56
      $region55: #{rna_block.23} parent=5 // pred_region
        // Predicated region
        $region57: #{rna_block.23} parent=55 // pred_check
          %p328 = pneg %p37
        $region58: #{rna_block.23} parent=55 // pred_check_branch
          %330 = sbr.rel (%p328) target = $region60
        $region59: #{rna_block.23} parent=55 // pred_region
          %s331 = sand.u32 %s27, 1
          %s332 = sand.u32 %s27, 1
          %s333 = smul.addr %s332, 32
          %s334 = scalar_lea.vmem [#allocation2], %s333
          %s335 = smul.addr %s17, 8
          %s336 = scalar_lea.vmem %s0, %s335
          // Predicated region
          $region61: #{rna_block.23} parent=59 // pred_check
            _
          $region62: #{rna_block.23} parent=59 // pred_check_branch
            %338 = sbr.rel (0) target = $region64
          $region63: #{rna_block.23} parent=59 // pred_region
            // Predicated region
            $region65: #{rna_block.23} parent=63 // pred_check
              _
            $region66: #{rna_block.23} parent=63 // pred_check_branch
              %340 = sbr.rel (0) target = $region68
            $region67: #{rna_block.23} parent=63 // pred_region
              // Predicated region
              $region80: #{rna_block.23} parent=67 // pred_check
                _
              $region81: #{rna_block.23} parent=67 // pred_check_branch
                %362 = sbr.rel (0) target = $region83
              $region82: #{rna_block.23} parent=67 // pred_region
                loop: start=0, step=1, limit=1
                $region84: #{rna_block.23} parent=82 // loop_pre_header
                  _
                $region85: #{rna_block.23} parent=82 // loop_header
                  %s364 = sphi 0, %s368
                  %p365 = scmp.ge.s32.totalorder %s364, 1
                  %s369 = sphi %s336, %s336
                  %s370 = sphi %s334, %s334
                $region86: #{rna_block.23} parent=82 // loop_header_branch
                  %367 = sbr.rel (%p365) target = $region90
                $region87: #{rna_block.23} parent=82 // loop_body
                  %v371 = vld [vmem:[%s369] sm:$0xff]
                  %372 = vst [vmem:[%s370] sm:$0xff] %v371
                  %v373 = vld [vmem:[%s369 + $0x10] sm:$0xff]
                  %374 = vst [vmem:[%s370 + $0x8] sm:$0xff] %v373
                  %v375 = vld [vmem:[%s369 + $0x20] sm:$0xff]
                  %376 = vst [vmem:[%s370 + $0x10] sm:$0xff] %v375
                  %v377 = vld [vmem:[%s369 + $0x30] sm:$0xff]
                  %378 = vst [vmem:[%s370 + $0x18] sm:$0xff] %v377
                $region88: #{rna_block.23} parent=82 // loop_footer
                  %s368 = sadd.s32 1, %s364
                $region89: #{rna_block.23} parent=82 // loop_footer_branch
                  %363 = sbr.rel target = $region85
                $region90: #{rna_block.23} parent=82 // loop_exit
                  _
              $region83: #{rna_block.23} parent=67 // pred_fallthru
                _
              // Predicated region
              $region91: #{rna_block.23} parent=67 // pred_check
                _
              $region92: #{rna_block.23} parent=67 // pred_check_branch
                %380 = sbr.rel target = $region94
              $region93: #{rna_block.23} parent=67 // pred_region
                _
              $region94: #{rna_block.23} parent=67 // pred_fallthru
                _
            $region68: #{rna_block.23} parent=63 // pred_fallthru
              _
            // Predicated region
            $region69: #{rna_block.23} parent=63 // pred_check
              _
            $region70: #{rna_block.23} parent=63 // pred_check_branch
              %342 = sbr.rel target = $region72
            $region71: #{rna_block.23} parent=63 // pred_region
              %s344 = ssub.s32 256, 1
              loop: start=0, step=1, limit=1
              $region73: #{rna_block.23} parent=71 // loop_pre_header
                _
              $region74: #{rna_block.23} parent=71 // loop_header
                %s346 = sphi 0, %s350
                %p347 = scmp.ge.s32.totalorder %s346, 1
                %s351 = sphi %s336, %s336
                %s352 = sphi %s334, %s334
              $region75: #{rna_block.23} parent=71 // loop_header_branch
                %349 = sbr.rel (%p347) target = $region79
              $region76: #{rna_block.23} parent=71 // loop_body
                %v353 = vld [vmem:[%s351] sm:%s344]
                %354 = vst [vmem:[%s352] sm:%s344] %v353
                %v355 = vld [vmem:[%s351 + $0x10] sm:%s344]
                %356 = vst [vmem:[%s352 + $0x8] sm:%s344] %v355
                %v357 = vld [vmem:[%s351 + $0x20] sm:%s344]
                %358 = vst [vmem:[%s352 + $0x10] sm:%s344] %v357
                %v359 = vld [vmem:[%s351 + $0x30] sm:%s344]
                %360 = vst [vmem:[%s352 + $0x18] sm:%s344] %v359
              $region77: #{rna_block.23} parent=71 // loop_footer
                %s350 = sadd.s32 1, %s346
              $region78: #{rna_block.23} parent=71 // loop_footer_branch
                %345 = sbr.rel target = $region74
              $region79: #{rna_block.23} parent=71 // loop_exit
                _
            $region72: #{rna_block.23} parent=63 // pred_fallthru
              _
          $region64: #{rna_block.23} parent=59 // pred_fallthru
            _
          %381 = vnop
        $region60: #{rna_block.23} parent=55 // pred_fallthru
          _
      $region56: #{rna_block.23} parent=5 // pred_fallthru
        _
      %p382 = scmp.le.s32.totalorder 1, %s17
      %p383 = scmp.lt.s32.totalorder %s17, 3
      %p384 = pnand %p382, %p383
      %p385 = pneg %p384
      // Predicated region
      $region95: #{rna_block.23} parent=5 // pred_check
        _
      $region96: #{rna_block.23} parent=5 // pred_check_branch
        %387 = sbr.rel (%p384) target = $region98
      $region97: #{rna_block.23} parent=5 // pred_region
        %s388 = ssub.s32 %s17, 1
        %s389 = sand.u32 %s30, 1
        %s390 = sand.u32 %s30, 1
        %s391 = smul.addr %s390, 32
        %s392 = scalar_lea.vmem [#allocation2], %s391
        // Predicated region
        $region99: #{rna_block.23} parent=97 // pred_check
          %p393 = pneg %p43
        $region100: #{rna_block.23} parent=97 // pred_check_branch
          %395 = sbr.rel (%p393) target = $region102
        $region101: #{rna_block.23} parent=97 // pred_region
          _
        $region102: #{rna_block.23} parent=97 // pred_fallthru
          _
        %s396 = sand.u32 %s30, 1
        %s397 = sand.u32 %s30, 1
        %s398 = smul.addr %s397, 32
        %s399 = scalar_lea.vmem [#allocation2], %s398
        %p400 = pneg %p43
        %p401 = pneg %p40
        %p402 = pneg %p64
        %p403 = pneg %p61
        %p404 = pneg %p85
        %p405 = pneg %p82
        %p406 = pneg %p106
        %p407 = pneg %p103
        %p408 = pneg %p127
        %p409 = pneg %p124
        %p410 = pneg %p148
        %p411 = pneg %p145
        %p412 = pneg %p169
        %p413 = pneg %p166
        %p414 = pneg %p190
        %p415 = pneg %p187
        %p416 = pneg %p211
        %p417 = pneg %p208
        %p418 = pneg %p232
        %p419 = pneg %p229
        %p420 = pneg %p253
        %p421 = pneg %p250
        %p422 = pneg %p279
        %p423 = pneg %p276
        %s424 = sand.u32 %s266, 1
        %s425 = sand.u32 %s266, 1
        %s426 = smul.addr %s425, 32
        %s427 = scalar_lea.vmem [#allocation3], %s426
        %v428 = vld [vmem:[%s392] sm:$0xff]
        %v429 = vld [vmem:[%s392 + $0x8] sm:$0xff]
        %v430 = vld [vmem:[%s392 + $0x10] sm:$0xff]
        %v431 = vld [vmem:[%s392 + $0x18] sm:$0xff]
        %432 = vadd.xlane.f32.xlu0 %v428
        %v433 = vpop.xlane.xlu0 %432
        %434 = vadd.xlane.f32.xlu0 %v429
        %v435 = vpop.xlane.xlu0 %434
        %436 = vadd.xlane.f32.xlu0 %v430
        %v437 = vpop.xlane.xlu0 %436
        %438 = vadd.xlane.f32.xlu0 %v431
        %v439 = vpop.xlane.xlu0 %438
        %v440 = vrcp.pop 128.0
        %v441 = vmul.f32 128.0, %v440
        %v442 = vsub.f32 1.0, %v441
        %v443 = vmul.f32 %v440, %v442
        %v444 = vadd.f32 %v440, %v443
        %vm445 = vweird.f32 %v440
        %v446 = vsel %vm445, %v440, %v444
        %v447 = vmul.f32 %v433, %v446
        %v448 = vmul.f32 %v435, %v446
        %v449 = vmul.f32 %v437, %v446
        %v450 = vmul.f32 %v439, %v446
        %v451 = vsub.f32 %v428, %v447
        %v452 = vsub.f32 %v429, %v448
        %v453 = vsub.f32 %v430, %v449
        %v454 = vsub.f32 %v431, %v450
        %v455 = vmul.f32 %v451, %v451
        %v456 = vmul.f32 %v452, %v452
        %v457 = vmul.f32 %v453, %v453
        %v458 = vmul.f32 %v454, %v454
        %459 = vadd.xlane.f32.xlu0 %v455
        %v460 = vpop.xlane.xlu0 %459
        %461 = vadd.xlane.f32.xlu0 %v456
        %v462 = vpop.xlane.xlu0 %461
        %463 = vadd.xlane.f32.xlu0 %v457
        %v464 = vpop.xlane.xlu0 %463
        %465 = vadd.xlane.f32.xlu0 %v458
        %v466 = vpop.xlane.xlu0 %465
        %v467 = vmul.f32 %v460, %v446
        %v468 = vmul.f32 %v462, %v446
        %v469 = vmul.f32 %v464, %v446
        %v470 = vmul.f32 %v466, %v446
        %v471 = vadd.f32 %v467, 0.001
        %v472 = vadd.f32 %v468, 0.001
        %v473 = vadd.f32 %v469, 0.001
        %v474 = vadd.f32 %v470, 0.001
        %v475 = vrsqrt.pop %v471
        %v476 = vmul.f32 %v475, %v471
        %v477 = vmul.f32 %v476, %v475
        %v478 = vmul.f32 0.5, %v477
        %v479 = vsub.f32 1.5, %v478
        %v480 = vmul.f32 %v475, %v479
        %vm481 = vweird.f32 %v471
        %vm482 = vweird.f32 %v475
        %vm483 = vmor %vm481, %vm482
        %v484 = vsel %vm483, %v475, %v480
        %v485 = vrsqrt.pop %v472
        %v486 = vmul.f32 %v485, %v472
        %v487 = vmul.f32 %v486, %v485
        %v488 = vmul.f32 0.5, %v487
        %v489 = vsub.f32 1.5, %v488
        %v490 = vmul.f32 %v485, %v489
        %vm491 = vweird.f32 %v472
        %vm492 = vweird.f32 %v485
        %vm493 = vmor %vm491, %vm492
        %v494 = vsel %vm493, %v485, %v490
        %v495 = vrsqrt.pop %v473
        %v496 = vmul.f32 %v495, %v473
        %v497 = vmul.f32 %v496, %v495
        %v498 = vmul.f32 0.5, %v497
        %v499 = vsub.f32 1.5, %v498
        %v500 = vmul.f32 %v495, %v499
        %vm501 = vweird.f32 %v473
        %vm502 = vweird.f32 %v495
        %vm503 = vmor %vm501, %vm502
        %v504 = vsel %vm503, %v495, %v500
        %v505 = vrsqrt.pop %v474
        %v506 = vmul.f32 %v505, %v474
        %v507 = vmul.f32 %v506, %v505
        %v508 = vmul.f32 0.5, %v507
        %v509 = vsub.f32 1.5, %v508
        %v510 = vmul.f32 %v505, %v509
        %vm511 = vweird.f32 %v474
        %vm512 = vweird.f32 %v505
        %vm513 = vmor %vm511, %vm512
        %v514 = vsel %vm513, %v505, %v510
        %v515 = vmul.f32 %v451, %v484
        %v516 = vmul.f32 %v452, %v494
        %v517 = vmul.f32 %v453, %v504
        %v518 = vmul.f32 %v454, %v514
        %v519 = vmul.f32 %v515, 0.999995
        %v520 = vmul.f32 %v516, 0.999995
        %v521 = vmul.f32 %v517, 0.999995
        %v522 = vmul.f32 %v518, 0.999995
        %v523 = vmax.f32 %v519, 0.0
        %v524 = vmax.f32 %v520, 0.0
        %v525 = vmax.f32 %v521, 0.0
        %v526 = vmax.f32 %v522, 0.0
        %v527 = vld [vmem:[%s1] sm:$0xff]
        %v528 = vld [vmem:[%s2] sm:$0xff]
        %530 = vset.pattern.permute.xlu0 0
        %531 = vperm.xlu0 %530, %v528
        %v532 = vpop.permute.xlu0 %531
        %vm534 = vcmask 261120
        %v536 = vsel %vm534, %v527, 0
        %538 = vmatpush.msra.mxu0 0.0
        %539 = vmatpush.msra.mxu0 0.0
        %540 = vmatpush.msra.mxu0 0.0
        %541 = vmatpush.msra.mxu0 0.0
        %542 = vmatpush.msra.mxu0 0.0
        %543 = vmatpush.msra.mxu0 0.0
        %544 = vmatpush.msra.mxu0 0.0
        %545 = vmatpush.msra.mxu0 0.0
        %546 = vmatpush.msra.mxu0 0.0
        %547 = vmatpush.msra.mxu0 0.0
        %548 = vmatpush.msra.mxu0 0.0
        %549 = vmatpush.msra.mxu0 0.0
        %550 = vmatpush.msra.mxu0 %v526
        %551 = vmatpush.msra.mxu0 %v525
        %552 = vmatpush.msra.mxu0 %v524
        %553 = vmatpush.msra.mxu0 %v523
        %554 = vmatmul.f32.gmra.mxu0 %v536
        %v555 = vpop.f32.mrf.mxu0
        %v556 = vadd.f32 %v532, %v555
        %557 = vdwg.mxu0
        %558 = vmax.xlane.f32.xlu0 %v556
        %v559 = vpop.xlane.xlu0 %558
        %v560 = vsub.f32 %v556, %v559
        %v561 = vmul.f32 %v560, 1.442695
        %v562 = vpow.pop %v561
        %563 = vadd.xlane.f32.xlu0 %v562
        %v564 = vpop.xlane.xlu0 %563
        %v565 = vrcp.pop %v564
        %v566 = vmul.f32 %v564, %v565
        %v567 = vsub.f32 1.0, %v566
        %v568 = vmul.f32 %v565, %v567
        %v569 = vadd.f32 %v565, %v568
        %vm570 = vweird.f32 %v564
        %vm571 = vweird.f32 %v565
        %vm572 = vmor %vm570, %vm571
        %v573 = vsel %vm572, %v565, %v569
        %v574 = vand.u32 2147483647, %v564
        %vm575 = vcmp.eq.f32.partialorder %v574, 8.507059e+37
        %v576 = vand.u32 %v564, 2147483648
        %v577 = vor.u32 1.1754944e-38, %v576
        %v578 = vsel %vm575, %v577, %v573
        %v579 = vmul.f32 %v562, %v578
        %580 = vmatpush.xpose.msra.mxu0 0.0
        %581 = vmatpush.xpose.msra.mxu0 0.0
        %582 = vmatpush.xpose.msra.mxu0 0.0
        %583 = vmatpush.xpose.msra.mxu0 0.0
        %584 = vmatpush.xpose.msra.mxu0 0.0
        %585 = vmatpush.xpose.msra.mxu0 0.0
        %586 = vmatpush.xpose.msra.mxu0 0.0
        %587 = vmatpush.xpose.msra.mxu0 0.0
        %588 = vmatpush.xpose.msra.mxu0 0.0
        %589 = vmatpush.xpose.msra.mxu0 0.0
        %590 = vmatpush.xpose.msra.mxu0 0.0
        %591 = vmatpush.xpose.msra.mxu0 0.0
        %592 = vmatpush.xpose.msra.mxu0 0.0
        %593 = vmatpush.xpose.msra.mxu0 0.0
        %594 = vmatpush.xpose.msra.mxu0 0.0
        %595 = vmatpush.xpose.msra.mxu0 %v579
        %596 = vmatmul.f32.gmra.mxu0 %v428
        %v597 = vpop.f32.mrf.mxu0
        %v598 = vadd.f32 0.0, %v597
        %599 = vmatmul.f32.gmra.mxu0 %v429
        %v600 = vpop.f32.mrf.mxu0
        %v601 = vadd.f32 0.0, %v600
        %602 = vmatmul.f32.gmra.mxu0 %v430
        %v603 = vpop.f32.mrf.mxu0
        %v604 = vadd.f32 0.0, %v603
        %605 = vmatmul.f32.gmra.mxu0 %v431
        %v606 = vpop.f32.mrf.mxu0
        %v607 = vadd.f32 0.0, %v606
        %608 = vdwg.mxu0
        %v609 = vld [vmem:[%s3] sm:$0xff]
        %v610 = vld [vmem:[%s3 + $0x8] sm:$0xff]
        %v611 = vld [vmem:[%s3 + $0x10] sm:$0xff]
        %v612 = vld [vmem:[%s3 + $0x18] sm:$0xff]
        %vm613 = vcmask 64512
        %v614 = vsel %vm613, %v598, 0.0
        %615 = vadd.xlane.f32.xlu0 %v614
        %v616 = vpop.xlane.xlu0 %615
        %v617 = vsel %vm613, %v601, 0.0
        %618 = vadd.xlane.f32.xlu0 %v617
        %v619 = vpop.xlane.xlu0 %618
        %v620 = vsel %vm613, %v604, 0.0
        %621 = vadd.xlane.f32.xlu0 %v620
        %v622 = vpop.xlane.xlu0 %621
        %v623 = vsel %vm613, %v607, 0.0
        %624 = vadd.xlane.f32.xlu0 %v623
        %v625 = vpop.xlane.xlu0 %624
        %v626 = vrcp.pop 8.0
        %v627 = vmul.f32 8.0, %v626
        %v628 = vsub.f32 1.0, %v627
        %v629 = vmul.f32 %v626, %v628
        %v630 = vadd.f32 %v626, %v629
        %vm631 = vweird.f32 %v626
        %v632 = vsel %vm631, %v626, %v630
        %v633 = vmul.f32 %v616, %v632
        %v634 = vmul.f32 %v619, %v632
        %v635 = vmul.f32 %v622, %v632
        %v636 = vmul.f32 %v625, %v632
        %v637 = vsub.f32 %v598, %v633
        %v638 = vsub.f32 %v601, %v634
        %v639 = vsub.f32 %v604, %v635
        %v640 = vsub.f32 %v607, %v636
        %v641 = vmul.f32 %v637, %v637
        %v642 = vmul.f32 %v638, %v638
        %v643 = vmul.f32 %v639, %v639
        %v644 = vmul.f32 %v640, %v640
        %v645 = vsel %vm613, %v641, 0.0
        %646 = vadd.xlane.f32.xlu0 %v645
        %v647 = vpop.xlane.xlu0 %646
        %v648 = vsel %vm613, %v642, 0.0
        %649 = vadd.xlane.f32.xlu0 %v648
        %v650 = vpop.xlane.xlu0 %649
        %v651 = vsel %vm613, %v643, 0.0
        %652 = vadd.xlane.f32.xlu0 %v651
        %v653 = vpop.xlane.xlu0 %652
        %v654 = vsel %vm613, %v644, 0.0
        %655 = vadd.xlane.f32.xlu0 %v654
        %v656 = vpop.xlane.xlu0 %655
        %v657 = vmul.f32 %v647, %v632
        %v658 = vmul.f32 %v650, %v632
        %v659 = vmul.f32 %v653, %v632
        %v660 = vmul.f32 %v656, %v632
        %v661 = vadd.f32 %v657, 0.001
        %v662 = vadd.f32 %v658, 0.001
        %v663 = vadd.f32 %v659, 0.001
        %v664 = vadd.f32 %v660, 0.001
        %v665 = vrsqrt.pop %v661
        %v666 = vmul.f32 %v665, %v661
        %v667 = vmul.f32 %v666, %v665
        %v668 = vmul.f32 0.5, %v667
        %v669 = vsub.f32 1.5, %v668
        %v670 = vmul.f32 %v665, %v669
        %vm671 = vweird.f32 %v661
        %vm672 = vweird.f32 %v665
        %vm673 = vmor %vm671, %vm672
        %v674 = vsel %vm673, %v665, %v670
        %v675 = vrsqrt.pop %v662
        %v676 = vmul.f32 %v675, %v662
        %v677 = vmul.f32 %v676, %v675
        %v678 = vmul.f32 0.5, %v677
        %v679 = vsub.f32 1.5, %v678
        %v680 = vmul.f32 %v675, %v679
        %vm681 = vweird.f32 %v662
        %vm682 = vweird.f32 %v675
        %vm683 = vmor %vm681, %vm682
        %v684 = vsel %vm683, %v675, %v680
        %v685 = vrsqrt.pop %v663
        %v686 = vmul.f32 %v685, %v663
        %v687 = vmul.f32 %v686, %v685
        %v688 = vmul.f32 0.5, %v687
        %v689 = vsub.f32 1.5, %v688
        %v690 = vmul.f32 %v685, %v689
        %vm691 = vweird.f32 %v663
        %vm692 = vweird.f32 %v685
        %vm693 = vmor %vm691, %vm692
        %v694 = vsel %vm693, %v685, %v690
        %v695 = vrsqrt.pop %v664
        %v696 = vmul.f32 %v695, %v664
        %v697 = vmul.f32 %v696, %v695
        %v698 = vmul.f32 0.5, %v697
        %v699 = vsub.f32 1.5, %v698
        %v700 = vmul.f32 %v695, %v699
        %vm701 = vweird.f32 %v664
        %vm702 = vweird.f32 %v695
        %vm703 = vmor %vm701, %vm702
        %v704 = vsel %vm703, %v695, %v700
        %v705 = vmul.f32 %v637, %v674
        %v706 = vmul.f32 %v638, %v684
        %v707 = vmul.f32 %v639, %v694
        %v708 = vmul.f32 %v640, %v704
        %v709 = vmul.f32 %v705, 0.999995
        %v710 = vmul.f32 %v706, 0.999995
        %v711 = vmul.f32 %v707, 0.999995
        %v712 = vmul.f32 %v708, 0.999995
        %v713 = vmax.f32 %v709, 0.0
        %v714 = vmax.f32 %v710, 0.0
        %v715 = vmax.f32 %v711, 0.0
        %v716 = vmax.f32 %v712, 0.0
        %v717 = vld [vmem:[%s4] sm:$0xff]
        %v718 = vld [vmem:[%s4 + $0x8] sm:$0xff]
        %v719 = vld [vmem:[%s4 + $0x10] sm:$0xff]
        %v720 = vld [vmem:[%s4 + $0x18] sm:$0xff]
        %722 = vset.pattern.permute.xlu0 0
        %723 = vperm.xlu0 %722, %v717
        %v724 = vpop.permute.xlu0 %723
        %727 = vset.pattern.permute.xlu0 0
        %728 = vperm.xlu0 %727, %v718
        %v729 = vpop.permute.xlu0 %728
        %732 = vset.pattern.permute.xlu0 0
        %733 = vperm.xlu0 %732, %v719
        %v734 = vpop.permute.xlu0 %733
        %737 = vset.pattern.permute.xlu0 0
        %738 = vperm.xlu0 %737, %v720
        %v739 = vpop.permute.xlu0 %738
        %v742 = vsel %vm534, %v609, 0
        %v745 = vsel %vm534, %v610, 0
        %v748 = vsel %vm534, %v611, 0
        %v751 = vsel %vm534, %v612, 0
        %753 = vmatpush.msra.mxu0 0.0
        %754 = vmatpush.msra.mxu0 0.0
        %755 = vmatpush.msra.mxu0 0.0
        %756 = vmatpush.msra.mxu0 0.0
        %757 = vmatpush.msra.mxu0 0.0
        %758 = vmatpush.msra.mxu0 0.0
        %759 = vmatpush.msra.mxu0 0.0
        %760 = vmatpush.msra.mxu0 0.0
        %761 = vmatpush.msra.mxu0 0.0
        %762 = vmatpush.msra.mxu0 0.0
        %763 = vmatpush.msra.mxu0 0.0
        %764 = vmatpush.msra.mxu0 0.0
        %765 = vmatpush.msra.mxu0 %v716
        %766 = vmatpush.msra.mxu0 %v715
        %767 = vmatpush.msra.mxu0 %v714
        %768 = vmatpush.msra.mxu0 %v713
        %769 = vmatmul.f32.gmra.mxu0 %v742
        %v770 = vpop.f32.mrf.mxu0
        %v771 = vadd.f32 %v724, %v770
        %772 = vmatmul.f32.gmra.mxu0 %v745
        %v773 = vpop.f32.mrf.mxu0
        %v774 = vadd.f32 %v729, %v773
        %775 = vmatmul.f32.gmra.mxu0 %v748
        %v776 = vpop.f32.mrf.mxu0
        %v777 = vadd.f32 %v734, %v776
        %778 = vmatmul.f32.gmra.mxu0 %v751
        %v779 = vpop.f32.mrf.mxu0
        %v780 = vadd.f32 %v739, %v779
        %781 = vdwg.mxu0
        %v782 = vmul.f32 %v771, 0.999995
        %v783 = vmul.f32 %v774, 0.999995
        %v784 = vmul.f32 %v777, 0.999995
        %v785 = vmul.f32 %v780, 0.999995
        %v786 = vmax.f32 %v782, 0.0
        %v787 = vmax.f32 %v783, 0.0
        %v788 = vmax.f32 %v784, 0.0
        %v789 = vmax.f32 %v785, 0.0
        %v790 = vld [vmem:[%s5] sm:$0xff]
        %v792 = vsel %vm613, %v786, 0
        %v795 = vsel %vm613, %v787, 0
        %v798 = vsel %vm613, %v788, 0
        %v801 = vsel %vm613, %v789, 0
        %803 = vmatpush.msra.mxu0 0.0
        %804 = vmatpush.msra.mxu0 0.0
        %805 = vmatpush.msra.mxu0 0.0
        %806 = vmatpush.msra.mxu0 0.0
        %807 = vmatpush.msra.mxu0 0.0
        %808 = vmatpush.msra.mxu0 0.0
        %809 = vmatpush.msra.mxu0 0.0
        %810 = vmatpush.msra.mxu0 0.0
        %811 = vmatpush.msra.mxu0 0.0
        %812 = vmatpush.msra.mxu0 0.0
        %813 = vmatpush.msra.mxu0 0.0
        %814 = vmatpush.msra.mxu0 0.0
        %815 = vmatpush.msra.mxu0 0.0
        %816 = vmatpush.msra.mxu0 0.0
        %817 = vmatpush.msra.mxu0 0.0
        %818 = vmatpush.msra.mxu0 %v790
        %819 = vmatmul.f32.gmra.mxu0 %v792
        %v820 = vpop.f32.mrf.mxu0
        %v821 = vadd.f32 0.0, %v820
        %822 = vmatmul.f32.gmra.mxu0 %v795
        %v823 = vpop.f32.mrf.mxu0
        %v824 = vadd.f32 0.0, %v823
        %825 = vmatmul.f32.gmra.mxu0 %v798
        %v826 = vpop.f32.mrf.mxu0
        %v827 = vadd.f32 0.0, %v826
        %828 = vmatmul.f32.gmra.mxu0 %v801
        %v829 = vpop.f32.mrf.mxu0
        %v830 = vadd.f32 0.0, %v829
        %831 = vdwg.mxu0
        %v832 = vadd.f32 %v771, %v821
        %v833 = vadd.f32 %v774, %v824
        %v834 = vadd.f32 %v777, %v827
        %v835 = vadd.f32 %v780, %v830
        %v836 = vld [vmem:[%s6] sm:$0x1]
        %v838 = vperm.slane %v836, 0
        %v840 = vadd.f32 %v832, %v838
        %v841 = vadd.f32 %v833, %v838
        %v842 = vadd.f32 %v834, %v838
        %v843 = vadd.f32 %v835, %v838
        %v844 = vld [vmem:[%s7] sm:$0xff]
        %v845 = vld [vmem:[%s7 + $0x8] sm:$0xff]
        %v846 = vld [vmem:[%s7 + $0x10] sm:$0xff]
        %v847 = vld [vmem:[%s7 + $0x18] sm:$0xff]
        %v848 = vsel %vm613, %v840, 0.0
        %849 = vadd.xlane.f32.xlu0 %v848
        %v850 = vpop.xlane.xlu0 %849
        %v851 = vsel %vm613, %v841, 0.0
        %852 = vadd.xlane.f32.xlu0 %v851
        %v853 = vpop.xlane.xlu0 %852
        %v854 = vsel %vm613, %v842, 0.0
        %855 = vadd.xlane.f32.xlu0 %v854
        %v856 = vpop.xlane.xlu0 %855
        %v857 = vsel %vm613, %v843, 0.0
        %858 = vadd.xlane.f32.xlu0 %v857
        %v859 = vpop.xlane.xlu0 %858
        %v860 = vmul.f32 %v850, %v632
        %v861 = vmul.f32 %v853, %v632
        %v862 = vmul.f32 %v856, %v632
        %v863 = vmul.f32 %v859, %v632
        %v864 = vsub.f32 %v840, %v860
        %v865 = vsub.f32 %v841, %v861
        %v866 = vsub.f32 %v842, %v862
        %v867 = vsub.f32 %v843, %v863
        %v868 = vmul.f32 %v864, %v864
        %v869 = vmul.f32 %v865, %v865
        %v870 = vmul.f32 %v866, %v866
        %v871 = vmul.f32 %v867, %v867
        %v872 = vsel %vm613, %v868, 0.0
        %873 = vadd.xlane.f32.xlu0 %v872
        %v874 = vpop.xlane.xlu0 %873
        %v875 = vsel %vm613, %v869, 0.0
        %876 = vadd.xlane.f32.xlu0 %v875
        %v877 = vpop.xlane.xlu0 %876
        %v878 = vsel %vm613, %v870, 0.0
        %879 = vadd.xlane.f32.xlu0 %v878
        %v880 = vpop.xlane.xlu0 %879
        %v881 = vsel %vm613, %v871, 0.0
        %882 = vadd.xlane.f32.xlu0 %v881
        %v883 = vpop.xlane.xlu0 %882
        %v884 = vmul.f32 %v874, %v632
        %v885 = vmul.f32 %v877, %v632
        %v886 = vmul.f32 %v880, %v632
        %v887 = vmul.f32 %v883, %v632
        %v888 = vadd.f32 %v884, 0.001
        %v889 = vadd.f32 %v885, 0.001
        %v890 = vadd.f32 %v886, 0.001
        %v891 = vadd.f32 %v887, 0.001
        %v892 = vrsqrt.pop %v888
        %v893 = vmul.f32 %v892, %v888
        %v894 = vmul.f32 %v893, %v892
        %v895 = vmul.f32 0.5, %v894
        %v896 = vsub.f32 1.5, %v895
        %v897 = vmul.f32 %v892, %v896
        %vm898 = vweird.f32 %v888
        %vm899 = vweird.f32 %v892
        %vm900 = vmor %vm898, %vm899
        %v901 = vsel %vm900, %v892, %v897
        %v902 = vrsqrt.pop %v889
        %v903 = vmul.f32 %v902, %v889
        %v904 = vmul.f32 %v903, %v902
        %v905 = vmul.f32 0.5, %v904
        %v906 = vsub.f32 1.5, %v905
        %v907 = vmul.f32 %v902, %v906
        %vm908 = vweird.f32 %v889
        %vm909 = vweird.f32 %v902
        %vm910 = vmor %vm908, %vm909
        %v911 = vsel %vm910, %v902, %v907
        %v912 = vrsqrt.pop %v890
        %v913 = vmul.f32 %v912, %v890
        %v914 = vmul.f32 %v913, %v912
        %v915 = vmul.f32 0.5, %v914
        %v916 = vsub.f32 1.5, %v915
        %v917 = vmul.f32 %v912, %v916
        %vm918 = vweird.f32 %v890
        %vm919 = vweird.f32 %v912
        %vm920 = vmor %vm918, %vm919
        %v921 = vsel %vm920, %v912, %v917
        %v922 = vrsqrt.pop %v891
        %v923 = vmul.f32 %v922, %v891
        %v924 = vmul.f32 %v923, %v922
        %v925 = vmul.f32 0.5, %v924
        %v926 = vsub.f32 1.5, %v925
        %v927 = vmul.f32 %v922, %v926
        %vm928 = vweird.f32 %v891
        %vm929 = vweird.f32 %v922
        %vm930 = vmor %vm928, %vm929
        %v931 = vsel %vm930, %v922, %v927
        %v932 = vmul.f32 %v864, %v901
        %v933 = vmul.f32 %v865, %v911
        %v934 = vmul.f32 %v866, %v921
        %v935 = vmul.f32 %v867, %v931
        %v936 = vmul.f32 %v932, 0.999995
        %v937 = vmul.f32 %v933, 0.999995
        %v938 = vmul.f32 %v934, 0.999995
        %v939 = vmul.f32 %v935, 0.999995
        %v940 = vmax.f32 %v936, 0.0
        %v941 = vmax.f32 %v937, 0.0
        %v942 = vmax.f32 %v938, 0.0
        %v943 = vmax.f32 %v939, 0.0
        %v944 = vld [vmem:[%s8] sm:$0xff]
        %v945 = vld [vmem:[%s8 + $0x8] sm:$0xff]
        %v946 = vld [vmem:[%s8 + $0x10] sm:$0xff]
        %v947 = vld [vmem:[%s8 + $0x18] sm:$0xff]
        %949 = vset.pattern.permute.xlu0 0
        %950 = vperm.xlu0 %949, %v944
        %v951 = vpop.permute.xlu0 %950
        %954 = vset.pattern.permute.xlu0 0
        %955 = vperm.xlu0 %954, %v945
        %v956 = vpop.permute.xlu0 %955
        %959 = vset.pattern.permute.xlu0 0
        %960 = vperm.xlu0 %959, %v946
        %v961 = vpop.permute.xlu0 %960
        %964 = vset.pattern.permute.xlu0 0
        %965 = vperm.xlu0 %964, %v947
        %v966 = vpop.permute.xlu0 %965
        %v969 = vsel %vm534, %v844, 0
        %v972 = vsel %vm534, %v845, 0
        %v975 = vsel %vm534, %v846, 0
        %v978 = vsel %vm534, %v847, 0
        %980 = vmatpush.msra.mxu0 0.0
        %981 = vmatpush.msra.mxu0 0.0
        %982 = vmatpush.msra.mxu0 0.0
        %983 = vmatpush.msra.mxu0 0.0
        %984 = vmatpush.msra.mxu0 0.0
        %985 = vmatpush.msra.mxu0 0.0
        %986 = vmatpush.msra.mxu0 0.0
        %987 = vmatpush.msra.mxu0 0.0
        %988 = vmatpush.msra.mxu0 0.0
        %989 = vmatpush.msra.mxu0 0.0
        %990 = vmatpush.msra.mxu0 0.0
        %991 = vmatpush.msra.mxu0 0.0
        %992 = vmatpush.msra.mxu0 %v943
        %993 = vmatpush.msra.mxu0 %v942
        %994 = vmatpush.msra.mxu0 %v941
        %995 = vmatpush.msra.mxu0 %v940
        %996 = vmatmul.f32.gmra.mxu0 %v969
        %v997 = vpop.f32.mrf.mxu0
        %v998 = vadd.f32 %v951, %v997
        %999 = vmatmul.f32.gmra.mxu0 %v972
        %v1000 = vpop.f32.mrf.mxu0
        %v1001 = vadd.f32 %v956, %v1000
        %1002 = vmatmul.f32.gmra.mxu0 %v975
        %v1003 = vpop.f32.mrf.mxu0
        %v1004 = vadd.f32 %v961, %v1003
        %1005 = vmatmul.f32.gmra.mxu0 %v978
        %v1006 = vpop.f32.mrf.mxu0
        %v1007 = vadd.f32 %v966, %v1006
        %1008 = vdwg.mxu0
        %v1009 = vadd.f32 %v998, %v598
        %v1010 = vadd.f32 %v1001, %v601
        %v1011 = vadd.f32 %v1004, %v604
        %v1012 = vadd.f32 %v1007, %v607
        %v1013 = vld [vmem:[%s9] sm:$0xff]
        %v1014 = vld [vmem:[%s10] sm:$0xff]
        %1016 = vset.pattern.permute.xlu0 0
        %1017 = vperm.xlu0 %1016, %v1014
        %v1018 = vpop.permute.xlu0 %1017
        %v1021 = vsel %vm534, %v1013, 0
        %1023 = vmatpush.msra.mxu0 0.0
        %1024 = vmatpush.msra.mxu0 0.0
        %1025 = vmatpush.msra.mxu0 0.0
        %1026 = vmatpush.msra.mxu0 0.0
        %1027 = vmatpush.msra.mxu0 0.0
        %1028 = vmatpush.msra.mxu0 0.0
        %1029 = vmatpush.msra.mxu0 0.0
        %1030 = vmatpush.msra.mxu0 0.0
        %1031 = vmatpush.msra.mxu0 0.0
        %1032 = vmatpush.msra.mxu0 0.0
        %1033 = vmatpush.msra.mxu0 0.0
        %1034 = vmatpush.msra.mxu0 0.0
        %1035 = vmatpush.msra.mxu0 %v526
        %1036 = vmatpush.msra.mxu0 %v525
        %1037 = vmatpush.msra.mxu0 %v524
        %1038 = vmatpush.msra.mxu0 %v523
        %1039 = vmatmul.f32.gmra.mxu0 %v1021
        %v1040 = vpop.f32.mrf.mxu0
        %v1041 = vadd.f32 %v1018, %v1040
        %1042 = vdwg.mxu0
        %v1043 = vrot.slane %v1041, 4
        %v1044 = vmax.f32 %v1041, %v1043
        %v1045 = vrot.slane %v1044, 2
        %v1046 = vmax.f32 %v1044, %v1045
        %v1047 = vrot.slane %v1046, 1
        %v1048 = vmax.f32 %v1046, %v1047
        %v1049 = vsub.f32 %v1041, %v1048
        %v1050 = vmul.f32 %v1049, 1.442695
        %v1051 = vpow.pop %v1050
        %v1052 = vrot.slane %v1051, 4
        %v1053 = vadd.f32 %v1051, %v1052
        %v1054 = vrot.slane %v1053, 2
        %v1055 = vadd.f32 %v1053, %v1054
        %v1056 = vrot.slane %v1055, 1
        %v1057 = vadd.f32 %v1055, %v1056
        %v1058 = vrcp.pop %v1057
        %v1059 = vmul.f32 %v1057, %v1058
        %v1060 = vsub.f32 1.0, %v1059
        %v1061 = vmul.f32 %v1058, %v1060
        %v1062 = vadd.f32 %v1058, %v1061
        %vm1063 = vweird.f32 %v1057
        %vm1064 = vweird.f32 %v1058
        %vm1065 = vmor %vm1063, %vm1064
        %v1066 = vsel %vm1065, %v1058, %v1062
        %v1067 = vand.u32 2147483647, %v1057
        %vm1068 = vcmp.eq.f32.partialorder %v1067, 8.507059e+37
        %v1069 = vand.u32 %v1057, 2147483648
        %v1070 = vor.u32 1.1754944e-38, %v1069
        %v1071 = vsel %vm1068, %v1070, %v1066
        %v1072 = vmul.f32 %v1051, %v1071
        %v1074 = vsel %vm613, %v1009, 0
        %v1077 = vsel %vm613, %v1010, 0
        %v1080 = vsel %vm613, %v1011, 0
        %v1083 = vsel %vm613, %v1012, 0
        %1085 = vmatpush.msra.mxu0 0.0
        %1086 = vmatpush.msra.mxu0 0.0
        %1087 = vmatpush.msra.mxu0 0.0
        %1088 = vmatpush.msra.mxu0 0.0
        %1089 = vmatpush.msra.mxu0 0.0
        %1090 = vmatpush.msra.mxu0 0.0
        %1091 = vmatpush.msra.mxu0 0.0
        %1092 = vmatpush.msra.mxu0 0.0
        %1093 = vmatpush.msra.mxu0 0.0
        %1094 = vmatpush.msra.mxu0 0.0
        %1095 = vmatpush.msra.mxu0 0.0
        %1096 = vmatpush.msra.mxu0 0.0
        %1097 = vmatpush.msra.mxu0 0.0
        %1098 = vmatpush.msra.mxu0 0.0
        %1099 = vmatpush.msra.mxu0 0.0
        %1100 = vmatpush.msra.mxu0 %v1072
        %1101 = vmatmul.f32.gmra.mxu0 %v1074
        %v1102 = vpop.f32.mrf.mxu0
        %v1103 = vadd.f32 0.0, %v1102
        %1104 = vmatmul.f32.gmra.mxu0 %v1077
        %v1105 = vpop.f32.mrf.mxu0
        %v1106 = vadd.f32 0.0, %v1105
        %1107 = vmatmul.f32.gmra.mxu0 %v1080
        %v1108 = vpop.f32.mrf.mxu0
        %v1109 = vadd.f32 0.0, %v1108
        %1110 = vmatmul.f32.gmra.mxu0 %v1083
        %v1111 = vpop.f32.mrf.mxu0
        %v1112 = vadd.f32 0.0, %v1111
        %1113 = vdwg.mxu0
        %1114 = vst [vmem:[%s427] sm:$0xff] %v1103
        %1115 = vst [vmem:[%s427 + $0x8] sm:$0xff] %v1106
        %1116 = vst [vmem:[%s427 + $0x10] sm:$0xff] %v1109
        %1117 = vst [vmem:[%s427 + $0x18] sm:$0xff] %v1112
        %s1118 = sand.u32 %s266, 1
        %s1119 = sand.u32 %s266, 1
        %s1120 = smul.addr %s1119, 32
        %s1121 = scalar_lea.vmem [#allocation3], %s1120
        // Predicated region
        $region103: #{rna_block.23} parent=97 // pred_check
          %p1122 = pneg %p276
        $region104: #{rna_block.23} parent=97 // pred_check_branch
          %1124 = sbr.rel (%p1122) target = $region106
        $region105: #{rna_block.23} parent=97 // pred_region
          %s1125 = smul.addr %s22, 8
          %s1126 = scalar_lea.vmem %s11, %s1125
          // Predicated region
          $region107: #{rna_block.23} parent=105 // pred_check
            _
          $region108: #{rna_block.23} parent=105 // pred_check_branch
            %1128 = sbr.rel (0) target = $region110
          $region109: #{rna_block.23} parent=105 // pred_region
            // Predicated region
            $region111: #{rna_block.23} parent=109 // pred_check
              _
            $region112: #{rna_block.23} parent=109 // pred_check_branch
              %1130 = sbr.rel (0) target = $region114
            $region113: #{rna_block.23} parent=109 // pred_region
              // Predicated region
              $region126: #{rna_block.23} parent=113 // pred_check
                _
              $region127: #{rna_block.23} parent=113 // pred_check_branch
                %1152 = sbr.rel (0) target = $region129
              $region128: #{rna_block.23} parent=113 // pred_region
                loop: start=0, step=1, limit=1
                $region130: #{rna_block.23} parent=128 // loop_pre_header
                  _
                $region131: #{rna_block.23} parent=128 // loop_header
                  %s1154 = sphi 0, %s1158
                  %p1155 = scmp.ge.s32.totalorder %s1154, 1
                  %s1159 = sphi %s1121, %s1121
                  %s1160 = sphi %s1126, %s1126
                $region132: #{rna_block.23} parent=128 // loop_header_branch
                  %1157 = sbr.rel (%p1155) target = $region136
                $region133: #{rna_block.23} parent=128 // loop_body
                  %v1161 = vld [vmem:[%s1159] sm:$0xff]
                  %1162 = vst [vmem:[%s1160] sm:$0xff] %v1161
                  %v1163 = vld [vmem:[%s1159 + $0x8] sm:$0xff]
                  %1164 = vst [vmem:[%s1160 + $0x10] sm:$0xff] %v1163
                  %v1165 = vld [vmem:[%s1159 + $0x10] sm:$0xff]
                  %1166 = vst [vmem:[%s1160 + $0x20] sm:$0xff] %v1165
                  %v1167 = vld [vmem:[%s1159 + $0x18] sm:$0xff]
                  %1168 = vst [vmem:[%s1160 + $0x30] sm:$0xff] %v1167
                $region134: #{rna_block.23} parent=128 // loop_footer
                  %s1158 = sadd.s32 1, %s1154
                $region135: #{rna_block.23} parent=128 // loop_footer_branch
                  %1153 = sbr.rel target = $region131
                $region136: #{rna_block.23} parent=128 // loop_exit
                  _
              $region129: #{rna_block.23} parent=113 // pred_fallthru
                _
              // Predicated region
              $region137: #{rna_block.23} parent=113 // pred_check
                _
              $region138: #{rna_block.23} parent=113 // pred_check_branch
                %1170 = sbr.rel target = $region140
              $region139: #{rna_block.23} parent=113 // pred_region
                _
              $region140: #{rna_block.23} parent=113 // pred_fallthru
                _
            $region114: #{rna_block.23} parent=109 // pred_fallthru
              _
            // Predicated region
            $region115: #{rna_block.23} parent=109 // pred_check
              _
            $region116: #{rna_block.23} parent=109 // pred_check_branch
              %1132 = sbr.rel target = $region118
            $region117: #{rna_block.23} parent=109 // pred_region
              %s1134 = ssub.s32 256, 1
              loop: start=0, step=1, limit=1
              $region119: #{rna_block.23} parent=117 // loop_pre_header
                _
              $region120: #{rna_block.23} parent=117 // loop_header
                %s1136 = sphi 0, %s1140
                %p1137 = scmp.ge.s32.totalorder %s1136, 1
                %s1141 = sphi %s1121, %s1121
                %s1142 = sphi %s1126, %s1126
              $region121: #{rna_block.23} parent=117 // loop_header_branch
                %1139 = sbr.rel (%p1137) target = $region125
              $region122: #{rna_block.23} parent=117 // loop_body
                %v1143 = vld [vmem:[%s1141] sm:%s1134]
                %1144 = vst [vmem:[%s1142] sm:%s1134] %v1143
                %v1145 = vld [vmem:[%s1141 + $0x8] sm:%s1134]
                %1146 = vst [vmem:[%s1142 + $0x10] sm:%s1134] %v1145
                %v1147 = vld [vmem:[%s1141 + $0x10] sm:%s1134]
                %1148 = vst [vmem:[%s1142 + $0x20] sm:%s1134] %v1147
                %v1149 = vld [vmem:[%s1141 + $0x18] sm:%s1134]
                %1150 = vst [vmem:[%s1142 + $0x30] sm:%s1134] %v1149
              $region123: #{rna_block.23} parent=117 // loop_footer
                %s1140 = sadd.s32 1, %s1136
              $region124: #{rna_block.23} parent=117 // loop_footer_branch
                %1135 = sbr.rel target = $region120
              $region125: #{rna_block.23} parent=117 // loop_exit
                _
            $region118: #{rna_block.23} parent=109 // pred_fallthru
              _
          $region110: #{rna_block.23} parent=105 // pred_fallthru
            _
          %1171 = vnop
        $region106: #{rna_block.23} parent=97 // pred_fallthru
          _
      $region98: #{rna_block.23} parent=5 // pred_fallthru
        _
      %p1172 = scmp.le.s32.totalorder 2, %s17
      // Predicated region
      $region141: #{rna_block.23} parent=5 // pred_check
        %p1173 = pneg %p1172
      $region142: #{rna_block.23} parent=5 // pred_check_branch
        %1175 = sbr.rel (%p1173) target = $region144
      $region143: #{rna_block.23} parent=5 // pred_region
        %s1176 = ssub.s32 %s17, 2
        // Predicated region
        $region145: #{rna_block.23} parent=143 // pred_check
          %p1177 = pneg %p282
        $region146: #{rna_block.23} parent=143 // pred_check_branch
          %1179 = sbr.rel (%p1177) target = $region148
        $region147: #{rna_block.23} parent=143 // pred_region
          %s1180 = sand.u32 %s267, 1
          %s1181 = sand.u32 %s267, 1
          %s1182 = smul.addr %s1181, 32
          %s1183 = scalar_lea.vmem [#allocation3], %s1182
        $region148: #{rna_block.23} parent=143 // pred_fallthru
          _
      $region144: #{rna_block.23} parent=5 // pred_fallthru
        _
    $region6: #{rna_block.23} parent=1 // loop_footer
      %s21 = sadd.s32 1, %s17
    $region7: #{rna_block.23} parent=1 // loop_footer_branch
      %16 = sbr.rel target = $region3
    $region8: #{rna_block.23} parent=1 // loop_exit
      _

// kernel: rna_block.22
$region0: #{rna_block.22}
  #allocation0 [shape = 'u32[]', space=smem, size = 0x4, offset = 0x4, fixed_abs, tag = 'smem constant byte address 0x4 - core index']
  #allocation1 [shape = 'u32[72,128]{1,0:T(1,128)}', space=vmem, size = 0x9000, scoped, tag = 'internal scratch']
  #allocation2 [shape = 'f32[32,128]{1,0:T(8,128)}', space=vmem, size = 0x4000, scoped, tag = 'scratch operand']
  %s0 = inlined_call_operand.vmem [shape: f32[32,256], index: 0, kind: input, shape index: {}]
  %s1 = inlined_call_operand.vmem [shape: f32[96,256], index: 1, kind: input, shape index: {}]
  %s2 = inlined_call_operand.vmem [shape: f32[2,128,1], index: 2, kind: input, shape index: {}]
  %s3 = inlined_call_operand.vmem [shape: f32[2,1,128], index: 3, kind: input, shape index: {}]
  %s4 = inlined_call_operand.vmem [shape: f32[32,32], index: 4, kind: input, shape index: {}]
  %s5 = inlined_call_operand.vmem [shape: f32[32,1], index: 5, kind: input, shape index: {}]
  %s6 = inlined_call_operand.vmem [shape: f32[64,32], index: 6, kind: input, shape index: {}]
  %s7 = inlined_call_operand.vmem [shape: f32[64,32], index: 7, kind: input, shape index: {}]
  %s8 = inlined_call_operand.vmem [shape: f32[64,1], index: 8, kind: input, shape index: {}]
  %s9 = inlined_call_operand.vmem [shape: f32[32,64], index: 9, kind: input, shape index: {}]
  %s10 = inlined_call_operand.vmem [shape: f32[32,1], index: 10, kind: input, shape index: {}]
  %s11 = inlined_call_operand.vmem [shape: f32[32,256], index: 11, kind: output, shape index: {}]
  %s12 = sld [smem:[#allocation0]]
  $region187: #{rna_block.22} parent=0
    _
  %s14 = ssub.s32 1, %s12
  %s15 = scalar_select 0, %s14, %s12
  $region1: #{rna_block.22} parent=0
    #allocation3 [shape = 'u8[32768]{0}', space=vmem, size = 0x8000, scoped, tag = 'input window, operand 0']
    #allocation4 [shape = 'u8[98304]{0}', space=vmem, size = 0x18000, scoped, tag = 'input window, operand 1']
    #allocation5 [shape = 'u8[32768]{0}', space=vmem, size = 0x8000, scoped, tag = 'output window, operand 0']
    loop: start=0, step=1, limit=4
    $region2: #{rna_block.22} parent=1 // loop_pre_header
      _
    $region3: #{rna_block.22} parent=1 // loop_header
      %s17 = sphi 0, %s21
      %p18 = scmp.ge.s32.totalorder %s17, 4
      %s27 = sphi 0, %s29
      %s30 = sphi 0, %s27
      %s31 = sphi 0, %s30
      %s47 = sphi 0, %s31
      %s53 = sphi 0, %s55
      %s56 = sphi 0, %s53
      %s57 = sphi 0, %s56
      %s73 = sphi 0, %s57
      %s79 = sphi 0, %s81
      %s82 = sphi 0, %s79
      %s83 = sphi 0, %s82
      %s99 = sphi 0, %s83
      %s105 = sphi 0, %s107
      %s108 = sphi 0, %s105
      %s109 = sphi 0, %s108
      %s125 = sphi 0, %s109
      %s129 = sphi 0, %s129
      %s131 = sphi 0, %s129
      %s132 = sphi 0, %s131
      %s146 = sphi 0, %s132
      %s150 = sphi 0, %s150
      %s152 = sphi 0, %s150
      %s153 = sphi 0, %s152
      %s167 = sphi 0, %s153
      %s171 = sphi 0, %s171
      %s173 = sphi 0, %s171
      %s174 = sphi 0, %s173
      %s188 = sphi 0, %s174
      %s192 = sphi 0, %s192
      %s194 = sphi 0, %s192
      %s195 = sphi 0, %s194
      %s209 = sphi 0, %s195
      %s213 = sphi 0, %s213
      %s215 = sphi 0, %s213
      %s216 = sphi 0, %s215
      %s230 = sphi 0, %s216
      %s234 = sphi 0, %s234
      %s236 = sphi 0, %s234
      %s237 = sphi 0, %s236
      %s251 = sphi 0, %s237
      %s255 = sphi 0, %s255
      %s257 = sphi 0, %s255
      %s258 = sphi 0, %s257
      %s272 = sphi 0, %s258
      %s278 = sphi 0, %s280
      %s281 = sphi 0, %s278
      %s282 = sphi 0, %s281
      %s298 = sphi 0, %s282
    $region4: #{rna_block.22} parent=1 // loop_header_branch
      %20 = sbr.rel (%p18) target = $region8
    $region5: #{rna_block.22} parent=1 // loop_body
      %s22 = ssub.s32 %s17, 1
      %s23 = ssub.s32 %s17, 2
      %s24 = sadd.s32 %s17, 1
      %s25 = ssub.s32 %s17, %s24
      %p26 = scmp.eq.s32.totalorder %s25, 0
      %s28 = sadd.s32 %s27, 1
      %s29 = scalar_select %p26, %s27, %s28
      %p32 = pneg %p26
      %p33 = scmp.eq.s32.totalorder %s17, 1
      %p34 = por %p32, %p33
      %p35 = scmp.ne.s32.totalorder %s27, %s30
      %p36 = scmp.eq.s32.totalorder %s17, 0
      %p37 = por %p35, %p36
      %p38 = scmp.ne.s32.totalorder %s27, %s30
      %p39 = scmp.eq.s32.totalorder %s22, 1
      %p40 = por %p38, %p39
      %p41 = scmp.ne.s32.totalorder %s30, %s31
      %p42 = scmp.eq.s32.totalorder %s22, 0
      %p43 = por %p41, %p42
      %p44 = scmp.ne.s32.totalorder %s30, %s31
      %p45 = scmp.eq.s32.totalorder %s23, 1
      %p46 = por %p44, %p45
      %p48 = scmp.ne.s32.totalorder %s31, %s47
      %p49 = scmp.eq.s32.totalorder %s23, 0
      %p50 = por %p48, %p49
      %s51 = ssub.s32 %s17, %s24
      %p52 = scmp.eq.s32.totalorder %s51, 0
      %s54 = sadd.s32 %s53, 1
      %s55 = scalar_select %p52, %s53, %s54
      %p58 = pneg %p52
      %p59 = scmp.eq.s32.totalorder %s17, 1
      %p60 = por %p58, %p59
      %p61 = scmp.ne.s32.totalorder %s53, %s56
      %p62 = scmp.eq.s32.totalorder %s17, 0
      %p63 = por %p61, %p62
      %p64 = scmp.ne.s32.totalorder %s53, %s56
      %p65 = scmp.eq.s32.totalorder %s22, 1
      %p66 = por %p64, %p65
      %p67 = scmp.ne.s32.totalorder %s56, %s57
      %p68 = scmp.eq.s32.totalorder %s22, 0
      %p69 = por %p67, %p68
      %p70 = scmp.ne.s32.totalorder %s56, %s57
      %p71 = scmp.eq.s32.totalorder %s23, 1
      %p72 = por %p70, %p71
      %p74 = scmp.ne.s32.totalorder %s57, %s73
      %p75 = scmp.eq.s32.totalorder %s23, 0
      %p76 = por %p74, %p75
      %s77 = ssub.s32 %s17, %s24
      %p78 = scmp.eq.s32.totalorder %s77, 0
      %s80 = sadd.s32 %s79, 1
      %s81 = scalar_select %p78, %s79, %s80
      %p84 = pneg %p78
      %p85 = scmp.eq.s32.totalorder %s17, 1
      %p86 = por %p84, %p85
      %p87 = scmp.ne.s32.totalorder %s79, %s82
      %p88 = scmp.eq.s32.totalorder %s17, 0
      %p89 = por %p87, %p88
      %p90 = scmp.ne.s32.totalorder %s79, %s82
      %p91 = scmp.eq.s32.totalorder %s22, 1
      %p92 = por %p90, %p91
      %p93 = scmp.ne.s32.totalorder %s82, %s83
      %p94 = scmp.eq.s32.totalorder %s22, 0
      %p95 = por %p93, %p94
      %p96 = scmp.ne.s32.totalorder %s82, %s83
      %p97 = scmp.eq.s32.totalorder %s23, 1
      %p98 = por %p96, %p97
      %p100 = scmp.ne.s32.totalorder %s83, %s99
      %p101 = scmp.eq.s32.totalorder %s23, 0
      %p102 = por %p100, %p101
      %s103 = ssub.s32 %s17, %s24
      %p104 = scmp.eq.s32.totalorder %s103, 0
      %s106 = sadd.s32 %s105, 1
      %s107 = scalar_select %p104, %s105, %s106
      %p110 = pneg %p104
      %p111 = scmp.eq.s32.totalorder %s17, 1
      %p112 = por %p110, %p111
      %p113 = scmp.ne.s32.totalorder %s105, %s108
      %p114 = scmp.eq.s32.totalorder %s17, 0
      %p115 = por %p113, %p114
      %p116 = scmp.ne.s32.totalorder %s105, %s108
      %p117 = scmp.eq.s32.totalorder %s22, 1
      %p118 = por %p116, %p117
      %p119 = scmp.ne.s32.totalorder %s108, %s109
      %p120 = scmp.eq.s32.totalorder %s22, 0
      %p121 = por %p119, %p120
      %p122 = scmp.ne.s32.totalorder %s108, %s109
      %p123 = scmp.eq.s32.totalorder %s23, 1
      %p124 = por %p122, %p123
      %p126 = scmp.ne.s32.totalorder %s109, %s125
      %p127 = scmp.eq.s32.totalorder %s23, 0
      %p128 = por %p126, %p127
      %s130 = sadd.s32 %s129, 1
      %p133 = scmp.eq.s32.totalorder %s17, 1
      %p134 = scmp.ne.s32.totalorder %s129, %s131
      %p135 = scmp.eq.s32.totalorder %s17, 0
      %p136 = por %p134, %p135
      %p137 = scmp.ne.s32.totalorder %s129, %s131
      %p138 = scmp.eq.s32.totalorder %s22, 1
      %p139 = por %p137, %p138
      %p140 = scmp.ne.s32.totalorder %s131, %s132
      %p141 = scmp.eq.s32.totalorder %s22, 0
      %p142 = por %p140, %p141
      %p143 = scmp.ne.s32.totalorder %s131, %s132
      %p144 = scmp.eq.s32.totalorder %s23, 1
      %p145 = por %p143, %p144
      %p147 = scmp.ne.s32.totalorder %s132, %s146
      %p148 = scmp.eq.s32.totalorder %s23, 0
      %p149 = por %p147, %p148
      %s151 = sadd.s32 %s150, 1
      %p154 = scmp.eq.s32.totalorder %s17, 1
      %p155 = scmp.ne.s32.totalorder %s150, %s152
      %p156 = scmp.eq.s32.totalorder %s17, 0
      %p157 = por %p155, %p156
      %p158 = scmp.ne.s32.totalorder %s150, %s152
      %p159 = scmp.eq.s32.totalorder %s22, 1
      %p160 = por %p158, %p159
      %p161 = scmp.ne.s32.totalorder %s152, %s153
      %p162 = scmp.eq.s32.totalorder %s22, 0
      %p163 = por %p161, %p162
      %p164 = scmp.ne.s32.totalorder %s152, %s153
      %p165 = scmp.eq.s32.totalorder %s23, 1
      %p166 = por %p164, %p165
      %p168 = scmp.ne.s32.totalorder %s153, %s167
      %p169 = scmp.eq.s32.totalorder %s23, 0
      %p170 = por %p168, %p169
      %s172 = sadd.s32 %s171, 1
      %p175 = scmp.eq.s32.totalorder %s17, 1
      %p176 = scmp.ne.s32.totalorder %s171, %s173
      %p177 = scmp.eq.s32.totalorder %s17, 0
      %p178 = por %p176, %p177
      %p179 = scmp.ne.s32.totalorder %s171, %s173
      %p180 = scmp.eq.s32.totalorder %s22, 1
      %p181 = por %p179, %p180
      %p182 = scmp.ne.s32.totalorder %s173, %s174
      %p183 = scmp.eq.s32.totalorder %s22, 0
      %p184 = por %p182, %p183
      %p185 = scmp.ne.s32.totalorder %s173, %s174
      %p186 = scmp.eq.s32.totalorder %s23, 1
      %p187 = por %p185, %p186
      %p189 = scmp.ne.s32.totalorder %s174, %s188
      %p190 = scmp.eq.s32.totalorder %s23, 0
      %p191 = por %p189, %p190
      %s193 = sadd.s32 %s192, 1
      %p196 = scmp.eq.s32.totalorder %s17, 1
      %p197 = scmp.ne.s32.totalorder %s192, %s194
      %p198 = scmp.eq.s32.totalorder %s17, 0
      %p199 = por %p197, %p198
      %p200 = scmp.ne.s32.totalorder %s192, %s194
      %p201 = scmp.eq.s32.totalorder %s22, 1
      %p202 = por %p200, %p201
      %p203 = scmp.ne.s32.totalorder %s194, %s195
      %p204 = scmp.eq.s32.totalorder %s22, 0
      %p205 = por %p203, %p204
      %p206 = scmp.ne.s32.totalorder %s194, %s195
      %p207 = scmp.eq.s32.totalorder %s23, 1
      %p208 = por %p206, %p207
      %p210 = scmp.ne.s32.totalorder %s195, %s209
      %p211 = scmp.eq.s32.totalorder %s23, 0
      %p212 = por %p210, %p211
      %s214 = sadd.s32 %s213, 1
      %p217 = scmp.eq.s32.totalorder %s17, 1
      %p218 = scmp.ne.s32.totalorder %s213, %s215
      %p219 = scmp.eq.s32.totalorder %s17, 0
      %p220 = por %p218, %p219
      %p221 = scmp.ne.s32.totalorder %s213, %s215
      %p222 = scmp.eq.s32.totalorder %s22, 1
      %p223 = por %p221, %p222
      %p224 = scmp.ne.s32.totalorder %s215, %s216
      %p225 = scmp.eq.s32.totalorder %s22, 0
      %p226 = por %p224, %p225
      %p227 = scmp.ne.s32.totalorder %s215, %s216
      %p228 = scmp.eq.s32.totalorder %s23, 1
      %p229 = por %p227, %p228
      %p231 = scmp.ne.s32.totalorder %s216, %s230
      %p232 = scmp.eq.s32.totalorder %s23, 0
      %p233 = por %p231, %p232
      %s235 = sadd.s32 %s234, 1
      %p238 = scmp.eq.s32.totalorder %s17, 1
      %p239 = scmp.ne.s32.totalorder %s234, %s236
      %p240 = scmp.eq.s32.totalorder %s17, 0
      %p241 = por %p239, %p240
      %p242 = scmp.ne.s32.totalorder %s234, %s236
      %p243 = scmp.eq.s32.totalorder %s22, 1
      %p244 = por %p242, %p243
      %p245 = scmp.ne.s32.totalorder %s236, %s237
      %p246 = scmp.eq.s32.totalorder %s22, 0
      %p247 = por %p245, %p246
      %p248 = scmp.ne.s32.totalorder %s236, %s237
      %p249 = scmp.eq.s32.totalorder %s23, 1
      %p250 = por %p248, %p249
      %p252 = scmp.ne.s32.totalorder %s237, %s251
      %p253 = scmp.eq.s32.totalorder %s23, 0
      %p254 = por %p252, %p253
      %s256 = sadd.s32 %s255, 1
      %p259 = scmp.eq.s32.totalorder %s17, 1
      %p260 = scmp.ne.s32.totalorder %s255, %s257
      %p261 = scmp.eq.s32.totalorder %s17, 0
      %p262 = por %p260, %p261
      %p263 = scmp.ne.s32.totalorder %s255, %s257
      %p264 = scmp.eq.s32.totalorder %s22, 1
      %p265 = por %p263, %p264
      %p266 = scmp.ne.s32.totalorder %s257, %s258
      %p267 = scmp.eq.s32.totalorder %s22, 0
      %p268 = por %p266, %p267
      %p269 = scmp.ne.s32.totalorder %s257, %s258
      %p270 = scmp.eq.s32.totalorder %s23, 1
      %p271 = por %p269, %p270
      %p273 = scmp.ne.s32.totalorder %s258, %s272
      %p274 = scmp.eq.s32.totalorder %s23, 0
      %p275 = por %p273, %p274
      %s276 = ssub.s32 %s17, %s24
      %p277 = scmp.eq.s32.totalorder %s276, 0
      %s279 = sadd.s32 %s278, 1
      %s280 = scalar_select %p277, %s278, %s279
      %p283 = pneg %p277
      %p284 = scmp.eq.s32.totalorder %s17, 1
      %p285 = por %p283, %p284
      %p286 = scmp.ne.s32.totalorder %s278, %s281
      %p287 = scmp.eq.s32.totalorder %s17, 0
      %p288 = por %p286, %p287
      %p289 = scmp.ne.s32.totalorder %s278, %s281
      %p290 = scmp.eq.s32.totalorder %s22, 1
      %p291 = por %p289, %p290
      %p292 = scmp.ne.s32.totalorder %s281, %s282
      %p293 = scmp.eq.s32.totalorder %s22, 0
      %p294 = por %p292, %p293
      %p295 = scmp.ne.s32.totalorder %s281, %s282
      %p296 = scmp.eq.s32.totalorder %s23, 1
      %p297 = por %p295, %p296
      %p299 = scmp.ne.s32.totalorder %s282, %s298
      %p300 = scmp.eq.s32.totalorder %s23, 0
      %p301 = por %p299, %p300
      %p302 = scmp.le.s32.totalorder 1, %s17
      %p303 = scmp.lt.s32.totalorder %s17, 3
      %p304 = pnand %p302, %p303
      %p305 = pneg %p304
      // Predicated region
      $region9: #{rna_block.22} parent=5 // pred_check
        _
      $region10: #{rna_block.22} parent=5 // pred_check_branch
        %307 = sbr.rel (%p304) target = $region12
      $region11: #{rna_block.22} parent=5 // pred_region
        %s308 = ssub.s32 %s17, 1
        // Predicated region
        $region13: #{rna_block.22} parent=11 // pred_check
          %p309 = pneg %p142
        $region14: #{rna_block.22} parent=11 // pred_check_branch
          %311 = sbr.rel (%p309) target = $region16
        $region15: #{rna_block.22} parent=11 // pred_region
          _
        $region16: #{rna_block.22} parent=11 // pred_fallthru
          _
        // Predicated region
        $region17: #{rna_block.22} parent=11 // pred_check
          %p312 = pneg %p163
        $region18: #{rna_block.22} parent=11 // pred_check_branch
          %314 = sbr.rel (%p312) target = $region20
        $region19: #{rna_block.22} parent=11 // pred_region
          _
        $region20: #{rna_block.22} parent=11 // pred_fallthru
          _
        // Predicated region
        $region21: #{rna_block.22} parent=11 // pred_check
          %p315 = pneg %p184
        $region22: #{rna_block.22} parent=11 // pred_check_branch
          %317 = sbr.rel (%p315) target = $region24
        $region23: #{rna_block.22} parent=11 // pred_region
          _
        $region24: #{rna_block.22} parent=11 // pred_fallthru
          _
        // Predicated region
        $region25: #{rna_block.22} parent=11 // pred_check
          %p318 = pneg %p205
        $region26: #{rna_block.22} parent=11 // pred_check_branch
          %320 = sbr.rel (%p318) target = $region28
        $region27: #{rna_block.22} parent=11 // pred_region
          _
        $region28: #{rna_block.22} parent=11 // pred_fallthru
          _
        // Predicated region
        $region29: #{rna_block.22} parent=11 // pred_check
          %p321 = pneg %p226
        $region30: #{rna_block.22} parent=11 // pred_check_branch
          %323 = sbr.rel (%p321) target = $region32
        $region31: #{rna_block.22} parent=11 // pred_region
          _
        $region32: #{rna_block.22} parent=11 // pred_fallthru
          _
        // Predicated region
        $region33: #{rna_block.22} parent=11 // pred_check
          %p324 = pneg %p247
        $region34: #{rna_block.22} parent=11 // pred_check_branch
          %326 = sbr.rel (%p324) target = $region36
        $region35: #{rna_block.22} parent=11 // pred_region
          _
        $region36: #{rna_block.22} parent=11 // pred_fallthru
          _
        // Predicated region
        $region37: #{rna_block.22} parent=11 // pred_check
          %p327 = pneg %p268
        $region38: #{rna_block.22} parent=11 // pred_check_branch
          %329 = sbr.rel (%p327) target = $region40
        $region39: #{rna_block.22} parent=11 // pred_region
          _
        $region40: #{rna_block.22} parent=11 // pred_fallthru
          _
      $region12: #{rna_block.22} parent=5 // pred_fallthru
        _
      %p330 = scmp.lt.s32.totalorder %s17, 2
      // Predicated region
      $region41: #{rna_block.22} parent=5 // pred_check
        %p331 = pneg %p330
      $region42: #{rna_block.22} parent=5 // pred_check_branch
        %333 = sbr.rel (%p331) target = $region44
      $region43: #{rna_block.22} parent=5 // pred_region
        // Predicated region
        $region45: #{rna_block.22} parent=43 // pred_check
          %p334 = pneg %p37
        $region46: #{rna_block.22} parent=43 // pred_check_branch
          %336 = sbr.rel (%p334) target = $region48
        $region47: #{rna_block.22} parent=43 // pred_region
          %s337 = sand.u32 %s27, 1
          %s338 = sand.u32 %s27, 1
          %s339 = smul.addr %s338, 32
          %s340 = scalar_lea.vmem [#allocation3], %s339
          %s341 = smul.addr %s17, 8
          %s342 = scalar_lea.vmem %s0, %s341
          // Predicated region
          $region49: #{rna_block.22} parent=47 // pred_check
            _
          $region50: #{rna_block.22} parent=47 // pred_check_branch
            %344 = sbr.rel (0) target = $region52
          $region51: #{rna_block.22} parent=47 // pred_region
            // Predicated region
            $region53: #{rna_block.22} parent=51 // pred_check
              _
            $region54: #{rna_block.22} parent=51 // pred_check_branch
              %346 = sbr.rel (0) target = $region56
            $region55: #{rna_block.22} parent=51 // pred_region
              // Predicated region
              $region68: #{rna_block.22} parent=55 // pred_check
                _
              $region69: #{rna_block.22} parent=55 // pred_check_branch
                %368 = sbr.rel (0) target = $region71
              $region70: #{rna_block.22} parent=55 // pred_region
                loop: start=0, step=1, limit=1
                $region72: #{rna_block.22} parent=70 // loop_pre_header
                  _
                $region73: #{rna_block.22} parent=70 // loop_header
                  %s370 = sphi 0, %s374
                  %p371 = scmp.ge.s32.totalorder %s370, 1
                  %s375 = sphi %s342, %s342
                  %s376 = sphi %s340, %s340
                $region74: #{rna_block.22} parent=70 // loop_header_branch
                  %373 = sbr.rel (%p371) target = $region78
                $region75: #{rna_block.22} parent=70 // loop_body
                  %v377 = vld [vmem:[%s375] sm:$0xff]
                  %378 = vst [vmem:[%s376] sm:$0xff] %v377
                  %v379 = vld [vmem:[%s375 + $0x10] sm:$0xff]
                  %380 = vst [vmem:[%s376 + $0x8] sm:$0xff] %v379
                  %v381 = vld [vmem:[%s375 + $0x20] sm:$0xff]
                  %382 = vst [vmem:[%s376 + $0x10] sm:$0xff] %v381
                  %v383 = vld [vmem:[%s375 + $0x30] sm:$0xff]
                  %384 = vst [vmem:[%s376 + $0x18] sm:$0xff] %v383
                $region76: #{rna_block.22} parent=70 // loop_footer
                  %s374 = sadd.s32 1, %s370
                $region77: #{rna_block.22} parent=70 // loop_footer_branch
                  %369 = sbr.rel target = $region73
                $region78: #{rna_block.22} parent=70 // loop_exit
                  _
              $region71: #{rna_block.22} parent=55 // pred_fallthru
                _
              // Predicated region
              $region79: #{rna_block.22} parent=55 // pred_check
                _
              $region80: #{rna_block.22} parent=55 // pred_check_branch
                %386 = sbr.rel target = $region82
              $region81: #{rna_block.22} parent=55 // pred_region
                _
              $region82: #{rna_block.22} parent=55 // pred_fallthru
                _
            $region56: #{rna_block.22} parent=51 // pred_fallthru
              _
            // Predicated region
            $region57: #{rna_block.22} parent=51 // pred_check
              _
            $region58: #{rna_block.22} parent=51 // pred_check_branch
              %348 = sbr.rel target = $region60
            $region59: #{rna_block.22} parent=51 // pred_region
              %s350 = ssub.s32 256, 1
              loop: start=0, step=1, limit=1
              $region61: #{rna_block.22} parent=59 // loop_pre_header
                _
              $region62: #{rna_block.22} parent=59 // loop_header
                %s352 = sphi 0, %s356
                %p353 = scmp.ge.s32.totalorder %s352, 1
                %s357 = sphi %s342, %s342
                %s358 = sphi %s340, %s340
              $region63: #{rna_block.22} parent=59 // loop_header_branch
                %355 = sbr.rel (%p353) target = $region67
              $region64: #{rna_block.22} parent=59 // loop_body
                %v359 = vld [vmem:[%s357] sm:%s350]
                %360 = vst [vmem:[%s358] sm:%s350] %v359
                %v361 = vld [vmem:[%s357 + $0x10] sm:%s350]
                %362 = vst [vmem:[%s358 + $0x8] sm:%s350] %v361
                %v363 = vld [vmem:[%s357 + $0x20] sm:%s350]
                %364 = vst [vmem:[%s358 + $0x10] sm:%s350] %v363
                %v365 = vld [vmem:[%s357 + $0x30] sm:%s350]
                %366 = vst [vmem:[%s358 + $0x18] sm:%s350] %v365
              $region65: #{rna_block.22} parent=59 // loop_footer
                %s356 = sadd.s32 1, %s352
              $region66: #{rna_block.22} parent=59 // loop_footer_branch
                %351 = sbr.rel target = $region62
              $region67: #{rna_block.22} parent=59 // loop_exit
                _
            $region60: #{rna_block.22} parent=51 // pred_fallthru
              _
          $region52: #{rna_block.22} parent=47 // pred_fallthru
            _
          %387 = vnop
        $region48: #{rna_block.22} parent=43 // pred_fallthru
          _
        // Predicated region
        $region83: #{rna_block.22} parent=43 // pred_check
          %p388 = pneg %p63
        $region84: #{rna_block.22} parent=43 // pred_check_branch
          %390 = sbr.rel (%p388) target = $region86
        $region85: #{rna_block.22} parent=43 // pred_region
          %s391 = sand.u32 %s53, 1
          %s392 = sand.u32 %s53, 1
          %s393 = smul.addr %s392, 96
          %s394 = scalar_lea.vmem [#allocation4], %s393
          %s395 = smul.addr %s17, 8
          %s396 = scalar_lea.vmem %s1, %s395
          // Predicated region
          $region87: #{rna_block.22} parent=85 // pred_check
            _
          $region88: #{rna_block.22} parent=85 // pred_check_branch
            %398 = sbr.rel (0) target = $region90
          $region89: #{rna_block.22} parent=85 // pred_region
            // Predicated region
            $region91: #{rna_block.22} parent=89 // pred_check
              _
            $region92: #{rna_block.22} parent=89 // pred_check_branch
              %400 = sbr.rel (0) target = $region94
            $region93: #{rna_block.22} parent=89 // pred_region
              // Predicated region
              $region106: #{rna_block.22} parent=93 // pred_check
                _
              $region107: #{rna_block.22} parent=93 // pred_check_branch
                %438 = sbr.rel (0) target = $region109
              $region108: #{rna_block.22} parent=93 // pred_region
                loop: start=0, step=1, limit=1
                $region110: #{rna_block.22} parent=108 // loop_pre_header
                  _
                $region111: #{rna_block.22} parent=108 // loop_header
                  %s440 = sphi 0, %s444
                  %p441 = scmp.ge.s32.totalorder %s440, 1
                  %s445 = sphi %s396, %s396
                  %s446 = sphi %s394, %s394
                $region112: #{rna_block.22} parent=108 // loop_header_branch
                  %443 = sbr.rel (%p441) target = $region116
                $region113: #{rna_block.22} parent=108 // loop_body
                  %v447 = vld [vmem:[%s445] sm:$0xff]
                  %448 = vst [vmem:[%s446] sm:$0xff] %v447
                  %v449 = vld [vmem:[%s445 + $0x10] sm:$0xff]
                  %450 = vst [vmem:[%s446 + $0x8] sm:$0xff] %v449
                  %v451 = vld [vmem:[%s445 + $0x20] sm:$0xff]
                  %452 = vst [vmem:[%s446 + $0x10] sm:$0xff] %v451
                  %v453 = vld [vmem:[%s445 + $0x30] sm:$0xff]
                  %454 = vst [vmem:[%s446 + $0x18] sm:$0xff] %v453
                  %v455 = vld [vmem:[%s445 + $0x40] sm:$0xff]
                  %456 = vst [vmem:[%s446 + $0x20] sm:$0xff] %v455
                  %v457 = vld [vmem:[%s445 + $0x50] sm:$0xff]
                  %458 = vst [vmem:[%s446 + $0x28] sm:$0xff] %v457
                  %v459 = vld [vmem:[%s445 + $0x60] sm:$0xff]
                  %460 = vst [vmem:[%s446 + $0x30] sm:$0xff] %v459
                  %v461 = vld [vmem:[%s445 + $0x70] sm:$0xff]
                  %462 = vst [vmem:[%s446 + $0x38] sm:$0xff] %v461
                  %v463 = vld [vmem:[%s445 + $0x80] sm:$0xff]
                  %464 = vst [vmem:[%s446 + $0x40] sm:$0xff] %v463
                  %v465 = vld [vmem:[%s445 + $0x90] sm:$0xff]
                  %466 = vst [vmem:[%s446 + $0x48] sm:$0xff] %v465
                  %v467 = vld [vmem:[%s445 + $0xa0] sm:$0xff]
                  %468 = vst [vmem:[%s446 + $0x50] sm:$0xff] %v467
                  %v469 = vld [vmem:[%s445 + $0xb0] sm:$0xff]
                  %470 = vst [vmem:[%s446 + $0x58] sm:$0xff] %v469
                $region114: #{rna_block.22} parent=108 // loop_footer
                  %s444 = sadd.s32 1, %s440
                $region115: #{rna_block.22} parent=108 // loop_footer_branch
                  %439 = sbr.rel target = $region111
                $region116: #{rna_block.22} parent=108 // loop_exit
                  _
              $region109: #{rna_block.22} parent=93 // pred_fallthru
                _
              // Predicated region
              $region117: #{rna_block.22} parent=93 // pred_check
                _
              $region118: #{rna_block.22} parent=93 // pred_check_branch
                %472 = sbr.rel target = $region120
              $region119: #{rna_block.22} parent=93 // pred_region
                _
              $region120: #{rna_block.22} parent=93 // pred_fallthru
                _
            $region94: #{rna_block.22} parent=89 // pred_fallthru
              _
            // Predicated region
            $region95: #{rna_block.22} parent=89 // pred_check
              _
            $region96: #{rna_block.22} parent=89 // pred_check_branch
              %402 = sbr.rel target = $region98
            $region97: #{rna_block.22} parent=89 // pred_region
              %s404 = ssub.s32 256, 1
              loop: start=0, step=1, limit=1
              $region99: #{rna_block.22} parent=97 // loop_pre_header
                _
              $region100: #{rna_block.22} parent=97 // loop_header
                %s406 = sphi 0, %s410
                %p407 = scmp.ge.s32.totalorder %s406, 1
                %s411 = sphi %s396, %s396
                %s412 = sphi %s394, %s394
              $region101: #{rna_block.22} parent=97 // loop_header_branch
                %409 = sbr.rel (%p407) target = $region105
              $region102: #{rna_block.22} parent=97 // loop_body
                %v413 = vld [vmem:[%s411] sm:%s404]
                %414 = vst [vmem:[%s412] sm:%s404] %v413
                %v415 = vld [vmem:[%s411 + $0x10] sm:%s404]
                %416 = vst [vmem:[%s412 + $0x8] sm:%s404] %v415
                %v417 = vld [vmem:[%s411 + $0x20] sm:%s404]
                %418 = vst [vmem:[%s412 + $0x10] sm:%s404] %v417
                %v419 = vld [vmem:[%s411 + $0x30] sm:%s404]
                %420 = vst [vmem:[%s412 + $0x18] sm:%s404] %v419
                %v421 = vld [vmem:[%s411 + $0x40] sm:%s404]
                %422 = vst [vmem:[%s412 + $0x20] sm:%s404] %v421
                %v423 = vld [vmem:[%s411 + $0x50] sm:%s404]
                %424 = vst [vmem:[%s412 + $0x28] sm:%s404] %v423
                %v425 = vld [vmem:[%s411 + $0x60] sm:%s404]
                %426 = vst [vmem:[%s412 + $0x30] sm:%s404] %v425
                %v427 = vld [vmem:[%s411 + $0x70] sm:%s404]
                %428 = vst [vmem:[%s412 + $0x38] sm:%s404] %v427
                %v429 = vld [vmem:[%s411 + $0x80] sm:%s404]
                %430 = vst [vmem:[%s412 + $0x40] sm:%s404] %v429
                %v431 = vld [vmem:[%s411 + $0x90] sm:%s404]
                %432 = vst [vmem:[%s412 + $0x48] sm:%s404] %v431
                %v433 = vld [vmem:[%s411 + $0xa0] sm:%s404]
                %434 = vst [vmem:[%s412 + $0x50] sm:%s404] %v433
                %v435 = vld [vmem:[%s411 + $0xb0] sm:%s404]
                %436 = vst [vmem:[%s412 + $0x58] sm:%s404] %v435
              $region103: #{rna_block.22} parent=97 // loop_footer
                %s410 = sadd.s32 1, %s406
              $region104: #{rna_block.22} parent=97 // loop_footer_branch
                %405 = sbr.rel target = $region100
              $region105: #{rna_block.22} parent=97 // loop_exit
                _
            $region98: #{rna_block.22} parent=89 // pred_fallthru
              _
          $region90: #{rna_block.22} parent=85 // pred_fallthru
            _
          %473 = vnop
        $region86: #{rna_block.22} parent=43 // pred_fallthru
          _
        // Predicated region
        $region121: #{rna_block.22} parent=43 // pred_check
          %p474 = pneg %p89
        $region122: #{rna_block.22} parent=43 // pred_check_branch
          %476 = sbr.rel (%p474) target = $region124
        $region123: #{rna_block.22} parent=43 // pred_region
          %p477 = scmp.lt.s32.totalorder %s17, 1
          %s478 = scalar_select %p477, %s17, 1
          %s479 = smul.addr %s478, 16
          %s480 = smul.addr %s479, 8
          %s481 = scalar_lea.vmem %s2, %s480
        $region124: #{rna_block.22} parent=43 // pred_fallthru
          _
        // Predicated region
        $region125: #{rna_block.22} parent=43 // pred_check
          %p482 = pneg %p115
        $region126: #{rna_block.22} parent=43 // pred_check_branch
          %484 = sbr.rel (%p482) target = $region128
        $region127: #{rna_block.22} parent=43 // pred_region
          %p485 = scmp.lt.s32.totalorder %s17, 1
          %s486 = scalar_select %p485, %s17, 1
          %s487 = scalar_lea.vmem %s3, %s486
        $region128: #{rna_block.22} parent=43 // pred_fallthru
          _
      $region44: #{rna_block.22} parent=5 // pred_fallthru
        _
      %p488 = scmp.le.s32.totalorder 1, %s17
      %p489 = scmp.lt.s32.totalorder %s17, 3
      %p490 = pnand %p488, %p489
      %p491 = pneg %p490
      // Predicated region
      $region129: #{rna_block.22} parent=5 // pred_check
        _
      $region130: #{rna_block.22} parent=5 // pred_check_branch
        %493 = sbr.rel (%p490) target = $region132
      $region131: #{rna_block.22} parent=5 // pred_region
        %s494 = ssub.s32 %s17, 1
        %s495 = sand.u32 %s30, 1
        %s496 = sand.u32 %s30, 1
        %s497 = smul.addr %s496, 32
        %s498 = scalar_lea.vmem [#allocation3], %s497
        // Predicated region
        $region133: #{rna_block.22} parent=131 // pred_check
          %p499 = pneg %p43
        $region134: #{rna_block.22} parent=131 // pred_check_branch
          %501 = sbr.rel (%p499) target = $region136
        $region135: #{rna_block.22} parent=131 // pred_region
          _
        $region136: #{rna_block.22} parent=131 // pred_fallthru
          _
        %s502 = sand.u32 %s56, 1
        %s503 = sand.u32 %s56, 1
        %s504 = smul.addr %s503, 96
        %s505 = scalar_lea.vmem [#allocation4], %s504
        // Predicated region
        $region137: #{rna_block.22} parent=131 // pred_check
          %p506 = pneg %p69
        $region138: #{rna_block.22} parent=131 // pred_check_branch
          %508 = sbr.rel (%p506) target = $region140
        $region139: #{rna_block.22} parent=131 // pred_region
          _
        $region140: #{rna_block.22} parent=131 // pred_fallthru
          _
        %s509 = sand.u32 %s30, 1
        %s510 = sand.u32 %s30, 1
        %s511 = smul.addr %s510, 32
        %s512 = scalar_lea.vmem [#allocation3], %s511
        %p513 = pneg %p43
        %p514 = pneg %p40
        %s515 = sand.u32 %s56, 1
        %s516 = sand.u32 %s56, 1
        %s517 = smul.addr %s516, 96
        %s518 = scalar_lea.vmem [#allocation4], %s517
        %p519 = pneg %p69
        %p520 = pneg %p66
        %p521 = scmp.lt.s32.totalorder %s22, 1
        %s522 = scalar_select %p521, %s22, 1
        %s523 = smul.addr %s522, 16
        %s524 = smul.addr %s523, 8
        %s525 = scalar_lea.vmem %s2, %s524
        %p526 = pneg %p95
        %p527 = pneg %p92
        %p528 = scmp.lt.s32.totalorder %s22, 1
        %s529 = scalar_select %p528, %s22, 1
        %s530 = scalar_lea.vmem %s3, %s529
        %p531 = pneg %p121
        %p532 = pneg %p118
        %p533 = pneg %p142
        %p534 = pneg %p139
        %p535 = pneg %p163
        %p536 = pneg %p160
        %p537 = pneg %p184
        %p538 = pneg %p181
        %p539 = pneg %p205
        %p540 = pneg %p202
        %p541 = pneg %p226
        %p542 = pneg %p223
        %p543 = pneg %p247
        %p544 = pneg %p244
        %p545 = pneg %p268
        %p546 = pneg %p265
        %p547 = pneg %p294
        %p548 = pneg %p291
        %s549 = sand.u32 %s281, 1
        %s550 = sand.u32 %s281, 1
        %s551 = smul.addr %s550, 32
        %s552 = scalar_lea.vmem [#allocation5], %s551
        %p553 = scmp.lt.s32.totalorder %s22, 1
        %s554 = scalar_select %p553, %s22, 1
        %s555 = smul.addr %s554, 16
        %s556 = smul.addr %s555, 8
        %s557 = scalar_lea.vmem %s2, %s556
        %p558 = scmp.lt.s32.totalorder %s22, 1
        %s559 = scalar_select %p558, %s22, 1
        %s560 = scalar_lea.vmem %s3, %s559
        %v562 = vld [vmem:[%s498] sm:$0xff]
        %v563 = vld [vmem:[%s498 + $0x8] sm:$0xff]
        %v564 = vld [vmem:[%s498 + $0x10] sm:$0xff]
        %v565 = vld [vmem:[%s498 + $0x18] sm:$0xff]
        %566 = vxpose.xlu0.b32.start [1/16] %v562, 128
        %567 = vxpose.xlu0.b32.cont [2/16] %v563, 128
        %568 = vxpose.xlu0.b32.cont [3/16] %v564, 128
        %569 = vxpose.xlu0.b32.cont [4/16] %v565, 128
        %570 = vxpose.xlu0.b32.cont [5/16] 0.0, 128
        %571 = vxpose.xlu0.b32.cont [6/16] 0.0, 128
        %572 = vxpose.xlu0.b32.cont [7/16] 0.0, 128
        %573 = vxpose.xlu0.b32.cont [8/16] 0.0, 128
        %574 = vxpose.xlu0.b32.cont [9/16] 0.0, 128
        %575 = vxpose.xlu0.b32.cont [10/16] 0.0, 128
        %576 = vxpose.xlu0.b32.cont [11/16] 0.0, 128
        %577 = vxpose.xlu0.b32.cont [12/16] 0.0, 128
        %578 = vxpose.xlu0.b32.cont [13/16] 0.0, 128
        %579 = vxpose.xlu0.b32.cont [14/16] 0.0, 128
        %580 = vxpose.xlu0.b32.cont [15/16] 0.0, 128
        %581 = vxpose.xlu0.b32.end [16/16] 0.0, 128
        %v582 = vpop.trf.xlu0
        %v583 = vpop.trf.xlu0
        %v584 = vpop.trf.xlu0
        %v585 = vpop.trf.xlu0
        %v586 = vpop.trf.xlu0
        %v587 = vpop.trf.xlu0
        %v588 = vpop.trf.xlu0
        %v589 = vpop.trf.xlu0
        %v590 = vpop.trf.xlu0
        %v591 = vpop.trf.xlu0
        %v592 = vpop.trf.xlu0
        %v593 = vpop.trf.xlu0
        %v594 = vpop.trf.xlu0
        %v595 = vpop.trf.xlu0
        %v596 = vpop.trf.xlu0
        %v597 = vpop.trf.xlu0
        %vm598 = vcmask 261120
        %v600 = vsel %vm598, %v582, 0
        %v603 = vsel %vm598, %v583, 0
        %v606 = vsel %vm598, %v584, 0
        %v609 = vsel %vm598, %v585, 0
        %v612 = vsel %vm598, %v586, 0
        %v615 = vsel %vm598, %v587, 0
        %v618 = vsel %vm598, %v588, 0
        %v621 = vsel %vm598, %v589, 0
        %v624 = vsel %vm598, %v590, 0
        %v627 = vsel %vm598, %v591, 0
        %v630 = vsel %vm598, %v592, 0
        %v633 = vsel %vm598, %v593, 0
        %v636 = vsel %vm598, %v594, 0
        %v639 = vsel %vm598, %v595, 0
        %v642 = vsel %vm598, %v596, 0
        %v645 = vsel %vm598, %v597, 0
        %647 = vmatpush.msra.mxu0 0.0
        %648 = vmatpush.msra.mxu0 0.0
        %649 = vmatpush.msra.mxu0 0.0
        %650 = vmatpush.msra.mxu0 0.0
        %651 = vmatpush.msra.mxu0 0.0
        %652 = vmatpush.msra.mxu0 0.0
        %653 = vmatpush.msra.mxu0 0.0
        %654 = vmatpush.msra.mxu0 0.0
        %655 = vmatpush.msra.mxu0 0.0
        %656 = vmatpush.msra.mxu0 0.0
        %657 = vmatpush.msra.mxu0 0.0
        %658 = vmatpush.msra.mxu0 0.0
        %659 = vmatpush.msra.mxu0 %v565
        %660 = vmatpush.msra.mxu0 %v564
        %661 = vmatpush.msra.mxu0 %v563
        %662 = vmatpush.msra.mxu0 %v562
        %663 = vmatmul.f32.gmra.mxu0 %v600
        %v664 = vpop.f32.mrf.mxu0
        %v665 = vadd.f32 0.0, %v664
        %666 = vmatmul.f32.gmra.mxu0 %v603
        %v667 = vpop.f32.mrf.mxu0
        %v668 = vadd.f32 0.0, %v667
        %669 = vmatmul.f32.gmra.mxu0 %v606
        %v670 = vpop.f32.mrf.mxu0
        %v671 = vadd.f32 0.0, %v670
        %672 = vmatmul.f32.gmra.mxu0 %v609
        %v673 = vpop.f32.mrf.mxu0
        %v674 = vadd.f32 0.0, %v673
        %675 = vmatmul.f32.gmra.mxu0 %v612
        %v676 = vpop.f32.mrf.mxu0
        %v677 = vadd.f32 0.0, %v676
        %678 = vmatmul.f32.gmra.mxu0 %v615
        %v679 = vpop.f32.mrf.mxu0
        %v680 = vadd.f32 0.0, %v679
        %681 = vmatmul.f32.gmra.mxu0 %v618
        %v682 = vpop.f32.mrf.mxu0
        %v683 = vadd.f32 0.0, %v682
        %684 = vmatmul.f32.gmra.mxu0 %v621
        %v685 = vpop.f32.mrf.mxu0
        %v686 = vadd.f32 0.0, %v685
        %687 = vmatmul.f32.gmra.mxu0 %v624
        %v688 = vpop.f32.mrf.mxu0
        %v689 = vadd.f32 0.0, %v688
        %690 = vmatmul.f32.gmra.mxu0 %v627
        %v691 = vpop.f32.mrf.mxu0
        %v692 = vadd.f32 0.0, %v691
        %693 = vmatmul.f32.gmra.mxu0 %v630
        %v694 = vpop.f32.mrf.mxu0
        %v695 = vadd.f32 0.0, %v694
        %696 = vmatmul.f32.gmra.mxu0 %v633
        %v697 = vpop.f32.mrf.mxu0
        %v698 = vadd.f32 0.0, %v697
        %699 = vmatmul.f32.gmra.mxu0 %v636
        %v700 = vpop.f32.mrf.mxu0
        %v701 = vadd.f32 0.0, %v700
        %702 = vmatmul.f32.gmra.mxu0 %v639
        %v703 = vpop.f32.mrf.mxu0
        %v704 = vadd.f32 0.0, %v703
        %705 = vmatmul.f32.gmra.mxu0 %v642
        %v706 = vpop.f32.mrf.mxu0
        %v707 = vadd.f32 0.0, %v706
        %708 = vmatmul.f32.gmra.mxu0 %v645
        %v709 = vpop.f32.mrf.mxu0
        %v710 = vadd.f32 0.0, %v709
        %711 = vdwg.mxu0
        %v712 = vmul.f32 %v562, %v562
        %v713 = vmul.f32 %v563, %v563
        %v714 = vmul.f32 %v564, %v564
        %v715 = vmul.f32 %v565, %v565
        %v716 = vadd.f32 %v712, %v713
        %v717 = vadd.f32 %v716, %v714
        %v718 = vadd.f32 %v717, %v715
        %v719 = vrot.slane %v718, 4
        %v720 = vadd.f32 %v718, %v719
        %v721 = vrot.slane %v720, 2
        %v722 = vadd.f32 %v720, %v721
        %v723 = vrot.slane %v722, 1
        %v724 = vadd.f32 %v722, %v723
        %v725 = vlaneseq
        %v726 = vshrl.u32 %v725, 7
        %v727 = vadd.s32 %v726, 8
        %v728 = vadd.s32 %v726, 16
        %v729 = vadd.s32 %v726, 24
        %v730 = vadd.s32 %v726, 32
        %v731 = vadd.s32 %v726, 40
        %v732 = vadd.s32 %v726, 48
        %v733 = vadd.s32 %v726, 56
        %v734 = vadd.s32 %v726, 64
        %v735 = vadd.s32 %v726, 72
        %v736 = vadd.s32 %v726, 80
        %v737 = vadd.s32 %v726, 88
        %v738 = vadd.s32 %v726, 96
        %v739 = vadd.s32 %v726, 104
        %v740 = vadd.s32 %v726, 112
        %v741 = vadd.s32 %v726, 120
        %v742 = vlaneseq
        %v743 = vand.u32 %v742, 127
        %vm744 = vcmp.eq.s32.totalorder %v726, %v743
        %vm745 = vcmp.eq.s32.totalorder %v727, %v743
        %vm746 = vcmp.eq.s32.totalorder %v728, %v743
        %vm747 = vcmp.eq.s32.totalorder %v729, %v743
        %vm748 = vcmp.eq.s32.totalorder %v730, %v743
        %vm749 = vcmp.eq.s32.totalorder %v731, %v743
        %vm750 = vcmp.eq.s32.totalorder %v732, %v743
        %vm751 = vcmp.eq.s32.totalorder %v733, %v743
        %vm752 = vcmp.eq.s32.totalorder %v734, %v743
        %vm753 = vcmp.eq.s32.totalorder %v735, %v743
        %vm754 = vcmp.eq.s32.totalorder %v736, %v743
        %vm755 = vcmp.eq.s32.totalorder %v737, %v743
        %vm756 = vcmp.eq.s32.totalorder %v738, %v743
        %vm757 = vcmp.eq.s32.totalorder %v739, %v743
        %vm758 = vcmp.eq.s32.totalorder %v740, %v743
        %vm759 = vcmp.eq.s32.totalorder %v741, %v743
        %v760 = vsel %vm744, %v665, 0.0
        %v761 = vsel %vm745, %v668, 0.0
        %v762 = vsel %vm746, %v671, 0.0
        %v763 = vsel %vm747, %v674, 0.0
        %v764 = vsel %vm748, %v677, 0.0
        %v765 = vsel %vm749, %v680, 0.0
        %v766 = vsel %vm750, %v683, 0.0
        %v767 = vsel %vm751, %v686, 0.0
        %v768 = vsel %vm752, %v689, 0.0
        %v769 = vsel %vm753, %v692, 0.0
        %v770 = vsel %vm754, %v695, 0.0
        %v771 = vsel %vm755, %v698, 0.0
        %v772 = vsel %vm756, %v701, 0.0
        %v773 = vsel %vm757, %v704, 0.0
        %v774 = vsel %vm758, %v707, 0.0
        %v775 = vsel %vm759, %v710, 0.0
        %776 = vadd.xlane.f32.xlu0 %v760
        %v777 = vpop.xlane.xlu0 %776
        %778 = vadd.xlane.f32.xlu0 %v761
        %v779 = vpop.xlane.xlu0 %778
        %780 = vadd.xlane.f32.xlu0 %v762
        %v781 = vpop.xlane.xlu0 %780
        %782 = vadd.xlane.f32.xlu0 %v763
        %v783 = vpop.xlane.xlu0 %782
        %784 = vadd.xlane.f32.xlu0 %v764
        %v785 = vpop.xlane.xlu0 %784
        %786 = vadd.xlane.f32.xlu0 %v765
        %v787 = vpop.xlane.xlu0 %786
        %788 = vadd.xlane.f32.xlu0 %v766
        %v789 = vpop.xlane.xlu0 %788
        %790 = vadd.xlane.f32.xlu0 %v767
        %v791 = vpop.xlane.xlu0 %790
        %792 = vadd.xlane.f32.xlu0 %v768
        %v793 = vpop.xlane.xlu0 %792
        %794 = vadd.xlane.f32.xlu0 %v769
        %v795 = vpop.xlane.xlu0 %794
        %796 = vadd.xlane.f32.xlu0 %v770
        %v797 = vpop.xlane.xlu0 %796
        %798 = vadd.xlane.f32.xlu0 %v771
        %v799 = vpop.xlane.xlu0 %798
        %800 = vadd.xlane.f32.xlu0 %v772
        %v801 = vpop.xlane.xlu0 %800
        %802 = vadd.xlane.f32.xlu0 %v773
        %v803 = vpop.xlane.xlu0 %802
        %804 = vadd.xlane.f32.xlu0 %v774
        %v805 = vpop.xlane.xlu0 %804
        %806 = vadd.xlane.f32.xlu0 %v775
        %v807 = vpop.xlane.xlu0 %806
        %v808 = vmul.f32 %v665, 2.0
        %v809 = vmul.f32 %v668, 2.0
        %v810 = vmul.f32 %v671, 2.0
        %v811 = vmul.f32 %v674, 2.0
        %v812 = vmul.f32 %v677, 2.0
        %v813 = vmul.f32 %v680, 2.0
        %v814 = vmul.f32 %v683, 2.0
        %v815 = vmul.f32 %v686, 2.0
        %v816 = vmul.f32 %v689, 2.0
        %v817 = vmul.f32 %v692, 2.0
        %v818 = vmul.f32 %v695, 2.0
        %v819 = vmul.f32 %v698, 2.0
        %v820 = vmul.f32 %v701, 2.0
        %v821 = vmul.f32 %v704, 2.0
        %v822 = vmul.f32 %v707, 2.0
        %v823 = vmul.f32 %v710, 2.0
        %v824 = vsub.f32 %v808, %v724
        %v825 = vsub.f32 %v809, %v724
        %v826 = vsub.f32 %v810, %v724
        %v827 = vsub.f32 %v811, %v724
        %v828 = vsub.f32 %v812, %v724
        %v829 = vsub.f32 %v813, %v724
        %v830 = vsub.f32 %v814, %v724
        %v831 = vsub.f32 %v815, %v724
        %v832 = vsub.f32 %v816, %v724
        %v833 = vsub.f32 %v817, %v724
        %v834 = vsub.f32 %v818, %v724
        %v835 = vsub.f32 %v819, %v724
        %v836 = vsub.f32 %v820, %v724
        %v837 = vsub.f32 %v821, %v724
        %v838 = vsub.f32 %v822, %v724
        %v839 = vsub.f32 %v823, %v724
        %v840 = vsub.f32 %v824, %v777
        %v841 = vsub.f32 %v825, %v779
        %v842 = vsub.f32 %v826, %v781
        %v843 = vsub.f32 %v827, %v783
        %v844 = vsub.f32 %v828, %v785
        %v845 = vsub.f32 %v829, %v787
        %v846 = vsub.f32 %v830, %v789
        %v847 = vsub.f32 %v831, %v791
        %v848 = vsub.f32 %v832, %v793
        %v849 = vsub.f32 %v833, %v795
        %v850 = vsub.f32 %v834, %v797
        %v851 = vsub.f32 %v835, %v799
        %v852 = vsub.f32 %v836, %v801
        %v853 = vsub.f32 %v837, %v803
        %v854 = vsub.f32 %v838, %v805
        %v855 = vsub.f32 %v839, %v807
        %v856 = vld [vmem:[%s557] sm:$0xff]
        %v857 = vld [vmem:[%s557 + $0x8] sm:$0xff]
        %v858 = vld [vmem:[%s557 + $0x10] sm:$0xff]
        %v859 = vld [vmem:[%s557 + $0x18] sm:$0xff]
        %v860 = vld [vmem:[%s557 + $0x20] sm:$0xff]
        %v861 = vld [vmem:[%s557 + $0x28] sm:$0xff]
        %v862 = vld [vmem:[%s557 + $0x30] sm:$0xff]
        %v863 = vld [vmem:[%s557 + $0x38] sm:$0xff]
        %v864 = vld [vmem:[%s557 + $0x40] sm:$0xff]
        %v865 = vld [vmem:[%s557 + $0x48] sm:$0xff]
        %v866 = vld [vmem:[%s557 + $0x50] sm:$0xff]
        %v867 = vld [vmem:[%s557 + $0x58] sm:$0xff]
        %v868 = vld [vmem:[%s557 + $0x60] sm:$0xff]
        %v869 = vld [vmem:[%s557 + $0x68] sm:$0xff]
        %v870 = vld [vmem:[%s557 + $0x70] sm:$0xff]
        %v871 = vld [vmem:[%s557 + $0x78] sm:$0xff]
        %873 = vset.pattern.permute.xlu0 0
        %874 = vperm.xlu0 %873, %v856
        %v875 = vpop.permute.xlu0 %874
        %878 = vset.pattern.permute.xlu0 0
        %879 = vperm.xlu0 %878, %v857
        %v880 = vpop.permute.xlu0 %879
        %883 = vset.pattern.permute.xlu0 0
        %884 = vperm.xlu0 %883, %v858
        %v885 = vpop.permute.xlu0 %884
        %888 = vset.pattern.permute.xlu0 0
        %889 = vperm.xlu0 %888, %v859
        %v890 = vpop.permute.xlu0 %889
        %893 = vset.pattern.permute.xlu0 0
        %894 = vperm.xlu0 %893, %v860
        %v895 = vpop.permute.xlu0 %894
        %898 = vset.pattern.permute.xlu0 0
        %899 = vperm.xlu0 %898, %v861
        %v900 = vpop.permute.xlu0 %899
        %903 = vset.pattern.permute.xlu0 0
        %904 = vperm.xlu0 %903, %v862
        %v905 = vpop.permute.xlu0 %904
        %908 = vset.pattern.permute.xlu0 0
        %909 = vperm.xlu0 %908, %v863
        %v910 = vpop.permute.xlu0 %909
        %913 = vset.pattern.permute.xlu0 0
        %914 = vperm.xlu0 %913, %v864
        %v915 = vpop.permute.xlu0 %914
        %918 = vset.pattern.permute.xlu0 0
        %919 = vperm.xlu0 %918, %v865
        %v920 = vpop.permute.xlu0 %919
        %923 = vset.pattern.permute.xlu0 0
        %924 = vperm.xlu0 %923, %v866
        %v925 = vpop.permute.xlu0 %924
        %928 = vset.pattern.permute.xlu0 0
        %929 = vperm.xlu0 %928, %v867
        %v930 = vpop.permute.xlu0 %929
        %933 = vset.pattern.permute.xlu0 0
        %934 = vperm.xlu0 %933, %v868
        %v935 = vpop.permute.xlu0 %934
        %938 = vset.pattern.permute.xlu0 0
        %939 = vperm.xlu0 %938, %v869
        %v940 = vpop.permute.xlu0 %939
        %943 = vset.pattern.permute.xlu0 0
        %944 = vperm.xlu0 %943, %v870
        %v945 = vpop.permute.xlu0 %944
        %948 = vset.pattern.permute.xlu0 0
        %949 = vperm.xlu0 %948, %v871
        %v950 = vpop.permute.xlu0 %949
        %vm952 = vcmp.ge.f32.partialorder %v840, %v875
        %vm953 = vcmp.ge.f32.partialorder %v841, %v880
        %vm954 = vcmp.ge.f32.partialorder %v842, %v885
        %vm955 = vcmp.ge.f32.partialorder %v843, %v890
        %vm956 = vcmp.ge.f32.partialorder %v844, %v895
        %vm957 = vcmp.ge.f32.partialorder %v845, %v900
        %vm958 = vcmp.ge.f32.partialorder %v846, %v905
        %vm959 = vcmp.ge.f32.partialorder %v847, %v910
        %vm960 = vcmp.ge.f32.partialorder %v848, %v915
        %vm961 = vcmp.ge.f32.partialorder %v849, %v920
        %vm962 = vcmp.ge.f32.partialorder %v850, %v925
        %vm963 = vcmp.ge.f32.partialorder %v851, %v930
        %vm964 = vcmp.ge.f32.partialorder %v852, %v935
        %vm965 = vcmp.ge.f32.partialorder %v853, %v940
        %vm966 = vcmp.ge.f32.partialorder %v854, %v945
        %vm967 = vcmp.ge.f32.partialorder %v855, %v950
        %v968 = vld [vmem:[%s560] sm:$0x1]
        %v970 = vperm.slane %v968, 0
        %vm972 = vcmp.ge.f32.partialorder %v840, %v970
        %vm973 = vcmp.ge.f32.partialorder %v841, %v970
        %vm974 = vcmp.ge.f32.partialorder %v842, %v970
        %vm975 = vcmp.ge.f32.partialorder %v843, %v970
        %vm976 = vcmp.ge.f32.partialorder %v844, %v970
        %vm977 = vcmp.ge.f32.partialorder %v845, %v970
        %vm978 = vcmp.ge.f32.partialorder %v846, %v970
        %vm979 = vcmp.ge.f32.partialorder %v847, %v970
        %vm980 = vcmp.ge.f32.partialorder %v848, %v970
        %vm981 = vcmp.ge.f32.partialorder %v849, %v970
        %vm982 = vcmp.ge.f32.partialorder %v850, %v970
        %vm983 = vcmp.ge.f32.partialorder %v851, %v970
        %vm984 = vcmp.ge.f32.partialorder %v852, %v970
        %vm985 = vcmp.ge.f32.partialorder %v853, %v970
        %vm986 = vcmp.ge.f32.partialorder %v854, %v970
        %vm987 = vcmp.ge.f32.partialorder %v855, %v970
        %vm988 = vmand %vm952, %vm972
        %vm989 = vmand %vm953, %vm973
        %vm990 = vmand %vm954, %vm974
        %vm991 = vmand %vm955, %vm975
        %vm992 = vmand %vm956, %vm976
        %vm993 = vmand %vm957, %vm977
        %vm994 = vmand %vm958, %vm978
        %vm995 = vmand %vm959, %vm979
        %vm996 = vmand %vm960, %vm980
        %vm997 = vmand %vm961, %vm981
        %vm998 = vmand %vm962, %vm982
        %vm999 = vmand %vm963, %vm983
        %vm1000 = vmand %vm964, %vm984
        %vm1001 = vmand %vm965, %vm985
        %vm1002 = vmand %vm966, %vm986
        %vm1003 = vmand %vm967, %vm987
        %v1004 = vld [vmem:[%s505] sm:$0xff]
        %v1005 = vpack.c.bf16 %v1004, %v1004
        %v1006 = vld [vmem:[%s505 + $0x20] sm:$0xff]
        %v1007 = vpack.c.bf16 %v1006, %v1006
        %v1008 = vld [vmem:[%s505 + $0x40] sm:$0xff]
        %v1009 = vpack.c.bf16 %v1008, %v1008
        %1010 = vxpose.xlu0.c.b16.start [1/8] %v1005, 128
        %1011 = vxpose.xlu0.c.b16.cont [2/8] 0, 128
        %1012 = vxpose.xlu0.c.b16.cont [3/8] 0, 128
        %1013 = vxpose.xlu0.c.b16.cont [4/8] 0, 128
        %1014 = vxpose.xlu0.c.b16.cont [5/8] 0, 128
        %1015 = vxpose.xlu0.c.b16.cont [6/8] 0, 128
        %1016 = vxpose.xlu0.c.b16.cont [7/8] 0, 128
        %1017 = vxpose.xlu0.c.b16.end [8/8] 0, 128
        %v1018 = vpop.trf.xlu0
        %v1019 = vpop.trf.xlu0
        %v1020 = vpop.trf.xlu0
        %v1021 = vpop.trf.xlu0
        %v1022 = vpop.trf.xlu0
        %v1023 = vpop.trf.xlu0
        %v1024 = vpop.trf.xlu0
        %v1025 = vpop.trf.xlu0
        %vm1026 = vcmask 64512
        %v1028 = vsel %vm1026, %v1018, 0
        %v1031 = vsel %vm1026, %v1019, 0
        %v1034 = vsel %vm1026, %v1020, 0
        %v1037 = vsel %vm1026, %v1021, 0
        %v1040 = vsel %vm1026, %v1022, 0
        %v1043 = vsel %vm1026, %v1023, 0
        %v1046 = vsel %vm1026, %v1024, 0
        %v1049 = vsel %vm1026, %v1025, 0
        %vm1051 = vcmask 1043456
        %v1053 = vsel %vm1051, %v1007, 0
        %1055 = vmatpush.bf16.msra.mxu0 0
        %1056 = vmatpush.bf16.msra.mxu0 0
        %1057 = vmatpush.bf16.msra.mxu0 0
        %1058 = vmatpush.bf16.msra.mxu0 0
        %1059 = vmatpush.bf16.msra.mxu0 0
        %1060 = vmatpush.bf16.msra.mxu0 0
        %1061 = vmatpush.bf16.msra.mxu0 0
        %1062 = vmatpush.bf16.msra.mxu0 %v1053
        %1063 = vmatmul.bf16.gmra.mxu0 %v1028
        %v1064 = vpop.f32.mrf.mxu0
        %v1065 = vadd.f32 0.0, %v1064
        %v1066 = vpop.f32.mrf.mxu0
        %v1067 = vadd.f32 0.0, %v1066
        %1068 = vmatmul.bf16.gmra.mxu0 %v1031
        %v1069 = vpop.f32.mrf.mxu0
        %v1070 = vadd.f32 0.0, %v1069
        %v1071 = vpop.f32.mrf.mxu0
        %v1072 = vadd.f32 0.0, %v1071
        %1073 = vmatmul.bf16.gmra.mxu0 %v1034
        %v1074 = vpop.f32.mrf.mxu0
        %v1075 = vadd.f32 0.0, %v1074
        %v1076 = vpop.f32.mrf.mxu0
        %v1077 = vadd.f32 0.0, %v1076
        %1078 = vmatmul.bf16.gmra.mxu0 %v1037
        %v1079 = vpop.f32.mrf.mxu0
        %v1080 = vadd.f32 0.0, %v1079
        %v1081 = vpop.f32.mrf.mxu0
        %v1082 = vadd.f32 0.0, %v1081
        %1083 = vmatmul.bf16.gmra.mxu0 %v1040
        %v1084 = vpop.f32.mrf.mxu0
        %v1085 = vadd.f32 0.0, %v1084
        %v1086 = vpop.f32.mrf.mxu0
        %v1087 = vadd.f32 0.0, %v1086
        %1088 = vmatmul.bf16.gmra.mxu0 %v1043
        %v1089 = vpop.f32.mrf.mxu0
        %v1090 = vadd.f32 0.0, %v1089
        %v1091 = vpop.f32.mrf.mxu0
        %v1092 = vadd.f32 0.0, %v1091
        %1093 = vmatmul.bf16.gmra.mxu0 %v1046
        %v1094 = vpop.f32.mrf.mxu0
        %v1095 = vadd.f32 0.0, %v1094
        %v1096 = vpop.f32.mrf.mxu0
        %v1097 = vadd.f32 0.0, %v1096
        %1098 = vmatmul.bf16.gmra.mxu0 %v1049
        %v1099 = vpop.f32.mrf.mxu0
        %v1100 = vadd.f32 0.0, %v1099
        %v1101 = vpop.f32.mrf.mxu0
        %v1102 = vadd.f32 0.0, %v1101
        %1103 = vdwg.mxu0
        %v1104 = vmul.f32 %v1065, 0.35355338
        %v1105 = vmul.f32 %v1067, 0.35355338
        %v1106 = vmul.f32 %v1070, 0.35355338
        %v1107 = vmul.f32 %v1072, 0.35355338
        %v1108 = vmul.f32 %v1075, 0.35355338
        %v1109 = vmul.f32 %v1077, 0.35355338
        %v1110 = vmul.f32 %v1080, 0.35355338
        %v1111 = vmul.f32 %v1082, 0.35355338
        %v1112 = vmul.f32 %v1085, 0.35355338
        %v1113 = vmul.f32 %v1087, 0.35355338
        %v1114 = vmul.f32 %v1090, 0.35355338
        %v1115 = vmul.f32 %v1092, 0.35355338
        %v1116 = vmul.f32 %v1095, 0.35355338
        %v1117 = vmul.f32 %v1097, 0.35355338
        %v1118 = vmul.f32 %v1100, 0.35355338
        %v1119 = vmul.f32 %v1102, 0.35355338
        %v1120 = vsel %vm988, %v1104, -1e+09
        %v1121 = vsel %vm989, %v1105, -1e+09
        %v1122 = vsel %vm990, %v1106, -1e+09
        %v1123 = vsel %vm991, %v1107, -1e+09
        %v1124 = vsel %vm992, %v1108, -1e+09
        %v1125 = vsel %vm993, %v1109, -1e+09
        %v1126 = vsel %vm994, %v1110, -1e+09
        %v1127 = vsel %vm995, %v1111, -1e+09
        %v1128 = vsel %vm996, %v1112, -1e+09
        %v1129 = vsel %vm997, %v1113, -1e+09
        %v1130 = vsel %vm998, %v1114, -1e+09
        %v1131 = vsel %vm999, %v1115, -1e+09
        %v1132 = vsel %vm1000, %v1116, -1e+09
        %v1133 = vsel %vm1001, %v1117, -1e+09
        %v1134 = vsel %vm1002, %v1118, -1e+09
        %v1135 = vsel %vm1003, %v1119, -1e+09
        %1136 = vmax.xlane.f32.xlu0 %v1120
        %v1137 = vpop.xlane.xlu0 %1136
        %1138 = vmax.xlane.f32.xlu0 %v1121
        %v1139 = vpop.xlane.xlu0 %1138
        %1140 = vmax.xlane.f32.xlu0 %v1122
        %v1141 = vpop.xlane.xlu0 %1140
        %1142 = vmax.xlane.f32.xlu0 %v1123
        %v1143 = vpop.xlane.xlu0 %1142
        %1144 = vmax.xlane.f32.xlu0 %v1124
        %v1145 = vpop.xlane.xlu0 %1144
        %1146 = vmax.xlane.f32.xlu0 %v1125
        %v1147 = vpop.xlane.xlu0 %1146
        %1148 = vmax.xlane.f32.xlu0 %v1126
        %v1149 = vpop.xlane.xlu0 %1148
        %1150 = vmax.xlane.f32.xlu0 %v1127
        %v1151 = vpop.xlane.xlu0 %1150
        %1152 = vmax.xlane.f32.xlu0 %v1128
        %v1153 = vpop.xlane.xlu0 %1152
        %1154 = vmax.xlane.f32.xlu0 %v1129
        %v1155 = vpop.xlane.xlu0 %1154
        %1156 = vmax.xlane.f32.xlu0 %v1130
        %v1157 = vpop.xlane.xlu0 %1156
        %1158 = vmax.xlane.f32.xlu0 %v1131
        %v1159 = vpop.xlane.xlu0 %1158
        %1160 = vmax.xlane.f32.xlu0 %v1132
        %v1161 = vpop.xlane.xlu0 %1160
        %1162 = vmax.xlane.f32.xlu0 %v1133
        %v1163 = vpop.xlane.xlu0 %1162
        %1164 = vmax.xlane.f32.xlu0 %v1134
        %v1165 = vpop.xlane.xlu0 %1164
        %1166 = vmax.xlane.f32.xlu0 %v1135
        %v1167 = vpop.xlane.xlu0 %1166
        %v1168 = vsub.f32 %v1120, %v1137
        %v1169 = vsub.f32 %v1121, %v1139
        %v1170 = vsub.f32 %v1122, %v1141
        %v1171 = vsub.f32 %v1123, %v1143
        %v1172 = vsub.f32 %v1124, %v1145
        %v1173 = vsub.f32 %v1125, %v1147
        %v1174 = vsub.f32 %v1126, %v1149
        %v1175 = vsub.f32 %v1127, %v1151
        %v1176 = vsub.f32 %v1128, %v1153
        %v1177 = vsub.f32 %v1129, %v1155
        %v1178 = vsub.f32 %v1130, %v1157
        %v1179 = vsub.f32 %v1131, %v1159
        %v1180 = vsub.f32 %v1132, %v1161
        %v1181 = vsub.f32 %v1133, %v1163
        %v1182 = vsub.f32 %v1134, %v1165
        %v1183 = vsub.f32 %v1135, %v1167
        %v1184 = vmul.f32 %v1168, 1.442695
        %v1185 = vpow.pop %v1184
        %v1186 = vmul.f32 %v1169, 1.442695
        %v1187 = vpow.pop %v1186
        %v1188 = vmul.f32 %v1170, 1.442695
        %v1189 = vpow.pop %v1188
        %v1190 = vmul.f32 %v1171, 1.442695
        %v1191 = vpow.pop %v1190
        %v1192 = vmul.f32 %v1172, 1.442695
        %v1193 = vpow.pop %v1192
        %v1194 = vmul.f32 %v1173, 1.442695
        %v1195 = vpow.pop %v1194
        %v1196 = vmul.f32 %v1174, 1.442695
        %v1197 = vpow.pop %v1196
        %v1198 = vmul.f32 %v1175, 1.442695
        %v1199 = vpow.pop %v1198
        %v1200 = vmul.f32 %v1176, 1.442695
        %v1201 = vpow.pop %v1200
        %v1202 = vmul.f32 %v1177, 1.442695
        %v1203 = vpow.pop %v1202
        %v1204 = vmul.f32 %v1178, 1.442695
        %v1205 = vpow.pop %v1204
        %v1206 = vmul.f32 %v1179, 1.442695
        %v1207 = vpow.pop %v1206
        %v1208 = vmul.f32 %v1180, 1.442695
        %v1209 = vpow.pop %v1208
        %v1210 = vmul.f32 %v1181, 1.442695
        %v1211 = vpow.pop %v1210
        %v1212 = vmul.f32 %v1182, 1.442695
        %v1213 = vpow.pop %v1212
        %v1214 = vmul.f32 %v1183, 1.442695
        %v1215 = vpow.pop %v1214
        %1216 = vadd.xlane.f32.xlu0 %v1185
        %v1217 = vpop.xlane.xlu0 %1216
        %1218 = vadd.xlane.f32.xlu0 %v1187
        %v1219 = vpop.xlane.xlu0 %1218
        %1220 = vadd.xlane.f32.xlu0 %v1189
        %v1221 = vpop.xlane.xlu0 %1220
        %1222 = vadd.xlane.f32.xlu0 %v1191
        %v1223 = vpop.xlane.xlu0 %1222
        %1224 = vadd.xlane.f32.xlu0 %v1193
        %v1225 = vpop.xlane.xlu0 %1224
        %1226 = vadd.xlane.f32.xlu0 %v1195
        %v1227 = vpop.xlane.xlu0 %1226
        %1228 = vadd.xlane.f32.xlu0 %v1197
        %v1229 = vpop.xlane.xlu0 %1228
        %1230 = vadd.xlane.f32.xlu0 %v1199
        %v1231 = vpop.xlane.xlu0 %1230
        %1232 = vadd.xlane.f32.xlu0 %v1201
        %v1233 = vpop.xlane.xlu0 %1232
        %1234 = vadd.xlane.f32.xlu0 %v1203
        %v1235 = vpop.xlane.xlu0 %1234
        %1236 = vadd.xlane.f32.xlu0 %v1205
        %v1237 = vpop.xlane.xlu0 %1236
        %1238 = vadd.xlane.f32.xlu0 %v1207
        %v1239 = vpop.xlane.xlu0 %1238
        %1240 = vadd.xlane.f32.xlu0 %v1209
        %v1241 = vpop.xlane.xlu0 %1240
        %1242 = vadd.xlane.f32.xlu0 %v1211
        %v1243 = vpop.xlane.xlu0 %1242
        %1244 = vadd.xlane.f32.xlu0 %v1213
        %v1245 = vpop.xlane.xlu0 %1244
        %1246 = vadd.xlane.f32.xlu0 %v1215
        %v1247 = vpop.xlane.xlu0 %1246
        %v1248 = vrcp.pop %v1217
        %v1249 = vmul.f32 %v1217, %v1248
        %v1250 = vsub.f32 1.0, %v1249
        %v1251 = vmul.f32 %v1248, %v1250
        %v1252 = vadd.f32 %v1248, %v1251
        %vm1253 = vweird.f32 %v1217
        %vm1254 = vweird.f32 %v1248
        %vm1255 = vmor %vm1253, %vm1254
        %v1256 = vsel %vm1255, %v1248, %v1252
        %v1257 = vand.u32 2147483647, %v1217
        %vm1258 = vcmp.eq.f32.partialorder %v1257, 8.507059e+37
        %v1259 = vand.u32 %v1217, 2147483648
        %v1260 = vor.u32 1.1754944e-38, %v1259
        %v1261 = vsel %vm1258, %v1260, %v1256
        %v1262 = vmul.f32 %v1185, %v1261
        %v1263 = vrcp.pop %v1219
        %v1264 = vmul.f32 %v1219, %v1263
        %v1265 = vsub.f32 1.0, %v1264
        %v1266 = vmul.f32 %v1263, %v1265
        %v1267 = vadd.f32 %v1263, %v1266
        %vm1268 = vweird.f32 %v1219
        %vm1269 = vweird.f32 %v1263
        %vm1270 = vmor %vm1268, %vm1269
        %v1271 = vsel %vm1270, %v1263, %v1267
        %v1272 = vand.u32 2147483647, %v1219
        %vm1273 = vcmp.eq.f32.partialorder %v1272, 8.507059e+37
        %v1274 = vand.u32 %v1219, 2147483648
        %v1275 = vor.u32 1.1754944e-38, %v1274
        %v1276 = vsel %vm1273, %v1275, %v1271
        %v1277 = vmul.f32 %v1187, %v1276
        %v1278 = vrcp.pop %v1221
        %v1279 = vmul.f32 %v1221, %v1278
        %v1280 = vsub.f32 1.0, %v1279
        %v1281 = vmul.f32 %v1278, %v1280
        %v1282 = vadd.f32 %v1278, %v1281
        %vm1283 = vweird.f32 %v1221
        %vm1284 = vweird.f32 %v1278
        %vm1285 = vmor %vm1283, %vm1284
        %v1286 = vsel %vm1285, %v1278, %v1282
        %v1287 = vand.u32 2147483647, %v1221
        %vm1288 = vcmp.eq.f32.partialorder %v1287, 8.507059e+37
        %v1289 = vand.u32 %v1221, 2147483648
        %v1290 = vor.u32 1.1754944e-38, %v1289
        %v1291 = vsel %vm1288, %v1290, %v1286
        %v1292 = vmul.f32 %v1189, %v1291
        %v1293 = vrcp.pop %v1223
        %v1294 = vmul.f32 %v1223, %v1293
        %v1295 = vsub.f32 1.0, %v1294
        %v1296 = vmul.f32 %v1293, %v1295
        %v1297 = vadd.f32 %v1293, %v1296
        %vm1298 = vweird.f32 %v1223
        %vm1299 = vweird.f32 %v1293
        %vm1300 = vmor %vm1298, %vm1299
        %v1301 = vsel %vm1300, %v1293, %v1297
        %v1302 = vand.u32 2147483647, %v1223
        %vm1303 = vcmp.eq.f32.partialorder %v1302, 8.507059e+37
        %v1304 = vand.u32 %v1223, 2147483648
        %v1305 = vor.u32 1.1754944e-38, %v1304
        %v1306 = vsel %vm1303, %v1305, %v1301
        %v1307 = vmul.f32 %v1191, %v1306
        %v1308 = vrcp.pop %v1225
        %v1309 = vmul.f32 %v1225, %v1308
        %v1310 = vsub.f32 1.0, %v1309
        %v1311 = vmul.f32 %v1308, %v1310
        %v1312 = vadd.f32 %v1308, %v1311
        %vm1313 = vweird.f32 %v1225
        %vm1314 = vweird.f32 %v1308
        %vm1315 = vmor %vm1313, %vm1314
        %v1316 = vsel %vm1315, %v1308, %v1312
        %v1317 = vand.u32 2147483647, %v1225
        %vm1318 = vcmp.eq.f32.partialorder %v1317, 8.507059e+37
        %v1319 = vand.u32 %v1225, 2147483648
        %v1320 = vor.u32 1.1754944e-38, %v1319
        %v1321 = vsel %vm1318, %v1320, %v1316
        %v1322 = vmul.f32 %v1193, %v1321
        %v1323 = vrcp.pop %v1227
        %v1324 = vmul.f32 %v1227, %v1323
        %v1325 = vsub.f32 1.0, %v1324
        %v1326 = vmul.f32 %v1323, %v1325
        %v1327 = vadd.f32 %v1323, %v1326
        %vm1328 = vweird.f32 %v1227
        %vm1329 = vweird.f32 %v1323
        %vm1330 = vmor %vm1328, %vm1329
        %v1331 = vsel %vm1330, %v1323, %v1327
        %v1332 = vand.u32 2147483647, %v1227
        %vm1333 = vcmp.eq.f32.partialorder %v1332, 8.507059e+37
        %v1334 = vand.u32 %v1227, 2147483648
        %v1335 = vor.u32 1.1754944e-38, %v1334
        %v1336 = vsel %vm1333, %v1335, %v1331
        %v1337 = vmul.f32 %v1195, %v1336
        %v1338 = vrcp.pop %v1229
        %v1339 = vmul.f32 %v1229, %v1338
        %v1340 = vsub.f32 1.0, %v1339
        %v1341 = vmul.f32 %v1338, %v1340
        %v1342 = vadd.f32 %v1338, %v1341
        %vm1343 = vweird.f32 %v1229
        %vm1344 = vweird.f32 %v1338
        %vm1345 = vmor %vm1343, %vm1344
        %v1346 = vsel %vm1345, %v1338, %v1342
        %v1347 = vand.u32 2147483647, %v1229
        %vm1348 = vcmp.eq.f32.partialorder %v1347, 8.507059e+37
        %v1349 = vand.u32 %v1229, 2147483648
        %v1350 = vor.u32 1.1754944e-38, %v1349
        %v1351 = vsel %vm1348, %v1350, %v1346
        %v1352 = vmul.f32 %v1197, %v1351
        %v1353 = vrcp.pop %v1231
        %v1354 = vmul.f32 %v1231, %v1353
        %v1355 = vsub.f32 1.0, %v1354
        %v1356 = vmul.f32 %v1353, %v1355
        %v1357 = vadd.f32 %v1353, %v1356
        %vm1358 = vweird.f32 %v1231
        %vm1359 = vweird.f32 %v1353
        %vm1360 = vmor %vm1358, %vm1359
        %v1361 = vsel %vm1360, %v1353, %v1357
        %v1362 = vand.u32 2147483647, %v1231
        %vm1363 = vcmp.eq.f32.partialorder %v1362, 8.507059e+37
        %v1364 = vand.u32 %v1231, 2147483648
        %v1365 = vor.u32 1.1754944e-38, %v1364
        %v1366 = vsel %vm1363, %v1365, %v1361
        %v1367 = vmul.f32 %v1199, %v1366
        %v1368 = vrcp.pop %v1233
        %v1369 = vmul.f32 %v1233, %v1368
        %v1370 = vsub.f32 1.0, %v1369
        %v1371 = vmul.f32 %v1368, %v1370
        %v1372 = vadd.f32 %v1368, %v1371
        %vm1373 = vweird.f32 %v1233
        %vm1374 = vweird.f32 %v1368
        %vm1375 = vmor %vm1373, %vm1374
        %v1376 = vsel %vm1375, %v1368, %v1372
        %v1377 = vand.u32 2147483647, %v1233
        %vm1378 = vcmp.eq.f32.partialorder %v1377, 8.507059e+37
        %v1379 = vand.u32 %v1233, 2147483648
        %v1380 = vor.u32 1.1754944e-38, %v1379
        %v1381 = vsel %vm1378, %v1380, %v1376
        %v1382 = vmul.f32 %v1201, %v1381
        %v1383 = vrcp.pop %v1235
        %v1384 = vmul.f32 %v1235, %v1383
        %v1385 = vsub.f32 1.0, %v1384
        %v1386 = vmul.f32 %v1383, %v1385
        %v1387 = vadd.f32 %v1383, %v1386
        %vm1388 = vweird.f32 %v1235
        %vm1389 = vweird.f32 %v1383
        %vm1390 = vmor %vm1388, %vm1389
        %v1391 = vsel %vm1390, %v1383, %v1387
        %v1392 = vand.u32 2147483647, %v1235
        %vm1393 = vcmp.eq.f32.partialorder %v1392, 8.507059e+37
        %v1394 = vand.u32 %v1235, 2147483648
        %v1395 = vor.u32 1.1754944e-38, %v1394
        %v1396 = vsel %vm1393, %v1395, %v1391
        %v1397 = vmul.f32 %v1203, %v1396
        %v1398 = vrcp.pop %v1237
        %v1399 = vmul.f32 %v1237, %v1398
        %v1400 = vsub.f32 1.0, %v1399
        %v1401 = vmul.f32 %v1398, %v1400
        %v1402 = vadd.f32 %v1398, %v1401
        %vm1403 = vweird.f32 %v1237
        %vm1404 = vweird.f32 %v1398
        %vm1405 = vmor %vm1403, %vm1404
        %v1406 = vsel %vm1405, %v1398, %v1402
        %v1407 = vand.u32 2147483647, %v1237
        %vm1408 = vcmp.eq.f32.partialorder %v1407, 8.507059e+37
        %v1409 = vand.u32 %v1237, 2147483648
        %v1410 = vor.u32 1.1754944e-38, %v1409
        %v1411 = vsel %vm1408, %v1410, %v1406
        %v1412 = vmul.f32 %v1205, %v1411
        %v1413 = vrcp.pop %v1239
        %v1414 = vmul.f32 %v1239, %v1413
        %v1415 = vsub.f32 1.0, %v1414
        %v1416 = vmul.f32 %v1413, %v1415
        %v1417 = vadd.f32 %v1413, %v1416
        %vm1418 = vweird.f32 %v1239
        %vm1419 = vweird.f32 %v1413
        %vm1420 = vmor %vm1418, %vm1419
        %v1421 = vsel %vm1420, %v1413, %v1417
        %v1422 = vand.u32 2147483647, %v1239
        %vm1423 = vcmp.eq.f32.partialorder %v1422, 8.507059e+37
        %v1424 = vand.u32 %v1239, 2147483648
        %v1425 = vor.u32 1.1754944e-38, %v1424
        %v1426 = vsel %vm1423, %v1425, %v1421
        %v1427 = vmul.f32 %v1207, %v1426
        %v1428 = vrcp.pop %v1241
        %v1429 = vmul.f32 %v1241, %v1428
        %v1430 = vsub.f32 1.0, %v1429
        %v1431 = vmul.f32 %v1428, %v1430
        %v1432 = vadd.f32 %v1428, %v1431
        %vm1433 = vweird.f32 %v1241
        %vm1434 = vweird.f32 %v1428
        %vm1435 = vmor %vm1433, %vm1434
        %v1436 = vsel %vm1435, %v1428, %v1432
        %v1437 = vand.u32 2147483647, %v1241
        %vm1438 = vcmp.eq.f32.partialorder %v1437, 8.507059e+37
        %v1439 = vand.u32 %v1241, 2147483648
        %v1440 = vor.u32 1.1754944e-38, %v1439
        %v1441 = vsel %vm1438, %v1440, %v1436
        %v1442 = vmul.f32 %v1209, %v1441
        %v1443 = vrcp.pop %v1243
        %v1444 = vmul.f32 %v1243, %v1443
        %v1445 = vsub.f32 1.0, %v1444
        %v1446 = vmul.f32 %v1443, %v1445
        %v1447 = vadd.f32 %v1443, %v1446
        %vm1448 = vweird.f32 %v1243
        %vm1449 = vweird.f32 %v1443
        %vm1450 = vmor %vm1448, %vm1449
        %v1451 = vsel %vm1450, %v1443, %v1447
        %v1452 = vand.u32 2147483647, %v1243
        %vm1453 = vcmp.eq.f32.partialorder %v1452, 8.507059e+37
        %v1454 = vand.u32 %v1243, 2147483648
        %v1455 = vor.u32 1.1754944e-38, %v1454
        %v1456 = vsel %vm1453, %v1455, %v1451
        %v1457 = vmul.f32 %v1211, %v1456
        %v1458 = vrcp.pop %v1245
        %v1459 = vmul.f32 %v1245, %v1458
        %v1460 = vsub.f32 1.0, %v1459
        %v1461 = vmul.f32 %v1458, %v1460
        %v1462 = vadd.f32 %v1458, %v1461
        %vm1463 = vweird.f32 %v1245
        %vm1464 = vweird.f32 %v1458
        %vm1465 = vmor %vm1463, %vm1464
        %v1466 = vsel %vm1465, %v1458, %v1462
        %v1467 = vand.u32 2147483647, %v1245
        %vm1468 = vcmp.eq.f32.partialorder %v1467, 8.507059e+37
        %v1469 = vand.u32 %v1245, 2147483648
        %v1470 = vor.u32 1.1754944e-38, %v1469
        %v1471 = vsel %vm1468, %v1470, %v1466
        %v1472 = vmul.f32 %v1213, %v1471
        %v1473 = vrcp.pop %v1247
        %v1474 = vmul.f32 %v1247, %v1473
        %v1475 = vsub.f32 1.0, %v1474
        %v1476 = vmul.f32 %v1473, %v1475
        %v1477 = vadd.f32 %v1473, %v1476
        %vm1478 = vweird.f32 %v1247
        %vm1479 = vweird.f32 %v1473
        %vm1480 = vmor %vm1478, %vm1479
        %v1481 = vsel %vm1480, %v1473, %v1477
        %v1482 = vand.u32 2147483647, %v1247
        %vm1483 = vcmp.eq.f32.partialorder %v1482, 8.507059e+37
        %v1484 = vand.u32 %v1247, 2147483648
        %v1485 = vor.u32 1.1754944e-38, %v1484
        %v1486 = vsel %vm1483, %v1485, %v1481
        %v1487 = vmul.f32 %v1215, %v1486
        %v1488 = vpack.c.bf16 %v1277, %v1262
        %v1489 = vpack.c.bf16 %v1307, %v1292
        %v1490 = vpack.c.bf16 %v1337, %v1322
        %v1491 = vpack.c.bf16 %v1367, %v1352
        %v1492 = vpack.c.bf16 %v1397, %v1382
        %v1493 = vpack.c.bf16 %v1427, %v1412
        %v1494 = vpack.c.bf16 %v1457, %v1442
        %v1495 = vpack.c.bf16 %v1487, %v1472
        %1496 = vmatpush.bf16.xpose.msra.mxu0 %v1495
        %1497 = vmatpush.bf16.xpose.msra.mxu0 %v1494
        %1498 = vmatpush.bf16.xpose.msra.mxu0 %v1493
        %1499 = vmatpush.bf16.xpose.msra.mxu0 %v1492
        %1500 = vmatpush.bf16.xpose.msra.mxu0 %v1491
        %1501 = vmatpush.bf16.xpose.msra.mxu0 %v1490
        %1502 = vmatpush.bf16.xpose.msra.mxu0 %v1489
        %1503 = vmatpush.bf16.xpose.msra.mxu0 %v1488
        %1504 = vmatmul.bf16.gmra.mxu0 %v1009
        %v1505 = vpop.f32.mrf.mxu0
        %v1506 = vadd.f32 0.0, %v1505
        %v1507 = vpop.f32.mrf.mxu0
        %1508 = vdwg.mxu0
        %1509 = vst [vmem:[#allocation2] sm:$0xff] %v1506
        %v1510 = vld [vmem:[%s505 + $0x8] sm:$0xff]
        %v1511 = vpack.c.bf16 %v1510, %v1510
        %v1512 = vld [vmem:[%s505 + $0x28] sm:$0xff]
        %v1513 = vpack.c.bf16 %v1512, %v1512
        %v1514 = vld [vmem:[%s505 + $0x48] sm:$0xff]
        %v1515 = vpack.c.bf16 %v1514, %v1514
        %1516 = vxpose.xlu0.c.b16.start [1/8] %v1511, 128
        %1517 = vxpose.xlu0.c.b16.cont [2/8] 0, 128
        %1518 = vxpose.xlu0.c.b16.cont [3/8] 0, 128
        %1519 = vxpose.xlu0.c.b16.cont [4/8] 0, 128
        %1520 = vxpose.xlu0.c.b16.cont [5/8] 0, 128
        %1521 = vxpose.xlu0.c.b16.cont [6/8] 0, 128
        %1522 = vxpose.xlu0.c.b16.cont [7/8] 0, 128
        %1523 = vxpose.xlu0.c.b16.end [8/8] 0, 128
        %v1524 = vpop.trf.xlu0
        %v1525 = vpop.trf.xlu0
        %v1526 = vpop.trf.xlu0
        %v1527 = vpop.trf.xlu0
        %v1528 = vpop.trf.xlu0
        %v1529 = vpop.trf.xlu0
        %v1530 = vpop.trf.xlu0
        %v1531 = vpop.trf.xlu0
        %v1533 = vsel %vm1026, %v1524, 0
        %v1536 = vsel %vm1026, %v1525, 0
        %v1539 = vsel %vm1026, %v1526, 0
        %v1542 = vsel %vm1026, %v1527, 0
        %v1545 = vsel %vm1026, %v1528, 0
        %v1548 = vsel %vm1026, %v1529, 0
        %v1551 = vsel %vm1026, %v1530, 0
        %v1554 = vsel %vm1026, %v1531, 0
        %v1557 = vsel %vm1051, %v1513, 0
        %1559 = vmatpush.bf16.msra.mxu0 0
        %1560 = vmatpush.bf16.msra.mxu0 0
        %1561 = vmatpush.bf16.msra.mxu0 0
        %1562 = vmatpush.bf16.msra.mxu0 0
        %1563 = vmatpush.bf16.msra.mxu0 0
        %1564 = vmatpush.bf16.msra.mxu0 0
        %1565 = vmatpush.bf16.msra.mxu0 0
        %1566 = vmatpush.bf16.msra.mxu0 %v1557
        %1567 = vmatmul.bf16.gmra.mxu0 %v1533
        %v1568 = vpop.f32.mrf.mxu0
        %v1569 = vadd.f32 0.0, %v1568
        %v1570 = vpop.f32.mrf.mxu0
        %v1571 = vadd.f32 0.0, %v1570
        %1572 = vmatmul.bf16.gmra.mxu0 %v1536
        %v1573 = vpop.f32.mrf.mxu0
        %v1574 = vadd.f32 0.0, %v1573
        %v1575 = vpop.f32.mrf.mxu0
        %v1576 = vadd.f32 0.0, %v1575
        %1577 = vmatmul.bf16.gmra.mxu0 %v1539
        %v1578 = vpop.f32.mrf.mxu0
        %v1579 = vadd.f32 0.0, %v1578
        %v1580 = vpop.f32.mrf.mxu0
        %v1581 = vadd.f32 0.0, %v1580
        %1582 = vmatmul.bf16.gmra.mxu0 %v1542
        %v1583 = vpop.f32.mrf.mxu0
        %v1584 = vadd.f32 0.0, %v1583
        %v1585 = vpop.f32.mrf.mxu0
        %v1586 = vadd.f32 0.0, %v1585
        %1587 = vmatmul.bf16.gmra.mxu0 %v1545
        %v1588 = vpop.f32.mrf.mxu0
        %v1589 = vadd.f32 0.0, %v1588
        %v1590 = vpop.f32.mrf.mxu0
        %v1591 = vadd.f32 0.0, %v1590
        %1592 = vmatmul.bf16.gmra.mxu0 %v1548
        %v1593 = vpop.f32.mrf.mxu0
        %v1594 = vadd.f32 0.0, %v1593
        %v1595 = vpop.f32.mrf.mxu0
        %v1596 = vadd.f32 0.0, %v1595
        %1597 = vmatmul.bf16.gmra.mxu0 %v1551
        %v1598 = vpop.f32.mrf.mxu0
        %v1599 = vadd.f32 0.0, %v1598
        %v1600 = vpop.f32.mrf.mxu0
        %v1601 = vadd.f32 0.0, %v1600
        %1602 = vmatmul.bf16.gmra.mxu0 %v1554
        %v1603 = vpop.f32.mrf.mxu0
        %v1604 = vadd.f32 0.0, %v1603
        %v1605 = vpop.f32.mrf.mxu0
        %v1606 = vadd.f32 0.0, %v1605
        %1607 = vdwg.mxu0
        %v1608 = vmul.f32 %v1569, 0.35355338
        %v1609 = vmul.f32 %v1571, 0.35355338
        %v1610 = vmul.f32 %v1574, 0.35355338
        %v1611 = vmul.f32 %v1576, 0.35355338
        %v1612 = vmul.f32 %v1579, 0.35355338
        %v1613 = vmul.f32 %v1581, 0.35355338
        %v1614 = vmul.f32 %v1584, 0.35355338
        %v1615 = vmul.f32 %v1586, 0.35355338
        %v1616 = vmul.f32 %v1589, 0.35355338
        %v1617 = vmul.f32 %v1591, 0.35355338
        %v1618 = vmul.f32 %v1594, 0.35355338
        %v1619 = vmul.f32 %v1596, 0.35355338
        %v1620 = vmul.f32 %v1599, 0.35355338
        %v1621 = vmul.f32 %v1601, 0.35355338
        %v1622 = vmul.f32 %v1604, 0.35355338
        %v1623 = vmul.f32 %v1606, 0.35355338
        %v1624 = vsel %vm988, %v1608, -1e+09
        %v1625 = vsel %vm989, %v1609, -1e+09
        %v1626 = vsel %vm990, %v1610, -1e+09
        %v1627 = vsel %vm991, %v1611, -1e+09
        %v1628 = vsel %vm992, %v1612, -1e+09
        %v1629 = vsel %vm993, %v1613, -1e+09
        %v1630 = vsel %vm994, %v1614, -1e+09
        %v1631 = vsel %vm995, %v1615, -1e+09
        %v1632 = vsel %vm996, %v1616, -1e+09
        %v1633 = vsel %vm997, %v1617, -1e+09
        %v1634 = vsel %vm998, %v1618, -1e+09
        %v1635 = vsel %vm999, %v1619, -1e+09
        %v1636 = vsel %vm1000, %v1620, -1e+09
        %v1637 = vsel %vm1001, %v1621, -1e+09
        %v1638 = vsel %vm1002, %v1622, -1e+09
        %v1639 = vsel %vm1003, %v1623, -1e+09
        %1640 = vmax.xlane.f32.xlu0 %v1624
        %v1641 = vpop.xlane.xlu0 %1640
        %1642 = vmax.xlane.f32.xlu0 %v1625
        %v1643 = vpop.xlane.xlu0 %1642
        %1644 = vmax.xlane.f32.xlu0 %v1626
        %v1645 = vpop.xlane.xlu0 %1644
        %1646 = vmax.xlane.f32.xlu0 %v1627
        %v1647 = vpop.xlane.xlu0 %1646
        %1648 = vmax.xlane.f32.xlu0 %v1628
        %v1649 = vpop.xlane.xlu0 %1648
        %1650 = vmax.xlane.f32.xlu0 %v1629
        %v1651 = vpop.xlane.xlu0 %1650
        %1652 = vmax.xlane.f32.xlu0 %v1630
        %v1653 = vpop.xlane.xlu0 %1652
        %1654 = vmax.xlane.f32.xlu0 %v1631
        %v1655 = vpop.xlane.xlu0 %1654
        %1656 = vmax.xlane.f32.xlu0 %v1632
        %v1657 = vpop.xlane.xlu0 %1656
        %1658 = vmax.xlane.f32.xlu0 %v1633
        %v1659 = vpop.xlane.xlu0 %1658
        %1660 = vmax.xlane.f32.xlu0 %v1634
        %v1661 = vpop.xlane.xlu0 %1660
        %1662 = vmax.xlane.f32.xlu0 %v1635
        %v1663 = vpop.xlane.xlu0 %1662
        %1664 = vmax.xlane.f32.xlu0 %v1636
        %v1665 = vpop.xlane.xlu0 %1664
        %1666 = vmax.xlane.f32.xlu0 %v1637
        %v1667 = vpop.xlane.xlu0 %1666
        %1668 = vmax.xlane.f32.xlu0 %v1638
        %v1669 = vpop.xlane.xlu0 %1668
        %1670 = vmax.xlane.f32.xlu0 %v1639
        %v1671 = vpop.xlane.xlu0 %1670
        %v1672 = vsub.f32 %v1624, %v1641
        %v1673 = vsub.f32 %v1625, %v1643
        %v1674 = vsub.f32 %v1626, %v1645
        %v1675 = vsub.f32 %v1627, %v1647
        %v1676 = vsub.f32 %v1628, %v1649
        %v1677 = vsub.f32 %v1629, %v1651
        %v1678 = vsub.f32 %v1630, %v1653
        %v1679 = vsub.f32 %v1631, %v1655
        %v1680 = vsub.f32 %v1632, %v1657
        %v1681 = vsub.f32 %v1633, %v1659
        %v1682 = vsub.f32 %v1634, %v1661
        %v1683 = vsub.f32 %v1635, %v1663
        %v1684 = vsub.f32 %v1636, %v1665
        %v1685 = vsub.f32 %v1637, %v1667
        %v1686 = vsub.f32 %v1638, %v1669
        %v1687 = vsub.f32 %v1639, %v1671
        %v1688 = vmul.f32 %v1672, 1.442695
        %v1689 = vpow.pop %v1688
        %v1690 = vmul.f32 %v1673, 1.442695
        %v1691 = vpow.pop %v1690
        %v1692 = vmul.f32 %v1674, 1.442695
        %v1693 = vpow.pop %v1692
        %v1694 = vmul.f32 %v1675, 1.442695
        %v1695 = vpow.pop %v1694
        %v1696 = vmul.f32 %v1676, 1.442695
        %v1697 = vpow.pop %v1696
        %v1698 = vmul.f32 %v1677, 1.442695
        %v1699 = vpow.pop %v1698
        %v1700 = vmul.f32 %v1678, 1.442695
        %v1701 = vpow.pop %v1700
        %v1702 = vmul.f32 %v1679, 1.442695
        %v1703 = vpow.pop %v1702
        %v1704 = vmul.f32 %v1680, 1.442695
        %v1705 = vpow.pop %v1704
        %v1706 = vmul.f32 %v1681, 1.442695
        %v1707 = vpow.pop %v1706
        %v1708 = vmul.f32 %v1682, 1.442695
        %v1709 = vpow.pop %v1708
        %v1710 = vmul.f32 %v1683, 1.442695
        %v1711 = vpow.pop %v1710
        %v1712 = vmul.f32 %v1684, 1.442695
        %v1713 = vpow.pop %v1712
        %v1714 = vmul.f32 %v1685, 1.442695
        %v1715 = vpow.pop %v1714
        %v1716 = vmul.f32 %v1686, 1.442695
        %v1717 = vpow.pop %v1716
        %v1718 = vmul.f32 %v1687, 1.442695
        %v1719 = vpow.pop %v1718
        %1720 = vadd.xlane.f32.xlu0 %v1689
        %v1721 = vpop.xlane.xlu0 %1720
        %1722 = vadd.xlane.f32.xlu0 %v1691
        %v1723 = vpop.xlane.xlu0 %1722
        %1724 = vadd.xlane.f32.xlu0 %v1693
        %v1725 = vpop.xlane.xlu0 %1724
        %1726 = vadd.xlane.f32.xlu0 %v1695
        %v1727 = vpop.xlane.xlu0 %1726
        %1728 = vadd.xlane.f32.xlu0 %v1697
        %v1729 = vpop.xlane.xlu0 %1728
        %1730 = vadd.xlane.f32.xlu0 %v1699
        %v1731 = vpop.xlane.xlu0 %1730
        %1732 = vadd.xlane.f32.xlu0 %v1701
        %v1733 = vpop.xlane.xlu0 %1732
        %1734 = vadd.xlane.f32.xlu0 %v1703
        %v1735 = vpop.xlane.xlu0 %1734
        %1736 = vadd.xlane.f32.xlu0 %v1705
        %v1737 = vpop.xlane.xlu0 %1736
        %1738 = vadd.xlane.f32.xlu0 %v1707
        %v1739 = vpop.xlane.xlu0 %1738
        %1740 = vadd.xlane.f32.xlu0 %v1709
        %v1741 = vpop.xlane.xlu0 %1740
        %1742 = vadd.xlane.f32.xlu0 %v1711
        %v1743 = vpop.xlane.xlu0 %1742
        %1744 = vadd.xlane.f32.xlu0 %v1713
        %v1745 = vpop.xlane.xlu0 %1744
        %1746 = vadd.xlane.f32.xlu0 %v1715
        %v1747 = vpop.xlane.xlu0 %1746
        %1748 = vadd.xlane.f32.xlu0 %v1717
        %v1749 = vpop.xlane.xlu0 %1748
        %1750 = vadd.xlane.f32.xlu0 %v1719
        %v1751 = vpop.xlane.xlu0 %1750
        %v1752 = vrcp.pop %v1721
        %v1753 = vmul.f32 %v1721, %v1752
        %v1754 = vsub.f32 1.0, %v1753
        %v1755 = vmul.f32 %v1752, %v1754
        %v1756 = vadd.f32 %v1752, %v1755
        %vm1757 = vweird.f32 %v1721
        %vm1758 = vweird.f32 %v1752
        %vm1759 = vmor %vm1757, %vm1758
        %v1760 = vsel %vm1759, %v1752, %v1756
        %v1761 = vand.u32 2147483647, %v1721
        %vm1762 = vcmp.eq.f32.partialorder %v1761, 8.507059e+37
        %v1763 = vand.u32 %v1721, 2147483648
        %v1764 = vor.u32 1.1754944e-38, %v1763
        %v1765 = vsel %vm1762, %v1764, %v1760
        %v1766 = vmul.f32 %v1689, %v1765
        %v1767 = vrcp.pop %v1723
        %v1768 = vmul.f32 %v1723, %v1767
        %v1769 = vsub.f32 1.0, %v1768
        %v1770 = vmul.f32 %v1767, %v1769
        %v1771 = vadd.f32 %v1767, %v1770
        %vm1772 = vweird.f32 %v1723
        %vm1773 = vweird.f32 %v1767
        %vm1774 = vmor %vm1772, %vm1773
        %v1775 = vsel %vm1774, %v1767, %v1771
        %v1776 = vand.u32 2147483647, %v1723
        %vm1777 = vcmp.eq.f32.partialorder %v1776, 8.507059e+37
        %v1778 = vand.u32 %v1723, 2147483648
        %v1779 = vor.u32 1.1754944e-38, %v1778
        %v1780 = vsel %vm1777, %v1779, %v1775
        %v1781 = vmul.f32 %v1691, %v1780
        %v1782 = vrcp.pop %v1725
        %v1783 = vmul.f32 %v1725, %v1782
        %v1784 = vsub.f32 1.0, %v1783
        %v1785 = vmul.f32 %v1782, %v1784
        %v1786 = vadd.f32 %v1782, %v1785
        %vm1787 = vweird.f32 %v1725
        %vm1788 = vweird.f32 %v1782
        %vm1789 = vmor %vm1787, %vm1788
        %v1790 = vsel %vm1789, %v1782, %v1786
        %v1791 = vand.u32 2147483647, %v1725
        %vm1792 = vcmp.eq.f32.partialorder %v1791, 8.507059e+37
        %v1793 = vand.u32 %v1725, 2147483648
        %v1794 = vor.u32 1.1754944e-38, %v1793
        %v1795 = vsel %vm1792, %v1794, %v1790
        %v1796 = vmul.f32 %v1693, %v1795
        %v1797 = vrcp.pop %v1727
        %v1798 = vmul.f32 %v1727, %v1797
        %v1799 = vsub.f32 1.0, %v1798
        %v1800 = vmul.f32 %v1797, %v1799
        %v1801 = vadd.f32 %v1797, %v1800
        %vm1802 = vweird.f32 %v1727
        %vm1803 = vweird.f32 %v1797
        %vm1804 = vmor %vm1802, %vm1803
        %v1805 = vsel %vm1804, %v1797, %v1801
        %v1806 = vand.u32 2147483647, %v1727
        %vm1807 = vcmp.eq.f32.partialorder %v1806, 8.507059e+37
        %v1808 = vand.u32 %v1727, 2147483648
        %v1809 = vor.u32 1.1754944e-38, %v1808
        %v1810 = vsel %vm1807, %v1809, %v1805
        %v1811 = vmul.f32 %v1695, %v1810
        %v1812 = vrcp.pop %v1729
        %v1813 = vmul.f32 %v1729, %v1812
        %v1814 = vsub.f32 1.0, %v1813
        %v1815 = vmul.f32 %v1812, %v1814
        %v1816 = vadd.f32 %v1812, %v1815
        %vm1817 = vweird.f32 %v1729
        %vm1818 = vweird.f32 %v1812
        %vm1819 = vmor %vm1817, %vm1818
        %v1820 = vsel %vm1819, %v1812, %v1816
        %v1821 = vand.u32 2147483647, %v1729
        %vm1822 = vcmp.eq.f32.partialorder %v1821, 8.507059e+37
        %v1823 = vand.u32 %v1729, 2147483648
        %v1824 = vor.u32 1.1754944e-38, %v1823
        %v1825 = vsel %vm1822, %v1824, %v1820
        %v1826 = vmul.f32 %v1697, %v1825
        %v1827 = vrcp.pop %v1731
        %v1828 = vmul.f32 %v1731, %v1827
        %v1829 = vsub.f32 1.0, %v1828
        %v1830 = vmul.f32 %v1827, %v1829
        %v1831 = vadd.f32 %v1827, %v1830
        %vm1832 = vweird.f32 %v1731
        %vm1833 = vweird.f32 %v1827
        %vm1834 = vmor %vm1832, %vm1833
        %v1835 = vsel %vm1834, %v1827, %v1831
        %v1836 = vand.u32 2147483647, %v1731
        %vm1837 = vcmp.eq.f32.partialorder %v1836, 8.507059e+37
        %v1838 = vand.u32 %v1731, 2147483648
        %v1839 = vor.u32 1.1754944e-38, %v1838
        %v1840 = vsel %vm1837, %v1839, %v1835
        %v1841 = vmul.f32 %v1699, %v1840
        %v1842 = vrcp.pop %v1733
        %v1843 = vmul.f32 %v1733, %v1842
        %v1844 = vsub.f32 1.0, %v1843
        %v1845 = vmul.f32 %v1842, %v1844
        %v1846 = vadd.f32 %v1842, %v1845
        %vm1847 = vweird.f32 %v1733
        %vm1848 = vweird.f32 %v1842
        %vm1849 = vmor %vm1847, %vm1848
        %v1850 = vsel %vm1849, %v1842, %v1846
        %v1851 = vand.u32 2147483647, %v1733
        %vm1852 = vcmp.eq.f32.partialorder %v1851, 8.507059e+37
        %v1853 = vand.u32 %v1733, 2147483648
        %v1854 = vor.u32 1.1754944e-38, %v1853
        %v1855 = vsel %vm1852, %v1854, %v1850
        %v1856 = vmul.f32 %v1701, %v1855
        %v1857 = vrcp.pop %v1735
        %v1858 = vmul.f32 %v1735, %v1857
        %v1859 = vsub.f32 1.0, %v1858
        %v1860 = vmul.f32 %v1857, %v1859
        %v1861 = vadd.f32 %v1857, %v1860
        %vm1862 = vweird.f32 %v1735
        %vm1863 = vweird.f32 %v1857
        %vm1864 = vmor %vm1862, %vm1863
        %v1865 = vsel %vm1864, %v1857, %v1861
        %v1866 = vand.u32 2147483647, %v1735
        %vm1867 = vcmp.eq.f32.partialorder %v1866, 8.507059e+37
        %v1868 = vand.u32 %v1735, 2147483648
        %v1869 = vor.u32 1.1754944e-38, %v1868
        %v1870 = vsel %vm1867, %v1869, %v1865
        %v1871 = vmul.f32 %v1703, %v1870
        %v1872 = vrcp.pop %v1737
        %v1873 = vmul.f32 %v1737, %v1872
        %v1874 = vsub.f32 1.0, %v1873
        %v1875 = vmul.f32 %v1872, %v1874
        %v1876 = vadd.f32 %v1872, %v1875
        %vm1877 = vweird.f32 %v1737
        %vm1878 = vweird.f32 %v1872
        %vm1879 = vmor %vm1877, %vm1878
        %v1880 = vsel %vm1879, %v1872, %v1876
        %v1881 = vand.u32 2147483647, %v1737
        %vm1882 = vcmp.eq.f32.partialorder %v1881, 8.507059e+37
        %v1883 = vand.u32 %v1737, 2147483648
        %v1884 = vor.u32 1.1754944e-38, %v1883
        %v1885 = vsel %vm1882, %v1884, %v1880
        %v1886 = vmul.f32 %v1705, %v1885
        %v1887 = vrcp.pop %v1739
        %v1888 = vmul.f32 %v1739, %v1887
        %v1889 = vsub.f32 1.0, %v1888
        %v1890 = vmul.f32 %v1887, %v1889
        %v1891 = vadd.f32 %v1887, %v1890
        %vm1892 = vweird.f32 %v1739
        %vm1893 = vweird.f32 %v1887
        %vm1894 = vmor %vm1892, %vm1893
        %v1895 = vsel %vm1894, %v1887, %v1891
        %v1896 = vand.u32 2147483647, %v1739
        %vm1897 = vcmp.eq.f32.partialorder %v1896, 8.507059e+37
        %v1898 = vand.u32 %v1739, 2147483648
        %v1899 = vor.u32 1.1754944e-38, %v1898
        %v1900 = vsel %vm1897, %v1899, %v1895
        %v1901 = vmul.f32 %v1707, %v1900
        %v1902 = vrcp.pop %v1741
        %v1903 = vmul.f32 %v1741, %v1902
        %v1904 = vsub.f32 1.0, %v1903
        %v1905 = vmul.f32 %v1902, %v1904
        %v1906 = vadd.f32 %v1902, %v1905
        %vm1907 = vweird.f32 %v1741
        %vm1908 = vweird.f32 %v1902
        %vm1909 = vmor %vm1907, %vm1908
        %v1910 = vsel %vm1909, %v1902, %v1906
        %v1911 = vand.u32 2147483647, %v1741
        %vm1912 = vcmp.eq.f32.partialorder %v1911, 8.507059e+37
        %v1913 = vand.u32 %v1741, 2147483648
        %v1914 = vor.u32 1.1754944e-38, %v1913
        %v1915 = vsel %vm1912, %v1914, %v1910
        %v1916 = vmul.f32 %v1709, %v1915
        %v1917 = vrcp.pop %v1743
        %v1918 = vmul.f32 %v1743, %v1917
        %v1919 = vsub.f32 1.0, %v1918
        %v1920 = vmul.f32 %v1917, %v1919
        %v1921 = vadd.f32 %v1917, %v1920
        %vm1922 = vweird.f32 %v1743
        %vm1923 = vweird.f32 %v1917
        %vm1924 = vmor %vm1922, %vm1923
        %v1925 = vsel %vm1924, %v1917, %v1921
        %v1926 = vand.u32 2147483647, %v1743
        %vm1927 = vcmp.eq.f32.partialorder %v1926, 8.507059e+37
        %v1928 = vand.u32 %v1743, 2147483648
        %v1929 = vor.u32 1.1754944e-38, %v1928
        %v1930 = vsel %vm1927, %v1929, %v1925
        %v1931 = vmul.f32 %v1711, %v1930
        %v1932 = vrcp.pop %v1745
        %v1933 = vmul.f32 %v1745, %v1932
        %v1934 = vsub.f32 1.0, %v1933
        %v1935 = vmul.f32 %v1932, %v1934
        %v1936 = vadd.f32 %v1932, %v1935
        %vm1937 = vweird.f32 %v1745
        %vm1938 = vweird.f32 %v1932
        %vm1939 = vmor %vm1937, %vm1938
        %v1940 = vsel %vm1939, %v1932, %v1936
        %v1941 = vand.u32 2147483647, %v1745
        %vm1942 = vcmp.eq.f32.partialorder %v1941, 8.507059e+37
        %v1943 = vand.u32 %v1745, 2147483648
        %v1944 = vor.u32 1.1754944e-38, %v1943
        %v1945 = vsel %vm1942, %v1944, %v1940
        %v1946 = vmul.f32 %v1713, %v1945
        %v1947 = vrcp.pop %v1747
        %v1948 = vmul.f32 %v1747, %v1947
        %v1949 = vsub.f32 1.0, %v1948
        %v1950 = vmul.f32 %v1947, %v1949
        %v1951 = vadd.f32 %v1947, %v1950
        %vm1952 = vweird.f32 %v1747
        %vm1953 = vweird.f32 %v1947
        %vm1954 = vmor %vm1952, %vm1953
        %v1955 = vsel %vm1954, %v1947, %v1951
        %v1956 = vand.u32 2147483647, %v1747
        %vm1957 = vcmp.eq.f32.partialorder %v1956, 8.507059e+37
        %v1958 = vand.u32 %v1747, 2147483648
        %v1959 = vor.u32 1.1754944e-38, %v1958
        %v1960 = vsel %vm1957, %v1959, %v1955
        %v1961 = vmul.f32 %v1715, %v1960
        %v1962 = vrcp.pop %v1749
        %v1963 = vmul.f32 %v1749, %v1962
        %v1964 = vsub.f32 1.0, %v1963
        %v1965 = vmul.f32 %v1962, %v1964
        %v1966 = vadd.f32 %v1962, %v1965
        %vm1967 = vweird.f32 %v1749
        %vm1968 = vweird.f32 %v1962
        %vm1969 = vmor %vm1967, %vm1968
        %v1970 = vsel %vm1969, %v1962, %v1966
        %v1971 = vand.u32 2147483647, %v1749
        %vm1972 = vcmp.eq.f32.partialorder %v1971, 8.507059e+37
        %v1973 = vand.u32 %v1749, 2147483648
        %v1974 = vor.u32 1.1754944e-38, %v1973
        %v1975 = vsel %vm1972, %v1974, %v1970
        %v1976 = vmul.f32 %v1717, %v1975
        %v1977 = vrcp.pop %v1751
        %v1978 = vmul.f32 %v1751, %v1977
        %v1979 = vsub.f32 1.0, %v1978
        %v1980 = vmul.f32 %v1977, %v1979
        %v1981 = vadd.f32 %v1977, %v1980
        %vm1982 = vweird.f32 %v1751
        %vm1983 = vweird.f32 %v1977
        %vm1984 = vmor %vm1982, %vm1983
        %v1985 = vsel %vm1984, %v1977, %v1981
        %v1986 = vand.u32 2147483647, %v1751
        %vm1987 = vcmp.eq.f32.partialorder %v1986, 8.507059e+37
        %v1988 = vand.u32 %v1751, 2147483648
        %v1989 = vor.u32 1.1754944e-38, %v1988
        %v1990 = vsel %vm1987, %v1989, %v1985
        %v1991 = vmul.f32 %v1719, %v1990
        %v1992 = vpack.c.bf16 %v1781, %v1766
        %v1993 = vpack.c.bf16 %v1811, %v1796
        %v1994 = vpack.c.bf16 %v1841, %v1826
        %v1995 = vpack.c.bf16 %v1871, %v1856
        %v1996 = vpack.c.bf16 %v1901, %v1886
        %v1997 = vpack.c.bf16 %v1931, %v1916
        %v1998 = vpack.c.bf16 %v1961, %v1946
        %v1999 = vpack.c.bf16 %v1991, %v1976
        %2000 = vmatpush.bf16.xpose.msra.mxu0 %v1999
        %2001 = vmatpush.bf16.xpose.msra.mxu0 %v1998
        %2002 = vmatpush.bf16.xpose.msra.mxu0 %v1997
        %2003 = vmatpush.bf16.xpose.msra.mxu0 %v1996
        %2004 = vmatpush.bf16.xpose.msra.mxu0 %v1995
        %2005 = vmatpush.bf16.xpose.msra.mxu0 %v1994
        %2006 = vmatpush.bf16.xpose.msra.mxu0 %v1993
        %2007 = vmatpush.bf16.xpose.msra.mxu0 %v1992
        %2008 = vmatmul.bf16.gmra.mxu0 %v1515
        %v2009 = vpop.f32.mrf.mxu0
        %v2010 = vadd.f32 0.0, %v2009
        %v2011 = vpop.f32.mrf.mxu0
        %2012 = vdwg.mxu0
        %2013 = vst [vmem:[#allocation2 + $0x8] sm:$0xff] %v2010
        %v2014 = vld [vmem:[%s505 + $0x10] sm:$0xff]
        %v2015 = vpack.c.bf16 %v2014, %v2014
        %v2016 = vld [vmem:[%s505 + $0x30] sm:$0xff]
        %v2017 = vpack.c.bf16 %v2016, %v2016
        %v2018 = vld [vmem:[%s505 + $0x50] sm:$0xff]
        %v2019 = vpack.c.bf16 %v2018, %v2018
        %2020 = vxpose.xlu0.c.b16.start [1/8] %v2015, 128
        %2021 = vxpose.xlu0.c.b16.cont [2/8] 0, 128
        %2022 = vxpose.xlu0.c.b16.cont [3/8] 0, 128
        %2023 = vxpose.xlu0.c.b16.cont [4/8] 0, 128
        %2024 = vxpose.xlu0.c.b16.cont [5/8] 0, 128
        %2025 = vxpose.xlu0.c.b16.cont [6/8] 0, 128
        %2026 = vxpose.xlu0.c.b16.cont [7/8] 0, 128
        %2027 = vxpose.xlu0.c.b16.end [8/8] 0, 128
        %v2028 = vpop.trf.xlu0
        %v2029 = vpop.trf.xlu0
        %v2030 = vpop.trf.xlu0
        %v2031 = vpop.trf.xlu0
        %v2032 = vpop.trf.xlu0
        %v2033 = vpop.trf.xlu0
        %v2034 = vpop.trf.xlu0
        %v2035 = vpop.trf.xlu0
        %v2037 = vsel %vm1026, %v2028, 0
        %v2040 = vsel %vm1026, %v2029, 0
        %v2043 = vsel %vm1026, %v2030, 0
        %v2046 = vsel %vm1026, %v2031, 0
        %v2049 = vsel %vm1026, %v2032, 0
        %v2052 = vsel %vm1026, %v2033, 0
        %v2055 = vsel %vm1026, %v2034, 0
        %v2058 = vsel %vm1026, %v2035, 0
        %v2061 = vsel %vm1051, %v2017, 0
        %2063 = vmatpush.bf16.msra.mxu0 0
        %2064 = vmatpush.bf16.msra.mxu0 0
        %2065 = vmatpush.bf16.msra.mxu0 0
        %2066 = vmatpush.bf16.msra.mxu0 0
        %2067 = vmatpush.bf16.msra.mxu0 0
        %2068 = vmatpush.bf16.msra.mxu0 0
        %2069 = vmatpush.bf16.msra.mxu0 0
        %2070 = vmatpush.bf16.msra.mxu0 %v2061
        %2071 = vmatmul.bf16.gmra.mxu0 %v2037
        %v2072 = vpop.f32.mrf.mxu0
        %v2073 = vadd.f32 0.0, %v2072
        %v2074 = vpop.f32.mrf.mxu0
        %v2075 = vadd.f32 0.0, %v2074
        %2076 = vmatmul.bf16.gmra.mxu0 %v2040
        %v2077 = vpop.f32.mrf.mxu0
        %v2078 = vadd.f32 0.0, %v2077
        %v2079 = vpop.f32.mrf.mxu0
        %v2080 = vadd.f32 0.0, %v2079
        %2081 = vmatmul.bf16.gmra.mxu0 %v2043
        %v2082 = vpop.f32.mrf.mxu0
        %v2083 = vadd.f32 0.0, %v2082
        %v2084 = vpop.f32.mrf.mxu0
        %v2085 = vadd.f32 0.0, %v2084
        %2086 = vmatmul.bf16.gmra.mxu0 %v2046
        %v2087 = vpop.f32.mrf.mxu0
        %v2088 = vadd.f32 0.0, %v2087
        %v2089 = vpop.f32.mrf.mxu0
        %v2090 = vadd.f32 0.0, %v2089
        %2091 = vmatmul.bf16.gmra.mxu0 %v2049
        %v2092 = vpop.f32.mrf.mxu0
        %v2093 = vadd.f32 0.0, %v2092
        %v2094 = vpop.f32.mrf.mxu0
        %v2095 = vadd.f32 0.0, %v2094
        %2096 = vmatmul.bf16.gmra.mxu0 %v2052
        %v2097 = vpop.f32.mrf.mxu0
        %v2098 = vadd.f32 0.0, %v2097
        %v2099 = vpop.f32.mrf.mxu0
        %v2100 = vadd.f32 0.0, %v2099
        %2101 = vmatmul.bf16.gmra.mxu0 %v2055
        %v2102 = vpop.f32.mrf.mxu0
        %v2103 = vadd.f32 0.0, %v2102
        %v2104 = vpop.f32.mrf.mxu0
        %v2105 = vadd.f32 0.0, %v2104
        %2106 = vmatmul.bf16.gmra.mxu0 %v2058
        %v2107 = vpop.f32.mrf.mxu0
        %v2108 = vadd.f32 0.0, %v2107
        %v2109 = vpop.f32.mrf.mxu0
        %v2110 = vadd.f32 0.0, %v2109
        %2111 = vdwg.mxu0
        %v2112 = vmul.f32 %v2073, 0.35355338
        %v2113 = vmul.f32 %v2075, 0.35355338
        %v2114 = vmul.f32 %v2078, 0.35355338
        %v2115 = vmul.f32 %v2080, 0.35355338
        %v2116 = vmul.f32 %v2083, 0.35355338
        %v2117 = vmul.f32 %v2085, 0.35355338
        %v2118 = vmul.f32 %v2088, 0.35355338
        %v2119 = vmul.f32 %v2090, 0.35355338
        %v2120 = vmul.f32 %v2093, 0.35355338
        %v2121 = vmul.f32 %v2095, 0.35355338
        %v2122 = vmul.f32 %v2098, 0.35355338
        %v2123 = vmul.f32 %v2100, 0.35355338
        %v2124 = vmul.f32 %v2103, 0.35355338
        %v2125 = vmul.f32 %v2105, 0.35355338
        %v2126 = vmul.f32 %v2108, 0.35355338
        %v2127 = vmul.f32 %v2110, 0.35355338
        %v2128 = vsel %vm988, %v2112, -1e+09
        %v2129 = vsel %vm989, %v2113, -1e+09
        %v2130 = vsel %vm990, %v2114, -1e+09
        %v2131 = vsel %vm991, %v2115, -1e+09
        %v2132 = vsel %vm992, %v2116, -1e+09
        %v2133 = vsel %vm993, %v2117, -1e+09
        %v2134 = vsel %vm994, %v2118, -1e+09
        %v2135 = vsel %vm995, %v2119, -1e+09
        %v2136 = vsel %vm996, %v2120, -1e+09
        %v2137 = vsel %vm997, %v2121, -1e+09
        %v2138 = vsel %vm998, %v2122, -1e+09
        %v2139 = vsel %vm999, %v2123, -1e+09
        %v2140 = vsel %vm1000, %v2124, -1e+09
        %v2141 = vsel %vm1001, %v2125, -1e+09
        %v2142 = vsel %vm1002, %v2126, -1e+09
        %v2143 = vsel %vm1003, %v2127, -1e+09
        %2144 = vmax.xlane.f32.xlu0 %v2128
        %v2145 = vpop.xlane.xlu0 %2144
        %2146 = vmax.xlane.f32.xlu0 %v2129
        %v2147 = vpop.xlane.xlu0 %2146
        %2148 = vmax.xlane.f32.xlu0 %v2130
        %v2149 = vpop.xlane.xlu0 %2148
        %2150 = vmax.xlane.f32.xlu0 %v2131
        %v2151 = vpop.xlane.xlu0 %2150
        %2152 = vmax.xlane.f32.xlu0 %v2132
        %v2153 = vpop.xlane.xlu0 %2152
        %2154 = vmax.xlane.f32.xlu0 %v2133
        %v2155 = vpop.xlane.xlu0 %2154
        %2156 = vmax.xlane.f32.xlu0 %v2134
        %v2157 = vpop.xlane.xlu0 %2156
        %2158 = vmax.xlane.f32.xlu0 %v2135
        %v2159 = vpop.xlane.xlu0 %2158
        %2160 = vmax.xlane.f32.xlu0 %v2136
        %v2161 = vpop.xlane.xlu0 %2160
        %2162 = vmax.xlane.f32.xlu0 %v2137
        %v2163 = vpop.xlane.xlu0 %2162
        %2164 = vmax.xlane.f32.xlu0 %v2138
        %v2165 = vpop.xlane.xlu0 %2164
        %2166 = vmax.xlane.f32.xlu0 %v2139
        %v2167 = vpop.xlane.xlu0 %2166
        %2168 = vmax.xlane.f32.xlu0 %v2140
        %v2169 = vpop.xlane.xlu0 %2168
        %2170 = vmax.xlane.f32.xlu0 %v2141
        %v2171 = vpop.xlane.xlu0 %2170
        %2172 = vmax.xlane.f32.xlu0 %v2142
        %v2173 = vpop.xlane.xlu0 %2172
        %2174 = vmax.xlane.f32.xlu0 %v2143
        %v2175 = vpop.xlane.xlu0 %2174
        %v2176 = vsub.f32 %v2128, %v2145
        %v2177 = vsub.f32 %v2129, %v2147
        %v2178 = vsub.f32 %v2130, %v2149
        %v2179 = vsub.f32 %v2131, %v2151
        %v2180 = vsub.f32 %v2132, %v2153
        %v2181 = vsub.f32 %v2133, %v2155
        %v2182 = vsub.f32 %v2134, %v2157
        %v2183 = vsub.f32 %v2135, %v2159
        %v2184 = vsub.f32 %v2136, %v2161
        %v2185 = vsub.f32 %v2137, %v2163
        %v2186 = vsub.f32 %v2138, %v2165
        %v2187 = vsub.f32 %v2139, %v2167
        %v2188 = vsub.f32 %v2140, %v2169
        %v2189 = vsub.f32 %v2141, %v2171
        %v2190 = vsub.f32 %v2142, %v2173
        %v2191 = vsub.f32 %v2143, %v2175
        %v2192 = vmul.f32 %v2176, 1.442695
        %v2193 = vpow.pop %v2192
        %v2194 = vmul.f32 %v2177, 1.442695
        %v2195 = vpow.pop %v2194
        %v2196 = vmul.f32 %v2178, 1.442695
        %v2197 = vpow.pop %v2196
        %v2198 = vmul.f32 %v2179, 1.442695
        %v2199 = vpow.pop %v2198
        %v2200 = vmul.f32 %v2180, 1.442695
        %v2201 = vpow.pop %v2200
        %v2202 = vmul.f32 %v2181, 1.442695
        %v2203 = vpow.pop %v2202
        %v2204 = vmul.f32 %v2182, 1.442695
        %v2205 = vpow.pop %v2204
        %v2206 = vmul.f32 %v2183, 1.442695
        %v2207 = vpow.pop %v2206
        %v2208 = vmul.f32 %v2184, 1.442695
        %v2209 = vpow.pop %v2208
        %v2210 = vmul.f32 %v2185, 1.442695
        %v2211 = vpow.pop %v2210
        %v2212 = vmul.f32 %v2186, 1.442695
        %v2213 = vpow.pop %v2212
        %v2214 = vmul.f32 %v2187, 1.442695
        %v2215 = vpow.pop %v2214
        %v2216 = vmul.f32 %v2188, 1.442695
        %v2217 = vpow.pop %v2216
        %v2218 = vmul.f32 %v2189, 1.442695
        %v2219 = vpow.pop %v2218
        %v2220 = vmul.f32 %v2190, 1.442695
        %v2221 = vpow.pop %v2220
        %v2222 = vmul.f32 %v2191, 1.442695
        %v2223 = vpow.pop %v2222
        %2224 = vadd.xlane.f32.xlu0 %v2193
        %v2225 = vpop.xlane.xlu0 %2224
        %2226 = vadd.xlane.f32.xlu0 %v2195
        %v2227 = vpop.xlane.xlu0 %2226
        %2228 = vadd.xlane.f32.xlu0 %v2197
        %v2229 = vpop.xlane.xlu0 %2228
        %2230 = vadd.xlane.f32.xlu0 %v2199
        %v2231 = vpop.xlane.xlu0 %2230
        %2232 = vadd.xlane.f32.xlu0 %v2201
        %v2233 = vpop.xlane.xlu0 %2232
        %2234 = vadd.xlane.f32.xlu0 %v2203
        %v2235 = vpop.xlane.xlu0 %2234
        %2236 = vadd.xlane.f32.xlu0 %v2205
        %v2237 = vpop.xlane.xlu0 %2236
        %2238 = vadd.xlane.f32.xlu0 %v2207
        %v2239 = vpop.xlane.xlu0 %2238
        %2240 = vadd.xlane.f32.xlu0 %v2209
        %v2241 = vpop.xlane.xlu0 %2240
        %2242 = vadd.xlane.f32.xlu0 %v2211
        %v2243 = vpop.xlane.xlu0 %2242
        %2244 = vadd.xlane.f32.xlu0 %v2213
        %v2245 = vpop.xlane.xlu0 %2244
        %2246 = vadd.xlane.f32.xlu0 %v2215
        %v2247 = vpop.xlane.xlu0 %2246
        %2248 = vadd.xlane.f32.xlu0 %v2217
        %v2249 = vpop.xlane.xlu0 %2248
        %2250 = vadd.xlane.f32.xlu0 %v2219
        %v2251 = vpop.xlane.xlu0 %2250
        %2252 = vadd.xlane.f32.xlu0 %v2221
        %v2253 = vpop.xlane.xlu0 %2252
        %2254 = vadd.xlane.f32.xlu0 %v2223
        %v2255 = vpop.xlane.xlu0 %2254
        %v2256 = vrcp.pop %v2225
        %v2257 = vmul.f32 %v2225, %v2256
        %v2258 = vsub.f32 1.0, %v2257
        %v2259 = vmul.f32 %v2256, %v2258
        %v2260 = vadd.f32 %v2256, %v2259
        %vm2261 = vweird.f32 %v2225
        %vm2262 = vweird.f32 %v2256
        %vm2263 = vmor %vm2261, %vm2262
        %v2264 = vsel %vm2263, %v2256, %v2260
        %v2265 = vand.u32 2147483647, %v2225
        %vm2266 = vcmp.eq.f32.partialorder %v2265, 8.507059e+37
        %v2267 = vand.u32 %v2225, 2147483648
        %v2268 = vor.u32 1.1754944e-38, %v2267
        %v2269 = vsel %vm2266, %v2268, %v2264
        %v2270 = vmul.f32 %v2193, %v2269
        %v2271 = vrcp.pop %v2227
        %v2272 = vmul.f32 %v2227, %v2271
        %v2273 = vsub.f32 1.0, %v2272
        %v2274 = vmul.f32 %v2271, %v2273
        %v2275 = vadd.f32 %v2271, %v2274
        %vm2276 = vweird.f32 %v2227
        %vm2277 = vweird.f32 %v2271
        %vm2278 = vmor %vm2276, %vm2277
        %v2279 = vsel %vm2278, %v2271, %v2275
        %v2280 = vand.u32 2147483647, %v2227
        %vm2281 = vcmp.eq.f32.partialorder %v2280, 8.507059e+37
        %v2282 = vand.u32 %v2227, 2147483648
        %v2283 = vor.u32 1.1754944e-38, %v2282
        %v2284 = vsel %vm2281, %v2283, %v2279
        %v2285 = vmul.f32 %v2195, %v2284
        %v2286 = vrcp.pop %v2229
        %v2287 = vmul.f32 %v2229, %v2286
        %v2288 = vsub.f32 1.0, %v2287
        %v2289 = vmul.f32 %v2286, %v2288
        %v2290 = vadd.f32 %v2286, %v2289
        %vm2291 = vweird.f32 %v2229
        %vm2292 = vweird.f32 %v2286
        %vm2293 = vmor %vm2291, %vm2292
        %v2294 = vsel %vm2293, %v2286, %v2290
        %v2295 = vand.u32 2147483647, %v2229
        %vm2296 = vcmp.eq.f32.partialorder %v2295, 8.507059e+37
        %v2297 = vand.u32 %v2229, 2147483648
        %v2298 = vor.u32 1.1754944e-38, %v2297
        %v2299 = vsel %vm2296, %v2298, %v2294
        %v2300 = vmul.f32 %v2197, %v2299
        %v2301 = vrcp.pop %v2231
        %v2302 = vmul.f32 %v2231, %v2301
        %v2303 = vsub.f32 1.0, %v2302
        %v2304 = vmul.f32 %v2301, %v2303
        %v2305 = vadd.f32 %v2301, %v2304
        %vm2306 = vweird.f32 %v2231
        %vm2307 = vweird.f32 %v2301
        %vm2308 = vmor %vm2306, %vm2307
        %v2309 = vsel %vm2308, %v2301, %v2305
        %v2310 = vand.u32 2147483647, %v2231
        %vm2311 = vcmp.eq.f32.partialorder %v2310, 8.507059e+37
        %v2312 = vand.u32 %v2231, 2147483648
        %v2313 = vor.u32 1.1754944e-38, %v2312
        %v2314 = vsel %vm2311, %v2313, %v2309
        %v2315 = vmul.f32 %v2199, %v2314
        %v2316 = vrcp.pop %v2233
        %v2317 = vmul.f32 %v2233, %v2316
        %v2318 = vsub.f32 1.0, %v2317
        %v2319 = vmul.f32 %v2316, %v2318
        %v2320 = vadd.f32 %v2316, %v2319
        %vm2321 = vweird.f32 %v2233
        %vm2322 = vweird.f32 %v2316
        %vm2323 = vmor %vm2321, %vm2322
        %v2324 = vsel %vm2323, %v2316, %v2320
        %v2325 = vand.u32 2147483647, %v2233
        %vm2326 = vcmp.eq.f32.partialorder %v2325, 8.507059e+37
        %v2327 = vand.u32 %v2233, 2147483648
        %v2328 = vor.u32 1.1754944e-38, %v2327
        %v2329 = vsel %vm2326, %v2328, %v2324
        %v2330 = vmul.f32 %v2201, %v2329
        %v2331 = vrcp.pop %v2235
        %v2332 = vmul.f32 %v2235, %v2331
        %v2333 = vsub.f32 1.0, %v2332
        %v2334 = vmul.f32 %v2331, %v2333
        %v2335 = vadd.f32 %v2331, %v2334
        %vm2336 = vweird.f32 %v2235
        %vm2337 = vweird.f32 %v2331
        %vm2338 = vmor %vm2336, %vm2337
        %v2339 = vsel %vm2338, %v2331, %v2335
        %v2340 = vand.u32 2147483647, %v2235
        %vm2341 = vcmp.eq.f32.partialorder %v2340, 8.507059e+37
        %v2342 = vand.u32 %v2235, 2147483648
        %v2343 = vor.u32 1.1754944e-38, %v2342
        %v2344 = vsel %vm2341, %v2343, %v2339
        %v2345 = vmul.f32 %v2203, %v2344
        %v2346 = vrcp.pop %v2237
        %v2347 = vmul.f32 %v2237, %v2346
        %v2348 = vsub.f32 1.0, %v2347
        %v2349 = vmul.f32 %v2346, %v2348
        %v2350 = vadd.f32 %v2346, %v2349
        %vm2351 = vweird.f32 %v2237
        %vm2352 = vweird.f32 %v2346
        %vm2353 = vmor %vm2351, %vm2352
        %v2354 = vsel %vm2353, %v2346, %v2350
        %v2355 = vand.u32 2147483647, %v2237
        %vm2356 = vcmp.eq.f32.partialorder %v2355, 8.507059e+37
        %v2357 = vand.u32 %v2237, 2147483648
        %v2358 = vor.u32 1.1754944e-38, %v2357
        %v2359 = vsel %vm2356, %v2358, %v2354
        %v2360 = vmul.f32 %v2205, %v2359
        %v2361 = vrcp.pop %v2239
        %v2362 = vmul.f32 %v2239, %v2361
        %v2363 = vsub.f32 1.0, %v2362
        %v2364 = vmul.f32 %v2361, %v2363
        %v2365 = vadd.f32 %v2361, %v2364
        %vm2366 = vweird.f32 %v2239
        %vm2367 = vweird.f32 %v2361
        %vm2368 = vmor %vm2366, %vm2367
        %v2369 = vsel %vm2368, %v2361, %v2365
        %v2370 = vand.u32 2147483647, %v2239
        %vm2371 = vcmp.eq.f32.partialorder %v2370, 8.507059e+37
        %v2372 = vand.u32 %v2239, 2147483648
        %v2373 = vor.u32 1.1754944e-38, %v2372
        %v2374 = vsel %vm2371, %v2373, %v2369
        %v2375 = vmul.f32 %v2207, %v2374
        %v2376 = vrcp.pop %v2241
        %v2377 = vmul.f32 %v2241, %v2376
        %v2378 = vsub.f32 1.0, %v2377
        %v2379 = vmul.f32 %v2376, %v2378
        %v2380 = vadd.f32 %v2376, %v2379
        %vm2381 = vweird.f32 %v2241
        %vm2382 = vweird.f32 %v2376
        %vm2383 = vmor %vm2381, %vm2382
        %v2384 = vsel %vm2383, %v2376, %v2380
        %v2385 = vand.u32 2147483647, %v2241
        %vm2386 = vcmp.eq.f32.partialorder %v2385, 8.507059e+37
        %v2387 = vand.u32 %v2241, 2147483648
        %v2388 = vor.u32 1.1754944e-38, %v2387
        %v2389 = vsel %vm2386, %v2388, %v2384
        %v2390 = vmul.f32 %v2209, %v2389
        %v2391 = vrcp.pop %v2243
        %v2392 = vmul.f32 %v2243, %v2391
        %v2393 = vsub.f32 1.0, %v2392
        %v2394 = vmul.f32 %v2391, %v2393
        %v2395 = vadd.f32 %v2391, %v2394
        %vm2396 = vweird.f32 %v2243
        %vm2397 = vweird.f32 %v2391
        %vm2398 = vmor %vm2396, %vm2397
        %v2399 = vsel %vm2398, %v2391, %v2395
        %v2400 = vand.u32 2147483647, %v2243
        %vm2401 = vcmp.eq.f32.partialorder %v2400, 8.507059e+37
        %v2402 = vand.u32 %v2243, 2147483648
        %v2403 = vor.u32 1.1754944e-38, %v2402
        %v2404 = vsel %vm2401, %v2403, %v2399
        %v2405 = vmul.f32 %v2211, %v2404
        %v2406 = vrcp.pop %v2245
        %v2407 = vmul.f32 %v2245, %v2406
        %v2408 = vsub.f32 1.0, %v2407
        %v2409 = vmul.f32 %v2406, %v2408
        %v2410 = vadd.f32 %v2406, %v2409
        %vm2411 = vweird.f32 %v2245
        %vm2412 = vweird.f32 %v2406
        %vm2413 = vmor %vm2411, %vm2412
        %v2414 = vsel %vm2413, %v2406, %v2410
        %v2415 = vand.u32 2147483647, %v2245
        %vm2416 = vcmp.eq.f32.partialorder %v2415, 8.507059e+37
        %v2417 = vand.u32 %v2245, 2147483648
        %v2418 = vor.u32 1.1754944e-38, %v2417
        %v2419 = vsel %vm2416, %v2418, %v2414
        %v2420 = vmul.f32 %v2213, %v2419
        %v2421 = vrcp.pop %v2247
        %v2422 = vmul.f32 %v2247, %v2421
        %v2423 = vsub.f32 1.0, %v2422
        %v2424 = vmul.f32 %v2421, %v2423
        %v2425 = vadd.f32 %v2421, %v2424
        %vm2426 = vweird.f32 %v2247
        %vm2427 = vweird.f32 %v2421
        %vm2428 = vmor %vm2426, %vm2427
        %v2429 = vsel %vm2428, %v2421, %v2425
        %v2430 = vand.u32 2147483647, %v2247
        %vm2431 = vcmp.eq.f32.partialorder %v2430, 8.507059e+37
        %v2432 = vand.u32 %v2247, 2147483648
        %v2433 = vor.u32 1.1754944e-38, %v2432
        %v2434 = vsel %vm2431, %v2433, %v2429
        %v2435 = vmul.f32 %v2215, %v2434
        %v2436 = vrcp.pop %v2249
        %v2437 = vmul.f32 %v2249, %v2436
        %v2438 = vsub.f32 1.0, %v2437
        %v2439 = vmul.f32 %v2436, %v2438
        %v2440 = vadd.f32 %v2436, %v2439
        %vm2441 = vweird.f32 %v2249
        %vm2442 = vweird.f32 %v2436
        %vm2443 = vmor %vm2441, %vm2442
        %v2444 = vsel %vm2443, %v2436, %v2440
        %v2445 = vand.u32 2147483647, %v2249
        %vm2446 = vcmp.eq.f32.partialorder %v2445, 8.507059e+37
        %v2447 = vand.u32 %v2249, 2147483648
        %v2448 = vor.u32 1.1754944e-38, %v2447
        %v2449 = vsel %vm2446, %v2448, %v2444
        %v2450 = vmul.f32 %v2217, %v2449
        %v2451 = vrcp.pop %v2251
        %v2452 = vmul.f32 %v2251, %v2451
        %v2453 = vsub.f32 1.0, %v2452
        %v2454 = vmul.f32 %v2451, %v2453
        %v2455 = vadd.f32 %v2451, %v2454
        %vm2456 = vweird.f32 %v2251
        %vm2457 = vweird.f32 %v2451
        %vm2458 = vmor %vm2456, %vm2457
        %v2459 = vsel %vm2458, %v2451, %v2455
        %v2460 = vand.u32 2147483647, %v2251
        %vm2461 = vcmp.eq.f32.partialorder %v2460, 8.507059e+37
        %v2462 = vand.u32 %v2251, 2147483648
        %v2463 = vor.u32 1.1754944e-38, %v2462
        %v2464 = vsel %vm2461, %v2463, %v2459
        %v2465 = vmul.f32 %v2219, %v2464
        %v2466 = vrcp.pop %v2253
        %v2467 = vmul.f32 %v2253, %v2466
        %v2468 = vsub.f32 1.0, %v2467
        %v2469 = vmul.f32 %v2466, %v2468
        %v2470 = vadd.f32 %v2466, %v2469
        %vm2471 = vweird.f32 %v2253
        %vm2472 = vweird.f32 %v2466
        %vm2473 = vmor %vm2471, %vm2472
        %v2474 = vsel %vm2473, %v2466, %v2470
        %v2475 = vand.u32 2147483647, %v2253
        %vm2476 = vcmp.eq.f32.partialorder %v2475, 8.507059e+37
        %v2477 = vand.u32 %v2253, 2147483648
        %v2478 = vor.u32 1.1754944e-38, %v2477
        %v2479 = vsel %vm2476, %v2478, %v2474
        %v2480 = vmul.f32 %v2221, %v2479
        %v2481 = vrcp.pop %v2255
        %v2482 = vmul.f32 %v2255, %v2481
        %v2483 = vsub.f32 1.0, %v2482
        %v2484 = vmul.f32 %v2481, %v2483
        %v2485 = vadd.f32 %v2481, %v2484
        %vm2486 = vweird.f32 %v2255
        %vm2487 = vweird.f32 %v2481
        %vm2488 = vmor %vm2486, %vm2487
        %v2489 = vsel %vm2488, %v2481, %v2485
        %v2490 = vand.u32 2147483647, %v2255
        %vm2491 = vcmp.eq.f32.partialorder %v2490, 8.507059e+37
        %v2492 = vand.u32 %v2255, 2147483648
        %v2493 = vor.u32 1.1754944e-38, %v2492
        %v2494 = vsel %vm2491, %v2493, %v2489
        %v2495 = vmul.f32 %v2223, %v2494
        %v2496 = vpack.c.bf16 %v2285, %v2270
        %v2497 = vpack.c.bf16 %v2315, %v2300
        %v2498 = vpack.c.bf16 %v2345, %v2330
        %v2499 = vpack.c.bf16 %v2375, %v2360
        %v2500 = vpack.c.bf16 %v2405, %v2390
        %v2501 = vpack.c.bf16 %v2435, %v2420
        %v2502 = vpack.c.bf16 %v2465, %v2450
        %v2503 = vpack.c.bf16 %v2495, %v2480
        %2504 = vmatpush.bf16.xpose.msra.mxu0 %v2503
        %2505 = vmatpush.bf16.xpose.msra.mxu0 %v2502
        %2506 = vmatpush.bf16.xpose.msra.mxu0 %v2501
        %2507 = vmatpush.bf16.xpose.msra.mxu0 %v2500
        %2508 = vmatpush.bf16.xpose.msra.mxu0 %v2499
        %2509 = vmatpush.bf16.xpose.msra.mxu0 %v2498
        %2510 = vmatpush.bf16.xpose.msra.mxu0 %v2497
        %2511 = vmatpush.bf16.xpose.msra.mxu0 %v2496
        %2512 = vmatmul.bf16.gmra.mxu0 %v2019
        %v2513 = vpop.f32.mrf.mxu0
        %v2514 = vadd.f32 0.0, %v2513
        %v2515 = vpop.f32.mrf.mxu0
        %2516 = vdwg.mxu0
        %2517 = vst [vmem:[#allocation2 + $0x10] sm:$0xff] %v2514
        %v2518 = vld [vmem:[%s505 + $0x18] sm:$0xff]
        %v2519 = vpack.c.bf16 %v2518, %v2518
        %v2520 = vld [vmem:[%s505 + $0x38] sm:$0xff]
        %v2521 = vpack.c.bf16 %v2520, %v2520
        %v2522 = vld [vmem:[%s505 + $0x58] sm:$0xff]
        %v2523 = vpack.c.bf16 %v2522, %v2522
        %2524 = vxpose.xlu0.c.b16.start [1/8] %v2519, 128
        %2525 = vxpose.xlu0.c.b16.cont [2/8] 0, 128
        %2526 = vxpose.xlu0.c.b16.cont [3/8] 0, 128
        %2527 = vxpose.xlu0.c.b16.cont [4/8] 0, 128
        %2528 = vxpose.xlu0.c.b16.cont [5/8] 0, 128
        %2529 = vxpose.xlu0.c.b16.cont [6/8] 0, 128
        %2530 = vxpose.xlu0.c.b16.cont [7/8] 0, 128
        %2531 = vxpose.xlu0.c.b16.end [8/8] 0, 128
        %v2532 = vpop.trf.xlu0
        %v2533 = vpop.trf.xlu0
        %v2534 = vpop.trf.xlu0
        %v2535 = vpop.trf.xlu0
        %v2536 = vpop.trf.xlu0
        %v2537 = vpop.trf.xlu0
        %v2538 = vpop.trf.xlu0
        %v2539 = vpop.trf.xlu0
        %v2541 = vsel %vm1026, %v2532, 0
        %v2544 = vsel %vm1026, %v2533, 0
        %v2547 = vsel %vm1026, %v2534, 0
        %v2550 = vsel %vm1026, %v2535, 0
        %v2553 = vsel %vm1026, %v2536, 0
        %v2556 = vsel %vm1026, %v2537, 0
        %v2559 = vsel %vm1026, %v2538, 0
        %v2562 = vsel %vm1026, %v2539, 0
        %v2565 = vsel %vm1051, %v2521, 0
        %2567 = vmatpush.bf16.msra.mxu0 0
        %2568 = vmatpush.bf16.msra.mxu0 0
        %2569 = vmatpush.bf16.msra.mxu0 0
        %2570 = vmatpush.bf16.msra.mxu0 0
        %2571 = vmatpush.bf16.msra.mxu0 0
        %2572 = vmatpush.bf16.msra.mxu0 0
        %2573 = vmatpush.bf16.msra.mxu0 0
        %2574 = vmatpush.bf16.msra.mxu0 %v2565
        %2575 = vmatmul.bf16.gmra.mxu0 %v2541
        %v2576 = vpop.f32.mrf.mxu0
        %v2577 = vadd.f32 0.0, %v2576
        %v2578 = vpop.f32.mrf.mxu0
        %v2579 = vadd.f32 0.0, %v2578
        %2580 = vmatmul.bf16.gmra.mxu0 %v2544
        %v2581 = vpop.f32.mrf.mxu0
        %v2582 = vadd.f32 0.0, %v2581
        %v2583 = vpop.f32.mrf.mxu0
        %v2584 = vadd.f32 0.0, %v2583
        %2585 = vmatmul.bf16.gmra.mxu0 %v2547
        %v2586 = vpop.f32.mrf.mxu0
        %v2587 = vadd.f32 0.0, %v2586
        %v2588 = vpop.f32.mrf.mxu0
        %v2589 = vadd.f32 0.0, %v2588
        %2590 = vmatmul.bf16.gmra.mxu0 %v2550
        %v2591 = vpop.f32.mrf.mxu0
        %v2592 = vadd.f32 0.0, %v2591
        %v2593 = vpop.f32.mrf.mxu0
        %v2594 = vadd.f32 0.0, %v2593
        %2595 = vmatmul.bf16.gmra.mxu0 %v2553
        %v2596 = vpop.f32.mrf.mxu0
        %v2597 = vadd.f32 0.0, %v2596
        %v2598 = vpop.f32.mrf.mxu0
        %v2599 = vadd.f32 0.0, %v2598
        %2600 = vmatmul.bf16.gmra.mxu0 %v2556
        %v2601 = vpop.f32.mrf.mxu0
        %v2602 = vadd.f32 0.0, %v2601
        %v2603 = vpop.f32.mrf.mxu0
        %v2604 = vadd.f32 0.0, %v2603
        %2605 = vmatmul.bf16.gmra.mxu0 %v2559
        %v2606 = vpop.f32.mrf.mxu0
        %v2607 = vadd.f32 0.0, %v2606
        %v2608 = vpop.f32.mrf.mxu0
        %v2609 = vadd.f32 0.0, %v2608
        %2610 = vmatmul.bf16.gmra.mxu0 %v2562
        %v2611 = vpop.f32.mrf.mxu0
        %v2612 = vadd.f32 0.0, %v2611
        %v2613 = vpop.f32.mrf.mxu0
        %v2614 = vadd.f32 0.0, %v2613
        %2615 = vdwg.mxu0
        %v2616 = vmul.f32 %v2577, 0.35355338
        %v2617 = vmul.f32 %v2579, 0.35355338
        %v2618 = vmul.f32 %v2582, 0.35355338
        %v2619 = vmul.f32 %v2584, 0.35355338
        %v2620 = vmul.f32 %v2587, 0.35355338
        %v2621 = vmul.f32 %v2589, 0.35355338
        %v2622 = vmul.f32 %v2592, 0.35355338
        %v2623 = vmul.f32 %v2594, 0.35355338
        %v2624 = vmul.f32 %v2597, 0.35355338
        %v2625 = vmul.f32 %v2599, 0.35355338
        %v2626 = vmul.f32 %v2602, 0.35355338
        %v2627 = vmul.f32 %v2604, 0.35355338
        %v2628 = vmul.f32 %v2607, 0.35355338
        %v2629 = vmul.f32 %v2609, 0.35355338
        %v2630 = vmul.f32 %v2612, 0.35355338
        %v2631 = vmul.f32 %v2614, 0.35355338
        %v2632 = vsel %vm988, %v2616, -1e+09
        %v2633 = vsel %vm989, %v2617, -1e+09
        %v2634 = vsel %vm990, %v2618, -1e+09
        %v2635 = vsel %vm991, %v2619, -1e+09
        %v2636 = vsel %vm992, %v2620, -1e+09
        %v2637 = vsel %vm993, %v2621, -1e+09
        %v2638 = vsel %vm994, %v2622, -1e+09
        %v2639 = vsel %vm995, %v2623, -1e+09
        %v2640 = vsel %vm996, %v2624, -1e+09
        %v2641 = vsel %vm997, %v2625, -1e+09
        %v2642 = vsel %vm998, %v2626, -1e+09
        %v2643 = vsel %vm999, %v2627, -1e+09
        %v2644 = vsel %vm1000, %v2628, -1e+09
        %v2645 = vsel %vm1001, %v2629, -1e+09
        %v2646 = vsel %vm1002, %v2630, -1e+09
        %v2647 = vsel %vm1003, %v2631, -1e+09
        %2648 = vmax.xlane.f32.xlu0 %v2632
        %v2649 = vpop.xlane.xlu0 %2648
        %2650 = vmax.xlane.f32.xlu0 %v2633
        %v2651 = vpop.xlane.xlu0 %2650
        %2652 = vmax.xlane.f32.xlu0 %v2634
        %v2653 = vpop.xlane.xlu0 %2652
        %2654 = vmax.xlane.f32.xlu0 %v2635
        %v2655 = vpop.xlane.xlu0 %2654
        %2656 = vmax.xlane.f32.xlu0 %v2636
        %v2657 = vpop.xlane.xlu0 %2656
        %2658 = vmax.xlane.f32.xlu0 %v2637
        %v2659 = vpop.xlane.xlu0 %2658
        %2660 = vmax.xlane.f32.xlu0 %v2638
        %v2661 = vpop.xlane.xlu0 %2660
        %2662 = vmax.xlane.f32.xlu0 %v2639
        %v2663 = vpop.xlane.xlu0 %2662
        %2664 = vmax.xlane.f32.xlu0 %v2640
        %v2665 = vpop.xlane.xlu0 %2664
        %2666 = vmax.xlane.f32.xlu0 %v2641
        %v2667 = vpop.xlane.xlu0 %2666
        %2668 = vmax.xlane.f32.xlu0 %v2642
        %v2669 = vpop.xlane.xlu0 %2668
        %2670 = vmax.xlane.f32.xlu0 %v2643
        %v2671 = vpop.xlane.xlu0 %2670
        %2672 = vmax.xlane.f32.xlu0 %v2644
        %v2673 = vpop.xlane.xlu0 %2672
        %2674 = vmax.xlane.f32.xlu0 %v2645
        %v2675 = vpop.xlane.xlu0 %2674
        %2676 = vmax.xlane.f32.xlu0 %v2646
        %v2677 = vpop.xlane.xlu0 %2676
        %2678 = vmax.xlane.f32.xlu0 %v2647
        %v2679 = vpop.xlane.xlu0 %2678
        %v2680 = vsub.f32 %v2632, %v2649
        %v2681 = vsub.f32 %v2633, %v2651
        %v2682 = vsub.f32 %v2634, %v2653
        %v2683 = vsub.f32 %v2635, %v2655
        %v2684 = vsub.f32 %v2636, %v2657
        %v2685 = vsub.f32 %v2637, %v2659
        %v2686 = vsub.f32 %v2638, %v2661
        %v2687 = vsub.f32 %v2639, %v2663
        %v2688 = vsub.f32 %v2640, %v2665
        %v2689 = vsub.f32 %v2641, %v2667
        %v2690 = vsub.f32 %v2642, %v2669
        %v2691 = vsub.f32 %v2643, %v2671
        %v2692 = vsub.f32 %v2644, %v2673
        %v2693 = vsub.f32 %v2645, %v2675
        %v2694 = vsub.f32 %v2646, %v2677
        %v2695 = vsub.f32 %v2647, %v2679
        %v2696 = vmul.f32 %v2680, 1.442695
        %v2697 = vpow.pop %v2696
        %v2698 = vmul.f32 %v2681, 1.442695
        %v2699 = vpow.pop %v2698
        %v2700 = vmul.f32 %v2682, 1.442695
        %v2701 = vpow.pop %v2700
        %v2702 = vmul.f32 %v2683, 1.442695
        %v2703 = vpow.pop %v2702
        %v2704 = vmul.f32 %v2684, 1.442695
        %v2705 = vpow.pop %v2704
        %v2706 = vmul.f32 %v2685, 1.442695
        %v2707 = vpow.pop %v2706
        %v2708 = vmul.f32 %v2686, 1.442695
        %v2709 = vpow.pop %v2708
        %v2710 = vmul.f32 %v2687, 1.442695
        %v2711 = vpow.pop %v2710
        %v2712 = vmul.f32 %v2688, 1.442695
        %v2713 = vpow.pop %v2712
        %v2714 = vmul.f32 %v2689, 1.442695
        %v2715 = vpow.pop %v2714
        %v2716 = vmul.f32 %v2690, 1.442695
        %v2717 = vpow.pop %v2716
        %v2718 = vmul.f32 %v2691, 1.442695
        %v2719 = vpow.pop %v2718
        %v2720 = vmul.f32 %v2692, 1.442695
        %v2721 = vpow.pop %v2720
        %v2722 = vmul.f32 %v2693, 1.442695
        %v2723 = vpow.pop %v2722
        %v2724 = vmul.f32 %v2694, 1.442695
        %v2725 = vpow.pop %v2724
        %v2726 = vmul.f32 %v2695, 1.442695
        %v2727 = vpow.pop %v2726
        %2728 = vadd.xlane.f32.xlu0 %v2697
        %v2729 = vpop.xlane.xlu0 %2728
        %2730 = vadd.xlane.f32.xlu0 %v2699
        %v2731 = vpop.xlane.xlu0 %2730
        %2732 = vadd.xlane.f32.xlu0 %v2701
        %v2733 = vpop.xlane.xlu0 %2732
        %2734 = vadd.xlane.f32.xlu0 %v2703
        %v2735 = vpop.xlane.xlu0 %2734
        %2736 = vadd.xlane.f32.xlu0 %v2705
        %v2737 = vpop.xlane.xlu0 %2736
        %2738 = vadd.xlane.f32.xlu0 %v2707
        %v2739 = vpop.xlane.xlu0 %2738
        %2740 = vadd.xlane.f32.xlu0 %v2709
        %v2741 = vpop.xlane.xlu0 %2740
        %2742 = vadd.xlane.f32.xlu0 %v2711
        %v2743 = vpop.xlane.xlu0 %2742
        %2744 = vadd.xlane.f32.xlu0 %v2713
        %v2745 = vpop.xlane.xlu0 %2744
        %2746 = vadd.xlane.f32.xlu0 %v2715
        %v2747 = vpop.xlane.xlu0 %2746
        %2748 = vadd.xlane.f32.xlu0 %v2717
        %v2749 = vpop.xlane.xlu0 %2748
        %2750 = vadd.xlane.f32.xlu0 %v2719
        %v2751 = vpop.xlane.xlu0 %2750
        %2752 = vadd.xlane.f32.xlu0 %v2721
        %v2753 = vpop.xlane.xlu0 %2752
        %2754 = vadd.xlane.f32.xlu0 %v2723
        %v2755 = vpop.xlane.xlu0 %2754
        %2756 = vadd.xlane.f32.xlu0 %v2725
        %v2757 = vpop.xlane.xlu0 %2756
        %2758 = vadd.xlane.f32.xlu0 %v2727
        %v2759 = vpop.xlane.xlu0 %2758
        %v2760 = vrcp.pop %v2729
        %v2761 = vmul.f32 %v2729, %v2760
        %v2762 = vsub.f32 1.0, %v2761
        %v2763 = vmul.f32 %v2760, %v2762
        %v2764 = vadd.f32 %v2760, %v2763
        %vm2765 = vweird.f32 %v2729
        %vm2766 = vweird.f32 %v2760
        %vm2767 = vmor %vm2765, %vm2766
        %v2768 = vsel %vm2767, %v2760, %v2764
        %v2769 = vand.u32 2147483647, %v2729
        %vm2770 = vcmp.eq.f32.partialorder %v2769, 8.507059e+37
        %v2771 = vand.u32 %v2729, 2147483648
        %v2772 = vor.u32 1.1754944e-38, %v2771
        %v2773 = vsel %vm2770, %v2772, %v2768
        %v2774 = vmul.f32 %v2697, %v2773
        %v2775 = vrcp.pop %v2731
        %v2776 = vmul.f32 %v2731, %v2775
        %v2777 = vsub.f32 1.0, %v2776
        %v2778 = vmul.f32 %v2775, %v2777
        %v2779 = vadd.f32 %v2775, %v2778
        %vm2780 = vweird.f32 %v2731
        %vm2781 = vweird.f32 %v2775
        %vm2782 = vmor %vm2780, %vm2781
        %v2783 = vsel %vm2782, %v2775, %v2779
        %v2784 = vand.u32 2147483647, %v2731
        %vm2785 = vcmp.eq.f32.partialorder %v2784, 8.507059e+37
        %v2786 = vand.u32 %v2731, 2147483648
        %v2787 = vor.u32 1.1754944e-38, %v2786
        %v2788 = vsel %vm2785, %v2787, %v2783
        %v2789 = vmul.f32 %v2699, %v2788
        %v2790 = vrcp.pop %v2733
        %v2791 = vmul.f32 %v2733, %v2790
        %v2792 = vsub.f32 1.0, %v2791
        %v2793 = vmul.f32 %v2790, %v2792
        %v2794 = vadd.f32 %v2790, %v2793
        %vm2795 = vweird.f32 %v2733
        %vm2796 = vweird.f32 %v2790
        %vm2797 = vmor %vm2795, %vm2796
        %v2798 = vsel %vm2797, %v2790, %v2794
        %v2799 = vand.u32 2147483647, %v2733
        %vm2800 = vcmp.eq.f32.partialorder %v2799, 8.507059e+37
        %v2801 = vand.u32 %v2733, 2147483648
        %v2802 = vor.u32 1.1754944e-38, %v2801
        %v2803 = vsel %vm2800, %v2802, %v2798
        %v2804 = vmul.f32 %v2701, %v2803
        %v2805 = vrcp.pop %v2735
        %v2806 = vmul.f32 %v2735, %v2805
        %v2807 = vsub.f32 1.0, %v2806
        %v2808 = vmul.f32 %v2805, %v2807
        %v2809 = vadd.f32 %v2805, %v2808
        %vm2810 = vweird.f32 %v2735
        %vm2811 = vweird.f32 %v2805
        %vm2812 = vmor %vm2810, %vm2811
        %v2813 = vsel %vm2812, %v2805, %v2809
        %v2814 = vand.u32 2147483647, %v2735
        %vm2815 = vcmp.eq.f32.partialorder %v2814, 8.507059e+37
        %v2816 = vand.u32 %v2735, 2147483648
        %v2817 = vor.u32 1.1754944e-38, %v2816
        %v2818 = vsel %vm2815, %v2817, %v2813
        %v2819 = vmul.f32 %v2703, %v2818
        %v2820 = vrcp.pop %v2737
        %v2821 = vmul.f32 %v2737, %v2820
        %v2822 = vsub.f32 1.0, %v2821
        %v2823 = vmul.f32 %v2820, %v2822
        %v2824 = vadd.f32 %v2820, %v2823
        %vm2825 = vweird.f32 %v2737
        %vm2826 = vweird.f32 %v2820
        %vm2827 = vmor %vm2825, %vm2826
        %v2828 = vsel %vm2827, %v2820, %v2824
        %v2829 = vand.u32 2147483647, %v2737
        %vm2830 = vcmp.eq.f32.partialorder %v2829, 8.507059e+37
        %v2831 = vand.u32 %v2737, 2147483648
        %v2832 = vor.u32 1.1754944e-38, %v2831
        %v2833 = vsel %vm2830, %v2832, %v2828
        %v2834 = vmul.f32 %v2705, %v2833
        %v2835 = vrcp.pop %v2739
        %v2836 = vmul.f32 %v2739, %v2835
        %v2837 = vsub.f32 1.0, %v2836
        %v2838 = vmul.f32 %v2835, %v2837
        %v2839 = vadd.f32 %v2835, %v2838
        %vm2840 = vweird.f32 %v2739
        %vm2841 = vweird.f32 %v2835
        %vm2842 = vmor %vm2840, %vm2841
        %v2843 = vsel %vm2842, %v2835, %v2839
        %v2844 = vand.u32 2147483647, %v2739
        %vm2845 = vcmp.eq.f32.partialorder %v2844, 8.507059e+37
        %v2846 = vand.u32 %v2739, 2147483648
        %v2847 = vor.u32 1.1754944e-38, %v2846
        %v2848 = vsel %vm2845, %v2847, %v2843
        %v2849 = vmul.f32 %v2707, %v2848
        %v2850 = vrcp.pop %v2741
        %v2851 = vmul.f32 %v2741, %v2850
        %v2852 = vsub.f32 1.0, %v2851
        %v2853 = vmul.f32 %v2850, %v2852
        %v2854 = vadd.f32 %v2850, %v2853
        %vm2855 = vweird.f32 %v2741
        %vm2856 = vweird.f32 %v2850
        %vm2857 = vmor %vm2855, %vm2856
        %v2858 = vsel %vm2857, %v2850, %v2854
        %v2859 = vand.u32 2147483647, %v2741
        %vm2860 = vcmp.eq.f32.partialorder %v2859, 8.507059e+37
        %v2861 = vand.u32 %v2741, 2147483648
        %v2862 = vor.u32 1.1754944e-38, %v2861
        %v2863 = vsel %vm2860, %v2862, %v2858
        %v2864 = vmul.f32 %v2709, %v2863
        %v2865 = vrcp.pop %v2743
        %v2866 = vmul.f32 %v2743, %v2865
        %v2867 = vsub.f32 1.0, %v2866
        %v2868 = vmul.f32 %v2865, %v2867
        %v2869 = vadd.f32 %v2865, %v2868
        %vm2870 = vweird.f32 %v2743
        %vm2871 = vweird.f32 %v2865
        %vm2872 = vmor %vm2870, %vm2871
        %v2873 = vsel %vm2872, %v2865, %v2869
        %v2874 = vand.u32 2147483647, %v2743
        %vm2875 = vcmp.eq.f32.partialorder %v2874, 8.507059e+37
        %v2876 = vand.u32 %v2743, 2147483648
        %v2877 = vor.u32 1.1754944e-38, %v2876
        %v2878 = vsel %vm2875, %v2877, %v2873
        %v2879 = vmul.f32 %v2711, %v2878
        %v2880 = vrcp.pop %v2745
        %v2881 = vmul.f32 %v2745, %v2880
        %v2882 = vsub.f32 1.0, %v2881
        %v2883 = vmul.f32 %v2880, %v2882
        %v2884 = vadd.f32 %v2880, %v2883
        %vm2885 = vweird.f32 %v2745
        %vm2886 = vweird.f32 %v2880
        %vm2887 = vmor %vm2885, %vm2886
        %v2888 = vsel %vm2887, %v2880, %v2884
        %v2889 = vand.u32 2147483647, %v2745
        %vm2890 = vcmp.eq.f32.partialorder %v2889, 8.507059e+37
        %v2891 = vand.u32 %v2745, 2147483648
        %v2892 = vor.u32 1.1754944e-38, %v2891
        %v2893 = vsel %vm2890, %v2892, %v2888
        %v2894 = vmul.f32 %v2713, %v2893
        %v2895 = vrcp.pop %v2747
        %v2896 = vmul.f32 %v2747, %v2895
        %v2897 = vsub.f32 1.0, %v2896
        %v2898 = vmul.f32 %v2895, %v2897
        %v2899 = vadd.f32 %v2895, %v2898
        %vm2900 = vweird.f32 %v2747
        %vm2901 = vweird.f32 %v2895
        %vm2902 = vmor %vm2900, %vm2901
        %v2903 = vsel %vm2902, %v2895, %v2899
        %v2904 = vand.u32 2147483647, %v2747
        %vm2905 = vcmp.eq.f32.partialorder %v2904, 8.507059e+37
        %v2906 = vand.u32 %v2747, 2147483648
        %v2907 = vor.u32 1.1754944e-38, %v2906
        %v2908 = vsel %vm2905, %v2907, %v2903
        %v2909 = vmul.f32 %v2715, %v2908
        %v2910 = vrcp.pop %v2749
        %v2911 = vmul.f32 %v2749, %v2910
        %v2912 = vsub.f32 1.0, %v2911
        %v2913 = vmul.f32 %v2910, %v2912
        %v2914 = vadd.f32 %v2910, %v2913
        %vm2915 = vweird.f32 %v2749
        %vm2916 = vweird.f32 %v2910
        %vm2917 = vmor %vm2915, %vm2916
        %v2918 = vsel %vm2917, %v2910, %v2914
        %v2919 = vand.u32 2147483647, %v2749
        %vm2920 = vcmp.eq.f32.partialorder %v2919, 8.507059e+37
        %v2921 = vand.u32 %v2749, 2147483648
        %v2922 = vor.u32 1.1754944e-38, %v2921
        %v2923 = vsel %vm2920, %v2922, %v2918
        %v2924 = vmul.f32 %v2717, %v2923
        %v2925 = vrcp.pop %v2751
        %v2926 = vmul.f32 %v2751, %v2925
        %v2927 = vsub.f32 1.0, %v2926
        %v2928 = vmul.f32 %v2925, %v2927
        %v2929 = vadd.f32 %v2925, %v2928
        %vm2930 = vweird.f32 %v2751
        %vm2931 = vweird.f32 %v2925
        %vm2932 = vmor %vm2930, %vm2931
        %v2933 = vsel %vm2932, %v2925, %v2929
        %v2934 = vand.u32 2147483647, %v2751
        %vm2935 = vcmp.eq.f32.partialorder %v2934, 8.507059e+37
        %v2936 = vand.u32 %v2751, 2147483648
        %v2937 = vor.u32 1.1754944e-38, %v2936
        %v2938 = vsel %vm2935, %v2937, %v2933
        %v2939 = vmul.f32 %v2719, %v2938
        %v2940 = vrcp.pop %v2753
        %v2941 = vmul.f32 %v2753, %v2940
        %v2942 = vsub.f32 1.0, %v2941
        %v2943 = vmul.f32 %v2940, %v2942
        %v2944 = vadd.f32 %v2940, %v2943
        %vm2945 = vweird.f32 %v2753
        %vm2946 = vweird.f32 %v2940
        %vm2947 = vmor %vm2945, %vm2946
        %v2948 = vsel %vm2947, %v2940, %v2944
        %v2949 = vand.u32 2147483647, %v2753
        %vm2950 = vcmp.eq.f32.partialorder %v2949, 8.507059e+37
        %v2951 = vand.u32 %v2753, 2147483648
        %v2952 = vor.u32 1.1754944e-38, %v2951
        %v2953 = vsel %vm2950, %v2952, %v2948
        %v2954 = vmul.f32 %v2721, %v2953
        %v2955 = vrcp.pop %v2755
        %v2956 = vmul.f32 %v2755, %v2955
        %v2957 = vsub.f32 1.0, %v2956
        %v2958 = vmul.f32 %v2955, %v2957
        %v2959 = vadd.f32 %v2955, %v2958
        %vm2960 = vweird.f32 %v2755
        %vm2961 = vweird.f32 %v2955
        %vm2962 = vmor %vm2960, %vm2961
        %v2963 = vsel %vm2962, %v2955, %v2959
        %v2964 = vand.u32 2147483647, %v2755
        %vm2965 = vcmp.eq.f32.partialorder %v2964, 8.507059e+37
        %v2966 = vand.u32 %v2755, 2147483648
        %v2967 = vor.u32 1.1754944e-38, %v2966
        %v2968 = vsel %vm2965, %v2967, %v2963
        %v2969 = vmul.f32 %v2723, %v2968
        %v2970 = vrcp.pop %v2757
        %v2971 = vmul.f32 %v2757, %v2970
        %v2972 = vsub.f32 1.0, %v2971
        %v2973 = vmul.f32 %v2970, %v2972
        %v2974 = vadd.f32 %v2970, %v2973
        %vm2975 = vweird.f32 %v2757
        %vm2976 = vweird.f32 %v2970
        %vm2977 = vmor %vm2975, %vm2976
        %v2978 = vsel %vm2977, %v2970, %v2974
        %v2979 = vand.u32 2147483647, %v2757
        %vm2980 = vcmp.eq.f32.partialorder %v2979, 8.507059e+37
        %v2981 = vand.u32 %v2757, 2147483648
        %v2982 = vor.u32 1.1754944e-38, %v2981
        %v2983 = vsel %vm2980, %v2982, %v2978
        %v2984 = vmul.f32 %v2725, %v2983
        %v2985 = vrcp.pop %v2759
        %v2986 = vmul.f32 %v2759, %v2985
        %v2987 = vsub.f32 1.0, %v2986
        %v2988 = vmul.f32 %v2985, %v2987
        %v2989 = vadd.f32 %v2985, %v2988
        %vm2990 = vweird.f32 %v2759
        %vm2991 = vweird.f32 %v2985
        %vm2992 = vmor %vm2990, %vm2991
        %v2993 = vsel %vm2992, %v2985, %v2989
        %v2994 = vand.u32 2147483647, %v2759
        %vm2995 = vcmp.eq.f32.partialorder %v2994, 8.507059e+37
        %v2996 = vand.u32 %v2759, 2147483648
        %v2997 = vor.u32 1.1754944e-38, %v2996
        %v2998 = vsel %vm2995, %v2997, %v2993
        %v2999 = vmul.f32 %v2727, %v2998
        %v3000 = vpack.c.bf16 %v2789, %v2774
        %v3001 = vpack.c.bf16 %v2819, %v2804
        %v3002 = vpack.c.bf16 %v2849, %v2834
        %v3003 = vpack.c.bf16 %v2879, %v2864
        %v3004 = vpack.c.bf16 %v2909, %v2894
        %v3005 = vpack.c.bf16 %v2939, %v2924
        %v3006 = vpack.c.bf16 %v2969, %v2954
        %v3007 = vpack.c.bf16 %v2999, %v2984
        %3008 = vmatpush.bf16.xpose.msra.mxu0 %v3007
        %3009 = vmatpush.bf16.xpose.msra.mxu0 %v3006
        %3010 = vmatpush.bf16.xpose.msra.mxu0 %v3005
        %3011 = vmatpush.bf16.xpose.msra.mxu0 %v3004
        %3012 = vmatpush.bf16.xpose.msra.mxu0 %v3003
        %3013 = vmatpush.bf16.xpose.msra.mxu0 %v3002
        %3014 = vmatpush.bf16.xpose.msra.mxu0 %v3001
        %3015 = vmatpush.bf16.xpose.msra.mxu0 %v3000
        %3016 = vmatmul.bf16.gmra.mxu0 %v2523
        %v3017 = vpop.f32.mrf.mxu0
        %v3018 = vadd.f32 0.0, %v3017
        %v3019 = vpop.f32.mrf.mxu0
        %3020 = vdwg.mxu0
        %3021 = vst [vmem:[#allocation2 + $0x18] sm:$0xff] %v3018
        %v3022 = vld [vmem:[#allocation2] sm:$0xff]
        %v3023 = vld [vmem:[#allocation2 + $0x8] sm:$0xff]
        %v3024 = vld [vmem:[#allocation2 + $0x10] sm:$0xff]
        %v3025 = vld [vmem:[#allocation2 + $0x18] sm:$0xff]
        %v3026 = vld [vmem:[%s4] sm:$0xff]
        %v3027 = vld [vmem:[%s4 + $0x8] sm:$0xff]
        %v3028 = vld [vmem:[%s4 + $0x10] sm:$0xff]
        %v3029 = vld [vmem:[%s4 + $0x18] sm:$0xff]
        %v3030 = vpack.c.bf16 %v3027, %v3026
        %v3031 = vpack.c.bf16 %v3029, %v3028
        %v3032 = vpack.c.bf16 %v3023, %v3022
        %v3033 = vpack.c.bf16 %v3025, %v3024
        %v3034 = vld [vmem:[%s5] sm:$0xff]
        %v3035 = vld [vmem:[%s5 + $0x8] sm:$0xff]
        %v3036 = vld [vmem:[%s5 + $0x10] sm:$0xff]
        %v3037 = vld [vmem:[%s5 + $0x18] sm:$0xff]
        %3039 = vset.pattern.permute.xlu0 0
        %3040 = vperm.xlu0 %3039, %v3034
        %v3041 = vpop.permute.xlu0 %3040
        %3044 = vset.pattern.permute.xlu0 0
        %3045 = vperm.xlu0 %3044, %v3035
        %v3046 = vpop.permute.xlu0 %3045
        %3049 = vset.pattern.permute.xlu0 0
        %3050 = vperm.xlu0 %3049, %v3036
        %v3051 = vpop.permute.xlu0 %3050
        %3054 = vset.pattern.permute.xlu0 0
        %3055 = vperm.xlu0 %3054, %v3037
        %v3056 = vpop.permute.xlu0 %3055
        %v3059 = vsel %vm598, %v3030, 0
        %v3062 = vsel %vm598, %v3031, 0
        %3064 = vmatpush.bf16.msra.mxu0 0
        %3065 = vmatpush.bf16.msra.mxu0 0
        %3066 = vmatpush.bf16.msra.mxu0 0
        %3067 = vmatpush.bf16.msra.mxu0 0
        %3068 = vmatpush.bf16.msra.mxu0 0
        %3069 = vmatpush.bf16.msra.mxu0 0
        %3070 = vmatpush.bf16.msra.mxu0 %v3033
        %3071 = vmatpush.bf16.msra.mxu0 %v3032
        %3072 = vmatmul.bf16.gmra.mxu0 %v3059
        %v3073 = vpop.f32.mrf.mxu0
        %v3074 = vadd.f32 %v3041, %v3073
        %v3075 = vpop.f32.mrf.mxu0
        %v3076 = vadd.f32 %v3046, %v3075
        %3077 = vmatmul.bf16.gmra.mxu0 %v3062
        %v3078 = vpop.f32.mrf.mxu0
        %v3079 = vadd.f32 %v3051, %v3078
        %v3080 = vpop.f32.mrf.mxu0
        %v3081 = vadd.f32 %v3056, %v3080
        %3082 = vdwg.mxu0
        %v3083 = vld [vmem:[%s6] sm:$0xff]
        %v3084 = vld [vmem:[%s6 + $0x8] sm:$0xff]
        %v3085 = vld [vmem:[%s6 + $0x10] sm:$0xff]
        %v3086 = vld [vmem:[%s6 + $0x18] sm:$0xff]
        %v3087 = vld [vmem:[%s6 + $0x20] sm:$0xff]
        %v3088 = vld [vmem:[%s6 + $0x28] sm:$0xff]
        %v3089 = vld [vmem:[%s6 + $0x30] sm:$0xff]
        %v3090 = vld [vmem:[%s6 + $0x38] sm:$0xff]
        %v3091 = vpack.c.bf16 %v3084, %v3083
        %v3092 = vpack.c.bf16 %v3086, %v3085
        %v3093 = vpack.c.bf16 %v3088, %v3087
        %v3094 = vpack.c.bf16 %v3090, %v3089
        %v3095 = vpack.c.bf16 %v563, %v562
        %v3096 = vpack.c.bf16 %v565, %v564
        %v3097 = vld [vmem:[%s7] sm:$0xff]
        %v3098 = vld [vmem:[%s7 + $0x8] sm:$0xff]
        %v3099 = vld [vmem:[%s7 + $0x10] sm:$0xff]
        %v3100 = vld [vmem:[%s7 + $0x18] sm:$0xff]
        %v3101 = vld [vmem:[%s7 + $0x20] sm:$0xff]
        %v3102 = vld [vmem:[%s7 + $0x28] sm:$0xff]
        %v3103 = vld [vmem:[%s7 + $0x30] sm:$0xff]
        %v3104 = vld [vmem:[%s7 + $0x38] sm:$0xff]
        %v3105 = vpack.c.bf16 %v3098, %v3097
        %v3106 = vpack.c.bf16 %v3100, %v3099
        %v3107 = vpack.c.bf16 %v3102, %v3101
        %v3108 = vpack.c.bf16 %v3104, %v3103
        %v3109 = vpack.c.bf16 %v3076, %v3074
        %v3110 = vpack.c.bf16 %v3081, %v3079
        %v3112 = vsel %vm598, %v3105, 0
        %v3115 = vsel %vm598, %v3106, 0
        %v3118 = vsel %vm598, %v3107, 0
        %v3121 = vsel %vm598, %v3108, 0
        %3123 = vmatpush.bf16.msra.mxu0 0
        %3124 = vmatpush.bf16.msra.mxu0 0
        %3125 = vmatpush.bf16.msra.mxu0 0
        %3126 = vmatpush.bf16.msra.mxu0 0
        %3127 = vmatpush.bf16.msra.mxu0 0
        %3128 = vmatpush.bf16.msra.mxu0 0
        %3129 = vmatpush.bf16.msra.mxu0 %v3110
        %3130 = vmatpush.bf16.msra.mxu0 %v3109
        %3131 = vmatmul.bf16.gmra.mxu0 %v3112
        %v3132 = vpop.f32.mrf.mxu0
        %v3133 = vadd.f32 0.0, %v3132
        %v3134 = vpop.f32.mrf.mxu0
        %v3135 = vadd.f32 0.0, %v3134
        %3136 = vmatmul.bf16.gmra.mxu0 %v3115
        %v3137 = vpop.f32.mrf.mxu0
        %v3138 = vadd.f32 0.0, %v3137
        %v3139 = vpop.f32.mrf.mxu0
        %v3140 = vadd.f32 0.0, %v3139
        %3141 = vmatmul.bf16.gmra.mxu0 %v3118
        %v3142 = vpop.f32.mrf.mxu0
        %v3143 = vadd.f32 0.0, %v3142
        %v3144 = vpop.f32.mrf.mxu0
        %v3145 = vadd.f32 0.0, %v3144
        %3146 = vmatmul.bf16.gmra.mxu0 %v3121
        %v3147 = vpop.f32.mrf.mxu0
        %v3148 = vadd.f32 0.0, %v3147
        %v3149 = vpop.f32.mrf.mxu0
        %v3150 = vadd.f32 0.0, %v3149
        %3151 = vdwg.mxu0
        %v3153 = vsel %vm598, %v3091, 0
        %v3156 = vsel %vm598, %v3092, 0
        %v3159 = vsel %vm598, %v3093, 0
        %v3162 = vsel %vm598, %v3094, 0
        %3164 = vmatpush.bf16.msra.mxu0 0
        %3165 = vmatpush.bf16.msra.mxu0 0
        %3166 = vmatpush.bf16.msra.mxu0 0
        %3167 = vmatpush.bf16.msra.mxu0 0
        %3168 = vmatpush.bf16.msra.mxu0 0
        %3169 = vmatpush.bf16.msra.mxu0 0
        %3170 = vmatpush.bf16.msra.mxu0 %v3096
        %3171 = vmatpush.bf16.msra.mxu0 %v3095
        %3172 = vmatmul.bf16.gmra.mxu0 %v3153
        %v3173 = vpop.f32.mrf.mxu0
        %v3174 = vadd.f32 %v3133, %v3173
        %v3175 = vpop.f32.mrf.mxu0
        %v3176 = vadd.f32 %v3135, %v3175
        %3177 = vmatmul.bf16.gmra.mxu0 %v3156
        %v3178 = vpop.f32.mrf.mxu0
        %v3179 = vadd.f32 %v3138, %v3178
        %v3180 = vpop.f32.mrf.mxu0
        %v3181 = vadd.f32 %v3140, %v3180
        %3182 = vmatmul.bf16.gmra.mxu0 %v3159
        %v3183 = vpop.f32.mrf.mxu0
        %v3184 = vadd.f32 %v3143, %v3183
        %v3185 = vpop.f32.mrf.mxu0
        %v3186 = vadd.f32 %v3145, %v3185
        %3187 = vmatmul.bf16.gmra.mxu0 %v3162
        %v3188 = vpop.f32.mrf.mxu0
        %v3189 = vadd.f32 %v3148, %v3188
        %v3190 = vpop.f32.mrf.mxu0
        %v3191 = vadd.f32 %v3150, %v3190
        %3192 = vdwg.mxu0
        %v3193 = vld [vmem:[%s8] sm:$0xff]
        %v3194 = vld [vmem:[%s8 + $0x8] sm:$0xff]
        %v3195 = vld [vmem:[%s8 + $0x10] sm:$0xff]
        %v3196 = vld [vmem:[%s8 + $0x18] sm:$0xff]
        %v3197 = vld [vmem:[%s8 + $0x20] sm:$0xff]
        %v3198 = vld [vmem:[%s8 + $0x28] sm:$0xff]
        %v3199 = vld [vmem:[%s8 + $0x30] sm:$0xff]
        %v3200 = vld [vmem:[%s8 + $0x38] sm:$0xff]
        %3202 = vset.pattern.permute.xlu0 0
        %3203 = vperm.xlu0 %3202, %v3193
        %v3204 = vpop.permute.xlu0 %3203
        %3207 = vset.pattern.permute.xlu0 0
        %3208 = vperm.xlu0 %3207, %v3194
        %v3209 = vpop.permute.xlu0 %3208
        %3212 = vset.pattern.permute.xlu0 0
        %3213 = vperm.xlu0 %3212, %v3195
        %v3214 = vpop.permute.xlu0 %3213
        %3217 = vset.pattern.permute.xlu0 0
        %3218 = vperm.xlu0 %3217, %v3196
        %v3219 = vpop.permute.xlu0 %3218
        %3222 = vset.pattern.permute.xlu0 0
        %3223 = vperm.xlu0 %3222, %v3197
        %v3224 = vpop.permute.xlu0 %3223
        %3227 = vset.pattern.permute.xlu0 0
        %3228 = vperm.xlu0 %3227, %v3198
        %v3229 = vpop.permute.xlu0 %3228
        %3232 = vset.pattern.permute.xlu0 0
        %3233 = vperm.xlu0 %3232, %v3199
        %v3234 = vpop.permute.xlu0 %3233
        %3237 = vset.pattern.permute.xlu0 0
        %3238 = vperm.xlu0 %3237, %v3200
        %v3239 = vpop.permute.xlu0 %3238
        %v3241 = vadd.f32 %v3174, %v3204
        %v3242 = vadd.f32 %v3176, %v3209
        %v3243 = vadd.f32 %v3179, %v3214
        %v3244 = vadd.f32 %v3181, %v3219
        %v3245 = vadd.f32 %v3184, %v3224
        %v3246 = vadd.f32 %v3186, %v3229
        %v3247 = vadd.f32 %v3189, %v3234
        %v3248 = vadd.f32 %v3191, %v3239
        %v3249 = vmul.f32 %v3241, 0.999995
        %v3250 = vmul.f32 %v3242, 0.999995
        %v3251 = vmul.f32 %v3243, 0.999995
        %v3252 = vmul.f32 %v3244, 0.999995
        %v3253 = vmul.f32 %v3245, 0.999995
        %v3254 = vmul.f32 %v3246, 0.999995
        %v3255 = vmul.f32 %v3247, 0.999995
        %v3256 = vmul.f32 %v3248, 0.999995
        %v3257 = vmax.f32 %v3249, 0.0
        %v3258 = vmax.f32 %v3250, 0.0
        %v3259 = vmax.f32 %v3251, 0.0
        %v3260 = vmax.f32 %v3252, 0.0
        %v3261 = vmax.f32 %v3253, 0.0
        %v3262 = vmax.f32 %v3254, 0.0
        %v3263 = vmax.f32 %v3255, 0.0
        %v3264 = vmax.f32 %v3256, 0.0
        %v3265 = vld [vmem:[%s9] sm:$0xff]
        %v3266 = vld [vmem:[%s9 + $0x8] sm:$0xff]
        %v3267 = vld [vmem:[%s9 + $0x10] sm:$0xff]
        %v3268 = vld [vmem:[%s9 + $0x18] sm:$0xff]
        %v3269 = vpack.c.bf16 %v3266, %v3265
        %v3270 = vpack.c.bf16 %v3268, %v3267
        %v3271 = vpack.c.bf16 %v3258, %v3257
        %v3272 = vpack.c.bf16 %v3260, %v3259
        %v3273 = vpack.c.bf16 %v3262, %v3261
        %v3274 = vpack.c.bf16 %v3264, %v3263
        %vm3275 = vcmask 523264
        %v3277 = vsel %vm3275, %v3269, 0
        %v3280 = vsel %vm3275, %v3270, 0
        %3282 = vmatpush.bf16.msra.mxu0 0
        %3283 = vmatpush.bf16.msra.mxu0 0
        %3284 = vmatpush.bf16.msra.mxu0 0
        %3285 = vmatpush.bf16.msra.mxu0 0
        %3286 = vmatpush.bf16.msra.mxu0 %v3274
        %3287 = vmatpush.bf16.msra.mxu0 %v3273
        %3288 = vmatpush.bf16.msra.mxu0 %v3272
        %3289 = vmatpush.bf16.msra.mxu0 %v3271
        %3290 = vmatmul.bf16.gmra.mxu0 %v3277
        %v3291 = vpop.f32.mrf.mxu0
        %v3292 = vadd.f32 0.0, %v3291
        %v3293 = vpop.f32.mrf.mxu0
        %v3294 = vadd.f32 0.0, %v3293
        %3295 = vmatmul.bf16.gmra.mxu0 %v3280
        %v3296 = vpop.f32.mrf.mxu0
        %v3297 = vadd.f32 0.0, %v3296
        %v3298 = vpop.f32.mrf.mxu0
        %v3299 = vadd.f32 0.0, %v3298
        %3300 = vdwg.mxu0
        %v3301 = vadd.f32 %v562, %v3292
        %v3302 = vadd.f32 %v563, %v3294
        %v3303 = vadd.f32 %v564, %v3297
        %v3304 = vadd.f32 %v565, %v3299
        %v3305 = vld [vmem:[%s10] sm:$0xff]
        %v3306 = vld [vmem:[%s10 + $0x8] sm:$0xff]
        %v3307 = vld [vmem:[%s10 + $0x10] sm:$0xff]
        %v3308 = vld [vmem:[%s10 + $0x18] sm:$0xff]
        %3310 = vset.pattern.permute.xlu0 0
        %3311 = vperm.xlu0 %3310, %v3305
        %v3312 = vpop.permute.xlu0 %3311
        %3315 = vset.pattern.permute.xlu0 0
        %3316 = vperm.xlu0 %3315, %v3306
        %v3317 = vpop.permute.xlu0 %3316
        %3320 = vset.pattern.permute.xlu0 0
        %3321 = vperm.xlu0 %3320, %v3307
        %v3322 = vpop.permute.xlu0 %3321
        %3325 = vset.pattern.permute.xlu0 0
        %3326 = vperm.xlu0 %3325, %v3308
        %v3327 = vpop.permute.xlu0 %3326
        %v3329 = vadd.f32 %v3301, %v3312
        %v3330 = vadd.f32 %v3302, %v3317
        %v3331 = vadd.f32 %v3303, %v3322
        %v3332 = vadd.f32 %v3304, %v3327
        %3333 = vst [vmem:[%s552] sm:$0xff] %v3329
        %3334 = vst [vmem:[%s552 + $0x8] sm:$0xff] %v3330
        %3335 = vst [vmem:[%s552 + $0x10] sm:$0xff] %v3331
        %3336 = vst [vmem:[%s552 + $0x18] sm:$0xff] %v3332
        %s3337 = sand.u32 %s281, 1
        %s3338 = sand.u32 %s281, 1
        %s3339 = smul.addr %s3338, 32
        %s3340 = scalar_lea.vmem [#allocation5], %s3339
        // Predicated region
        $region141: #{rna_block.22} parent=131 // pred_check
          %p3341 = pneg %p291
        $region142: #{rna_block.22} parent=131 // pred_check_branch
          %3343 = sbr.rel (%p3341) target = $region144
        $region143: #{rna_block.22} parent=131 // pred_region
          %s3344 = smul.addr %s22, 8
          %s3345 = scalar_lea.vmem %s11, %s3344
          // Predicated region
          $region145: #{rna_block.22} parent=143 // pred_check
            _
          $region146: #{rna_block.22} parent=143 // pred_check_branch
            %3347 = sbr.rel (0) target = $region148
          $region147: #{rna_block.22} parent=143 // pred_region
            // Predicated region
            $region149: #{rna_block.22} parent=147 // pred_check
              _
            $region150: #{rna_block.22} parent=147 // pred_check_branch
              %3349 = sbr.rel (0) target = $region152
            $region151: #{rna_block.22} parent=147 // pred_region
              // Predicated region
              $region164: #{rna_block.22} parent=151 // pred_check
                _
              $region165: #{rna_block.22} parent=151 // pred_check_branch
                %3371 = sbr.rel (0) target = $region167
              $region166: #{rna_block.22} parent=151 // pred_region
                loop: start=0, step=1, limit=1
                $region168: #{rna_block.22} parent=166 // loop_pre_header
                  _
                $region169: #{rna_block.22} parent=166 // loop_header
                  %s3373 = sphi 0, %s3377
                  %p3374 = scmp.ge.s32.totalorder %s3373, 1
                  %s3378 = sphi %s3340, %s3340
                  %s3379 = sphi %s3345, %s3345
                $region170: #{rna_block.22} parent=166 // loop_header_branch
                  %3376 = sbr.rel (%p3374) target = $region174
                $region171: #{rna_block.22} parent=166 // loop_body
                  %v3380 = vld [vmem:[%s3378] sm:$0xff]
                  %3381 = vst [vmem:[%s3379] sm:$0xff] %v3380
                  %v3382 = vld [vmem:[%s3378 + $0x8] sm:$0xff]
                  %3383 = vst [vmem:[%s3379 + $0x10] sm:$0xff] %v3382
                  %v3384 = vld [vmem:[%s3378 + $0x10] sm:$0xff]
                  %3385 = vst [vmem:[%s3379 + $0x20] sm:$0xff] %v3384
                  %v3386 = vld [vmem:[%s3378 + $0x18] sm:$0xff]
                  %3387 = vst [vmem:[%s3379 + $0x30] sm:$0xff] %v3386
                $region172: #{rna_block.22} parent=166 // loop_footer
                  %s3377 = sadd.s32 1, %s3373
                $region173: #{rna_block.22} parent=166 // loop_footer_branch
                  %3372 = sbr.rel target = $region169
                $region174: #{rna_block.22} parent=166 // loop_exit
                  _
              $region167: #{rna_block.22} parent=151 // pred_fallthru
                _
              // Predicated region
              $region175: #{rna_block.22} parent=151 // pred_check
                _
              $region176: #{rna_block.22} parent=151 // pred_check_branch
                %3389 = sbr.rel target = $region178
              $region177: #{rna_block.22} parent=151 // pred_region
                _
              $region178: #{rna_block.22} parent=151 // pred_fallthru
                _
            $region152: #{rna_block.22} parent=147 // pred_fallthru
              _
            // Predicated region
            $region153: #{rna_block.22} parent=147 // pred_check
              _
            $region154: #{rna_block.22} parent=147 // pred_check_branch
              %3351 = sbr.rel target = $region156
            $region155: #{rna_block.22} parent=147 // pred_region
              %s3353 = ssub.s32 256, 1
              loop: start=0, step=1, limit=1
              $region157: #{rna_block.22} parent=155 // loop_pre_header
                _
              $region158: #{rna_block.22} parent=155 // loop_header
                %s3355 = sphi 0, %s3359
                %p3356 = scmp.ge.s32.totalorder %s3355, 1
                %s3360 = sphi %s3340, %s3340
                %s3361 = sphi %s3345, %s3345
              $region159: #{rna_block.22} parent=155 // loop_header_branch
                %3358 = sbr.rel (%p3356) target = $region163
              $region160: #{rna_block.22} parent=155 // loop_body
                %v3362 = vld [vmem:[%s3360] sm:%s3353]
                %3363 = vst [vmem:[%s3361] sm:%s3353] %v3362
                %v3364 = vld [vmem:[%s3360 + $0x8] sm:%s3353]
                %3365 = vst [vmem:[%s3361 + $0x10] sm:%s3353] %v3364
                %v3366 = vld [vmem:[%s3360 + $0x10] sm:%s3353]
                %3367 = vst [vmem:[%s3361 + $0x20] sm:%s3353] %v3366
                %v3368 = vld [vmem:[%s3360 + $0x18] sm:%s3353]
                %3369 = vst [vmem:[%s3361 + $0x30] sm:%s3353] %v3368
              $region161: #{rna_block.22} parent=155 // loop_footer
                %s3359 = sadd.s32 1, %s3355
              $region162: #{rna_block.22} parent=155 // loop_footer_branch
                %3354 = sbr.rel target = $region158
              $region163: #{rna_block.22} parent=155 // loop_exit
                _
            $region156: #{rna_block.22} parent=147 // pred_fallthru
              _
          $region148: #{rna_block.22} parent=143 // pred_fallthru
            _
          %3390 = vnop
        $region144: #{rna_block.22} parent=131 // pred_fallthru
          _
      $region132: #{rna_block.22} parent=5 // pred_fallthru
        _
      %p3391 = scmp.le.s32.totalorder 2, %s17
      // Predicated region
      $region179: #{rna_block.22} parent=5 // pred_check
        %p3392 = pneg %p3391
      $region180: #{rna_block.22} parent=5 // pred_check_branch
        %3394 = sbr.rel (%p3392) target = $region182
      $region181: #{rna_block.22} parent=5 // pred_region
        %s3395 = ssub.s32 %s17, 2
        // Predicated region
        $region183: #{rna_block.22} parent=181 // pred_check
          %p3396 = pneg %p297
        $region184: #{rna_block.22} parent=181 // pred_check_branch
          %3398 = sbr.rel (%p3396) target = $region186
        $region185: #{rna_block.22} parent=181 // pred_region
          %s3399 = sand.u32 %s282, 1
          %s3400 = sand.u32 %s282, 1
          %s3401 = smul.addr %s3400, 32
          %s3402 = scalar_lea.vmem [#allocation5], %s3401
        $region186: #{rna_block.22} parent=181 // pred_fallthru
          _
      $region182: #{rna_block.22} parent=5 // pred_fallthru
        _
    $region6: #{rna_block.22} parent=1 // loop_footer
      %s21 = sadd.s32 1, %s17
    $region7: #{rna_block.22} parent=1 // loop_footer_branch
      %16 = sbr.rel target = $region3
    $region8: #{rna_block.22} parent=1 // loop_exit
      _

// kernel: rna_block.31
$region0: #{rna_block.31}
  #allocation0 [shape = 'u32[]', space=smem, size = 0x4, offset = 0x4, fixed_abs, tag = 'smem constant byte address 0x4 - core index']
  #allocation1 [shape = 'u32[72,128]{1,0:T(1,128)}', space=vmem, size = 0x9000, scoped, tag = 'internal scratch']
  #allocation2 [shape = 'f32[1,1]{1,0:T(1,128)S(1)}', space=vmem, size = 0x200, scoped, tag = 'scoped memory for rna_block.31']
  %s0 = inlined_call_operand.vmem [shape: f32[32,256], index: 0, kind: input, shape index: {}]
  %s1 = inlined_call_operand.vmem [shape: f32[1,32], index: 1, kind: input, shape index: {}]
  %s2 = inlined_call_operand.<no memory space> [shape: f32[1,1], index: 2, kind: input, shape index: {}]
  %s3 = inlined_call_operand.vmem [shape: f32[1,256], index: 3, kind: output, shape index: {}]
  %s4 = sld [smem:[#allocation0]]
  $region22: #{rna_block.31} parent=0
    _
  %s6 = ssub.s32 1, %s4
  %s7 = scalar_select 0, %s6, %s4
  %v8 = vstv %s2
  %9 = vst [vmem:[#allocation2] sm:$0x1] %v8
  // Predicated region
  $region2: #{rna_block.31} parent=0 // pred_check
    _
  $region3: #{rna_block.31} parent=0 // pred_check_branch
    %11 = sbr.rel (0) target = $region5
  $region4: #{rna_block.31} parent=0 // pred_region
    _
  $region5: #{rna_block.31} parent=0 // pred_fallthru
    _
  // Predicated region
  $region6: #{rna_block.31} parent=0 // pred_check
    _
  $region7: #{rna_block.31} parent=0 // pred_check_branch
    %13 = sbr.rel (0) target = $region9
  $region8: #{rna_block.31} parent=0 // pred_region
    _
  $region9: #{rna_block.31} parent=0 // pred_fallthru
    _
  // Predicated region
  $region10: #{rna_block.31} parent=0 // pred_check
    _
  $region11: #{rna_block.31} parent=0 // pred_check_branch
    %15 = sbr.rel (0) target = $region13
  $region12: #{rna_block.31} parent=0 // pred_region
    _
  $region13: #{rna_block.31} parent=0 // pred_fallthru
    _
  %v17 = vld [vmem:[%s1] sm:$0x1]
  %v18 = vld [vmem:[%s0] sm:$0xff]
  %v19 = vld [vmem:[%s0 + $0x8] sm:$0xff]
  %v20 = vld [vmem:[%s0 + $0x10] sm:$0xff]
  %v21 = vld [vmem:[%s0 + $0x18] sm:$0xff]
  %v22 = vld [vmem:[%s0 + $0x20] sm:$0xff]
  %v23 = vld [vmem:[%s0 + $0x28] sm:$0xff]
  %v24 = vld [vmem:[%s0 + $0x30] sm:$0xff]
  %v25 = vld [vmem:[%s0 + $0x38] sm:$0xff]
  %v26 = vpack.c.bf16 %v17, %v17
  %v27 = vpack.c.bf16 %v20, %v18
  %v28 = vpack.c.bf16 %v21, %v19
  %v29 = vpack.c.bf16 %v24, %v22
  %v30 = vpack.c.bf16 %v25, %v23
  %v31 = vld [vmem:[#allocation2] sm:$0x1]
  %33 = vset.pattern.permute.xlu0 0
  %34 = vperm.xlu0 %33, %v31
  %v35 = vpop.permute.xlu0 %34
  %v37 = vperm.slane %v35, 0
  %vm38 = vcmask 261120
  %v40 = vsel %vm38, %v26, 0
  %42 = vmatpush.bf16.msra.mxu0 0
  %43 = vmatpush.bf16.msra.mxu0 0
  %44 = vmatpush.bf16.msra.mxu0 0
  %45 = vmatpush.bf16.msra.mxu0 0
  %46 = vmatpush.bf16.msra.mxu0 0
  %47 = vmatpush.bf16.msra.mxu0 0
  %48 = vmatpush.bf16.msra.mxu0 %v29
  %49 = vmatpush.bf16.msra.mxu0 %v27
  %50 = vmatmul.bf16.gmra.mxu0 %v40
  %v51 = vpop.f32.mrf.mxu0
  %v52 = vadd.f32 %v37, %v51
  %v53 = vpop.f32.mrf.mxu0
  %54 = vdwg.mxu0
  %55 = vmatpush.bf16.msra.mxu0 0
  %56 = vmatpush.bf16.msra.mxu0 0
  %57 = vmatpush.bf16.msra.mxu0 0
  %58 = vmatpush.bf16.msra.mxu0 0
  %59 = vmatpush.bf16.msra.mxu0 0
  %60 = vmatpush.bf16.msra.mxu0 0
  %61 = vmatpush.bf16.msra.mxu0 %v30
  %62 = vmatpush.bf16.msra.mxu0 %v28
  %63 = vmatmul.bf16.gmra.mxu0 %v40
  %v64 = vpop.f32.mrf.mxu0
  %v65 = vadd.f32 %v37, %v64
  %v66 = vpop.f32.mrf.mxu0
  %67 = vdwg.mxu0
  %v70 = vrot.slane %v65, 7
  %vm71 = vcmask 1040384
  %v72 = vsel %vm71, %v52, %v70
  %v74 = vlaneseq
  %vm75 = vcmp.ge.s32.totalorder %v74, 0
  %vm76 = vcmp.lt.s32.totalorder %v74, 256
  %vm77 = vmand %vm75, %vm76
  %78 = vst.msk [vmem:[%s3] sm:$0x3] %vm77, %v72
  // Predicated region
  $region14: #{rna_block.31} parent=0 // pred_check
    _
  $region15: #{rna_block.31} parent=0 // pred_check_branch
    %80 = sbr.rel (0) target = $region17
  $region16: #{rna_block.31} parent=0 // pred_region
    _
  $region17: #{rna_block.31} parent=0 // pred_fallthru
    _
  // Predicated region
  $region18: #{rna_block.31} parent=0 // pred_check
    _
  $region19: #{rna_block.31} parent=0 // pred_check_branch
    %82 = sbr.rel (0) target = $region21
  $region20: #{rna_block.31} parent=0 // pred_region
    _
  $region21: #{rna_block.31} parent=0 // pred_fallthru
    _

// kernel: custom-call.2
$region0: #{custom-call.2}
  %s0 = inlined_call_operand.vmem [shape: f32[2,5,5], index: 0, kind: input, shape index: {}]
  %s1 = inlined_call_operand.vmem [shape: f32[2,5,5], index: 1, kind: input, shape index: {}]
  %s2 = inlined_call_operand.vmem [shape: f32[2,5,5], index: 2, kind: input, shape index: {}]
  %s3 = inlined_call_operand.vmem [shape: f32[2,5,5], index: 3, kind: input, shape index: {}]
  %s4 = inlined_call_operand.vmem [shape: f32[2,5], index: 4, kind: output, shape index: {0}]
  %s5 = inlined_call_operand.vmem [shape: f32[2,5], index: 5, kind: output, shape index: {1}]
  %s6 = inlined_call_operand.vmem [shape: f32[2,5,5], index: 6, kind: output, shape index: {2}]
  %s7 = inlined_call_operand.vmem [shape: f32[2,5,5], index: 7, kind: output, shape index: {3}]
  %s8 = inlined_call_operand.vmem [shape: f32[2,5,5], index: 8, kind: output, shape index: {4}]
  %s9 = inlined_call_operand.vmem [shape: f32[2,5,5], index: 9, kind: output, shape index: {5}]
  %10 = xla_tuple %s4, %s5, %s6, %s7, %s8, %s9
  $region1: #{custom-call.2} parent=0
    #allocation0 [shape = 'u8[8192]{0}', space=vmem, size = 0x2000, scoped, tag = 'operand span for operand 0']
    #allocation1 [shape = 'u8[8192]{0}', space=vmem, size = 0x2000, scoped, tag = 'operand span for operand 1']
    #allocation2 [shape = 'u8[8192]{0}', space=vmem, size = 0x2000, scoped, tag = 'operand span for operand 2']
    #allocation3 [shape = 'u8[8192]{0}', space=vmem, size = 0x2000, scoped, tag = 'operand span for operand 3']
    #allocation4 [shape = 'u8[4096]{0}', space=vmem, size = 0x1000, scoped, tag = 'operand span for operand 4']
    #allocation5 [shape = 'u8[2048]{0}', space=vmem, size = 0x800, scoped, tag = 'packed  for operand 4']
    #allocation6 [shape = 'u8[4096]{0}', space=vmem, size = 0x1000, scoped, tag = 'operand span for operand 5']
    #allocation7 [shape = 'u8[2048]{0}', space=vmem, size = 0x800, scoped, tag = 'packed  for operand 5']
    #allocation8 [shape = 'u8[8192]{0}', space=vmem, size = 0x2000, scoped, tag = 'operand span for operand 6']
    #allocation9 [shape = 'u8[8192]{0}', space=vmem, size = 0x2000, scoped, tag = 'operand span for operand 7']
    #allocation10 [shape = 'u8[8192]{0}', space=vmem, size = 0x2000, scoped, tag = 'operand span for operand 8']
    #allocation11 [shape = 'u8[8192]{0}', space=vmem, size = 0x2000, scoped, tag = 'operand span for operand 9']
    loop: start=0, step=1, limit=4
    $region2: #{custom-call.2} parent=1 // loop_pre_header
      _
    $region3: #{custom-call.2} parent=1 // loop_header
      %s12 = sphi 0, %s16
      %p13 = scmp.ge.s32.totalorder %s12, 4
      %s24 = sphi 0, %s26
      %s27 = sphi 0, %s24
      %s28 = sphi 0, %s27
      %s44 = sphi 0, %s28
      %s52 = sphi 0, %s54
      %s55 = sphi 0, %s52
      %s56 = sphi 0, %s55
      %s72 = sphi 0, %s56
    $region4: #{custom-call.2} parent=1 // loop_header_branch
      %15 = sbr.rel (%p13) target = $region8
    $region5: #{custom-call.2} parent=1 // loop_body
      %s17 = ssub.s32 %s12, 1
      %s18 = ssub.s32 %s12, 2
      %s19 = sadd.s32 %s12, 1
      %s20 = sshrl.u32 %s12, 3
      %s21 = sshrl.u32 %s19, 3
      %s22 = ssub.s32 %s20, %s21
      %p23 = scmp.eq.s32.totalorder %s22, 0
      %s25 = sadd.s32 %s24, 1
      %s26 = scalar_select %p23, %s24, %s25
      %p29 = pneg %p23
      %p30 = scmp.eq.s32.totalorder %s12, 1
      %p31 = por %p29, %p30
      %p32 = scmp.ne.s32.totalorder %s24, %s27
      %p33 = scmp.eq.s32.totalorder %s12, 0
      %p34 = por %p32, %p33
      %p35 = scmp.ne.s32.totalorder %s24, %s27
      %p36 = scmp.eq.s32.totalorder %s17, 1
      %p37 = por %p35, %p36
      %p38 = scmp.ne.s32.totalorder %s27, %s28
      %p39 = scmp.eq.s32.totalorder %s17, 0
      %p40 = por %p38, %p39
      %p41 = scmp.ne.s32.totalorder %s27, %s28
      %p42 = scmp.eq.s32.totalorder %s18, 1
      %p43 = por %p41, %p42
      %p45 = scmp.ne.s32.totalorder %s28, %s44
      %p46 = scmp.eq.s32.totalorder %s18, 0
      %p47 = por %p45, %p46
      %s48 = sshrl.u32 %s12, 3
      %s49 = sshrl.u32 %s19, 3
      %s50 = ssub.s32 %s48, %s49
      %p51 = scmp.eq.s32.totalorder %s50, 0
      %s53 = sadd.s32 %s52, 1
      %s54 = scalar_select %p51, %s52, %s53
      %p57 = pneg %p51
      %p58 = scmp.eq.s32.totalorder %s12, 1
      %p59 = por %p57, %p58
      %p60 = scmp.ne.s32.totalorder %s52, %s55
      %p61 = scmp.eq.s32.totalorder %s12, 0
      %p62 = por %p60, %p61
      %p63 = scmp.ne.s32.totalorder %s52, %s55
      %p64 = scmp.eq.s32.totalorder %s17, 1
      %p65 = por %p63, %p64
      %p66 = scmp.ne.s32.totalorder %s55, %s56
      %p67 = scmp.eq.s32.totalorder %s17, 0
      %p68 = por %p66, %p67
      %p69 = scmp.ne.s32.totalorder %s55, %s56
      %p70 = scmp.eq.s32.totalorder %s18, 1
      %p71 = por %p69, %p70
      %p73 = scmp.ne.s32.totalorder %s56, %s72
      %p74 = scmp.eq.s32.totalorder %s18, 0
      %p75 = por %p73, %p74
      %p76 = scmp.le.s32.totalorder 1, %s12
      %p77 = scmp.lt.s32.totalorder %s12, 3
      %p78 = pnand %p76, %p77
      %p79 = pneg %p78
      // Predicated region
      $region9: #{custom-call.2} parent=5 // pred_check
        _
      $region10: #{custom-call.2} parent=5 // pred_check_branch
        %81 = sbr.rel (%p78) target = $region12
      $region11: #{custom-call.2} parent=5 // pred_region
        %s82 = ssub.s32 %s12, 1
      $region12: #{custom-call.2} parent=5 // pred_fallthru
        _
      %p83 = scmp.lt.s32.totalorder %s12, 2
      // Predicated region
      $region13: #{custom-call.2} parent=5 // pred_check
        %p84 = pneg %p83
      $region14: #{custom-call.2} parent=5 // pred_check_branch
        %86 = sbr.rel (%p84) target = $region16
      $region15: #{custom-call.2} parent=5 // pred_region
        %s87 = sand.u32 %s12, 1
        %s88 = sand.u32 %s12, 1
        %s89 = smul.addr %s88, 8
        %s90 = scalar_lea.vmem [#allocation0], %s89
        %s91 = smul.addr %s12, 8
        %s92 = scalar_lea.vmem %s0, %s91
        // Predicated region
        $region17: #{custom-call.2} parent=15 // pred_check
          _
        $region18: #{custom-call.2} parent=15 // pred_check_branch
          %94 = sbr.rel (0) target = $region20
        $region19: #{custom-call.2} parent=15 // pred_region
          // Predicated region
          $region21: #{custom-call.2} parent=19 // pred_check
            _
          $region22: #{custom-call.2} parent=19 // pred_check_branch
            %96 = sbr.rel (0) target = $region24
          $region23: #{custom-call.2} parent=19 // pred_region
            // Predicated region
            $region36: #{custom-call.2} parent=23 // pred_check
              _
            $region37: #{custom-call.2} parent=23 // pred_check_branch
              %112 = sbr.rel (0) target = $region39
            $region38: #{custom-call.2} parent=23 // pred_region
              loop: start=0, step=1, limit=1
              $region40: #{custom-call.2} parent=38 // loop_pre_header
                _
              $region41: #{custom-call.2} parent=38 // loop_header
                %s114 = sphi 0, %s118
                %p115 = scmp.ge.s32.totalorder %s114, 1
                %s119 = sphi %s92, %s92
                %s120 = sphi %s90, %s90
              $region42: #{custom-call.2} parent=38 // loop_header_branch
                %117 = sbr.rel (%p115) target = $region46
              $region43: #{custom-call.2} parent=38 // loop_body
                %v121 = vld [vmem:[%s119] sm:$0xff]
                %122 = vst [vmem:[%s120] sm:$0xff] %v121
              $region44: #{custom-call.2} parent=38 // loop_footer
                %s118 = sadd.s32 1, %s114
              $region45: #{custom-call.2} parent=38 // loop_footer_branch
                %113 = sbr.rel target = $region41
              $region46: #{custom-call.2} parent=38 // loop_exit
                _
            $region39: #{custom-call.2} parent=23 // pred_fallthru
              _
            // Predicated region
            $region47: #{custom-call.2} parent=23 // pred_check
              _
            $region48: #{custom-call.2} parent=23 // pred_check_branch
              %124 = sbr.rel target = $region50
            $region49: #{custom-call.2} parent=23 // pred_region
              _
            $region50: #{custom-call.2} parent=23 // pred_fallthru
              _
          $region24: #{custom-call.2} parent=19 // pred_fallthru
            _
          // Predicated region
          $region25: #{custom-call.2} parent=19 // pred_check
            _
          $region26: #{custom-call.2} parent=19 // pred_check_branch
            %98 = sbr.rel target = $region28
          $region27: #{custom-call.2} parent=19 // pred_region
            %s100 = ssub.s32 256, 1
            loop: start=0, step=1, limit=1
            $region29: #{custom-call.2} parent=27 // loop_pre_header
              _
            $region30: #{custom-call.2} parent=27 // loop_header
              %s102 = sphi 0, %s106
              %p103 = scmp.ge.s32.totalorder %s102, 1
              %s107 = sphi %s92, %s92
              %s108 = sphi %s90, %s90
            $region31: #{custom-call.2} parent=27 // loop_header_branch
              %105 = sbr.rel (%p103) target = $region35
            $region32: #{custom-call.2} parent=27 // loop_body
              %v109 = vld [vmem:[%s107] sm:%s100]
              %110 = vst [vmem:[%s108] sm:%s100] %v109
            $region33: #{custom-call.2} parent=27 // loop_footer
              %s106 = sadd.s32 1, %s102
            $region34: #{custom-call.2} parent=27 // loop_footer_branch
              %101 = sbr.rel target = $region30
            $region35: #{custom-call.2} parent=27 // loop_exit
              _
          $region28: #{custom-call.2} parent=19 // pred_fallthru
            _
        $region20: #{custom-call.2} parent=15 // pred_fallthru
          _
        %125 = vnop
        %s126 = sand.u32 %s12, 1
        %s127 = sand.u32 %s12, 1
        %s128 = smul.addr %s127, 8
        %s129 = scalar_lea.vmem [#allocation1], %s128
        %s130 = smul.addr %s12, 8
        %s131 = scalar_lea.vmem %s1, %s130
        // Predicated region
        $region51: #{custom-call.2} parent=15 // pred_check
          _
        $region52: #{custom-call.2} parent=15 // pred_check_branch
          %133 = sbr.rel (0) target = $region54
        $region53: #{custom-call.2} parent=15 // pred_region
          // Predicated region
          $region55: #{custom-call.2} parent=53 // pred_check
            _
          $region56: #{custom-call.2} parent=53 // pred_check_branch
            %135 = sbr.rel (0) target = $region58
          $region57: #{custom-call.2} parent=53 // pred_region
            // Predicated region
            $region70: #{custom-call.2} parent=57 // pred_check
              _
            $region71: #{custom-call.2} parent=57 // pred_check_branch
              %151 = sbr.rel (0) target = $region73
            $region72: #{custom-call.2} parent=57 // pred_region
              loop: start=0, step=1, limit=1
              $region74: #{custom-call.2} parent=72 // loop_pre_header
                _
              $region75: #{custom-call.2} parent=72 // loop_header
                %s153 = sphi 0, %s157
                %p154 = scmp.ge.s32.totalorder %s153, 1
                %s158 = sphi %s131, %s131
                %s159 = sphi %s129, %s129
              $region76: #{custom-call.2} parent=72 // loop_header_branch
                %156 = sbr.rel (%p154) target = $region80
              $region77: #{custom-call.2} parent=72 // loop_body
                %v160 = vld [vmem:[%s158] sm:$0xff]
                %161 = vst [vmem:[%s159] sm:$0xff] %v160
              $region78: #{custom-call.2} parent=72 // loop_footer
                %s157 = sadd.s32 1, %s153
              $region79: #{custom-call.2} parent=72 // loop_footer_branch
                %152 = sbr.rel target = $region75
              $region80: #{custom-call.2} parent=72 // loop_exit
                _
            $region73: #{custom-call.2} parent=57 // pred_fallthru
              _
            // Predicated region
            $region81: #{custom-call.2} parent=57 // pred_check
              _
            $region82: #{custom-call.2} parent=57 // pred_check_branch
              %163 = sbr.rel target = $region84
            $region83: #{custom-call.2} parent=57 // pred_region
              _
            $region84: #{custom-call.2} parent=57 // pred_fallthru
              _
          $region58: #{custom-call.2} parent=53 // pred_fallthru
            _
          // Predicated region
          $region59: #{custom-call.2} parent=53 // pred_check
            _
          $region60: #{custom-call.2} parent=53 // pred_check_branch
            %137 = sbr.rel target = $region62
          $region61: #{custom-call.2} parent=53 // pred_region
            %s139 = ssub.s32 256, 1
            loop: start=0, step=1, limit=1
            $region63: #{custom-call.2} parent=61 // loop_pre_header
              _
            $region64: #{custom-call.2} parent=61 // loop_header
              %s141 = sphi 0, %s145
              %p142 = scmp.ge.s32.totalorder %s141, 1
              %s146 = sphi %s131, %s131
              %s147 = sphi %s129, %s129
            $region65: #{custom-call.2} parent=61 // loop_header_branch
              %144 = sbr.rel (%p142) target = $region69
            $region66: #{custom-call.2} parent=61 // loop_body
              %v148 = vld [vmem:[%s146] sm:%s139]
              %149 = vst [vmem:[%s147] sm:%s139] %v148
            $region67: #{custom-call.2} parent=61 // loop_footer
              %s145 = sadd.s32 1, %s141
            $region68: #{custom-call.2} parent=61 // loop_footer_branch
              %140 = sbr.rel target = $region64
            $region69: #{custom-call.2} parent=61 // loop_exit
              _
          $region62: #{custom-call.2} parent=53 // pred_fallthru
            _
        $region54: #{custom-call.2} parent=15 // pred_fallthru
          _
        %164 = vnop
        %s165 = sand.u32 %s12, 1
        %s166 = sand.u32 %s12, 1
        %s167 = smul.addr %s166, 8
        %s168 = scalar_lea.vmem [#allocation2], %s167
        %s169 = smul.addr %s12, 8
        %s170 = scalar_lea.vmem %s2, %s169
        // Predicated region
        $region85: #{custom-call.2} parent=15 // pred_check
          _
        $region86: #{custom-call.2} parent=15 // pred_check_branch
          %172 = sbr.rel (0) target = $region88
        $region87: #{custom-call.2} parent=15 // pred_region
          // Predicated region
          $region89: #{custom-call.2} parent=87 // pred_check
            _
          $region90: #{custom-call.2} parent=87 // pred_check_branch
            %174 = sbr.rel (0) target = $region92
          $region91: #{custom-call.2} parent=87 // pred_region
            // Predicated region
            $region104: #{custom-call.2} parent=91 // pred_check
              _
            $region105: #{custom-call.2} parent=91 // pred_check_branch
              %190 = sbr.rel (0) target = $region107
            $region106: #{custom-call.2} parent=91 // pred_region
              loop: start=0, step=1, limit=1
              $region108: #{custom-call.2} parent=106 // loop_pre_header
                _
              $region109: #{custom-call.2} parent=106 // loop_header
                %s192 = sphi 0, %s196
                %p193 = scmp.ge.s32.totalorder %s192, 1
                %s197 = sphi %s170, %s170
                %s198 = sphi %s168, %s168
              $region110: #{custom-call.2} parent=106 // loop_header_branch
                %195 = sbr.rel (%p193) target = $region114
              $region111: #{custom-call.2} parent=106 // loop_body
                %v199 = vld [vmem:[%s197] sm:$0xff]
                %200 = vst [vmem:[%s198] sm:$0xff] %v199
              $region112: #{custom-call.2} parent=106 // loop_footer
                %s196 = sadd.s32 1, %s192
              $region113: #{custom-call.2} parent=106 // loop_footer_branch
                %191 = sbr.rel target = $region109
              $region114: #{custom-call.2} parent=106 // loop_exit
                _
            $region107: #{custom-call.2} parent=91 // pred_fallthru
              _
            // Predicated region
            $region115: #{custom-call.2} parent=91 // pred_check
              _
            $region116: #{custom-call.2} parent=91 // pred_check_branch
              %202 = sbr.rel target = $region118
            $region117: #{custom-call.2} parent=91 // pred_region
              _
            $region118: #{custom-call.2} parent=91 // pred_fallthru
              _
          $region92: #{custom-call.2} parent=87 // pred_fallthru
            _
          // Predicated region
          $region93: #{custom-call.2} parent=87 // pred_check
            _
          $region94: #{custom-call.2} parent=87 // pred_check_branch
            %176 = sbr.rel target = $region96
          $region95: #{custom-call.2} parent=87 // pred_region
            %s178 = ssub.s32 256, 1
            loop: start=0, step=1, limit=1
            $region97: #{custom-call.2} parent=95 // loop_pre_header
              _
            $region98: #{custom-call.2} parent=95 // loop_header
              %s180 = sphi 0, %s184
              %p181 = scmp.ge.s32.totalorder %s180, 1
              %s185 = sphi %s170, %s170
              %s186 = sphi %s168, %s168
            $region99: #{custom-call.2} parent=95 // loop_header_branch
              %183 = sbr.rel (%p181) target = $region103
            $region100: #{custom-call.2} parent=95 // loop_body
              %v187 = vld [vmem:[%s185] sm:%s178]
              %188 = vst [vmem:[%s186] sm:%s178] %v187
            $region101: #{custom-call.2} parent=95 // loop_footer
              %s184 = sadd.s32 1, %s180
            $region102: #{custom-call.2} parent=95 // loop_footer_branch
              %179 = sbr.rel target = $region98
            $region103: #{custom-call.2} parent=95 // loop_exit
              _
          $region96: #{custom-call.2} parent=87 // pred_fallthru
            _
        $region88: #{custom-call.2} parent=15 // pred_fallthru
          _
        %203 = vnop
        %s204 = sand.u32 %s12, 1
        %s205 = sand.u32 %s12, 1
        %s206 = smul.addr %s205, 8
        %s207 = scalar_lea.vmem [#allocation3], %s206
        %s208 = smul.addr %s12, 8
        %s209 = scalar_lea.vmem %s3, %s208
        // Predicated region
        $region119: #{custom-call.2} parent=15 // pred_check
          _
        $region120: #{custom-call.2} parent=15 // pred_check_branch
          %211 = sbr.rel (0) target = $region122
        $region121: #{custom-call.2} parent=15 // pred_region
          // Predicated region
          $region123: #{custom-call.2} parent=121 // pred_check
            _
          $region124: #{custom-call.2} parent=121 // pred_check_branch
            %213 = sbr.rel (0) target = $region126
          $region125: #{custom-call.2} parent=121 // pred_region
            // Predicated region
            $region138: #{custom-call.2} parent=125 // pred_check
              _
            $region139: #{custom-call.2} parent=125 // pred_check_branch
              %229 = sbr.rel (0) target = $region141
            $region140: #{custom-call.2} parent=125 // pred_region
              loop: start=0, step=1, limit=1
              $region142: #{custom-call.2} parent=140 // loop_pre_header
                _
              $region143: #{custom-call.2} parent=140 // loop_header
                %s231 = sphi 0, %s235
                %p232 = scmp.ge.s32.totalorder %s231, 1
                %s236 = sphi %s209, %s209
                %s237 = sphi %s207, %s207
              $region144: #{custom-call.2} parent=140 // loop_header_branch
                %234 = sbr.rel (%p232) target = $region148
              $region145: #{custom-call.2} parent=140 // loop_body
                %v238 = vld [vmem:[%s236] sm:$0xff]
                %239 = vst [vmem:[%s237] sm:$0xff] %v238
              $region146: #{custom-call.2} parent=140 // loop_footer
                %s235 = sadd.s32 1, %s231
              $region147: #{custom-call.2} parent=140 // loop_footer_branch
                %230 = sbr.rel target = $region143
              $region148: #{custom-call.2} parent=140 // loop_exit
                _
            $region141: #{custom-call.2} parent=125 // pred_fallthru
              _
            // Predicated region
            $region149: #{custom-call.2} parent=125 // pred_check
              _
            $region150: #{custom-call.2} parent=125 // pred_check_branch
              %241 = sbr.rel target = $region152
            $region151: #{custom-call.2} parent=125 // pred_region
              _
            $region152: #{custom-call.2} parent=125 // pred_fallthru
              _
          $region126: #{custom-call.2} parent=121 // pred_fallthru
            _
          // Predicated region
          $region127: #{custom-call.2} parent=121 // pred_check
            _
          $region128: #{custom-call.2} parent=121 // pred_check_branch
            %215 = sbr.rel target = $region130
          $region129: #{custom-call.2} parent=121 // pred_region
            %s217 = ssub.s32 256, 1
            loop: start=0, step=1, limit=1
            $region131: #{custom-call.2} parent=129 // loop_pre_header
              _
            $region132: #{custom-call.2} parent=129 // loop_header
              %s219 = sphi 0, %s223
              %p220 = scmp.ge.s32.totalorder %s219, 1
              %s224 = sphi %s209, %s209
              %s225 = sphi %s207, %s207
            $region133: #{custom-call.2} parent=129 // loop_header_branch
              %222 = sbr.rel (%p220) target = $region137
            $region134: #{custom-call.2} parent=129 // loop_body
              %v226 = vld [vmem:[%s224] sm:%s217]
              %227 = vst [vmem:[%s225] sm:%s217] %v226
            $region135: #{custom-call.2} parent=129 // loop_footer
              %s223 = sadd.s32 1, %s219
            $region136: #{custom-call.2} parent=129 // loop_footer_branch
              %218 = sbr.rel target = $region132
            $region137: #{custom-call.2} parent=129 // loop_exit
              _
          $region130: #{custom-call.2} parent=121 // pred_fallthru
            _
        $region122: #{custom-call.2} parent=15 // pred_fallthru
          _
        %242 = vnop
      $region16: #{custom-call.2} parent=5 // pred_fallthru
        _
      %p243 = scmp.le.s32.totalorder 1, %s12
      %p244 = scmp.lt.s32.totalorder %s12, 3
      %p245 = pnand %p243, %p244
      %p246 = pneg %p245
      // Predicated region
      $region153: #{custom-call.2} parent=5 // pred_check
        _
      $region154: #{custom-call.2} parent=5 // pred_check_branch
        %248 = sbr.rel (%p245) target = $region156
      $region155: #{custom-call.2} parent=5 // pred_region
        #allocation12 [shape = 'f32[5,5]{1,0}', space=vmem, size = 0x1000, scoped, tag = 'a top-left matrix']
        #allocation13 [shape = 'f32[5,5]{1,0}', space=vmem, size = 0x1000, scoped, tag = 'a top-right matrix']
        #allocation14 [shape = 'f32[5,5]{1,0}', space=vmem, size = 0x1000, scoped, tag = 'a bottom-left matrix']
        #allocation15 [shape = 'f32[5,5]{1,0}', space=vmem, size = 0x1000, scoped, tag = 'a bottom-right matrix']
        %s249 = ssub.s32 %s12, 1
        %s250 = sand.u32 %s17, 1
        %s251 = sand.u32 %s17, 1
        %s252 = smul.addr %s251, 8
        %s253 = scalar_lea.vmem [#allocation0], %s252
        %s254 = sand.u32 %s17, 1
        %s255 = sand.u32 %s17, 1
        %s256 = smul.addr %s255, 8
        %s257 = scalar_lea.vmem [#allocation1], %s256
        %s258 = sand.u32 %s17, 1
        %s259 = sand.u32 %s17, 1
        %s260 = smul.addr %s259, 8
        %s261 = scalar_lea.vmem [#allocation2], %s260
        %s262 = sand.u32 %s17, 1
        %s263 = sand.u32 %s17, 1
        %s264 = smul.addr %s263, 8
        %s265 = scalar_lea.vmem [#allocation3], %s264
        %s266 = sand.u32 %s17, 1
        %s267 = sand.u32 %s17, 1
        %s268 = smul.addr %s267, 8
        %s269 = scalar_lea.vmem [#allocation0], %s268
        %s270 = sand.u32 %s17, 1
        %s271 = sand.u32 %s17, 1
        %s272 = smul.addr %s271, 8
        %s273 = scalar_lea.vmem [#allocation1], %s272
        %s274 = sand.u32 %s17, 1
        %s275 = sand.u32 %s17, 1
        %s276 = smul.addr %s275, 8
        %s277 = scalar_lea.vmem [#allocation2], %s276
        %s278 = sand.u32 %s17, 1
        %s279 = sand.u32 %s17, 1
        %s280 = smul.addr %s279, 8
        %s281 = scalar_lea.vmem [#allocation3], %s280
        %p282 = pneg %p40
        %p283 = pneg %p37
        %s284 = sand.u32 %s27, 1
        %s285 = sand.u32 %s27, 1
        %s286 = smul.addr %s285, 2
        %s287 = scalar_lea.vmem [#allocation5], %s286
        %p288 = pneg %p68
        %p289 = pneg %p65
        %s290 = sand.u32 %s55, 1
        %s291 = sand.u32 %s55, 1
        %s292 = smul.addr %s291, 2
        %s293 = scalar_lea.vmem [#allocation7], %s292
        %s294 = sand.u32 %s17, 1
        %s295 = sand.u32 %s17, 1
        %s296 = smul.addr %s295, 8
        %s297 = scalar_lea.vmem [#allocation8], %s296
        %s298 = sand.u32 %s17, 1
        %s299 = sand.u32 %s17, 1
        %s300 = smul.addr %s299, 8
        %s301 = scalar_lea.vmem [#allocation9], %s300
        %s302 = sand.u32 %s17, 1
        %s303 = sand.u32 %s17, 1
        %s304 = smul.addr %s303, 8
        %s305 = scalar_lea.vmem [#allocation10], %s304
        %s306 = sand.u32 %s17, 1
        %s307 = sand.u32 %s17, 1
        %s308 = smul.addr %s307, 8
        %s309 = scalar_lea.vmem [#allocation11], %s308
        %s310 = sshrl.u32 %s17, 3
        %s311 = sshrl.u32 %s17, 3
        %s312 = smov [#allocation12]
        %v313 = vld [vmem:[%s253] sm:$0xff]
        %314 = vst [vmem:[%s312] sm:$0xff] %v313
        %s315 = smov [#allocation13]
        %v316 = vld [vmem:[%s257] sm:$0xff]
        %317 = vst [vmem:[%s315] sm:$0xff] %v316
        %s318 = smov [#allocation14]
        %v319 = vld [vmem:[%s261] sm:$0xff]
        %320 = vst [vmem:[%s318] sm:$0xff] %v319
        %s321 = smov [#allocation15]
        %v322 = vld [vmem:[%s265] sm:$0xff]
        %323 = vst [vmem:[%s321] sm:$0xff] %v322
        %324 = vst [vmem:[%s297] sm:$0xff] 0.0
        %325 = vst [vmem:[%s301] sm:$0xff] 0.0
        %326 = vst [vmem:[%s305] sm:$0xff] 0.0
        %327 = vst [vmem:[%s309] sm:$0xff] 0.0
        %s328 = smov %s297
        %v329 = vlaneseq
        %v330 = vand.u32 %v329, 127
        %v331 = vmov %v330
        %v332 = vlaneseq
        %v333 = vshrl.u32 %v332, 7
        %v334 = vmov %v333
        %v335 = vld [vmem:[%s328] sm:$0x1f]
        %vm338 = vcmp.eq.s32.totalorder %v334, %v331
        %v339 = vsel %vm338, 1.0, %v335
        %340 = vst [vmem:[%s328] sm:$0x1f] %v339
        %s341 = smov %s309
        %v342 = vlaneseq
        %v343 = vand.u32 %v342, 127
        %v344 = vmov %v343
        %v345 = vlaneseq
        %v346 = vshrl.u32 %v345, 7
        %v347 = vmov %v346
        %v348 = vld [vmem:[%s341] sm:$0x1f]
        %vm351 = vcmp.eq.s32.totalorder %v347, %v344
        %v352 = vsel %vm351, 1.0, %v348
        %353 = vst [vmem:[%s341] sm:$0x1f] %v352
        // While loop
        $region157: #{custom-call.2} parent=155 // loop_pre_header
          _
        $region158: #{custom-call.2} parent=155 // loop_header
          %s355 = sphi 0, %s937
          %v356 = vlaneseq
          %v357 = vand.u32 %v356, 127
          %v358 = vmov %v357
          %v359 = vlaneseq
          %v360 = vshrl.u32 %v359, 7
          %v361 = vmov %v360
          %s362 = smov [#allocation12]
          %v363 = vlaneseq
          %v364 = vand.u32 %v363, 127
          %vm365 = vcmp.ge.s32.totalorder %v364, 0
          %vm366 = vcmp.lt.s32.totalorder %v364, 5
          %vm367 = vmand %vm365, %vm366
          %v368 = vld [vmem:[%s362] sm:$0x1f]
          %v369 = vsel %vm367, %v368, 0.0
          %v370 = vmul.f32 %v369, %v369
          %vm373 = vcmp.eq.s32.totalorder %v361, %v358
          %v374 = vsel %vm373, 0.0, %v370
          %v375 = vlaneseq
          %v376 = vand.u32 %v375, 127
          %v377 = vmov %v376
          %v378 = vlaneseq
          %v379 = vshrl.u32 %v378, 7
          %v380 = vmov %v379
          %s381 = smov [#allocation13]
          %v382 = vlaneseq
          %v383 = vand.u32 %v382, 127
          %vm384 = vcmp.ge.s32.totalorder %v383, 0
          %vm385 = vcmp.lt.s32.totalorder %v383, 5
          %vm386 = vmand %vm384, %vm385
          %v387 = vld [vmem:[%s381] sm:$0x1f]
          %v388 = vsel %vm386, %v387, 0.0
          %v389 = vmul.f32 %v388, %v388
          %v390 = vadd.f32 %v374, %v389
          %v391 = vadd.f32 %v370, %v389
          %v392 = vlaneseq
          %v393 = vand.u32 %v392, 127
          %v394 = vmov %v393
          %v395 = vlaneseq
          %v396 = vshrl.u32 %v395, 7
          %v397 = vmov %v396
          %s398 = smov [#allocation14]
          %v399 = vlaneseq
          %v400 = vand.u32 %v399, 127
          %vm401 = vcmp.ge.s32.totalorder %v400, 0
          %vm402 = vcmp.lt.s32.totalorder %v400, 5
          %vm403 = vmand %vm401, %vm402
          %v404 = vld [vmem:[%s398] sm:$0x1f]
          %v405 = vsel %vm403, %v404, 0.0
          %v406 = vmul.f32 %v405, %v405
          %v407 = vadd.f32 %v390, %v406
          %v408 = vadd.f32 %v391, %v406
          %v409 = vlaneseq
          %v410 = vand.u32 %v409, 127
          %v411 = vmov %v410
          %v412 = vlaneseq
          %v413 = vshrl.u32 %v412, 7
          %v414 = vmov %v413
          %s415 = smov [#allocation15]
          %v416 = vlaneseq
          %v417 = vand.u32 %v416, 127
          %vm418 = vcmp.ge.s32.totalorder %v417, 0
          %vm419 = vcmp.lt.s32.totalorder %v417, 5
          %vm420 = vmand %vm418, %vm419
          %v421 = vld [vmem:[%s415] sm:$0x1f]
          %v422 = vsel %vm420, %v421, 0.0
          %v423 = vmul.f32 %v422, %v422
          %vm426 = vcmp.eq.s32.totalorder %v414, %v411
          %v427 = vsel %vm426, 0.0, %v423
          %v428 = vadd.f32 %v407, %v427
          %v429 = vadd.f32 %v408, %v423
          %430 = vadd.xlane.f32.xlu0 %v429
          %v431 = vpop.xlane.xlu0 %430
          %v432 = vrot.slane %v431, 4
          %v433 = vadd.f32 %v431, %v432
          %v434 = vrot.slane %v433, 2
          %v435 = vadd.f32 %v433, %v434
          %v436 = vrot.slane %v435, 1
          %v437 = vadd.f32 %v435, %v436
          %438 = vadd.xlane.f32.xlu0 %v428
          %v439 = vpop.xlane.xlu0 %438
          %v440 = vrot.slane %v439, 4
          %v441 = vadd.f32 %v439, %v440
          %v442 = vrot.slane %v441, 2
          %v443 = vadd.f32 %v441, %v442
          %v444 = vrot.slane %v443, 1
          %v445 = vadd.f32 %v443, %v444
          %s446 = vtos %v445
          %s447 = vtos %v437
          %s448 = smul.f32 1e-10, %s447
          %p449 = scmp.le.f32.partialorder %s446, %s448
          %p450 = scmp.ge.s32.totalorder %s355, 15
          %p451 = por %p449, %p450
        $region159: #{custom-call.2} parent=155 // loop_header_branch
          %939 = sbr.rel (%p451) target = $region163
        $region160: #{custom-call.2} parent=155 // loop_body
          loop: start=0, step=1, limit=9
          $region164: #{custom-call.2} parent=160 // loop_pre_header
            _
          $region165: #{custom-call.2} parent=160 // loop_header
            %s453 = sphi 0, %s457
            %p454 = scmp.ge.s32.totalorder %s453, 9
          $region166: #{custom-call.2} parent=160 // loop_header_branch
            %456 = sbr.rel (%p454) target = $region170
          $region167: #{custom-call.2} parent=160 // loop_body
            #allocation16 [shape = 'f32[1024]{0}', space=vmem, size = 0x1000, scoped, tag = 'a_tl_diag vmem']
            #allocation17 [shape = 'f32[1024]{0}', space=vmem, size = 0x1000, scoped, tag = 'a_tr_diag vmem']
            #allocation18 [shape = 'f32[1024]{0}', space=vmem, size = 0x1000, scoped, tag = 'a_br_diag vmem']
            #allocation19 [shape = 'f32[1024]{0}', space=vmem, size = 0x1000, scoped, tag = 'rt1 vmem']
            #allocation20 [shape = 'f32[1024]{0}', space=vmem, size = 0x1000, scoped, tag = 'rt2 vmem']
            #allocation21 [shape = 'f32[1024]{0}', space=vmem, size = 0x1000, scoped, tag = 'c vmem']
            #allocation22 [shape = 'f32[1024]{0}', space=vmem, size = 0x1000, scoped, tag = 's vmem']
            #allocation23 [shape = 'f32[4096]{0}', space=vmem, size = 0x4000, scoped, tag = 'c broadcast']
            #allocation24 [shape = 'f32[4096]{0}', space=vmem, size = 0x4000, scoped, tag = 's broadcast']
            %s458 = smov [#allocation12]
            %s459 = smov [#allocation16]
            %v460 = vlaneseq
            %v461 = vand.u32 %v460, 127
            %v462 = vmov %v461
            %v463 = vlaneseq
            %v464 = vshrl.u32 %v463, 7
            %v465 = vmov %v464
            %v466 = vld [vmem:[%s458] sm:$0x1f]
            %vm469 = vcmp.eq.s32.totalorder %v465, %v462
            %v470 = vsel %vm469, %v466, 0.0
            %v471 = vrot.slane %v470, 4
            %v472 = vadd.f32 %v470, %v471
            %v473 = vrot.slane %v472, 2
            %v474 = vadd.f32 %v472, %v473
            %v475 = vrot.slane %v474, 1
            %v476 = vadd.f32 %v474, %v475
            %477 = vst [vmem:[%s459] sm:$0x1] %v476
            %s478 = smov [#allocation13]
            %s479 = smov [#allocation17]
            %v480 = vlaneseq
            %v481 = vand.u32 %v480, 127
            %v482 = vmov %v481
            %v483 = vlaneseq
            %v484 = vshrl.u32 %v483, 7
            %v485 = vmov %v484
            %v486 = vld [vmem:[%s478] sm:$0x1f]
            %vm489 = vcmp.eq.s32.totalorder %v485, %v482
            %v490 = vsel %vm489, %v486, 0.0
            %v491 = vrot.slane %v490, 4
            %v492 = vadd.f32 %v490, %v491
            %v493 = vrot.slane %v492, 2
            %v494 = vadd.f32 %v492, %v493
            %v495 = vrot.slane %v494, 1
            %v496 = vadd.f32 %v494, %v495
            %497 = vst [vmem:[%s479] sm:$0x1] %v496
            %s498 = smov [#allocation15]
            %s499 = smov [#allocation18]
            %v500 = vlaneseq
            %v501 = vand.u32 %v500, 127
            %v502 = vmov %v501
            %v503 = vlaneseq
            %v504 = vshrl.u32 %v503, 7
            %v505 = vmov %v504
            %v506 = vld [vmem:[%s498] sm:$0x1f]
            %vm509 = vcmp.eq.s32.totalorder %v505, %v502
            %v510 = vsel %vm509, %v506, 0.0
            %v511 = vrot.slane %v510, 4
            %v512 = vadd.f32 %v510, %v511
            %v513 = vrot.slane %v512, 2
            %v514 = vadd.f32 %v512, %v513
            %v515 = vrot.slane %v514, 1
            %v516 = vadd.f32 %v514, %v515
            %517 = vst [vmem:[%s499] sm:$0x1] %v516
            %s518 = smov [#allocation21]
            %s519 = smov [#allocation22]
            %s520 = smov [#allocation16]
            %v521 = vld [vmem:[%s520] sm:$0xff]
            %s522 = smov [#allocation17]
            %v523 = vld [vmem:[%s522] sm:$0xff]
            %s524 = smov [#allocation18]
            %v525 = vld [vmem:[%s524] sm:$0xff]
            %v526 = vsub.f32 %v525, %v521
            %v527 = vmul.f32 2.0, %v523
            %v528 = vrcp.pop %v527
            %v529 = vmul.f32 %v527, %v528
            %v530 = vsub.f32 1.0, %v529
            %v531 = vmul.f32 %v528, %v530
            %v532 = vadd.f32 %v528, %v531
            %vm533 = vweird.f32 %v527
            %vm534 = vweird.f32 %v528
            %vm535 = vmor %vm533, %vm534
            %v536 = vsel %vm535, %v528, %v532
            %v537 = vand.u32 2147483647, %v527
            %vm538 = vcmp.eq.f32.partialorder %v537, 8.507059e+37
            %v539 = vand.u32 %v527, 2147483648
            %v540 = vor.u32 1.1754944e-38, %v539
            %v541 = vsel %vm538, %v540, %v536
            %v542 = vmul.f32 %v526, %v541
            %vm543 = vcmp.ge.f32.partialorder %v542, 0.0
            %v544 = vmul.f32 %v542, %v542
            %v545 = vadd.f32 1.0, %v544
            %v546 = vrsqrt.pop %v545
            %v547 = vmul.f32 %v546, %v545
            %v548 = vmul.f32 %v547, %v546
            %v549 = vmul.f32 0.5, %v548
            %v550 = vsub.f32 1.5, %v549
            %v551 = vmul.f32 %v546, %v550
            %v552 = vmul.f32 %v545, %v551
            %vm553 = vcmp.eq.f32.partialorder %v545, inf
            %v554 = vsel %vm553, %v545, %v552
            %vm555 = vcmp.eq.f32.partialorder %v545, 0.0
            %v556 = vand.u32 %v545, 2147483648
            %v557 = vsel %vm555, %v556, %v554
            %v558 = vxor.u32 %v557, 2147483648
            %v559 = vsel %vm543, %v557, %v558
            %v560 = vadd.f32 %v542, %v559
            %v561 = vrcp.pop %v560
            %v562 = vmul.f32 %v560, %v561
            %v563 = vsub.f32 1.0, %v562
            %v564 = vmul.f32 %v561, %v563
            %v565 = vadd.f32 %v561, %v564
            %vm566 = vweird.f32 %v560
            %vm567 = vweird.f32 %v561
            %vm568 = vmor %vm566, %vm567
            %v569 = vsel %vm568, %v561, %v565
            %v570 = vand.u32 2147483647, %v560
            %vm571 = vcmp.eq.f32.partialorder %v570, 8.507059e+37
            %v572 = vand.u32 %v560, 2147483648
            %v573 = vor.u32 1.1754944e-38, %v572
            %v574 = vsel %vm571, %v573, %v569
            %v575 = vand.u32 2147483647, %v521
            %v576 = vand.u32 2147483647, %v523
            %v577 = vand.u32 2147483647, %v525
            %v578 = vmin.f32 %v575, %v577
            %v579 = vmul.f32 1.1920929e-08, %v578
            %vm580 = vcmp.le.f32.partialorder %v576, %v579
            %v581 = vsel %vm580, 0.0, %v574
            %v582 = vmul.f32 %v581, %v581
            %v583 = vadd.f32 1.0, %v582
            %v584 = vrsqrt.pop %v583
            %v585 = vmul.f32 %v584, %v583
            %v586 = vmul.f32 %v585, %v584
            %v587 = vmul.f32 0.5, %v586
            %v588 = vsub.f32 1.5, %v587
            %v589 = vmul.f32 %v584, %v588
            %vm590 = vweird.f32 %v583
            %vm591 = vweird.f32 %v584
            %vm592 = vmor %vm590, %vm591
            %v593 = vsel %vm592, %v584, %v589
            %v594 = vmul.f32 %v581, %v593
            %v595 = vmul.f32 %v581, %v523
            %v596 = vsub.f32 %v521, %v595
            %v597 = vmul.f32 %v581, %v523
            %v598 = vadd.f32 %v525, %v597
            %s599 = smov [#allocation19]
            %600 = vst [vmem:[%s599] sm:$0xff] %v596
            %s601 = smov [#allocation20]
            %602 = vst [vmem:[%s601] sm:$0xff] %v598
            %s603 = smov %s518
            %604 = vst [vmem:[%s603] sm:$0xff] %v593
            %s605 = smov %s519
            %606 = vst [vmem:[%s605] sm:$0xff] %v594
            %s607 = smov [#allocation21]
            %v608 = vld [vmem:[%s607] ss:$0 sm:$0xff]
            %v609 = vlaneseq
            %v610 = vand.u32 %v609, 127
            %v611 = vmov %v610
            %v612 = vlaneseq
            %v613 = vshrl.u32 %v612, 7
            %v614 = vmov %v613
            %vm616 = vcmp.eq.s32.totalorder %v614, %v611
            %v617 = vsel %vm616, %v608, 0.0
            %618 = vadd.xlane.f32.xlu0 %v617
            %v619 = vpop.xlane.xlu0 %618
            %s620 = smov [#allocation23]
            %621 = vst [vmem:[%s620] sm:$0xff] %v619
            %s622 = smov [#allocation22]
            %v623 = vld [vmem:[%s622] ss:$0 sm:$0xff]
            %v624 = vlaneseq
            %v625 = vand.u32 %v624, 127
            %v626 = vmov %v625
            %v627 = vlaneseq
            %v628 = vshrl.u32 %v627, 7
            %v629 = vmov %v628
            %vm631 = vcmp.eq.s32.totalorder %v629, %v626
            %v632 = vsel %vm631, %v623, 0.0
            %633 = vadd.xlane.f32.xlu0 %v632
            %v634 = vpop.xlane.xlu0 %633
            %s635 = smov [#allocation24]
            %636 = vst [vmem:[%s635] sm:$0xff] %v634
            %s637 = smov [#allocation23]
            %v638 = vld [vmem:[%s637] sm:$0xff]
            %s639 = smov [#allocation24]
            %v640 = vld [vmem:[%s639] sm:$0xff]
            %s641 = smov [#allocation12]
            %s642 = smov [#allocation13]
            %s643 = smov [#allocation14]
            %s644 = smov [#allocation15]
            %v645 = vld [vmem:[%s641] sm:$0x1f]
            %v646 = vld [vmem:[%s642] sm:$0x1f]
            %v647 = vld [vmem:[%s643] sm:$0x1f]
            %v648 = vld [vmem:[%s644] sm:$0x1f]
            %v649 = vmul.f32 %v638, %v645
            %v650 = vmul.f32 %v640, %v647
            %v651 = vsub.f32 %v649, %v650
            %v652 = vmul.f32 %v638, %v646
            %v653 = vmul.f32 %v640, %v648
            %v654 = vsub.f32 %v652, %v653
            %v655 = vmul.f32 %v640, %v645
            %v656 = vmul.f32 %v638, %v647
            %v657 = vadd.f32 %v655, %v656
            %v658 = vmul.f32 %v640, %v646
            %v659 = vmul.f32 %v638, %v648
            %v660 = vadd.f32 %v658, %v659
            %661 = vst [vmem:[%s641] sm:$0x1f] %v651
            %662 = vst [vmem:[%s642] sm:$0x1f] %v654
            %663 = vst [vmem:[%s643] sm:$0x1f] %v657
            %664 = vst [vmem:[%s644] sm:$0x1f] %v660
            %s665 = smov [#allocation21]
            %v666 = vld [vmem:[%s665] ss:$0 sm:$0xff]
            %s667 = smov [#allocation22]
            %v668 = vld [vmem:[%s667] ss:$0 sm:$0xff]
            %s669 = smov [#allocation12]
            %s670 = smov [#allocation13]
            %s671 = smov [#allocation14]
            %s672 = smov [#allocation15]
            %v673 = vld [vmem:[%s669] sm:$0x1f]
            %v674 = vld [vmem:[%s670] sm:$0x1f]
            %v675 = vld [vmem:[%s671] sm:$0x1f]
            %v676 = vld [vmem:[%s672] sm:$0x1f]
            %v677 = vmul.f32 %v666, %v673
            %v678 = vmul.f32 %v668, %v674
            %v679 = vsub.f32 %v677, %v678
            %v680 = vmul.f32 %v668, %v673
            %v681 = vmul.f32 %v666, %v674
            %v682 = vadd.f32 %v680, %v681
            %v683 = vmul.f32 %v666, %v675
            %v684 = vmul.f32 %v668, %v676
            %v685 = vsub.f32 %v683, %v684
            %v686 = vmul.f32 %v668, %v675
            %v687 = vmul.f32 %v666, %v676
            %v688 = vadd.f32 %v686, %v687
            %689 = vst [vmem:[%s669] sm:$0x1f] %v679
            %690 = vst [vmem:[%s670] sm:$0x1f] %v682
            %691 = vst [vmem:[%s671] sm:$0x1f] %v685
            %692 = vst [vmem:[%s672] sm:$0x1f] %v688
            %s693 = smov [#allocation12]
            %s694 = smov [#allocation19]
            %v695 = vlaneseq
            %v696 = vand.u32 %v695, 127
            %v697 = vmov %v696
            %v698 = vlaneseq
            %v699 = vshrl.u32 %v698, 7
            %v700 = vmov %v699
            %v701 = vld [vmem:[%s694] ss:$0 sm:$0xff]
            %v702 = vld [vmem:[%s693] sm:$0x1f]
            %vm705 = vcmp.eq.s32.totalorder %v700, %v697
            %v706 = vsel %vm705, %v701, %v702
            %707 = vst [vmem:[%s693] sm:$0x1f] %v706
            %s708 = smov [#allocation13]
            %v709 = vlaneseq
            %v710 = vand.u32 %v709, 127
            %v711 = vmov %v710
            %v712 = vlaneseq
            %v713 = vshrl.u32 %v712, 7
            %v714 = vmov %v713
            %v715 = vld [vmem:[%s708] sm:$0x1f]
            %vm718 = vcmp.eq.s32.totalorder %v714, %v711
            %v719 = vsel %vm718, 0.0, %v715
            %720 = vst [vmem:[%s708] sm:$0x1f] %v719
            %s721 = smov [#allocation14]
            %v722 = vlaneseq
            %v723 = vand.u32 %v722, 127
            %v724 = vmov %v723
            %v725 = vlaneseq
            %v726 = vshrl.u32 %v725, 7
            %v727 = vmov %v726
            %v728 = vld [vmem:[%s721] sm:$0x1f]
            %vm731 = vcmp.eq.s32.totalorder %v727, %v724
            %v732 = vsel %vm731, 0.0, %v728
            %733 = vst [vmem:[%s721] sm:$0x1f] %v732
            %s734 = smov [#allocation15]
            %s735 = smov [#allocation20]
            %v736 = vlaneseq
            %v737 = vand.u32 %v736, 127
            %v738 = vmov %v737
            %v739 = vlaneseq
            %v740 = vshrl.u32 %v739, 7
            %v741 = vmov %v740
            %v742 = vld [vmem:[%s735] ss:$0 sm:$0xff]
            %v743 = vld [vmem:[%s734] sm:$0x1f]
            %vm746 = vcmp.eq.s32.totalorder %v741, %v738
            %v747 = vsel %vm746, %v742, %v743
            %748 = vst [vmem:[%s734] sm:$0x1f] %v747
            %s749 = smov [#allocation12]
            %s750 = smov [#allocation13]
            %v751 = vld [vmem:[%s750] sm:$0x1f]
            %752 = vrot.lane.b32.xlu0 %v751, 1
            %v753 = vpop.permute.xlu0 %752
            %v754 = vld [vmem:[%s749] sm:$0x1f]
            %v755 = vld [vmem:[%s749] sm:$0x1f]
            %756 = vrot.lane.b32.xlu0 %v755, 1
            %v757 = vpop.permute.xlu0 %756
            %v758 = vlaneseq
            %v759 = vand.u32 %v758, 127
            %vm760 = vcmp.eq.s32.totalorder %v759, 0
            %v761 = vsel %vm760, %v755, %v757
            %v762 = vlaneseq
            %v763 = vand.u32 %v762, 127
            %vm764 = vcmp.eq.s32.totalorder %v763, 1
            %v765 = vsel %vm764, %v753, %v761
            %v766 = vlaneseq
            %v767 = vand.u32 %v766, 127
            %vm768 = vcmp.ge.s32.totalorder %v767, 0
            %vm769 = vcmp.lt.s32.totalorder %v767, 5
            %vm770 = vmand %vm768, %vm769
            %v771 = vsel %vm770, %v765, 0.0
            %v772 = vld [vmem:[%s750] sm:$0x1f]
            %773 = vrot.lane.b32.xlu0 %v772, 127
            %v774 = vpop.permute.xlu0 %773
            %v775 = vlaneseq
            %v776 = vand.u32 %v775, 127
            %vm777 = vcmp.eq.s32.totalorder %v776, 4
            %v778 = vsel %vm777, %v754, %v774
            %779 = vst [vmem:[%s749] sm:$0x1f] %v771
            %780 = vst [vmem:[%s750] sm:$0x1f] %v778
            %s781 = smov [#allocation14]
            %s782 = smov [#allocation15]
            %v783 = vld [vmem:[%s782] sm:$0x1f]
            %784 = vrot.lane.b32.xlu0 %v783, 1
            %v785 = vpop.permute.xlu0 %784
            %v786 = vld [vmem:[%s781] sm:$0x1f]
            %v787 = vld [vmem:[%s781] sm:$0x1f]
            %788 = vrot.lane.b32.xlu0 %v787, 1
            %v789 = vpop.permute.xlu0 %788
            %v790 = vlaneseq
            %v791 = vand.u32 %v790, 127
            %vm792 = vcmp.eq.s32.totalorder %v791, 0
            %v793 = vsel %vm792, %v787, %v789
            %v794 = vlaneseq
            %v795 = vand.u32 %v794, 127
            %vm796 = vcmp.eq.s32.totalorder %v795, 1
            %v797 = vsel %vm796, %v785, %v793
            %v798 = vlaneseq
            %v799 = vand.u32 %v798, 127
            %vm800 = vcmp.ge.s32.totalorder %v799, 0
            %vm801 = vcmp.lt.s32.totalorder %v799, 5
            %vm802 = vmand %vm800, %vm801
            %v803 = vsel %vm802, %v797, 0.0
            %v804 = vld [vmem:[%s782] sm:$0x1f]
            %805 = vrot.lane.b32.xlu0 %v804, 127
            %v806 = vpop.permute.xlu0 %805
            %v807 = vlaneseq
            %v808 = vand.u32 %v807, 127
            %vm809 = vcmp.eq.s32.totalorder %v808, 4
            %v810 = vsel %vm809, %v786, %v806
            %811 = vst [vmem:[%s781] sm:$0x1f] %v803
            %812 = vst [vmem:[%s782] sm:$0x1f] %v810
            %s813 = smov [#allocation12]
            %s814 = smov [#allocation14]
            %v815 = vld [vmem:[%s813] ss:$0 sm:$0xff]
            %s817 = scalar_lea.vmem %s813, 4294967295
            %v818 = vld [vmem:[%s817] sm:$0x1e]
            %v819 = vlaneseq
            %v820 = vshrl.u32 %v819, 7
            %vm821 = vcmp.eq.s32.totalorder %v820, 0
            %v822 = vsel %vm821, %v815, %v818
            %s823 = scalar_lea.vmem %s813, 4
            %v824 = vld [vmem:[%s823] ss:$0 sm:$0xff]
            %825 = vst [vmem:[%s813] sm:$0x1f] %v822
            %v826 = vld [vmem:[%s814] ss:$0 sm:$0xff]
            %s827 = scalar_lea.vmem %s813, 1
            %828 = vst [vmem:[%s827] sm:$0x1] %v826
            %s829 = scalar_lea.vmem %s814, 1
            %v830 = vld [vmem:[%s829] sm:$0xf]
            %v831 = vlaneseq
            %v832 = vshrl.u32 %v831, 7
            %vm833 = vcmp.eq.s32.totalorder %v832, 4
            %v834 = vsel %vm833, %v824, %v830
            %v835 = vld [vmem:[%s814] ss:$0 sm:$0xff]
            %836 = vst [vmem:[%s814] sm:$0x1f] %v834
            %s837 = smov [#allocation13]
            %s838 = smov [#allocation15]
            %v839 = vld [vmem:[%s837] ss:$0 sm:$0xff]
            %s841 = scalar_lea.vmem %s837, 4294967295
            %v842 = vld [vmem:[%s841] sm:$0x1e]
            %v843 = vlaneseq
            %v844 = vshrl.u32 %v843, 7
            %vm845 = vcmp.eq.s32.totalorder %v844, 0
            %v846 = vsel %vm845, %v839, %v842
            %s847 = scalar_lea.vmem %s837, 4
            %v848 = vld [vmem:[%s847] ss:$0 sm:$0xff]
            %849 = vst [vmem:[%s837] sm:$0x1f] %v846
            %v850 = vld [vmem:[%s838] ss:$0 sm:$0xff]
            %s851 = scalar_lea.vmem %s837, 1
            %852 = vst [vmem:[%s851] sm:$0x1] %v850
            %s853 = scalar_lea.vmem %s838, 1
            %v854 = vld [vmem:[%s853] sm:$0xf]
            %v855 = vlaneseq
            %v856 = vshrl.u32 %v855, 7
            %vm857 = vcmp.eq.s32.totalorder %v856, 4
            %v858 = vsel %vm857, %v848, %v854
            %v859 = vld [vmem:[%s838] ss:$0 sm:$0xff]
            %860 = vst [vmem:[%s838] sm:$0x1f] %v858
            %s861 = smov [#allocation23]
            %v862 = vld [vmem:[%s861] sm:$0xff]
            %s863 = smov [#allocation24]
            %v864 = vld [vmem:[%s863] sm:$0xff]
            %s865 = smov %s297
            %s866 = smov %s301
            %s867 = smov %s305
            %s868 = smov %s309
            %v869 = vld [vmem:[%s865] sm:$0x1f]
            %v870 = vld [vmem:[%s866] sm:$0x1f]
            %v871 = vld [vmem:[%s867] sm:$0x1f]
            %v872 = vld [vmem:[%s868] sm:$0x1f]
            %v873 = vmul.f32 %v862, %v869
            %v874 = vmul.f32 %v864, %v871
            %v875 = vsub.f32 %v873, %v874
            %v876 = vmul.f32 %v862, %v870
            %v877 = vmul.f32 %v864, %v872
            %v878 = vsub.f32 %v876, %v877
            %v879 = vmul.f32 %v864, %v869
            %v880 = vmul.f32 %v862, %v871
            %v881 = vadd.f32 %v879, %v880
            %v882 = vmul.f32 %v864, %v870
            %v883 = vmul.f32 %v862, %v872
            %v884 = vadd.f32 %v882, %v883
            %885 = vst [vmem:[%s865] sm:$0x1f] %v875
            %886 = vst [vmem:[%s866] sm:$0x1f] %v878
            %887 = vst [vmem:[%s867] sm:$0x1f] %v881
            %888 = vst [vmem:[%s868] sm:$0x1f] %v884
            %s889 = smov %s297
            %s890 = smov %s305
            %v891 = vld [vmem:[%s889] ss:$0 sm:$0xff]
            %s893 = scalar_lea.vmem %s889, 4294967295
            %v894 = vld [vmem:[%s893] sm:$0x1e]
            %v895 = vlaneseq
            %v896 = vshrl.u32 %v895, 7
            %vm897 = vcmp.eq.s32.totalorder %v896, 0
            %v898 = vsel %vm897, %v891, %v894
            %s899 = scalar_lea.vmem %s889, 4
            %v900 = vld [vmem:[%s899] ss:$0 sm:$0xff]
            %901 = vst [vmem:[%s889] sm:$0x1f] %v898
            %v902 = vld [vmem:[%s890] ss:$0 sm:$0xff]
            %s903 = scalar_lea.vmem %s889, 1
            %904 = vst [vmem:[%s903] sm:$0x1] %v902
            %s905 = scalar_lea.vmem %s890, 1
            %v906 = vld [vmem:[%s905] sm:$0xf]
            %v907 = vlaneseq
            %v908 = vshrl.u32 %v907, 7
            %vm909 = vcmp.eq.s32.totalorder %v908, 4
            %v910 = vsel %vm909, %v900, %v906
            %v911 = vld [vmem:[%s890] ss:$0 sm:$0xff]
            %912 = vst [vmem:[%s890] sm:$0x1f] %v910
            %s913 = smov %s301
            %s914 = smov %s309
            %v915 = vld [vmem:[%s913] ss:$0 sm:$0xff]
            %s917 = scalar_lea.vmem %s913, 4294967295
            %v918 = vld [vmem:[%s917] sm:$0x1e]
            %v919 = vlaneseq
            %v920 = vshrl.u32 %v919, 7
            %vm921 = vcmp.eq.s32.totalorder %v920, 0
            %v922 = vsel %vm921, %v915, %v918
            %s923 = scalar_lea.vmem %s913, 4
            %v924 = vld [vmem:[%s923] ss:$0 sm:$0xff]
            %925 = vst [vmem:[%s913] sm:$0x1f] %v922
            %v926 = vld [vmem:[%s914] ss:$0 sm:$0xff]
            %s927 = scalar_lea.vmem %s913, 1
            %928 = vst [vmem:[%s927] sm:$0x1] %v926
            %s929 = scalar_lea.vmem %s914, 1
            %v930 = vld [vmem:[%s929] sm:$0xf]
            %v931 = vlaneseq
            %v932 = vshrl.u32 %v931, 7
            %vm933 = vcmp.eq.s32.totalorder %v932, 4
            %v934 = vsel %vm933, %v924, %v930
            %v935 = vld [vmem:[%s914] ss:$0 sm:$0xff]
            %936 = vst [vmem:[%s914] sm:$0x1f] %v934
          $region168: #{custom-call.2} parent=160 // loop_footer
            %s457 = sadd.s32 1, %s453
          $region169: #{custom-call.2} parent=160 // loop_footer_branch
            %452 = sbr.rel target = $region165
          $region170: #{custom-call.2} parent=160 // loop_exit
            _
          %s937 = sadd.s32 %s355, 1
        $region161: #{custom-call.2} parent=155 // loop_footer
          _
        $region162: #{custom-call.2} parent=155 // loop_footer_branch
          %354 = sbr.rel target = $region158
        $region163: #{custom-call.2} parent=155 // loop_exit
          _
        %s940 = sand.u32 %s17, 7
        %s941 = scalar_lea.vmem [#allocation4], %s940
        %s942 = sand.u32 %s17, 7
        %s943 = scalar_lea.vmem [#allocation6], %s942
        %s944 = smov [#allocation12]
        %s945 = smov %s941
        %v946 = vlaneseq
        %v947 = vand.u32 %v946, 127
        %v948 = vmov %v947
        %v949 = vlaneseq
        %v950 = vshrl.u32 %v949, 7
        %v951 = vmov %v950
        %v952 = vld [vmem:[%s944] sm:$0x1f]
        %vm955 = vcmp.eq.s32.totalorder %v951, %v948
        %v956 = vsel %vm955, %v952, 0.0
        %v957 = vrot.slane %v956, 4
        %v958 = vadd.f32 %v956, %v957
        %v959 = vrot.slane %v958, 2
        %v960 = vadd.f32 %v958, %v959
        %v961 = vrot.slane %v960, 1
        %v962 = vadd.f32 %v960, %v961
        %963 = vst [vmem:[%s945] sm:$0x1] %v962
        %s964 = smov [#allocation15]
        %s965 = smov %s943
        %v966 = vlaneseq
        %v967 = vand.u32 %v966, 127
        %v968 = vmov %v967
        %v969 = vlaneseq
        %v970 = vshrl.u32 %v969, 7
        %v971 = vmov %v970
        %v972 = vld [vmem:[%s964] sm:$0x1f]
        %vm975 = vcmp.eq.s32.totalorder %v971, %v968
        %v976 = vsel %vm975, %v972, 0.0
        %v977 = vrot.slane %v976, 4
        %v978 = vadd.f32 %v976, %v977
        %v979 = vrot.slane %v978, 2
        %v980 = vadd.f32 %v978, %v979
        %v981 = vrot.slane %v980, 1
        %v982 = vadd.f32 %v980, %v981
        %983 = vst [vmem:[%s965] sm:$0x1] %v982
        %s985 = ssub.s32 4, 1
        %v986 = vld [vmem:[#allocation4] sm:%s985]
        %s988 = ssub.s32 4, 1
        %989 = vst [vmem:[%s287] sm:%s988] %v986
        %s991 = ssub.s32 4, 1
        %v992 = vld [vmem:[#allocation6] sm:%s991]
        %s994 = ssub.s32 4, 1
        %995 = vst [vmem:[%s293] sm:%s994] %v992
        %s996 = sand.u32 %s27, 1
        %s997 = sand.u32 %s27, 1
        %s998 = smul.addr %s997, 2
        %s999 = scalar_lea.vmem [#allocation5], %s998
        %s1000 = sand.u32 %s55, 1
        %s1001 = sand.u32 %s55, 1
        %s1002 = smul.addr %s1001, 2
        %s1003 = scalar_lea.vmem [#allocation7], %s1002
        %s1004 = sand.u32 %s17, 1
        %s1005 = sand.u32 %s17, 1
        %s1006 = smul.addr %s1005, 8
        %s1007 = scalar_lea.vmem [#allocation8], %s1006
        %s1008 = sand.u32 %s17, 1
        %s1009 = sand.u32 %s17, 1
        %s1010 = smul.addr %s1009, 8
        %s1011 = scalar_lea.vmem [#allocation9], %s1010
        %s1012 = sand.u32 %s17, 1
        %s1013 = sand.u32 %s17, 1
        %s1014 = smul.addr %s1013, 8
        %s1015 = scalar_lea.vmem [#allocation10], %s1014
        %s1016 = sand.u32 %s17, 1
        %s1017 = sand.u32 %s17, 1
        %s1018 = smul.addr %s1017, 8
        %s1019 = scalar_lea.vmem [#allocation11], %s1018
        // Predicated region
        $region171: #{custom-call.2} parent=155 // pred_check
          %p1020 = pneg %p37
        $region172: #{custom-call.2} parent=155 // pred_check_branch
          %1022 = sbr.rel (%p1020) target = $region174
        $region173: #{custom-call.2} parent=155 // pred_region
          %s1023 = sshrl.u32 %s17, 3
          %s1024 = smul.addr %s1023, 2
          %s1025 = scalar_lea.vmem %s4, %s1024
          // Predicated region
          $region175: #{custom-call.2} parent=173 // pred_check
            _
          $region176: #{custom-call.2} parent=173 // pred_check_branch
            %1027 = sbr.rel (0) target = $region178
          $region177: #{custom-call.2} parent=173 // pred_region
            // Predicated region
            $region179: #{custom-call.2} parent=177 // pred_check
              _
            $region180: #{custom-call.2} parent=177 // pred_check_branch
              %1029 = sbr.rel target = $region182
            $region181: #{custom-call.2} parent=177 // pred_region
              // Predicated region
              $region194: #{custom-call.2} parent=181 // pred_check
                _
              $region195: #{custom-call.2} parent=181 // pred_check_branch
                %1045 = sbr.rel (0) target = $region197
              $region196: #{custom-call.2} parent=181 // pred_region
                %s1047 = ssub.s32 4, 1
                loop: start=0, step=1, limit=1
                $region198: #{custom-call.2} parent=196 // loop_pre_header
                  _
                $region199: #{custom-call.2} parent=196 // loop_header
                  %s1049 = sphi 0, %s1053
                  %p1050 = scmp.ge.s32.totalorder %s1049, 1
                  %s1054 = sphi %s999, %s999
                  %s1055 = sphi %s1025, %s1025
                $region200: #{custom-call.2} parent=196 // loop_header_branch
                  %1052 = sbr.rel (%p1050) target = $region204
                $region201: #{custom-call.2} parent=196 // loop_body
                  %v1056 = vld [vmem:[%s1054] sm:%s1047]
                  %1057 = vst [vmem:[%s1055] sm:%s1047] %v1056
                $region202: #{custom-call.2} parent=196 // loop_footer
                  %s1053 = sadd.s32 1, %s1049
                $region203: #{custom-call.2} parent=196 // loop_footer_branch
                  %1048 = sbr.rel target = $region199
                $region204: #{custom-call.2} parent=196 // loop_exit
                  _
              $region197: #{custom-call.2} parent=181 // pred_fallthru
                _
            $region182: #{custom-call.2} parent=177 // pred_fallthru
              _
            // Predicated region
            $region183: #{custom-call.2} parent=177 // pred_check
              _
            $region184: #{custom-call.2} parent=177 // pred_check_branch
              %1031 = sbr.rel (0) target = $region186
            $region185: #{custom-call.2} parent=177 // pred_region
              %s1033 = ssub.s32 4, 1
              loop: start=0, step=1, limit=1
              $region187: #{custom-call.2} parent=185 // loop_pre_header
                _
              $region188: #{custom-call.2} parent=185 // loop_header
                %s1035 = sphi 0, %s1039
                %p1036 = scmp.ge.s32.totalorder %s1035, 1
                %s1040 = sphi %s999, %s999
                %s1041 = sphi %s1025, %s1025
              $region189: #{custom-call.2} parent=185 // loop_header_branch
                %1038 = sbr.rel (%p1036) target = $region193
              $region190: #{custom-call.2} parent=185 // loop_body
                %v1042 = vld [vmem:[%s1040] sm:%s1033]
                %1043 = vst [vmem:[%s1041] sm:%s1033] %v1042
              $region191: #{custom-call.2} parent=185 // loop_footer
                %s1039 = sadd.s32 1, %s1035
              $region192: #{custom-call.2} parent=185 // loop_footer_branch
                %1034 = sbr.rel target = $region188
              $region193: #{custom-call.2} parent=185 // loop_exit
                _
            $region186: #{custom-call.2} parent=177 // pred_fallthru
              _
          $region178: #{custom-call.2} parent=173 // pred_fallthru
            _
          %1058 = vnop
        $region174: #{custom-call.2} parent=155 // pred_fallthru
          _
        // Predicated region
        $region205: #{custom-call.2} parent=155 // pred_check
          %p1059 = pneg %p65
        $region206: #{custom-call.2} parent=155 // pred_check_branch
          %1061 = sbr.rel (%p1059) target = $region208
        $region207: #{custom-call.2} parent=155 // pred_region
          %s1062 = sshrl.u32 %s17, 3
          %s1063 = smul.addr %s1062, 2
          %s1064 = scalar_lea.vmem %s5, %s1063
          // Predicated region
          $region209: #{custom-call.2} parent=207 // pred_check
            _
          $region210: #{custom-call.2} parent=207 // pred_check_branch
            %1066 = sbr.rel (0) target = $region212
          $region211: #{custom-call.2} parent=207 // pred_region
            // Predicated region
            $region213: #{custom-call.2} parent=211 // pred_check
              _
            $region214: #{custom-call.2} parent=211 // pred_check_branch
              %1068 = sbr.rel target = $region216
            $region215: #{custom-call.2} parent=211 // pred_region
              // Predicated region
              $region228: #{custom-call.2} parent=215 // pred_check
                _
              $region229: #{custom-call.2} parent=215 // pred_check_branch
                %1084 = sbr.rel (0) target = $region231
              $region230: #{custom-call.2} parent=215 // pred_region
                %s1086 = ssub.s32 4, 1
                loop: start=0, step=1, limit=1
                $region232: #{custom-call.2} parent=230 // loop_pre_header
                  _
                $region233: #{custom-call.2} parent=230 // loop_header
                  %s1088 = sphi 0, %s1092
                  %p1089 = scmp.ge.s32.totalorder %s1088, 1
                  %s1093 = sphi %s1003, %s1003
                  %s1094 = sphi %s1064, %s1064
                $region234: #{custom-call.2} parent=230 // loop_header_branch
                  %1091 = sbr.rel (%p1089) target = $region238
                $region235: #{custom-call.2} parent=230 // loop_body
                  %v1095 = vld [vmem:[%s1093] sm:%s1086]
                  %1096 = vst [vmem:[%s1094] sm:%s1086] %v1095
                $region236: #{custom-call.2} parent=230 // loop_footer
                  %s1092 = sadd.s32 1, %s1088
                $region237: #{custom-call.2} parent=230 // loop_footer_branch
                  %1087 = sbr.rel target = $region233
                $region238: #{custom-call.2} parent=230 // loop_exit
                  _
              $region231: #{custom-call.2} parent=215 // pred_fallthru
                _
            $region216: #{custom-call.2} parent=211 // pred_fallthru
              _
            // Predicated region
            $region217: #{custom-call.2} parent=211 // pred_check
              _
            $region218: #{custom-call.2} parent=211 // pred_check_branch
              %1070 = sbr.rel (0) target = $region220
            $region219: #{custom-call.2} parent=211 // pred_region
              %s1072 = ssub.s32 4, 1
              loop: start=0, step=1, limit=1
              $region221: #{custom-call.2} parent=219 // loop_pre_header
                _
              $region222: #{custom-call.2} parent=219 // loop_header
                %s1074 = sphi 0, %s1078
                %p1075 = scmp.ge.s32.totalorder %s1074, 1
                %s1079 = sphi %s1003, %s1003
                %s1080 = sphi %s1064, %s1064
              $region223: #{custom-call.2} parent=219 // loop_header_branch
                %1077 = sbr.rel (%p1075) target = $region227
              $region224: #{custom-call.2} parent=219 // loop_body
                %v1081 = vld [vmem:[%s1079] sm:%s1072]
                %1082 = vst [vmem:[%s1080] sm:%s1072] %v1081
              $region225: #{custom-call.2} parent=219 // loop_footer
                %s1078 = sadd.s32 1, %s1074
              $region226: #{custom-call.2} parent=219 // loop_footer_branch
                %1073 = sbr.rel target = $region222
              $region227: #{custom-call.2} parent=219 // loop_exit
                _
            $region220: #{custom-call.2} parent=211 // pred_fallthru
              _
          $region212: #{custom-call.2} parent=207 // pred_fallthru
            _
          %1097 = vnop
        $region208: #{custom-call.2} parent=155 // pred_fallthru
          _
        %s1098 = smul.addr %s17, 8
        %s1099 = scalar_lea.vmem %s6, %s1098
        // Predicated region
        $region239: #{custom-call.2} parent=155 // pred_check
          _
        $region240: #{custom-call.2} parent=155 // pred_check_branch
          %1101 = sbr.rel (0) target = $region242
        $region241: #{custom-call.2} parent=155 // pred_region
          // Predicated region
          $region243: #{custom-call.2} parent=241 // pred_check
            _
          $region244: #{custom-call.2} parent=241 // pred_check_branch
            %1103 = sbr.rel (0) target = $region246
          $region245: #{custom-call.2} parent=241 // pred_region
            // Predicated region
            $region258: #{custom-call.2} parent=245 // pred_check
              _
            $region259: #{custom-call.2} parent=245 // pred_check_branch
              %1119 = sbr.rel (0) target = $region261
            $region260: #{custom-call.2} parent=245 // pred_region
              loop: start=0, step=1, limit=1
              $region262: #{custom-call.2} parent=260 // loop_pre_header
                _
              $region263: #{custom-call.2} parent=260 // loop_header
                %s1121 = sphi 0, %s1125
                %p1122 = scmp.ge.s32.totalorder %s1121, 1
                %s1126 = sphi %s1007, %s1007
                %s1127 = sphi %s1099, %s1099
              $region264: #{custom-call.2} parent=260 // loop_header_branch
                %1124 = sbr.rel (%p1122) target = $region268
              $region265: #{custom-call.2} parent=260 // loop_body
                %v1128 = vld [vmem:[%s1126] sm:$0xff]
                %1129 = vst [vmem:[%s1127] sm:$0xff] %v1128
              $region266: #{custom-call.2} parent=260 // loop_footer
                %s1125 = sadd.s32 1, %s1121
              $region267: #{custom-call.2} parent=260 // loop_footer_branch
                %1120 = sbr.rel target = $region263
              $region268: #{custom-call.2} parent=260 // loop_exit
                _
            $region261: #{custom-call.2} parent=245 // pred_fallthru
              _
            // Predicated region
            $region269: #{custom-call.2} parent=245 // pred_check
              _
            $region270: #{custom-call.2} parent=245 // pred_check_branch
              %1131 = sbr.rel target = $region272
            $region271: #{custom-call.2} parent=245 // pred_region
              _
            $region272: #{custom-call.2} parent=245 // pred_fallthru
              _
          $region246: #{custom-call.2} parent=241 // pred_fallthru
            _
          // Predicated region
          $region247: #{custom-call.2} parent=241 // pred_check
            _
          $region248: #{custom-call.2} parent=241 // pred_check_branch
            %1105 = sbr.rel target = $region250
          $region249: #{custom-call.2} parent=241 // pred_region
            %s1107 = ssub.s32 256, 1
            loop: start=0, step=1, limit=1
            $region251: #{custom-call.2} parent=249 // loop_pre_header
              _
            $region252: #{custom-call.2} parent=249 // loop_header
              %s1109 = sphi 0, %s1113
              %p1110 = scmp.ge.s32.totalorder %s1109, 1
              %s1114 = sphi %s1007, %s1007
              %s1115 = sphi %s1099, %s1099
            $region253: #{custom-call.2} parent=249 // loop_header_branch
              %1112 = sbr.rel (%p1110) target = $region257
            $region254: #{custom-call.2} parent=249 // loop_body
              %v1116 = vld [vmem:[%s1114] sm:%s1107]
              %1117 = vst [vmem:[%s1115] sm:%s1107] %v1116
            $region255: #{custom-call.2} parent=249 // loop_footer
              %s1113 = sadd.s32 1, %s1109
            $region256: #{custom-call.2} parent=249 // loop_footer_branch
              %1108 = sbr.rel target = $region252
            $region257: #{custom-call.2} parent=249 // loop_exit
              _
          $region250: #{custom-call.2} parent=241 // pred_fallthru
            _
        $region242: #{custom-call.2} parent=155 // pred_fallthru
          _
        %1132 = vnop
        %s1133 = smul.addr %s17, 8
        %s1134 = scalar_lea.vmem %s7, %s1133
        // Predicated region
        $region273: #{custom-call.2} parent=155 // pred_check
          _
        $region274: #{custom-call.2} parent=155 // pred_check_branch
          %1136 = sbr.rel (0) target = $region276
        $region275: #{custom-call.2} parent=155 // pred_region
          // Predicated region
          $region277: #{custom-call.2} parent=275 // pred_check
            _
          $region278: #{custom-call.2} parent=275 // pred_check_branch
            %1138 = sbr.rel (0) target = $region280
          $region279: #{custom-call.2} parent=275 // pred_region
            // Predicated region
            $region292: #{custom-call.2} parent=279 // pred_check
              _
            $region293: #{custom-call.2} parent=279 // pred_check_branch
              %1154 = sbr.rel (0) target = $region295
            $region294: #{custom-call.2} parent=279 // pred_region
              loop: start=0, step=1, limit=1
              $region296: #{custom-call.2} parent=294 // loop_pre_header
                _
              $region297: #{custom-call.2} parent=294 // loop_header
                %s1156 = sphi 0, %s1160
                %p1157 = scmp.ge.s32.totalorder %s1156, 1
                %s1161 = sphi %s1011, %s1011
                %s1162 = sphi %s1134, %s1134
              $region298: #{custom-call.2} parent=294 // loop_header_branch
                %1159 = sbr.rel (%p1157) target = $region302
              $region299: #{custom-call.2} parent=294 // loop_body
                %v1163 = vld [vmem:[%s1161] sm:$0xff]
                %1164 = vst [vmem:[%s1162] sm:$0xff] %v1163
              $region300: #{custom-call.2} parent=294 // loop_footer
                %s1160 = sadd.s32 1, %s1156
              $region301: #{custom-call.2} parent=294 // loop_footer_branch
                %1155 = sbr.rel target = $region297
              $region302: #{custom-call.2} parent=294 // loop_exit
                _
            $region295: #{custom-call.2} parent=279 // pred_fallthru
              _
            // Predicated region
            $region303: #{custom-call.2} parent=279 // pred_check
              _
            $region304: #{custom-call.2} parent=279 // pred_check_branch
              %1166 = sbr.rel target = $region306
            $region305: #{custom-call.2} parent=279 // pred_region
              _
            $region306: #{custom-call.2} parent=279 // pred_fallthru
              _
          $region280: #{custom-call.2} parent=275 // pred_fallthru
            _
          // Predicated region
          $region281: #{custom-call.2} parent=275 // pred_check
            _
          $region282: #{custom-call.2} parent=275 // pred_check_branch
            %1140 = sbr.rel target = $region284
          $region283: #{custom-call.2} parent=275 // pred_region
            %s1142 = ssub.s32 256, 1
            loop: start=0, step=1, limit=1
            $region285: #{custom-call.2} parent=283 // loop_pre_header
              _
            $region286: #{custom-call.2} parent=283 // loop_header
              %s1144 = sphi 0, %s1148
              %p1145 = scmp.ge.s32.totalorder %s1144, 1
              %s1149 = sphi %s1011, %s1011
              %s1150 = sphi %s1134, %s1134
            $region287: #{custom-call.2} parent=283 // loop_header_branch
              %1147 = sbr.rel (%p1145) target = $region291
            $region288: #{custom-call.2} parent=283 // loop_body
              %v1151 = vld [vmem:[%s1149] sm:%s1142]
              %1152 = vst [vmem:[%s1150] sm:%s1142] %v1151
            $region289: #{custom-call.2} parent=283 // loop_footer
              %s1148 = sadd.s32 1, %s1144
            $region290: #{custom-call.2} parent=283 // loop_footer_branch
              %1143 = sbr.rel target = $region286
            $region291: #{custom-call.2} parent=283 // loop_exit
              _
          $region284: #{custom-call.2} parent=275 // pred_fallthru
            _
        $region276: #{custom-call.2} parent=155 // pred_fallthru
          _
        %1167 = vnop
        %s1168 = smul.addr %s17, 8
        %s1169 = scalar_lea.vmem %s8, %s1168
        // Predicated region
        $region307: #{custom-call.2} parent=155 // pred_check
          _
        $region308: #{custom-call.2} parent=155 // pred_check_branch
          %1171 = sbr.rel (0) target = $region310
        $region309: #{custom-call.2} parent=155 // pred_region
          // Predicated region
          $region311: #{custom-call.2} parent=309 // pred_check
            _
          $region312: #{custom-call.2} parent=309 // pred_check_branch
            %1173 = sbr.rel (0) target = $region314
          $region313: #{custom-call.2} parent=309 // pred_region
            // Predicated region
            $region326: #{custom-call.2} parent=313 // pred_check
              _
            $region327: #{custom-call.2} parent=313 // pred_check_branch
              %1189 = sbr.rel (0) target = $region329
            $region328: #{custom-call.2} parent=313 // pred_region
              loop: start=0, step=1, limit=1
              $region330: #{custom-call.2} parent=328 // loop_pre_header
                _
              $region331: #{custom-call.2} parent=328 // loop_header
                %s1191 = sphi 0, %s1195
                %p1192 = scmp.ge.s32.totalorder %s1191, 1
                %s1196 = sphi %s1015, %s1015
                %s1197 = sphi %s1169, %s1169
              $region332: #{custom-call.2} parent=328 // loop_header_branch
                %1194 = sbr.rel (%p1192) target = $region336
              $region333: #{custom-call.2} parent=328 // loop_body
                %v1198 = vld [vmem:[%s1196] sm:$0xff]
                %1199 = vst [vmem:[%s1197] sm:$0xff] %v1198
              $region334: #{custom-call.2} parent=328 // loop_footer
                %s1195 = sadd.s32 1, %s1191
              $region335: #{custom-call.2} parent=328 // loop_footer_branch
                %1190 = sbr.rel target = $region331
              $region336: #{custom-call.2} parent=328 // loop_exit
                _
            $region329: #{custom-call.2} parent=313 // pred_fallthru
              _
            // Predicated region
            $region337: #{custom-call.2} parent=313 // pred_check
              _
            $region338: #{custom-call.2} parent=313 // pred_check_branch
              %1201 = sbr.rel target = $region340
            $region339: #{custom-call.2} parent=313 // pred_region
              _
            $region340: #{custom-call.2} parent=313 // pred_fallthru
              _
          $region314: #{custom-call.2} parent=309 // pred_fallthru
            _
          // Predicated region
          $region315: #{custom-call.2} parent=309 // pred_check
            _
          $region316: #{custom-call.2} parent=309 // pred_check_branch
            %1175 = sbr.rel target = $region318
          $region317: #{custom-call.2} parent=309 // pred_region
            %s1177 = ssub.s32 256, 1
            loop: start=0, step=1, limit=1
            $region319: #{custom-call.2} parent=317 // loop_pre_header
              _
            $region320: #{custom-call.2} parent=317 // loop_header
              %s1179 = sphi 0, %s1183
              %p1180 = scmp.ge.s32.totalorder %s1179, 1
              %s1184 = sphi %s1015, %s1015
              %s1185 = sphi %s1169, %s1169
            $region321: #{custom-call.2} parent=317 // loop_header_branch
              %1182 = sbr.rel (%p1180) target = $region325
            $region322: #{custom-call.2} parent=317 // loop_body
              %v1186 = vld [vmem:[%s1184] sm:%s1177]
              %1187 = vst [vmem:[%s1185] sm:%s1177] %v1186
            $region323: #{custom-call.2} parent=317 // loop_footer
              %s1183 = sadd.s32 1, %s1179
            $region324: #{custom-call.2} parent=317 // loop_footer_branch
              %1178 = sbr.rel target = $region320
            $region325: #{custom-call.2} parent=317 // loop_exit
              _
          $region318: #{custom-call.2} parent=309 // pred_fallthru
            _
        $region310: #{custom-call.2} parent=155 // pred_fallthru
          _
        %1202 = vnop
        %s1203 = smul.addr %s17, 8
        %s1204 = scalar_lea.vmem %s9, %s1203
        // Predicated region
        $region341: #{custom-call.2} parent=155 // pred_check
          _
        $region342: #{custom-call.2} parent=155 // pred_check_branch
          %1206 = sbr.rel (0) target = $region344
        $region343: #{custom-call.2} parent=155 // pred_region
          // Predicated region
          $region345: #{custom-call.2} parent=343 // pred_check
            _
          $region346: #{custom-call.2} parent=343 // pred_check_branch
            %1208 = sbr.rel (0) target = $region348
          $region347: #{custom-call.2} parent=343 // pred_region
            // Predicated region
            $region360: #{custom-call.2} parent=347 // pred_check
              _
            $region361: #{custom-call.2} parent=347 // pred_check_branch
              %1224 = sbr.rel (0) target = $region363
            $region362: #{custom-call.2} parent=347 // pred_region
              loop: start=0, step=1, limit=1
              $region364: #{custom-call.2} parent=362 // loop_pre_header
                _
              $region365: #{custom-call.2} parent=362 // loop_header
                %s1226 = sphi 0, %s1230
                %p1227 = scmp.ge.s32.totalorder %s1226, 1
                %s1231 = sphi %s1019, %s1019
                %s1232 = sphi %s1204, %s1204
              $region366: #{custom-call.2} parent=362 // loop_header_branch
                %1229 = sbr.rel (%p1227) target = $region370
              $region367: #{custom-call.2} parent=362 // loop_body
                %v1233 = vld [vmem:[%s1231] sm:$0xff]
                %1234 = vst [vmem:[%s1232] sm:$0xff] %v1233
              $region368: #{custom-call.2} parent=362 // loop_footer
                %s1230 = sadd.s32 1, %s1226
              $region369: #{custom-call.2} parent=362 // loop_footer_branch
                %1225 = sbr.rel target = $region365
              $region370: #{custom-call.2} parent=362 // loop_exit
                _
            $region363: #{custom-call.2} parent=347 // pred_fallthru
              _
            // Predicated region
            $region371: #{custom-call.2} parent=347 // pred_check
              _
            $region372: #{custom-call.2} parent=347 // pred_check_branch
              %1236 = sbr.rel target = $region374
            $region373: #{custom-call.2} parent=347 // pred_region
              _
            $region374: #{custom-call.2} parent=347 // pred_fallthru
              _
          $region348: #{custom-call.2} parent=343 // pred_fallthru
            _
          // Predicated region
          $region349: #{custom-call.2} parent=343 // pred_check
            _
          $region350: #{custom-call.2} parent=343 // pred_check_branch
            %1210 = sbr.rel target = $region352
          $region351: #{custom-call.2} parent=343 // pred_region
            %s1212 = ssub.s32 256, 1
            loop: start=0, step=1, limit=1
            $region353: #{custom-call.2} parent=351 // loop_pre_header
              _
            $region354: #{custom-call.2} parent=351 // loop_header
              %s1214 = sphi 0, %s1218
              %p1215 = scmp.ge.s32.totalorder %s1214, 1
              %s1219 = sphi %s1019, %s1019
              %s1220 = sphi %s1204, %s1204
            $region355: #{custom-call.2} parent=351 // loop_header_branch
              %1217 = sbr.rel (%p1215) target = $region359
            $region356: #{custom-call.2} parent=351 // loop_body
              %v1221 = vld [vmem:[%s1219] sm:%s1212]
              %1222 = vst [vmem:[%s1220] sm:%s1212] %v1221
            $region357: #{custom-call.2} parent=351 // loop_footer
              %s1218 = sadd.s32 1, %s1214
            $region358: #{custom-call.2} parent=351 // loop_footer_branch
              %1213 = sbr.rel target = $region354
            $region359: #{custom-call.2} parent=351 // loop_exit
              _
          $region352: #{custom-call.2} parent=343 // pred_fallthru
            _
        $region344: #{custom-call.2} parent=155 // pred_fallthru
          _
        %1237 = vnop
      $region156: #{custom-call.2} parent=5 // pred_fallthru
        _
      %p1238 = scmp.le.s32.totalorder 2, %s12
      // Predicated region
      $region375: #{custom-call.2} parent=5 // pred_check
        %p1239 = pneg %p1238
      $region376: #{custom-call.2} parent=5 // pred_check_branch
        %1241 = sbr.rel (%p1239) target = $region378
      $region377: #{custom-call.2} parent=5 // pred_region
        %s1242 = ssub.s32 %s12, 2
        // Predicated region
        $region379: #{custom-call.2} parent=377 // pred_check
          %p1243 = pneg %p43
        $region380: #{custom-call.2} parent=377 // pred_check_branch
          %1245 = sbr.rel (%p1243) target = $region382
        $region381: #{custom-call.2} parent=377 // pred_region
          %s1246 = sand.u32 %s28, 1
          %s1247 = sand.u32 %s28, 1
          %s1248 = smul.addr %s1247, 2
          %s1249 = scalar_lea.vmem [#allocation5], %s1248
        $region382: #{custom-call.2} parent=377 // pred_fallthru
          _
        // Predicated region
        $region383: #{custom-call.2} parent=377 // pred_check
          %p1250 = pneg %p71
        $region384: #{custom-call.2} parent=377 // pred_check_branch
          %1252 = sbr.rel (%p1250) target = $region386
        $region385: #{custom-call.2} parent=377 // pred_region
          %s1253 = sand.u32 %s56, 1
          %s1254 = sand.u32 %s56, 1
          %s1255 = smul.addr %s1254, 2
          %s1256 = scalar_lea.vmem [#allocation7], %s1255
        $region386: #{custom-call.2} parent=377 // pred_fallthru
          _
        %s1257 = sand.u32 %s18, 1
        %s1258 = sand.u32 %s18, 1
        %s1259 = smul.addr %s1258, 8
        %s1260 = scalar_lea.vmem [#allocation8], %s1259
        %s1261 = sand.u32 %s18, 1
        %s1262 = sand.u32 %s18, 1
        %s1263 = smul.addr %s1262, 8
        %s1264 = scalar_lea.vmem [#allocation9], %s1263
        %s1265 = sand.u32 %s18, 1
        %s1266 = sand.u32 %s18, 1
        %s1267 = smul.addr %s1266, 8
        %s1268 = scalar_lea.vmem [#allocation10], %s1267
        %s1269 = sand.u32 %s18, 1
        %s1270 = sand.u32 %s18, 1
        %s1271 = smul.addr %s1270, 8
        %s1272 = scalar_lea.vmem [#allocation11], %s1271
      $region378: #{custom-call.2} parent=5 // pred_fallthru
        _
    $region6: #{custom-call.2} parent=1 // loop_footer
      %s16 = sadd.s32 1, %s12
    $region7: #{custom-call.2} parent=1 // loop_footer_branch
      %11 = sbr.rel target = $region3
    $region8: #{custom-call.2} parent=1 // loop_exit
      _

</llo_original>
